<compile_context>
chip_gen: v7x
topology: tpu7x:2x2x1
jax: 0.10.0
libtpu: 0.0.40
codegen_flags: <defaults>
</compile_context>

<pallas_src>
import functools

import jax
import jax.numpy as jnp
import numpy as np
from jax.experimental import pallas as pl
from jax.experimental.pallas import tpu as pltpu


def _cparams(sem):
    return pltpu.CompilerParams(dimension_semantics=sem,
                                vmem_limit_bytes=32 * 1024 * 1024)


def _full_spec(shape):
    nd = len(shape)
    return pl.BlockSpec(shape, lambda *_, _nd=nd: (0,) * _nd)


# --------------------------------- kernels -----------------------------------
def _stem_kernel(cols_ref, w_ref, b_ref, o_ref, *, kk):
    # cols_ref: (kk, kk*Cin, blk) -- leading axis = pool-window position.
    # conv is one small GEMM per pool position; pool = running max in regs.
    w = w_ref[...]
    acc = jnp.dot(w, cols_ref[0], preferred_element_type=jnp.float32)
    for t in range(1, kk):
        acc = jnp.maximum(
            acc, jnp.dot(w, cols_ref[t], preferred_element_type=jnp.float32))
    o_ref[...] = acc + b_ref[...]          # bias commutes with the max


def _block_compute(xw, w1, w2, s1, t1, s2, t2, mask_h, cols1_ref, cols2_ref,
                   *, C, NP, MAR, Wp, k):
    """Fused residual block on a channel-first, flat zero-padded pixel grid.

    xw:      (C, NP + 6*MAR)  padded image(s) + shift margins (zeros outside)
    mask_h:  (1, NP + 4*MAR)  1.0 at real (interior) pixels, 0.0 elsewhere
    returns  (C, NP) per-pixel kxk window max of [bn2(conv2(.)), x] halves;
             the caller does the stride-k subsample (pure data movement).
    """
    p = k // 2
    W_h = NP + 4 * MAR
    W_m = NP + 2 * MAR
    shifts = [dh * Wp + dw for dh in range(-p, p + 1) for dw in range(-p, p + 1)]

    # conv1 + bn1 + relu : in-VMEM im2col (lane-shifted slices), ONE K=kk*C GEMM
    for t, d in enumerate(shifts):
        cols1_ref[t * C:(t + 1) * C, :] = xw[:, MAR + d: MAR + d + W_h]
    h1 = jnp.dot(w1, cols1_ref[...], preferred_element_type=jnp.float32)
    h1 = jnp.maximum(h1 * s1 + t1, 0.0) * mask_h        # halos -> conv zero pad

    # conv2 + bn2 : same, taps of the VMEM-resident h1
    for t, d in enumerate(shifts):
        cols2_ref[t * C:(t + 1) * C, :] = h1[:, MAR + d: MAR + d + W_m]
    y2 = jnp.dot(w2, cols2_ref[...], preferred_element_type=jnp.float32) * s2 + t2

    # merge = cat([bn2(conv2), x]); relu; zero halos (== -inf pool pad post-relu)
    mask_m = mask_h[:, MAR:MAR + W_m]
    m1 = jnp.maximum(y2, 0.0) * mask_m
    m2 = jnp.maximum(xw[:, 2 * MAR: 2 * MAR + W_m], 0.0)   # halos already zero

    # per-pixel kxk window max (running max, no extra zeros/broadcasts)
    d0 = shifts[0]
    wm1 = m1[:, MAR + d0: MAR + d0 + NP]
    wm2 = m2[:, MAR + d0: MAR + d0 + NP]
    for d in shifts[1:]:
        wm1 = jnp.maximum(wm1, m1[:, MAR + d: MAR + d + NP])
        wm2 = jnp.maximum(wm2, m2[:, MAR + d: MAR + d + NP])
    return wm1, wm2


def _block_kernel(x_ref, w1_ref, w2_ref, s1_ref, t1_ref, s2_ref, t2_ref, m_ref,
                  o_ref, cols1_ref, cols2_ref, *, C, NP, MAR, Wp, k):
    wm1, wm2 = _block_compute(
        x_ref[...], w1_ref[...], w2_ref[...], s1_ref[...], t1_ref[...],
        s2_ref[...], t2_ref[...], m_ref[...], cols1_ref, cols2_ref,
        C=C, NP=NP, MAR=MAR, Wp=Wp, k=k)
    o_ref[0:C, :] = wm1              # full-lane-width stores (channel sublanes)
    o_ref[C:2 * C, :] = wm2


def _tail_kernel(x3_ref,
                 w1a_ref, w2a_ref, s1a_ref, t1a_ref, s2a_ref, t2a_ref, ma_ref,
                 w1b_ref, w2b_ref, s1b_ref, t1b_ref, s2b_ref, t2b_ref, mb_ref,
                 sel34_ref, sel4f_ref,
                 fc1a_ref, fc1b_ref, fc1bias_ref, fc2w_ref, fc2bias_ref,
                 fc3w_ref, fc3bias_ref,
                 o_ref,
                 cols3a_ref, cols3b_ref, cols4a_ref, cols4b_ref, x4_ref,
                 *, C3, NP3, MAR3, Wp3, C4, NP4, MAR4, Wp4, k):
    """Fused tail: res3 -> res4 -> fc1+relu+fc2+relu+fc3, all in VMEM."""
    wm1_3, wm2_3 = _block_compute(
        x3_ref[...], w1a_ref[...], w2a_ref[...], s1a_ref[...], t1a_ref[...],
        s2a_ref[...], t2a_ref[...], ma_ref[...], cols3a_ref, cols3b_ref,
        C=C3, NP=NP3, MAR=MAR3, Wp=Wp3, k=k)
    # stride-k pool subsample + re-pad to res4's layout == constant 0/1 matmul
    sel34 = sel34_ref[...]
    x4_ref[0:C3, :] = jnp.dot(wm1_3, sel34, preferred_element_type=jnp.float32)
    x4_ref[C3:2 * C3, :] = jnp.dot(wm2_3, sel34,
                                   preferred_element_type=jnp.float32)
    wm1_4, wm2_4 = _block_compute(
        x4_ref[...], w1b_ref[...], w2b_ref[...], s1b_ref[...], t1b_ref[...],
        s2b_ref[...], t2b_ref[...], mb_ref[...], cols4a_ref, cols4b_ref,
        C=C4, NP=NP4, MAR=MAR4, Wp=Wp4, k=k)
    # flatten (1x1 spatial): pick each image's pooled pixel -> (C4, B) halves
    sel4f = sel4f_ref[...]
    f_top = jnp.dot(wm1_4, sel4f, preferred_element_type=jnp.float32)
    f_bot = jnp.dot(wm2_4, sel4f, preferred_element_type=jnp.float32)
    # fc head (transposed orientation, features on sublanes, batch on lanes);
    # fc1 weight pre-split along its input to match [conv2-path | x] halves.
    h = (jnp.dot(fc1a_ref[...], f_top, preferred_element_type=jnp.float32)
         + jnp.dot(fc1b_ref[...], f_bot, preferred_element_type=jnp.float32)
         + fc1bias_ref[...])
    h = jnp.maximum(h, 0.0)
    h = jnp.maximum(jnp.dot(fc2w_ref[...], h, preferred_element_type=jnp.float32)
                    + fc2bias_ref[...], 0.0)
    o_ref[...] = (jnp.dot(fc3w_ref[...], h, preferred_element_type=jnp.float32)
                  + fc3bias_ref[...])


# ------------------------------ glue (data movement) --------------------------
def _interior_mask(B, H, W, p, MAR):
    """(1, B*Hp*Wp + 4*MAR) f32 mask: 1 at real pixels, 0 at halos/margins."""
    Hp, Wp = H + 2 * p, W + 2 * p
    m = np.zeros((B, Hp, Wp), np.float32)
    m[:, p:p + H, p:p + W] = 1.0
    out = np.zeros((1, B * Hp * Wp + 4 * MAR), np.float32)
    out[0, 2 * MAR:2 * MAR + B * Hp * Wp] = m.reshape(-1)
    return jnp.asarray(out)


def _repack_matrix(B, H_in, W_in, p, k, H_out, W_out, MAR_out):
    """0/1 matrix mapping per-pixel window max (padded grid of the previous
    block) to the next block's padded+margined input layout (stride-k pool
    subsample + zero re-pad, fused onto the MXU)."""
    Hp_i, Wp_i = H_in + 2 * p, W_in + 2 * p
    Hp_o, Wp_o = H_out + 2 * p, W_out + 2 * p
    S = np.zeros((B * Hp_i * Wp_i, B * Hp_o * Wp_o + 6 * MAR_out), np.float32)
    for b in range(B):
        for ho in range(H_out):
            for wo in range(W_out):
                src = b * Hp_i * Wp_i + (k * ho + p) * Wp_i + (k * wo + p)
                dst = (3 * MAR_out + b * Hp_o * Wp_o
                       + (ho + p) * Wp_o + (wo + p))
                S[src, dst] = 1.0
    return jnp.asarray(S)


def _flatten_matrix(B, H_in, W_in, p, k):
    """0/1 matrix picking each image's single (1x1) pooled pixel -> (.., B)."""
    Hp_i, Wp_i = H_in + 2 * p, W_in + 2 * p
    S = np.zeros((B * Hp_i * Wp_i, B), np.float32)
    for b in range(B):
        S[b * Hp_i * Wp_i + p * Wp_i + p, b] = 1.0
    return jnp.asarray(S)


def _pack_per_image(y_bchw, p, MAR):
    """(B,C,H,W) -> (B, C, Hp*Wp + 6*MAR): per-image padded flat grid."""
    B, C, H, W = y_bchw.shape
    yp = jnp.pad(y_bchw, ((0, 0), (0, 0), (p, p), (p, p)))
    flat = yp.reshape(B, C, (H + 2 * p) * (W + 2 * p))
    return jnp.pad(flat, ((0, 0), (0, 0), (3 * MAR, 3 * MAR)))


def _pack_batched(y_bchw, p, MAR):
    """(B,C,H,W) -> (C, B*Hp*Wp + 6*MAR): batched padded flat grid."""
    B, C, H, W = y_bchw.shape
    yp = jnp.pad(y_bchw, ((0, 0), (0, 0), (p, p), (p, p)))
    flat = jnp.transpose(yp, (1, 0, 2, 3)).reshape(
        C, B * (H + 2 * p) * (W + 2 * p))
    return jnp.pad(flat, ((0, 0), (3 * MAR, 3 * MAR)))


# --------------------------------- wrappers -----------------------------------
def stem_forward(x_nchw, w_cf, b_col, *, kernel):
    """conv1 (3->C1, stride 1, pad k//2) + MaxPool2d(k, k) in one kernel."""
    B, Cin, H, W = x_nchw.shape
    k = kernel
    p = k // 2
    kk = k * k
    C1 = w_cf.shape[0]
    Ho = (H - k) // k + 1
    Wo = (W - k) // k + 1
    npool = B * Ho * Wo
    xcf = jnp.transpose(x_nchw, (1, 0, 2, 3))
    xp = jnp.pad(xcf, ((0, 0), (0, 0), (p, p), (p, p)))
    taps = []
    for ph in range(k):
        for pw in range(k):
            rows = []
            for kh in range(k):
                for kw in range(k):
                    sl = xp[:, :, ph + kh: ph + kh + k * (Ho - 1) + 1: k,
                            pw + kw: pw + kw + k * (Wo - 1) + 1: k]
                    rows.append(sl.reshape(Cin, npool))
            taps.append(jnp.concatenate(rows, axis=0))     # (kk*Cin, npool)
    cols = jnp.stack(taps, axis=0)                         # (kk, kk*Cin, npool)

    blk = 256 if npool % 256 == 0 else npool               # lane-dense blocks
    out = pl.pallas_call(
        functools.partial(_stem_kernel, kk=kk),
        out_shape=jax.ShapeDtypeStruct((C1, npool), jnp.float32),
        grid=(npool // blk,),
        in_specs=[pl.BlockSpec((kk, kk * Cin, blk), lambda g: (0, 0, g)),
                  pl.BlockSpec((C1, kk * Cin), lambda g: (0, 0)),
                  pl.BlockSpec((C1, 1), lambda g: (0, 0))],
        out_specs=pl.BlockSpec((C1, blk), lambda g: (0, g)),
        compiler_params=_cparams(("parallel",)),
    )(cols, w_cf, b_col)
    return jnp.transpose(out.reshape(C1, B, Ho, Wo), (1, 0, 2, 3))   # NCHW


def residual_block(y_bchw, prm, *, kernel):
    """One fused kernel per block, per-image ("parallel") grid over batch."""
    B, C, H, W = y_bchw.shape
    k = kernel
    p = k // 2
    kk = k * k
    Hp, Wp = H + 2 * p, W + 2 * p
    NP = Hp * Wp
    MAR = p * (Wp + 1)
    WX = NP + 6 * MAR
    Wh = NP + 4 * MAR
    Wm = NP + 2 * MAR
    xw = _pack_per_image(y_bchw, p, MAR)                   # (B, C, WX)
    mask = _interior_mask(1, H, W, p, MAR)                 # (1, Wh)

    full = pl.pallas_call(
        functools.partial(_block_kernel, C=C, NP=NP, MAR=MAR, Wp=Wp, k=k),
        out_shape=jax.ShapeDtypeStruct((B, 2 * C, NP), jnp.float32),
        grid=(B,),
        in_specs=[pl.BlockSpec((None, C, WX), lambda b: (b, 0, 0)),
                  pl.BlockSpec(prm["w1"].shape, lambda b: (0, 0)),
                  pl.BlockSpec(prm["w2"].shape, lambda b: (0, 0)),
                  pl.BlockSpec((C, 1), lambda b: (0, 0)),
                  pl.BlockSpec((C, 1), lambda b: (0, 0)),
                  pl.BlockSpec((C, 1), lambda b: (0, 0)),
                  pl.BlockSpec((C, 1), lambda b: (0, 0)),
                  pl.BlockSpec((1, Wh), lambda b: (0, 0))],
        out_specs=pl.BlockSpec((None, 2 * C, NP), lambda b: (b, 0, 0)),
        scratch_shapes=[pltpu.VMEM((kk * C, Wh), jnp.float32),
                        pltpu.VMEM((kk * C, Wm), jnp.float32)],
        compiler_params=_cparams(("parallel",)),
    )(xw, prm["w1"], prm["w2"], prm["s1"], prm["t1"], prm["s2"], prm["t2"],
      mask)

    # stride-k subsample of the per-pixel window max == MaxPool2d(k, k, k//2)
    Ho = (H + 2 * p - k) // k + 1
    Wo = (W + 2 * p - k) // k + 1
    img = full.reshape(B, 2 * C, Hp, Wp)
    return img[:, :, p:p + k * (Ho - 1) + 1:k, p:p + k * (Wo - 1) + 1:k]


def tail_forward(y_bchw, params, *, kernel):
    """res3 + res4 + fc head fused into one kernel."""
    B, C3, H, W = y_bchw.shape
    k = kernel
    p = k // 2
    kk = k * k
    # res3 geometry (batched flat grid)
    Hp3, Wp3 = H + 2 * p, W + 2 * p
    NP3 = B * Hp3 * Wp3
    MAR3 = p * (Wp3 + 1)
    Wh3, Wm3 = NP3 + 4 * MAR3, NP3 + 2 * MAR3
    Ho3 = (H + 2 * p - k) // k + 1
    Wo3 = (W + 2 * p - k) // k + 1
    # res4 geometry
    C4 = 2 * C3
    H4, W4 = Ho3, Wo3
    Hp4, Wp4 = H4 + 2 * p, W4 + 2 * p
    NP4 = B * Hp4 * Wp4
    MAR4 = p * (Wp4 + 1)
    WX4 = NP4 + 6 * MAR4
    Wh4, Wm4 = NP4 + 4 * MAR4, NP4 + 2 * MAR4
    Ho4 = (H4 + 2 * p - k) // k + 1
    Wo4 = (W4 + 2 * p - k) // k + 1
    assert Ho4 == 1 and Wo4 == 1, "fc head expects a 1x1 final spatial map"

    x3w = _pack_batched(y_bchw, p, MAR3)                   # (C3, NP3+6*MAR3)
    m3 = _interior_mask(B, H, W, p, MAR3)
    m4 = _interior_mask(B, H4, W4, p, MAR4)
    sel34 = _repack_matrix(B, H, W, p, k, H4, W4, MAR4)    # (NP3, WX4)
    sel4f = _flatten_matrix(B, H4, W4, p, k)               # (NP4, B)

    r3, r4 = params["res3"], params["res4"]
    fc1a = params["fc1_w"][:, 0:C4]                        # conv2-path features
    fc1b = params["fc1_w"][:, C4:2 * C4]                   # identity-path (x)
    nclass = params["fc3_w"].shape[0]

    args = (x3w,
            r3["w1"], r3["w2"], r3["s1"], r3["t1"], r3["s2"], r3["t2"], m3,
            r4["w1"], r4["w2"], r4["s1"], r4["t1"], r4["s2"], r4["t2"], m4,
            sel34, sel4f,
            fc1a, fc1b, params["fc1_b"], params["fc2_w"], params["fc2_b"],
            params["fc3_w"], params["fc3_b"])

    out = pl.pallas_call(
        functools.partial(_tail_kernel, C3=C3, NP3=NP3, MAR3=MAR3, Wp3=Wp3,
                          C4=C4, NP4=NP4, MAR4=MAR4, Wp4=Wp4, k=k),
        out_shape=jax.ShapeDtypeStruct((nclass, B), jnp.float32),
        grid=(1,),
        in_specs=[_full_spec(a.shape) for a in args],
        out_specs=_full_spec((nclass, B)),
        scratch_shapes=[pltpu.VMEM((kk * C3, Wh3), jnp.float32),
                        pltpu.VMEM((kk * C3, Wm3), jnp.float32),
                        pltpu.VMEM((kk * C4, Wh4), jnp.float32),
                        pltpu.VMEM((kk * C4, Wm4), jnp.float32),
                        pltpu.VMEM((C4, WX4), jnp.float32)],
        compiler_params=_cparams(("arbitrary",)),
    )(*args)
    return out.T                                           # (B, num_class)


def rescnn_forward(x_nchw, params, *, kernel):
    y = stem_forward(x_nchw, params["conv1_w"], params["conv1_b"], kernel=kernel)
    for name in ("res1", "res2"):
        y = residual_block(y, params[name], kernel=kernel)
    return tail_forward(y, params, kernel=kernel)


# ------------------------------ parameter init --------------------------------
def _conv_params(key, cin, cout, k):
    k1, k2 = jax.random.split(key)
    bound = 1.0 / (cin * k * k) ** 0.5
    w = jax.random.uniform(k1, (cout, cin, k, k), jnp.float32, -bound, bound)
    b = jax.random.uniform(k2, (cout,), jnp.float32, -bound, bound)
    return w, b


def _bn_fold(key, c, conv_bias):
    """Eval-mode BN folded to per-channel scale/shift; conv bias folded in."""
    k1, k2, k3, k4 = jax.random.split(key, 4)
    gamma = jax.random.uniform(k1, (c,), jnp.float32, 0.5, 1.5)
    beta = jax.random.uniform(k2, (c,), jnp.float32, -0.5, 0.5)
    mean = jax.random.uniform(k3, (c,), jnp.float32, -0.5, 0.5)
    var = jax.random.uniform(k4, (c,), jnp.float32, 0.5, 1.5)
    scale = gamma / jnp.sqrt(var + 1e-5)
    shift = beta - mean * scale + conv_bias * scale
    return scale.reshape(c, 1), shift.reshape(c, 1)


def _res_params(key, c, k):
    k1, k2, k3, k4 = jax.random.split(key, 4)
    w1t, b1 = _conv_params(k1, c, c, k)
    w2t, b2 = _conv_params(k3, c, c, k)
    s1, t1 = _bn_fold(k2, c, b1)
    s2, t2 = _bn_fold(k4, c, b2)
    # (Cout,Cin,kh,kw) -> (Cout, kh*kw*Cin) to match the in-kernel im2col order
    w1 = jnp.transpose(w1t, (0, 2, 3, 1)).reshape(c, k * k * c)
    w2 = jnp.transpose(w2t, (0, 2, 3, 1)).reshape(c, k * k * c)
    return dict(w1=w1, w2=w2, s1=s1, t1=t1, s2=s2, t2=t2)


def _linear_params(key, fin, fout):
    k1, k2 = jax.random.split(key)
    bound = 1.0 / fin ** 0.5
    w = jax.random.uniform(k1, (fout, fin), jnp.float32, -bound, bound)
    b = jax.random.uniform(k2, (fout,), jnp.float32, -bound, bound)
    return w, b.reshape(fout, 1)


def init_params(key, in_channel, num_class, kernel):
    ks = jax.random.split(key, 8)
    p = {}
    w, b = _conv_params(ks[0], 3, in_channel, kernel)
    p["conv1_w"] = jnp.transpose(w, (0, 2, 3, 1)).reshape(
        in_channel, kernel * kernel * 3)                    # (Cout, kk*Cin)
    p["conv1_b"] = b.reshape(in_channel, 1)
    p["res1"] = _res_params(ks[1], in_channel, kernel)
    p["res2"] = _res_params(ks[2], in_channel * 2, kernel)
    p["res3"] = _res_params(ks[3], in_channel * 4, kernel)
    p["res4"] = _res_params(ks[4], in_channel * 8, kernel)
    f = in_channel * 16
    p["fc1_w"], p["fc1_b"] = _linear_params(ks[5], f, f)
    p["fc2_w"], p["fc2_b"] = _linear_params(ks[6], f, f)
    p["fc3_w"], p["fc3_b"] = _linear_params(ks[7], f, num_class)
    return p


if __name__ == "__main__":
    in_channel, num_class, kernel = 4, 10, 3
    key = jax.random.PRNGKey(0)
    pkey, xkey = jax.random.split(key)
    params = init_params(pkey, in_channel, num_class, kernel)
    # NCHW input like the PyTorch module; 48x48 so the head sees 1x1 spatial.
    x = jax.random.normal(xkey, (2, 3, 48, 48), jnp.float32)

    fwd = jax.jit(functools.partial(rescnn_forward, kernel=kernel))
    out = fwd(x, params)
    jax.block_until_ready(out)
    assert out.shape == (2, num_class), out.shape
    print("KERNEL_OK")
</pallas_src>

<mosaic_0001>
module attributes {stable_mosaic.version = 11 : i64} {
  func.func @_stem_kernel(%arg0: i32, %arg1: memref<9x27x256xf32, #tpu.memory_space<vmem>>, %arg2: memref<4x27xf32, #tpu.memory_space<vmem>>, %arg3: memref<4x1xf32, #tpu.memory_space<vmem>>, %arg4: memref<4x256xf32, #tpu.memory_space<vmem>>) attributes {dimension_semantics = [#tpu.dimension_semantics<parallel>], iteration_bounds = array<i64: 2>, scalar_prefetch = 0 : i64, scratch_operands = 0 : i64, tpu.core_type = #tpu.core_type<tc>, window_params = [{transform_indices = @transform_0, window_bounds = array<i64: 9, 27, 256>}, {pipeline_mode = #tpu.pipeline_mode<synchronous>, transform_indices = @transform_1, window_bounds = array<i64: 4, 27>}, {pipeline_mode = #tpu.pipeline_mode<synchronous>, transform_indices = @transform_2, window_bounds = array<i64: 4, 1>}, {transform_indices = @transform_3, window_bounds = array<i64: 4, 256>}]} {
    %c0 = arith.constant 0 : index
    %c0_0 = arith.constant 0 : index
    %0 = vector.load %arg2[%c0, %c0_0] : memref<4x27xf32, #tpu.memory_space<vmem>>, vector<4x27xf32>
    %c0_1 = arith.constant 0 : index
    %c0_2 = arith.constant 0 : index
    %c0_3 = arith.constant 0 : index
    %1 = vector.load %arg1[%c0_1, %c0_2, %c0_3] : memref<9x27x256xf32, #tpu.memory_space<vmem>>, vector<1x27x256xf32>
    %2 = vector.shape_cast %1 : vector<1x27x256xf32> to vector<27x256xf32>
    %cst = arith.constant dense<0.000000e+00> : vector<4x256xf32>
    %3 = tpu.matmul %0, %2, %cst {dimension_numbers = #tpu.dot_dimension_numbers<[1], [0], [0], [1], [0, 0, 1, 1], [], []>} : vector<4x27xf32>, vector<27x256xf32>, vector<4x256xf32> -> vector<4x256xf32>
    %c1 = arith.constant 1 : index
    %c0_4 = arith.constant 0 : index
    %c0_5 = arith.constant 0 : index
    %4 = vector.load %arg1[%c1, %c0_4, %c0_5] : memref<9x27x256xf32, #tpu.memory_space<vmem>>, vector<1x27x256xf32>
    %5 = vector.shape_cast %4 : vector<1x27x256xf32> to vector<27x256xf32>
    %cst_6 = arith.constant dense<0.000000e+00> : vector<4x256xf32>
    %6 = tpu.matmul %0, %5, %cst_6 {dimension_numbers = #tpu.dot_dimension_numbers<[1], [0], [0], [1], [0, 0, 1, 1], [], []>} : vector<4x27xf32>, vector<27x256xf32>, vector<4x256xf32> -> vector<4x256xf32>
    %7 = arith.maximumf %3, %6 : vector<4x256xf32>
    %c2 = arith.constant 2 : index
    %c0_7 = arith.constant 0 : index
    %c0_8 = arith.constant 0 : index
    %8 = vector.load %arg1[%c2, %c0_7, %c0_8] : memref<9x27x256xf32, #tpu.memory_space<vmem>>, vector<1x27x256xf32>
    %9 = vector.shape_cast %8 : vector<1x27x256xf32> to vector<27x256xf32>
    %cst_9 = arith.constant dense<0.000000e+00> : vector<4x256xf32>
    %10 = tpu.matmul %0, %9, %cst_9 {dimension_numbers = #tpu.dot_dimension_numbers<[1], [0], [0], [1], [0, 0, 1, 1], [], []>} : vector<4x27xf32>, vector<27x256xf32>, vector<4x256xf32> -> vector<4x256xf32>
    %11 = arith.maximumf %7, %10 : vector<4x256xf32>
    %c3 = arith.constant 3 : index
    %c0_10 = arith.constant 0 : index
    %c0_11 = arith.constant 0 : index
    %12 = vector.load %arg1[%c3, %c0_10, %c0_11] : memref<9x27x256xf32, #tpu.memory_space<vmem>>, vector<1x27x256xf32>
    %13 = vector.shape_cast %12 : vector<1x27x256xf32> to vector<27x256xf32>
    %cst_12 = arith.constant dense<0.000000e+00> : vector<4x256xf32>
    %14 = tpu.matmul %0, %13, %cst_12 {dimension_numbers = #tpu.dot_dimension_numbers<[1], [0], [0], [1], [0, 0, 1, 1], [], []>} : vector<4x27xf32>, vector<27x256xf32>, vector<4x256xf32> -> vector<4x256xf32>
    %15 = arith.maximumf %11, %14 : vector<4x256xf32>
    %c4 = arith.constant 4 : index
    %c0_13 = arith.constant 0 : index
    %c0_14 = arith.constant 0 : index
    %16 = vector.load %arg1[%c4, %c0_13, %c0_14] : memref<9x27x256xf32, #tpu.memory_space<vmem>>, vector<1x27x256xf32>
    %17 = vector.shape_cast %16 : vector<1x27x256xf32> to vector<27x256xf32>
    %cst_15 = arith.constant dense<0.000000e+00> : vector<4x256xf32>
    %18 = tpu.matmul %0, %17, %cst_15 {dimension_numbers = #tpu.dot_dimension_numbers<[1], [0], [0], [1], [0, 0, 1, 1], [], []>} : vector<4x27xf32>, vector<27x256xf32>, vector<4x256xf32> -> vector<4x256xf32>
    %19 = arith.maximumf %15, %18 : vector<4x256xf32>
    %c5 = arith.constant 5 : index
    %c0_16 = arith.constant 0 : index
    %c0_17 = arith.constant 0 : index
    %20 = vector.load %arg1[%c5, %c0_16, %c0_17] : memref<9x27x256xf32, #tpu.memory_space<vmem>>, vector<1x27x256xf32>
    %21 = vector.shape_cast %20 : vector<1x27x256xf32> to vector<27x256xf32>
    %cst_18 = arith.constant dense<0.000000e+00> : vector<4x256xf32>
    %22 = tpu.matmul %0, %21, %cst_18 {dimension_numbers = #tpu.dot_dimension_numbers<[1], [0], [0], [1], [0, 0, 1, 1], [], []>} : vector<4x27xf32>, vector<27x256xf32>, vector<4x256xf32> -> vector<4x256xf32>
    %23 = arith.maximumf %19, %22 : vector<4x256xf32>
    %c6 = arith.constant 6 : index
    %c0_19 = arith.constant 0 : index
    %c0_20 = arith.constant 0 : index
    %24 = vector.load %arg1[%c6, %c0_19, %c0_20] : memref<9x27x256xf32, #tpu.memory_space<vmem>>, vector<1x27x256xf32>
    %25 = vector.shape_cast %24 : vector<1x27x256xf32> to vector<27x256xf32>
    %cst_21 = arith.constant dense<0.000000e+00> : vector<4x256xf32>
    %26 = tpu.matmul %0, %25, %cst_21 {dimension_numbers = #tpu.dot_dimension_numbers<[1], [0], [0], [1], [0, 0, 1, 1], [], []>} : vector<4x27xf32>, vector<27x256xf32>, vector<4x256xf32> -> vector<4x256xf32>
    %27 = arith.maximumf %23, %26 : vector<4x256xf32>
    %c7 = arith.constant 7 : index
    %c0_22 = arith.constant 0 : index
    %c0_23 = arith.constant 0 : index
    %28 = vector.load %arg1[%c7, %c0_22, %c0_23] : memref<9x27x256xf32, #tpu.memory_space<vmem>>, vector<1x27x256xf32>
    %29 = vector.shape_cast %28 : vector<1x27x256xf32> to vector<27x256xf32>
    %cst_24 = arith.constant dense<0.000000e+00> : vector<4x256xf32>
    %30 = tpu.matmul %0, %29, %cst_24 {dimension_numbers = #tpu.dot_dimension_numbers<[1], [0], [0], [1], [0, 0, 1, 1], [], []>} : vector<4x27xf32>, vector<27x256xf32>, vector<4x256xf32> -> vector<4x256xf32>
    %31 = arith.maximumf %27, %30 : vector<4x256xf32>
    %c8 = arith.constant 8 : index
    %c0_25 = arith.constant 0 : index
    %c0_26 = arith.constant 0 : index
    %32 = vector.load %arg1[%c8, %c0_25, %c0_26] : memref<9x27x256xf32, #tpu.memory_space<vmem>>, vector<1x27x256xf32>
    %33 = vector.shape_cast %32 : vector<1x27x256xf32> to vector<27x256xf32>
    %cst_27 = arith.constant dense<0.000000e+00> : vector<4x256xf32>
    %34 = tpu.matmul %0, %33, %cst_27 {dimension_numbers = #tpu.dot_dimension_numbers<[1], [0], [0], [1], [0, 0, 1, 1], [], []>} : vector<4x27xf32>, vector<27x256xf32>, vector<4x256xf32> -> vector<4x256xf32>
    %35 = arith.maximumf %31, %34 : vector<4x256xf32>
    %c0_28 = arith.constant 0 : index
    %c0_29 = arith.constant 0 : index
    %36 = vector.load %arg3[%c0_28, %c0_29] : memref<4x1xf32, #tpu.memory_space<vmem>>, vector<4x1xf32>
    %37 = vector.broadcast %36 : vector<4x1xf32> to vector<4x256xf32>
    %38 = arith.addf %35, %37 : vector<4x256xf32>
    %c0_30 = arith.constant 0 : index
    %c0_31 = arith.constant 0 : index
    %39 = vector.load %arg4[%c0_30, %c0_31] : memref<4x256xf32, #tpu.memory_space<vmem>>, vector<4x256xf32>
    tpu.vector_store %arg4[%c0_30, %c0_31], %38 {strides = array<i32>} : memref<4x256xf32, #tpu.memory_space<vmem>>, vector<4x256xf32>,
    return
  }
  func.func @transform_0(%arg0: i32) -> (i32, i32, i32) {
    %c0_i32 = arith.constant 0 : i32
    %c0_i32_0 = arith.constant 0 : i32
    %c0_i32_1 = arith.constant 0 : i32
    return %c0_i32, %c0_i32_0, %arg0 : i32, i32, i32
  }
  func.func @transform_1(%arg0: i32) -> (i32, i32) {
    %c0_i32 = arith.constant 0 : i32
    %c0_i32_0 = arith.constant 0 : i32
    %c0_i32_1 = arith.constant 0 : i32
    return %c0_i32, %c0_i32_0 : i32, i32
  }
  func.func @transform_2(%arg0: i32) -> (i32, i32) {
    %c0_i32 = arith.constant 0 : i32
    %c0_i32_0 = arith.constant 0 : i32
    %c0_i32_1 = arith.constant 0 : i32
    return %c0_i32, %c0_i32_0 : i32, i32
  }
  func.func @transform_3(%arg0: i32) -> (i32, i32) {
    %c0_i32 = arith.constant 0 : i32
    %c0_i32_0 = arith.constant 0 : i32
    return %c0_i32, %arg0 : i32, i32
  }
}

module attributes {stable_mosaic.version = 11 : i64} {
  func.func @_block_kernel(%arg0: i32, %arg1: memref<1x4x438xf32, #tpu.memory_space<vmem>>, %arg2: memref<4x36xf32, #tpu.memory_space<vmem>>, %arg3: memref<4x36xf32, #tpu.memory_space<vmem>>, %arg4: memref<4x1xf32, #tpu.memory_space<vmem>>, %arg5: memref<4x1xf32, #tpu.memory_space<vmem>>, %arg6: memref<4x1xf32, #tpu.memory_space<vmem>>, %arg7: memref<4x1xf32, #tpu.memory_space<vmem>>, %arg8: memref<1x400xf32, #tpu.memory_space<vmem>>, %arg9: memref<1x8x324xf32, #tpu.memory_space<vmem>>, %arg10: memref<36x400xf32, #tpu.memory_space<vmem>>, %arg11: memref<36x362xf32, #tpu.memory_space<vmem>>) attributes {dimension_semantics = [#tpu.dimension_semantics<parallel>], iteration_bounds = array<i64: 2>, scalar_prefetch = 0 : i64, scratch_operands = 2 : i64, tpu.core_type = #tpu.core_type<tc>, window_params = [{transform_indices = @transform_0, window_bounds = array<i64: 1, 4, 438>}, {pipeline_mode = #tpu.pipeline_mode<synchronous>, transform_indices = @transform_1, window_bounds = array<i64: 4, 36>}, {pipeline_mode = #tpu.pipeline_mode<synchronous>, transform_indices = @transform_2, window_bounds = array<i64: 4, 36>}, {pipeline_mode = #tpu.pipeline_mode<synchronous>, transform_indices = @transform_3, window_bounds = array<i64: 4, 1>}, {pipeline_mode = #tpu.pipeline_mode<synchronous>, transform_indices = @transform_4, window_bounds = array<i64: 4, 1>}, {pipeline_mode = #tpu.pipeline_mode<synchronous>, transform_indices = @transform_5, window_bounds = array<i64: 4, 1>}, {pipeline_mode = #tpu.pipeline_mode<synchronous>, transform_indices = @transform_6, window_bounds = array<i64: 4, 1>}, {pipeline_mode = #tpu.pipeline_mode<synchronous>, transform_indices = @transform_7, window_bounds = array<i64: 1, 400>}, {transform_indices = @transform_8, window_bounds = array<i64: 1, 8, 324>}]} {
    %c0 = arith.constant 0 : index
    %c0_0 = arith.constant 0 : index
    %c0_1 = arith.constant 0 : index
    %0 = vector.load %arg1[%c0, %c0_0, %c0_1] : memref<1x4x438xf32, #tpu.memory_space<vmem>>, vector<1x4x438xf32>
    %1 = vector.shape_cast %0 : vector<1x4x438xf32> to vector<4x438xf32>
    %c0_2 = arith.constant 0 : index
    %c0_3 = arith.constant 0 : index
    %2 = vector.load %arg2[%c0_2, %c0_3] : memref<4x36xf32, #tpu.memory_space<vmem>>, vector<4x36xf32>
    %c0_4 = arith.constant 0 : index
    %c0_5 = arith.constant 0 : index
    %3 = vector.load %arg3[%c0_4, %c0_5] : memref<4x36xf32, #tpu.memory_space<vmem>>, vector<4x36xf32>
    %c0_6 = arith.constant 0 : index
    %c0_7 = arith.constant 0 : index
    %4 = vector.load %arg4[%c0_6, %c0_7] : memref<4x1xf32, #tpu.memory_space<vmem>>, vector<4x1xf32>
    %c0_8 = arith.constant 0 : index
    %c0_9 = arith.constant 0 : index
    %5 = vector.load %arg5[%c0_8, %c0_9] : memref<4x1xf32, #tpu.memory_space<vmem>>, vector<4x1xf32>
    %c0_10 = arith.constant 0 : index
    %c0_11 = arith.constant 0 : index
    %6 = vector.load %arg6[%c0_10, %c0_11] : memref<4x1xf32, #tpu.memory_space<vmem>>, vector<4x1xf32>
    %c0_12 = arith.constant 0 : index
    %c0_13 = arith.constant 0 : index
    %7 = vector.load %arg7[%c0_12, %c0_13] : memref<4x1xf32, #tpu.memory_space<vmem>>, vector<4x1xf32>
    %c0_14 = arith.constant 0 : index
    %c0_15 = arith.constant 0 : index
    %8 = vector.load %arg8[%c0_14, %c0_15] : memref<1x400xf32, #tpu.memory_space<vmem>>, vector<1x400xf32>
    %9 = vector.extract_strided_slice %1 {offsets = [0, 0], sizes = [4, 400], strides = [1, 1]} : vector<4x438xf32> to vector<4x400xf32>
    %c0_16 = arith.constant 0 : index
    %c0_17 = arith.constant 0 : index
    %10 = vector.load %arg10[%c0_16, %c0_17] : memref<36x400xf32, #tpu.memory_space<vmem>>, vector<4x400xf32>
    tpu.vector_store %arg10[%c0_16, %c0_17], %9 {strides = array<i32>} : memref<36x400xf32, #tpu.memory_space<vmem>>, vector<4x400xf32>,
    %11 = vector.extract_strided_slice %1 {offsets = [0, 1], sizes = [4, 400], strides = [1, 1]} : vector<4x438xf32> to vector<4x400xf32>
    %c4 = arith.constant 4 : index
    %c0_18 = arith.constant 0 : index
    %12 = vector.load %arg10[%c4, %c0_18] : memref<36x400xf32, #tpu.memory_space<vmem>>, vector<4x400xf32>
    tpu.vector_store %arg10[%c4, %c0_18], %11 {strides = array<i32>} : memref<36x400xf32, #tpu.memory_space<vmem>>, vector<4x400xf32>,
    %13 = vector.extract_strided_slice %1 {offsets = [0, 2], sizes = [4, 400], strides = [1, 1]} : vector<4x438xf32> to vector<4x400xf32>
    %c8 = arith.constant 8 : index
    %c0_19 = arith.constant 0 : index
    %14 = vector.load %arg10[%c8, %c0_19] : memref<36x400xf32, #tpu.memory_space<vmem>>, vector<4x400xf32>
    tpu.vector_store %arg10[%c8, %c0_19], %13 {strides = array<i32>} : memref<36x400xf32, #tpu.memory_space<vmem>>, vector<4x400xf32>,
    %15 = vector.extract_strided_slice %1 {offsets = [0, 18], sizes = [4, 400], strides = [1, 1]} : vector<4x438xf32> to vector<4x400xf32>
    %c12 = arith.constant 12 : index
    %c0_20 = arith.constant 0 : index
    %16 = vector.load %arg10[%c12, %c0_20] : memref<36x400xf32, #tpu.memory_space<vmem>>, vector<4x400xf32>
    tpu.vector_store %arg10[%c12, %c0_20], %15 {strides = array<i32>} : memref<36x400xf32, #tpu.memory_space<vmem>>, vector<4x400xf32>,
    %17 = vector.extract_strided_slice %1 {offsets = [0, 19], sizes = [4, 400], strides = [1, 1]} : vector<4x438xf32> to vector<4x400xf32>
    %c16 = arith.constant 16 : index
    %c0_21 = arith.constant 0 : index
    %18 = vector.load %arg10[%c16, %c0_21] : memref<36x400xf32, #tpu.memory_space<vmem>>, vector<4x400xf32>
    tpu.vector_store %arg10[%c16, %c0_21], %17 {strides = array<i32>} : memref<36x400xf32, #tpu.memory_space<vmem>>, vector<4x400xf32>,
    %19 = vector.extract_strided_slice %1 {offsets = [0, 20], sizes = [4, 400], strides = [1, 1]} : vector<4x438xf32> to vector<4x400xf32>
    %c20 = arith.constant 20 : index
    %c0_22 = arith.constant 0 : index
    %20 = vector.load %arg10[%c20, %c0_22] : memref<36x400xf32, #tpu.memory_space<vmem>>, vector<4x400xf32>
    tpu.vector_store %arg10[%c20, %c0_22], %19 {strides = array<i32>} : memref<36x400xf32, #tpu.memory_space<vmem>>, vector<4x400xf32>,
    %21 = vector.extract_strided_slice %1 {offsets = [0, 36], sizes = [4, 400], strides = [1, 1]} : vector<4x438xf32> to vector<4x400xf32>
    %c24 = arith.constant 24 : index
    %c0_23 = arith.constant 0 : index
    %22 = vector.load %arg10[%c24, %c0_23] : memref<36x400xf32, #tpu.memory_space<vmem>>, vector<4x400xf32>
    tpu.vector_store %arg10[%c24, %c0_23], %21 {strides = array<i32>} : memref<36x400xf32, #tpu.memory_space<vmem>>, vector<4x400xf32>,
    %23 = vector.extract_strided_slice %1 {offsets = [0, 37], sizes = [4, 400], strides = [1, 1]} : vector<4x438xf32> to vector<4x400xf32>
    %c28 = arith.constant 28 : index
    %c0_24 = arith.constant 0 : index
    %24 = vector.load %arg10[%c28, %c0_24] : memref<36x400xf32, #tpu.memory_space<vmem>>, vector<4x400xf32>
    tpu.vector_store %arg10[%c28, %c0_24], %23 {strides = array<i32>} : memref<36x400xf32, #tpu.memory_space<vmem>>, vector<4x400xf32>,
    %25 = vector.extract_strided_slice %1 {offsets = [0, 38], sizes = [4, 400], strides = [1, 1]} : vector<4x438xf32> to vector<4x400xf32>
    %c32 = arith.constant 32 : index
    %c0_25 = arith.constant 0 : index
    %26 = vector.load %arg10[%c32, %c0_25] : memref<36x400xf32, #tpu.memory_space<vmem>>, vector<4x400xf32>
    tpu.vector_store %arg10[%c32, %c0_25], %25 {strides = array<i32>} : memref<36x400xf32, #tpu.memory_space<vmem>>, vector<4x400xf32>,
    %c0_26 = arith.constant 0 : index
    %c0_27 = arith.constant 0 : index
    %27 = vector.load %arg10[%c0_26, %c0_27] : memref<36x400xf32, #tpu.memory_space<vmem>>, vector<36x400xf32>
    %cst = arith.constant dense<0.000000e+00> : vector<4x400xf32>
    %28 = tpu.matmul %2, %27, %cst {dimension_numbers = #tpu.dot_dimension_numbers<[1], [0], [0], [1], [0, 0, 1, 1], [], []>} : vector<4x36xf32>, vector<36x400xf32>, vector<4x400xf32> -> vector<4x400xf32>
    %29 = vector.broadcast %4 : vector<4x1xf32> to vector<4x400xf32>
    %30 = arith.mulf %28, %29 : vector<4x400xf32>
    %31 = vector.broadcast %5 : vector<4x1xf32> to vector<4x400xf32>
    %32 = arith.addf %30, %31 : vector<4x400xf32>
    %cst_28 = arith.constant 0.000000e+00 : f32
    %33 = vector.broadcast %cst_28 : f32 to vector<4x400xf32>
    %34 = arith.maximumf %32, %33 : vector<4x400xf32>
    %35 = vector.broadcast %8 : vector<1x400xf32> to vector<4x400xf32>
    %36 = arith.mulf %34, %35 : vector<4x400xf32>
    %37 = vector.extract_strided_slice %36 {offsets = [0, 0], sizes = [4, 362], strides = [1, 1]} : vector<4x400xf32> to vector<4x362xf32>
    %c0_29 = arith.constant 0 : index
    %c0_30 = arith.constant 0 : index
    %38 = vector.load %arg11[%c0_29, %c0_30] : memref<36x362xf32, #tpu.memory_space<vmem>>, vector<4x362xf32>
    tpu.vector_store %arg11[%c0_29, %c0_30], %37 {strides = array<i32>} : memref<36x362xf32, #tpu.memory_space<vmem>>, vector<4x362xf32>,
    %39 = vector.extract_strided_slice %36 {offsets = [0, 1], sizes = [4, 362], strides = [1, 1]} : vector<4x400xf32> to vector<4x362xf32>
    %c4_31 = arith.constant 4 : index
    %c0_32 = arith.constant 0 : index
    %40 = vector.load %arg11[%c4_31, %c0_32] : memref<36x362xf32, #tpu.memory_space<vmem>>, vector<4x362xf32>
    tpu.vector_store %arg11[%c4_31, %c0_32], %39 {strides = array<i32>} : memref<36x362xf32, #tpu.memory_space<vmem>>, vector<4x362xf32>,
    %41 = vector.extract_strided_slice %36 {offsets = [0, 2], sizes = [4, 362], strides = [1, 1]} : vector<4x400xf32> to vector<4x362xf32>
    %c8_33 = arith.constant 8 : index
    %c0_34 = arith.constant 0 : index
    %42 = vector.load %arg11[%c8_33, %c0_34] : memref<36x362xf32, #tpu.memory_space<vmem>>, vector<4x362xf32>
    tpu.vector_store %arg11[%c8_33, %c0_34], %41 {strides = array<i32>} : memref<36x362xf32, #tpu.memory_space<vmem>>, vector<4x362xf32>,
    %43 = vector.extract_strided_slice %36 {offsets = [0, 18], sizes = [4, 362], strides = [1, 1]} : vector<4x400xf32> to vector<4x362xf32>
    %c12_35 = arith.constant 12 : index
    %c0_36 = arith.constant 0 : index
    %44 = vector.load %arg11[%c12_35, %c0_36] : memref<36x362xf32, #tpu.memory_space<vmem>>, vector<4x362xf32>
    tpu.vector_store %arg11[%c12_35, %c0_36], %43 {strides = array<i32>} : memref<36x362xf32, #tpu.memory_space<vmem>>, vector<4x362xf32>,
    %45 = vector.extract_strided_slice %36 {offsets = [0, 19], sizes = [4, 362], strides = [1, 1]} : vector<4x400xf32> to vector<4x362xf32>
    %c16_37 = arith.constant 16 : index
    %c0_38 = arith.constant 0 : index
    %46 = vector.load %arg11[%c16_37, %c0_38] : memref<36x362xf32, #tpu.memory_space<vmem>>, vector<4x362xf32>
    tpu.vector_store %arg11[%c16_37, %c0_38], %45 {strides = array<i32>} : memref<36x362xf32, #tpu.memory_space<vmem>>, vector<4x362xf32>,
    %47 = vector.extract_strided_slice %36 {offsets = [0, 20], sizes = [4, 362], strides = [1, 1]} : vector<4x400xf32> to vector<4x362xf32>
    %c20_39 = arith.constant 20 : index
    %c0_40 = arith.constant 0 : index
    %48 = vector.load %arg11[%c20_39, %c0_40] : memref<36x362xf32, #tpu.memory_space<vmem>>, vector<4x362xf32>
    tpu.vector_store %arg11[%c20_39, %c0_40], %47 {strides = array<i32>} : memref<36x362xf32, #tpu.memory_space<vmem>>, vector<4x362xf32>,
    %49 = vector.extract_strided_slice %36 {offsets = [0, 36], sizes = [4, 362], strides = [1, 1]} : vector<4x400xf32> to vector<4x362xf32>
    %c24_41 = arith.constant 24 : index
    %c0_42 = arith.constant 0 : index
    %50 = vector.load %arg11[%c24_41, %c0_42] : memref<36x362xf32, #tpu.memory_space<vmem>>, vector<4x362xf32>
    tpu.vector_store %arg11[%c24_41, %c0_42], %49 {strides = array<i32>} : memref<36x362xf32, #tpu.memory_space<vmem>>, vector<4x362xf32>,
    %51 = vector.extract_strided_slice %36 {offsets = [0, 37], sizes = [4, 362], strides = [1, 1]} : vector<4x400xf32> to vector<4x362xf32>
    %c28_43 = arith.constant 28 : index
    %c0_44 = arith.constant 0 : index
    %52 = vector.load %arg11[%c28_43, %c0_44] : memref<36x362xf32, #tpu.memory_space<vmem>>, vector<4x362xf32>
    tpu.vector_store %arg11[%c28_43, %c0_44], %51 {strides = array<i32>} : memref<36x362xf32, #tpu.memory_space<vmem>>, vector<4x362xf32>,
    %53 = vector.extract_strided_slice %36 {offsets = [0, 38], sizes = [4, 362], strides = [1, 1]} : vector<4x400xf32> to vector<4x362xf32>
    %c32_45 = arith.constant 32 : index
    %c0_46 = arith.constant 0 : index
    %54 = vector.load %arg11[%c32_45, %c0_46] : memref<36x362xf32, #tpu.memory_space<vmem>>, vector<4x362xf32>
    tpu.vector_store %arg11[%c32_45, %c0_46], %53 {strides = array<i32>} : memref<36x362xf32, #tpu.memory_space<vmem>>, vector<4x362xf32>,
    %c0_47 = arith.constant 0 : index
    %c0_48 = arith.constant 0 : index
    %55 = vector.load %arg11[%c0_47, %c0_48] : memref<36x362xf32, #tpu.memory_space<vmem>>, vector<36x362xf32>
    %cst_49 = arith.constant dense<0.000000e+00> : vector<4x362xf32>
    %56 = tpu.matmul %3, %55, %cst_49 {dimension_numbers = #tpu.dot_dimension_numbers<[1], [0], [0], [1], [0, 0, 1, 1], [], []>} : vector<4x36xf32>, vector<36x362xf32>, vector<4x362xf32> -> vector<4x362xf32>
    %57 = vector.broadcast %6 : vector<4x1xf32> to vector<4x362xf32>
    %58 = arith.mulf %56, %57 : vector<4x362xf32>
    %59 = vector.broadcast %7 : vector<4x1xf32> to vector<4x362xf32>
    %60 = arith.addf %58, %59 : vector<4x362xf32>
    %61 = vector.extract_strided_slice %8 {offsets = [0, 19], sizes = [1, 362], strides = [1, 1]} : vector<1x400xf32> to vector<1x362xf32>
    %cst_50 = arith.constant 0.000000e+00 : f32
    %62 = vector.broadcast %cst_50 : f32 to vector<4x362xf32>
    %63 = arith.maximumf %60, %62 : vector<4x362xf32>
    %64 = vector.broadcast %61 : vector<1x362xf32> to vector<4x362xf32>
    %65 = arith.mulf %63, %64 : vector<4x362xf32>
    %66 = vector.extract_strided_slice %1 {offsets = [0, 38], sizes = [4, 362], strides = [1, 1]} : vector<4x438xf32> to vector<4x362xf32>
    %cst_51 = arith.constant 0.000000e+00 : f32
    %67 = vector.broadcast %cst_51 : f32 to vector<4x362xf32>
    %68 = arith.maximumf %66, %67 : vector<4x362xf32>
    %69 = vector.extract_strided_slice %65 {offsets = [0, 0], sizes = [4, 324], strides = [1, 1]} : vector<4x362xf32> to vector<4x324xf32>
    %70 = vector.extract_strided_slice %68 {offsets = [0, 0], sizes = [4, 324], strides = [1, 1]} : vector<4x362xf32> to vector<4x324xf32>
    %71 = vector.extract_strided_slice %65 {offsets = [0, 1], sizes = [4, 324], strides = [1, 1]} : vector<4x362xf32> to vector<4x324xf32>
    %72 = arith.maximumf %69, %71 : vector<4x324xf32>
    %73 = vector.extract_strided_slice %68 {offsets = [0, 1], sizes = [4, 324], strides = [1, 1]} : vector<4x362xf32> to vector<4x324xf32>
    %74 = arith.maximumf %70, %73 : vector<4x324xf32>
    %75 = vector.extract_strided_slice %65 {offsets = [0, 2], sizes = [4, 324], strides = [1, 1]} : vector<4x362xf32> to vector<4x324xf32>
    %76 = arith.maximumf %72, %75 : vector<4x324xf32>
    %77 = vector.extract_strided_slice %68 {offsets = [0, 2], sizes = [4, 324], strides = [1, 1]} : vector<4x362xf32> to vector<4x324xf32>
    %78 = arith.maximumf %74, %77 : vector<4x324xf32>
    %79 = vector.extract_strided_slice %65 {offsets = [0, 18], sizes = [4, 324], strides = [1, 1]} : vector<4x362xf32> to vector<4x324xf32>
    %80 = arith.maximumf %76, %79 : vector<4x324xf32>
    %81 = vector.extract_strided_slice %68 {offsets = [0, 18], sizes = [4, 324], strides = [1, 1]} : vector<4x362xf32> to vector<4x324xf32>
    %82 = arith.maximumf %78, %81 : vector<4x324xf32>
    %83 = vector.extract_strided_slice %65 {offsets = [0, 19], sizes = [4, 324], strides = [1, 1]} : vector<4x362xf32> to vector<4x324xf32>
    %84 = arith.maximumf %80, %83 : vector<4x324xf32>
    %85 = vector.extract_strided_slice %68 {offsets = [0, 19], sizes = [4, 324], strides = [1, 1]} : vector<4x362xf32> to vector<4x324xf32>
    %86 = arith.maximumf %82, %85 : vector<4x324xf32>
    %87 = vector.extract_strided_slice %65 {offsets = [0, 20], sizes = [4, 324], strides = [1, 1]} : vector<4x362xf32> to vector<4x324xf32>
    %88 = arith.maximumf %84, %87 : vector<4x324xf32>
    %89 = vector.extract_strided_slice %68 {offsets = [0, 20], sizes = [4, 324], strides = [1, 1]} : vector<4x362xf32> to vector<4x324xf32>
    %90 = arith.maximumf %86, %89 : vector<4x324xf32>
    %91 = vector.extract_strided_slice %65 {offsets = [0, 36], sizes = [4, 324], strides = [1, 1]} : vector<4x362xf32> to vector<4x324xf32>
    %92 = arith.maximumf %88, %91 : vector<4x324xf32>
    %93 = vector.extract_strided_slice %68 {offsets = [0, 36], sizes = [4, 324], strides = [1, 1]} : vector<4x362xf32> to vector<4x324xf32>
    %94 = arith.maximumf %90, %93 : vector<4x324xf32>
    %95 = vector.extract_strided_slice %65 {offsets = [0, 37], sizes = [4, 324], strides = [1, 1]} : vector<4x362xf32> to vector<4x324xf32>
    %96 = arith.maximumf %92, %95 : vector<4x324xf32>
    %97 = vector.extract_strided_slice %68 {offsets = [0, 37], sizes = [4, 324], strides = [1, 1]} : vector<4x362xf32> to vector<4x324xf32>
    %98 = arith.maximumf %94, %97 : vector<4x324xf32>
    %99 = vector.extract_strided_slice %65 {offsets = [0, 38], sizes = [4, 324], strides = [1, 1]} : vector<4x362xf32> to vector<4x324xf32>
    %100 = arith.maximumf %96, %99 : vector<4x324xf32>
    %101 = vector.extract_strided_slice %68 {offsets = [0, 38], sizes = [4, 324], strides = [1, 1]} : vector<4x362xf32> to vector<4x324xf32>
    %102 = arith.maximumf %98, %101 : vector<4x324xf32>
    %c0_52 = arith.constant 0 : index
    %c0_53 = arith.constant 0 : index
    %c0_54 = arith.constant 0 : index
    %103 = vector.load %arg9[%c0_52, %c0_53, %c0_54] : memref<1x8x324xf32, #tpu.memory_space<vmem>>, vector<1x4x324xf32>
    %104 = vector.shape_cast %103 : vector<1x4x324xf32> to vector<4x324xf32>
    %105 = vector.shape_cast %100 : vector<4x324xf32> to vector<1x4x324xf32>
    tpu.vector_store %arg9[%c0_52, %c0_53, %c0_54], %105 {strides = array<i32>} : memref<1x8x324xf32, #tpu.memory_space<vmem>>, vector<1x4x324xf32>,
    %c0_55 = arith.constant 0 : index
    %c4_56 = arith.constant 4 : index
    %c0_57 = arith.constant 0 : index
    %106 = vector.load %arg9[%c0_55, %c4_56, %c0_57] : memref<1x8x324xf32, #tpu.memory_space<vmem>>, vector<1x4x324xf32>
    %107 = vector.shape_cast %106 : vector<1x4x324xf32> to vector<4x324xf32>
    %108 = vector.shape_cast %102 : vector<4x324xf32> to vector<1x4x324xf32>
    tpu.vector_store %arg9[%c0_55, %c4_56, %c0_57], %108 {strides = array<i32>} : memref<1x8x324xf32, #tpu.memory_space<vmem>>, vector<1x4x324xf32>,
    return
  }
  func.func @transform_0(%arg0: i32) -> (i32, i32, i32) {
    %c0_i32 = arith.constant 0 : i32
    %c0_i32_0 = arith.constant 0 : i32
    %c0_i32_1 = arith.constant 0 : i32
    return %arg0, %c0_i32, %c0_i32_0 : i32, i32, i32
  }
  func.func @transform_1(%arg0: i32) -> (i32, i32) {
    %c0_i32 = arith.constant 0 : i32
    %c0_i32_0 = arith.constant 0 : i32
    %c0_i32_1 = arith.constant 0 : i32
    return %c0_i32, %c0_i32_0 : i32, i32
  }
  func.func @transform_2(%arg0: i32) -> (i32, i32) {
    %c0_i32 = arith.constant 0 : i32
    %c0_i32_0 = arith.constant 0 : i32
    %c0_i32_1 = arith.constant 0 : i32
    return %c0_i32, %c0_i32_0 : i32, i32
  }
  func.func @transform_3(%arg0: i32) -> (i32, i32) {
    %c0_i32 = arith.constant 0 : i32
    %c0_i32_0 = arith.constant 0 : i32
    %c0_i32_1 = arith.constant 0 : i32
    return %c0_i32, %c0_i32_0 : i32, i32
  }
  func.func @transform_4(%arg0: i32) -> (i32, i32) {
    %c0_i32 = arith.constant 0 : i32
    %c0_i32_0 = arith.constant 0 : i32
    %c0_i32_1 = arith.constant 0 : i32
    return %c0_i32, %c0_i32_0 : i32, i32
  }
  func.func @transform_5(%arg0: i32) -> (i32, i32) {
    %c0_i32 = arith.constant 0 : i32
    %c0_i32_0 = arith.constant 0 : i32
    %c0_i32_1 = arith.constant 0 : i32
    return %c0_i32, %c0_i32_0 : i32, i32
  }
  func.func @transform_6(%arg0: i32) -> (i32, i32) {
    %c0_i32 = arith.constant 0 : i32
    %c0_i32_0 = arith.constant 0 : i32
    %c0_i32_1 = arith.constant 0 : i32
    return %c0_i32, %c0_i32_0 : i32, i32
  }
  func.func @transform_7(%arg0: i32) -> (i32, i32) {
    %c0_i32 = arith.constant 0 : i32
    %c0_i32_0 = arith.constant 0 : i32
    %c0_i32_1 = arith.constant 0 : i32
    return %c0_i32, %c0_i32_0 : i32, i32
  }
  func.func @transform_8(%arg0: i32) -> (i32, i32, i32) {
    %c0_i32 = arith.constant 0 : i32
    %c0_i32_0 = arith.constant 0 : i32
    %c0_i32_1 = arith.constant 0 : i32
    return %arg0, %c0_i32, %c0_i32_0 : i32, i32, i32
  }
}

module attributes {stable_mosaic.version = 11 : i64} {
  func.func @_block_kernel(%arg0: i32, %arg1: memref<1x8x118xf32, #tpu.memory_space<vmem>>, %arg2: memref<8x72xf32, #tpu.memory_space<vmem>>, %arg3: memref<8x72xf32, #tpu.memory_space<vmem>>, %arg4: memref<8x1xf32, #tpu.memory_space<vmem>>, %arg5: memref<8x1xf32, #tpu.memory_space<vmem>>, %arg6: memref<8x1xf32, #tpu.memory_space<vmem>>, %arg7: memref<8x1xf32, #tpu.memory_space<vmem>>, %arg8: memref<1x100xf32, #tpu.memory_space<vmem>>, %arg9: memref<1x16x64xf32, #tpu.memory_space<vmem>>, %arg10: memref<72x100xf32, #tpu.memory_space<vmem>>, %arg11: memref<72x82xf32, #tpu.memory_space<vmem>>) attributes {dimension_semantics = [#tpu.dimension_semantics<parallel>], iteration_bounds = array<i64: 2>, scalar_prefetch = 0 : i64, scratch_operands = 2 : i64, tpu.core_type = #tpu.core_type<tc>, window_params = [{transform_indices = @transform_0, window_bounds = array<i64: 1, 8, 118>}, {pipeline_mode = #tpu.pipeline_mode<synchronous>, transform_indices = @transform_1, window_bounds = array<i64: 8, 72>}, {pipeline_mode = #tpu.pipeline_mode<synchronous>, transform_indices = @transform_2, window_bounds = array<i64: 8, 72>}, {pipeline_mode = #tpu.pipeline_mode<synchronous>, transform_indices = @transform_3, window_bounds = array<i64: 8, 1>}, {pipeline_mode = #tpu.pipeline_mode<synchronous>, transform_indices = @transform_4, window_bounds = array<i64: 8, 1>}, {pipeline_mode = #tpu.pipeline_mode<synchronous>, transform_indices = @transform_5, window_bounds = array<i64: 8, 1>}, {pipeline_mode = #tpu.pipeline_mode<synchronous>, transform_indices = @transform_6, window_bounds = array<i64: 8, 1>}, {pipeline_mode = #tpu.pipeline_mode<synchronous>, transform_indices = @transform_7, window_bounds = array<i64: 1, 100>}, {transform_indices = @transform_8, window_bounds = array<i64: 1, 16, 64>}]} {
    %c0 = arith.constant 0 : index
    %c0_0 = arith.constant 0 : index
    %c0_1 = arith.constant 0 : index
    %0 = vector.load %arg1[%c0, %c0_0, %c0_1] : memref<1x8x118xf32, #tpu.memory_space<vmem>>, vector<1x8x118xf32>
    %1 = vector.shape_cast %0 : vector<1x8x118xf32> to vector<8x118xf32>
    %c0_2 = arith.constant 0 : index
    %c0_3 = arith.constant 0 : index
    %2 = vector.load %arg2[%c0_2, %c0_3] : memref<8x72xf32, #tpu.memory_space<vmem>>, vector<8x72xf32>
    %c0_4 = arith.constant 0 : index
    %c0_5 = arith.constant 0 : index
    %3 = vector.load %arg3[%c0_4, %c0_5] : memref<8x72xf32, #tpu.memory_space<vmem>>, vector<8x72xf32>
    %c0_6 = arith.constant 0 : index
    %c0_7 = arith.constant 0 : index
    %4 = vector.load %arg4[%c0_6, %c0_7] : memref<8x1xf32, #tpu.memory_space<vmem>>, vector<8x1xf32>
    %c0_8 = arith.constant 0 : index
    %c0_9 = arith.constant 0 : index
    %5 = vector.load %arg5[%c0_8, %c0_9] : memref<8x1xf32, #tpu.memory_space<vmem>>, vector<8x1xf32>
    %c0_10 = arith.constant 0 : index
    %c0_11 = arith.constant 0 : index
    %6 = vector.load %arg6[%c0_10, %c0_11] : memref<8x1xf32, #tpu.memory_space<vmem>>, vector<8x1xf32>
    %c0_12 = arith.constant 0 : index
    %c0_13 = arith.constant 0 : index
    %7 = vector.load %arg7[%c0_12, %c0_13] : memref<8x1xf32, #tpu.memory_space<vmem>>, vector<8x1xf32>
    %c0_14 = arith.constant 0 : index
    %c0_15 = arith.constant 0 : index
    %8 = vector.load %arg8[%c0_14, %c0_15] : memref<1x100xf32, #tpu.memory_space<vmem>>, vector<1x100xf32>
    %9 = vector.extract_strided_slice %1 {offsets = [0, 0], sizes = [8, 100], strides = [1, 1]} : vector<8x118xf32> to vector<8x100xf32>
    %c0_16 = arith.constant 0 : index
    %c0_17 = arith.constant 0 : index
    %10 = vector.load %arg10[%c0_16, %c0_17] : memref<72x100xf32, #tpu.memory_space<vmem>>, vector<8x100xf32>
    tpu.vector_store %arg10[%c0_16, %c0_17], %9 {strides = array<i32>} : memref<72x100xf32, #tpu.memory_space<vmem>>, vector<8x100xf32>,
    %11 = vector.extract_strided_slice %1 {offsets = [0, 1], sizes = [8, 100], strides = [1, 1]} : vector<8x118xf32> to vector<8x100xf32>
    %c8 = arith.constant 8 : index
    %c0_18 = arith.constant 0 : index
    %12 = vector.load %arg10[%c8, %c0_18] : memref<72x100xf32, #tpu.memory_space<vmem>>, vector<8x100xf32>
    tpu.vector_store %arg10[%c8, %c0_18], %11 {strides = array<i32>} : memref<72x100xf32, #tpu.memory_space<vmem>>, vector<8x100xf32>,
    %13 = vector.extract_strided_slice %1 {offsets = [0, 2], sizes = [8, 100], strides = [1, 1]} : vector<8x118xf32> to vector<8x100xf32>
    %c16 = arith.constant 16 : index
    %c0_19 = arith.constant 0 : index
    %14 = vector.load %arg10[%c16, %c0_19] : memref<72x100xf32, #tpu.memory_space<vmem>>, vector<8x100xf32>
    tpu.vector_store %arg10[%c16, %c0_19], %13 {strides = array<i32>} : memref<72x100xf32, #tpu.memory_space<vmem>>, vector<8x100xf32>,
    %15 = vector.extract_strided_slice %1 {offsets = [0, 8], sizes = [8, 100], strides = [1, 1]} : vector<8x118xf32> to vector<8x100xf32>
    %c24 = arith.constant 24 : index
    %c0_20 = arith.constant 0 : index
    %16 = vector.load %arg10[%c24, %c0_20] : memref<72x100xf32, #tpu.memory_space<vmem>>, vector<8x100xf32>
    tpu.vector_store %arg10[%c24, %c0_20], %15 {strides = array<i32>} : memref<72x100xf32, #tpu.memory_space<vmem>>, vector<8x100xf32>,
    %17 = vector.extract_strided_slice %1 {offsets = [0, 9], sizes = [8, 100], strides = [1, 1]} : vector<8x118xf32> to vector<8x100xf32>
    %c32 = arith.constant 32 : index
    %c0_21 = arith.constant 0 : index
    %18 = vector.load %arg10[%c32, %c0_21] : memref<72x100xf32, #tpu.memory_space<vmem>>, vector<8x100xf32>
    tpu.vector_store %arg10[%c32, %c0_21], %17 {strides = array<i32>} : memref<72x100xf32, #tpu.memory_space<vmem>>, vector<8x100xf32>,
    %19 = vector.extract_strided_slice %1 {offsets = [0, 10], sizes = [8, 100], strides = [1, 1]} : vector<8x118xf32> to vector<8x100xf32>
    %c40 = arith.constant 40 : index
    %c0_22 = arith.constant 0 : index
    %20 = vector.load %arg10[%c40, %c0_22] : memref<72x100xf32, #tpu.memory_space<vmem>>, vector<8x100xf32>
    tpu.vector_store %arg10[%c40, %c0_22], %19 {strides = array<i32>} : memref<72x100xf32, #tpu.memory_space<vmem>>, vector<8x100xf32>,
    %21 = vector.extract_strided_slice %1 {offsets = [0, 16], sizes = [8, 100], strides = [1, 1]} : vector<8x118xf32> to vector<8x100xf32>
    %c48 = arith.constant 48 : index
    %c0_23 = arith.constant 0 : index
    %22 = vector.load %arg10[%c48, %c0_23] : memref<72x100xf32, #tpu.memory_space<vmem>>, vector<8x100xf32>
    tpu.vector_store %arg10[%c48, %c0_23], %21 {strides = array<i32>} : memref<72x100xf32, #tpu.memory_space<vmem>>, vector<8x100xf32>,
    %23 = vector.extract_strided_slice %1 {offsets = [0, 17], sizes = [8, 100], strides = [1, 1]} : vector<8x118xf32> to vector<8x100xf32>
    %c56 = arith.constant 56 : index
    %c0_24 = arith.constant 0 : index
    %24 = vector.load %arg10[%c56, %c0_24] : memref<72x100xf32, #tpu.memory_space<vmem>>, vector<8x100xf32>
    tpu.vector_store %arg10[%c56, %c0_24], %23 {strides = array<i32>} : memref<72x100xf32, #tpu.memory_space<vmem>>, vector<8x100xf32>,
    %25 = vector.extract_strided_slice %1 {offsets = [0, 18], sizes = [8, 100], strides = [1, 1]} : vector<8x118xf32> to vector<8x100xf32>
    %c64 = arith.constant 64 : index
    %c0_25 = arith.constant 0 : index
    %26 = vector.load %arg10[%c64, %c0_25] : memref<72x100xf32, #tpu.memory_space<vmem>>, vector<8x100xf32>
    tpu.vector_store %arg10[%c64, %c0_25], %25 {strides = array<i32>} : memref<72x100xf32, #tpu.memory_space<vmem>>, vector<8x100xf32>,
    %c0_26 = arith.constant 0 : index
    %c0_27 = arith.constant 0 : index
    %27 = vector.load %arg10[%c0_26, %c0_27] : memref<72x100xf32, #tpu.memory_space<vmem>>, vector<72x100xf32>
    %cst = arith.constant dense<0.000000e+00> : vector<8x100xf32>
    %28 = tpu.matmul %2, %27, %cst {dimension_numbers = #tpu.dot_dimension_numbers<[1], [0], [0], [1], [0, 0, 1, 1], [], []>} : vector<8x72xf32>, vector<72x100xf32>, vector<8x100xf32> -> vector<8x100xf32>
    %29 = vector.broadcast %4 : vector<8x1xf32> to vector<8x100xf32>
    %30 = arith.mulf %28, %29 : vector<8x100xf32>
    %31 = vector.broadcast %5 : vector<8x1xf32> to vector<8x100xf32>
    %32 = arith.addf %30, %31 : vector<8x100xf32>
    %cst_28 = arith.constant 0.000000e+00 : f32
    %33 = vector.broadcast %cst_28 : f32 to vector<8x100xf32>
    %34 = arith.maximumf %32, %33 : vector<8x100xf32>
    %35 = vector.broadcast %8 : vector<1x100xf32> to vector<8x100xf32>
    %36 = arith.mulf %34, %35 : vector<8x100xf32>
    %37 = vector.extract_strided_slice %36 {offsets = [0, 0], sizes = [8, 82], strides = [1, 1]} : vector<8x100xf32> to vector<8x82xf32>
    %c0_29 = arith.constant 0 : index
    %c0_30 = arith.constant 0 : index
    %38 = vector.load %arg11[%c0_29, %c0_30] : memref<72x82xf32, #tpu.memory_space<vmem>>, vector<8x82xf32>
    tpu.vector_store %arg11[%c0_29, %c0_30], %37 {strides = array<i32>} : memref<72x82xf32, #tpu.memory_space<vmem>>, vector<8x82xf32>,
    %39 = vector.extract_strided_slice %36 {offsets = [0, 1], sizes = [8, 82], strides = [1, 1]} : vector<8x100xf32> to vector<8x82xf32>
    %c8_31 = arith.constant 8 : index
    %c0_32 = arith.constant 0 : index
    %40 = vector.load %arg11[%c8_31, %c0_32] : memref<72x82xf32, #tpu.memory_space<vmem>>, vector<8x82xf32>
    tpu.vector_store %arg11[%c8_31, %c0_32], %39 {strides = array<i32>} : memref<72x82xf32, #tpu.memory_space<vmem>>, vector<8x82xf32>,
    %41 = vector.extract_strided_slice %36 {offsets = [0, 2], sizes = [8, 82], strides = [1, 1]} : vector<8x100xf32> to vector<8x82xf32>
    %c16_33 = arith.constant 16 : index
    %c0_34 = arith.constant 0 : index
    %42 = vector.load %arg11[%c16_33, %c0_34] : memref<72x82xf32, #tpu.memory_space<vmem>>, vector<8x82xf32>
    tpu.vector_store %arg11[%c16_33, %c0_34], %41 {strides = array<i32>} : memref<72x82xf32, #tpu.memory_space<vmem>>, vector<8x82xf32>,
    %43 = vector.extract_strided_slice %36 {offsets = [0, 8], sizes = [8, 82], strides = [1, 1]} : vector<8x100xf32> to vector<8x82xf32>
    %c24_35 = arith.constant 24 : index
    %c0_36 = arith.constant 0 : index
    %44 = vector.load %arg11[%c24_35, %c0_36] : memref<72x82xf32, #tpu.memory_space<vmem>>, vector<8x82xf32>
    tpu.vector_store %arg11[%c24_35, %c0_36], %43 {strides = array<i32>} : memref<72x82xf32, #tpu.memory_space<vmem>>, vector<8x82xf32>,
    %45 = vector.extract_strided_slice %36 {offsets = [0, 9], sizes = [8, 82], strides = [1, 1]} : vector<8x100xf32> to vector<8x82xf32>
    %c32_37 = arith.constant 32 : index
    %c0_38 = arith.constant 0 : index
    %46 = vector.load %arg11[%c32_37, %c0_38] : memref<72x82xf32, #tpu.memory_space<vmem>>, vector<8x82xf32>
    tpu.vector_store %arg11[%c32_37, %c0_38], %45 {strides = array<i32>} : memref<72x82xf32, #tpu.memory_space<vmem>>, vector<8x82xf32>,
    %47 = vector.extract_strided_slice %36 {offsets = [0, 10], sizes = [8, 82], strides = [1, 1]} : vector<8x100xf32> to vector<8x82xf32>
    %c40_39 = arith.constant 40 : index
    %c0_40 = arith.constant 0 : index
    %48 = vector.load %arg11[%c40_39, %c0_40] : memref<72x82xf32, #tpu.memory_space<vmem>>, vector<8x82xf32>
    tpu.vector_store %arg11[%c40_39, %c0_40], %47 {strides = array<i32>} : memref<72x82xf32, #tpu.memory_space<vmem>>, vector<8x82xf32>,
    %49 = vector.extract_strided_slice %36 {offsets = [0, 16], sizes = [8, 82], strides = [1, 1]} : vector<8x100xf32> to vector<8x82xf32>
    %c48_41 = arith.constant 48 : index
    %c0_42 = arith.constant 0 : index
    %50 = vector.load %arg11[%c48_41, %c0_42] : memref<72x82xf32, #tpu.memory_space<vmem>>, vector<8x82xf32>
    tpu.vector_store %arg11[%c48_41, %c0_42], %49 {strides = array<i32>} : memref<72x82xf32, #tpu.memory_space<vmem>>, vector<8x82xf32>,
    %51 = vector.extract_strided_slice %36 {offsets = [0, 17], sizes = [8, 82], strides = [1, 1]} : vector<8x100xf32> to vector<8x82xf32>
    %c56_43 = arith.constant 56 : index
    %c0_44 = arith.constant 0 : index
    %52 = vector.load %arg11[%c56_43, %c0_44] : memref<72x82xf32, #tpu.memory_space<vmem>>, vector<8x82xf32>
    tpu.vector_store %arg11[%c56_43, %c0_44], %51 {strides = array<i32>} : memref<72x82xf32, #tpu.memory_space<vmem>>, vector<8x82xf32>,
    %53 = vector.extract_strided_slice %36 {offsets = [0, 18], sizes = [8, 82], strides = [1, 1]} : vector<8x100xf32> to vector<8x82xf32>
    %c64_45 = arith.constant 64 : index
    %c0_46 = arith.constant 0 : index
    %54 = vector.load %arg11[%c64_45, %c0_46] : memref<72x82xf32, #tpu.memory_space<vmem>>, vector<8x82xf32>
    tpu.vector_store %arg11[%c64_45, %c0_46], %53 {strides = array<i32>} : memref<72x82xf32, #tpu.memory_space<vmem>>, vector<8x82xf32>,
    %c0_47 = arith.constant 0 : index
    %c0_48 = arith.constant 0 : index
    %55 = vector.load %arg11[%c0_47, %c0_48] : memref<72x82xf32, #tpu.memory_space<vmem>>, vector<72x82xf32>
    %cst_49 = arith.constant dense<0.000000e+00> : vector<8x82xf32>
    %56 = tpu.matmul %3, %55, %cst_49 {dimension_numbers = #tpu.dot_dimension_numbers<[1], [0], [0], [1], [0, 0, 1, 1], [], []>} : vector<8x72xf32>, vector<72x82xf32>, vector<8x82xf32> -> vector<8x82xf32>
    %57 = vector.broadcast %6 : vector<8x1xf32> to vector<8x82xf32>
    %58 = arith.mulf %56, %57 : vector<8x82xf32>
    %59 = vector.broadcast %7 : vector<8x1xf32> to vector<8x82xf32>
    %60 = arith.addf %58, %59 : vector<8x82xf32>
    %61 = vector.extract_strided_slice %8 {offsets = [0, 9], sizes = [1, 82], strides = [1, 1]} : vector<1x100xf32> to vector<1x82xf32>
    %cst_50 = arith.constant 0.000000e+00 : f32
    %62 = vector.broadcast %cst_50 : f32 to vector<8x82xf32>
    %63 = arith.maximumf %60, %62 : vector<8x82xf32>
    %64 = vector.broadcast %61 : vector<1x82xf32> to vector<8x82xf32>
    %65 = arith.mulf %63, %64 : vector<8x82xf32>
    %66 = vector.extract_strided_slice %1 {offsets = [0, 18], sizes = [8, 82], strides = [1, 1]} : vector<8x118xf32> to vector<8x82xf32>
    %cst_51 = arith.constant 0.000000e+00 : f32
    %67 = vector.broadcast %cst_51 : f32 to vector<8x82xf32>
    %68 = arith.maximumf %66, %67 : vector<8x82xf32>
    %69 = vector.extract_strided_slice %65 {offsets = [0, 0], sizes = [8, 64], strides = [1, 1]} : vector<8x82xf32> to vector<8x64xf32>
    %70 = vector.extract_strided_slice %68 {offsets = [0, 0], sizes = [8, 64], strides = [1, 1]} : vector<8x82xf32> to vector<8x64xf32>
    %71 = vector.extract_strided_slice %65 {offsets = [0, 1], sizes = [8, 64], strides = [1, 1]} : vector<8x82xf32> to vector<8x64xf32>
    %72 = arith.maximumf %69, %71 : vector<8x64xf32>
    %73 = vector.extract_strided_slice %68 {offsets = [0, 1], sizes = [8, 64], strides = [1, 1]} : vector<8x82xf32> to vector<8x64xf32>
    %74 = arith.maximumf %70, %73 : vector<8x64xf32>
    %75 = vector.extract_strided_slice %65 {offsets = [0, 2], sizes = [8, 64], strides = [1, 1]} : vector<8x82xf32> to vector<8x64xf32>
    %76 = arith.maximumf %72, %75 : vector<8x64xf32>
    %77 = vector.extract_strided_slice %68 {offsets = [0, 2], sizes = [8, 64], strides = [1, 1]} : vector<8x82xf32> to vector<8x64xf32>
    %78 = arith.maximumf %74, %77 : vector<8x64xf32>
    %79 = vector.extract_strided_slice %65 {offsets = [0, 8], sizes = [8, 64], strides = [1, 1]} : vector<8x82xf32> to vector<8x64xf32>
    %80 = arith.maximumf %76, %79 : vector<8x64xf32>
    %81 = vector.extract_strided_slice %68 {offsets = [0, 8], sizes = [8, 64], strides = [1, 1]} : vector<8x82xf32> to vector<8x64xf32>
    %82 = arith.maximumf %78, %81 : vector<8x64xf32>
    %83 = vector.extract_strided_slice %65 {offsets = [0, 9], sizes = [8, 64], strides = [1, 1]} : vector<8x82xf32> to vector<8x64xf32>
    %84 = arith.maximumf %80, %83 : vector<8x64xf32>
    %85 = vector.extract_strided_slice %68 {offsets = [0, 9], sizes = [8, 64], strides = [1, 1]} : vector<8x82xf32> to vector<8x64xf32>
    %86 = arith.maximumf %82, %85 : vector<8x64xf32>
    %87 = vector.extract_strided_slice %65 {offsets = [0, 10], sizes = [8, 64], strides = [1, 1]} : vector<8x82xf32> to vector<8x64xf32>
    %88 = arith.maximumf %84, %87 : vector<8x64xf32>
    %89 = vector.extract_strided_slice %68 {offsets = [0, 10], sizes = [8, 64], strides = [1, 1]} : vector<8x82xf32> to vector<8x64xf32>
    %90 = arith.maximumf %86, %89 : vector<8x64xf32>
    %91 = vector.extract_strided_slice %65 {offsets = [0, 16], sizes = [8, 64], strides = [1, 1]} : vector<8x82xf32> to vector<8x64xf32>
    %92 = arith.maximumf %88, %91 : vector<8x64xf32>
    %93 = vector.extract_strided_slice %68 {offsets = [0, 16], sizes = [8, 64], strides = [1, 1]} : vector<8x82xf32> to vector<8x64xf32>
    %94 = arith.maximumf %90, %93 : vector<8x64xf32>
    %95 = vector.extract_strided_slice %65 {offsets = [0, 17], sizes = [8, 64], strides = [1, 1]} : vector<8x82xf32> to vector<8x64xf32>
    %96 = arith.maximumf %92, %95 : vector<8x64xf32>
    %97 = vector.extract_strided_slice %68 {offsets = [0, 17], sizes = [8, 64], strides = [1, 1]} : vector<8x82xf32> to vector<8x64xf32>
    %98 = arith.maximumf %94, %97 : vector<8x64xf32>
    %99 = vector.extract_strided_slice %65 {offsets = [0, 18], sizes = [8, 64], strides = [1, 1]} : vector<8x82xf32> to vector<8x64xf32>
    %100 = arith.maximumf %96, %99 : vector<8x64xf32>
    %101 = vector.extract_strided_slice %68 {offsets = [0, 18], sizes = [8, 64], strides = [1, 1]} : vector<8x82xf32> to vector<8x64xf32>
    %102 = arith.maximumf %98, %101 : vector<8x64xf32>
    %c0_52 = arith.constant 0 : index
    %c0_53 = arith.constant 0 : index
    %c0_54 = arith.constant 0 : index
    %103 = vector.load %arg9[%c0_52, %c0_53, %c0_54] : memref<1x16x64xf32, #tpu.memory_space<vmem>>, vector<1x8x64xf32>
    %104 = vector.shape_cast %103 : vector<1x8x64xf32> to vector<8x64xf32>
    %105 = vector.shape_cast %100 : vector<8x64xf32> to vector<1x8x64xf32>
    tpu.vector_store %arg9[%c0_52, %c0_53, %c0_54], %105 {strides = array<i32>} : memref<1x16x64xf32, #tpu.memory_space<vmem>>, vector<1x8x64xf32>,
    %c0_55 = arith.constant 0 : index
    %c8_56 = arith.constant 8 : index
    %c0_57 = arith.constant 0 : index
    %106 = vector.load %arg9[%c0_55, %c8_56, %c0_57] : memref<1x16x64xf32, #tpu.memory_space<vmem>>, vector<1x8x64xf32>
    %107 = vector.shape_cast %106 : vector<1x8x64xf32> to vector<8x64xf32>
    %108 = vector.shape_cast %102 : vector<8x64xf32> to vector<1x8x64xf32>
    tpu.vector_store %arg9[%c0_55, %c8_56, %c0_57], %108 {strides = array<i32>} : memref<1x16x64xf32, #tpu.memory_space<vmem>>, vector<1x8x64xf32>,
    return
  }
  func.func @transform_0(%arg0: i32) -> (i32, i32, i32) {
    %c0_i32 = arith.constant 0 : i32
    %c0_i32_0 = arith.constant 0 : i32
    %c0_i32_1 = arith.constant 0 : i32
    return %arg0, %c0_i32, %c0_i32_0 : i32, i32, i32
  }
  func.func @transform_1(%arg0: i32) -> (i32, i32) {
    %c0_i32 = arith.constant 0 : i32
    %c0_i32_0 = arith.constant 0 : i32
    %c0_i32_1 = arith.constant 0 : i32
    return %c0_i32, %c0_i32_0 : i32, i32
  }
  func.func @transform_2(%arg0: i32) -> (i32, i32) {
    %c0_i32 = arith.constant 0 : i32
    %c0_i32_0 = arith.constant 0 : i32
    %c0_i32_1 = arith.constant 0 : i32
    return %c0_i32, %c0_i32_0 : i32, i32
  }
  func.func @transform_3(%arg0: i32) -> (i32, i32) {
    %c0_i32 = arith.constant 0 : i32
    %c0_i32_0 = arith.constant 0 : i32
    %c0_i32_1 = arith.constant 0 : i32
    return %c0_i32, %c0_i32_0 : i32, i32
  }
  func.func @transform_4(%arg0: i32) -> (i32, i32) {
    %c0_i32 = arith.constant 0 : i32
    %c0_i32_0 = arith.constant 0 : i32
    %c0_i32_1 = arith.constant 0 : i32
    return %c0_i32, %c0_i32_0 : i32, i32
  }
  func.func @transform_5(%arg0: i32) -> (i32, i32) {
    %c0_i32 = arith.constant 0 : i32
    %c0_i32_0 = arith.constant 0 : i32
    %c0_i32_1 = arith.constant 0 : i32
    return %c0_i32, %c0_i32_0 : i32, i32
  }
  func.func @transform_6(%arg0: i32) -> (i32, i32) {
    %c0_i32 = arith.constant 0 : i32
    %c0_i32_0 = arith.constant 0 : i32
    %c0_i32_1 = arith.constant 0 : i32
    return %c0_i32, %c0_i32_0 : i32, i32
  }
  func.func @transform_7(%arg0: i32) -> (i32, i32) {
    %c0_i32 = arith.constant 0 : i32
    %c0_i32_0 = arith.constant 0 : i32
    %c0_i32_1 = arith.constant 0 : i32
    return %c0_i32, %c0_i32_0 : i32, i32
  }
  func.func @transform_8(%arg0: i32) -> (i32, i32, i32) {
    %c0_i32 = arith.constant 0 : i32
    %c0_i32_0 = arith.constant 0 : i32
    %c0_i32_1 = arith.constant 0 : i32
    return %arg0, %c0_i32, %c0_i32_0 : i32, i32, i32
  }
}

module attributes {stable_mosaic.version = 11 : i64} {
  func.func @_tail_kernel(%arg0: i32, %arg1: memref<16x62xf32, #tpu.memory_space<vmem>>, %arg2: memref<16x144xf32, #tpu.memory_space<vmem>>, %arg3: memref<16x144xf32, #tpu.memory_space<vmem>>, %arg4: memref<16x1xf32, #tpu.memory_space<vmem>>, %arg5: memref<16x1xf32, #tpu.memory_space<vmem>>, %arg6: memref<16x1xf32, #tpu.memory_space<vmem>>, %arg7: memref<16x1xf32, #tpu.memory_space<vmem>>, %arg8: memref<1x52xf32, #tpu.memory_space<vmem>>, %arg9: memref<32x288xf32, #tpu.memory_space<vmem>>, %arg10: memref<32x288xf32, #tpu.memory_space<vmem>>, %arg11: memref<32x1xf32, #tpu.memory_space<vmem>>, %arg12: memref<32x1xf32, #tpu.memory_space<vmem>>, %arg13: memref<32x1xf32, #tpu.memory_space<vmem>>, %arg14: memref<32x1xf32, #tpu.memory_space<vmem>>, %arg15: memref<1x34xf32, #tpu.memory_space<vmem>>, %arg16: memref<32x42xf32, #tpu.memory_space<vmem>>, %arg17: memref<18x2xf32, #tpu.memory_space<vmem>>, %arg18: memref<64x32xf32, #tpu.memory_space<vmem>>, %arg19: memref<64x32xf32, #tpu.memory_space<vmem>>, %arg20: memref<64x1xf32, #tpu.memory_space<vmem>>, %arg21: memref<64x64xf32, #tpu.memory_space<vmem>>, %arg22: memref<64x1xf32, #tpu.memory_space<vmem>>, %arg23: memref<10x64xf32, #tpu.memory_space<vmem>>, %arg24: memref<10x1xf32, #tpu.memory_space<vmem>>, %arg25: memref<10x2xf32, #tpu.memory_space<vmem>>, %arg26: memref<144x52xf32, #tpu.memory_space<vmem>>, %arg27: memref<144x42xf32, #tpu.memory_space<vmem>>, %arg28: memref<288x34xf32, #tpu.memory_space<vmem>>, %arg29: memref<288x26xf32, #tpu.memory_space<vmem>>, %arg30: memref<32x42xf32, #tpu.memory_space<vmem>>) attributes {dimension_semantics = [#tpu.dimension_semantics<arbitrary>], iteration_bounds = array<i64: 1>, scalar_prefetch = 0 : i64, scratch_operands = 5 : i64, tpu.core_type = #tpu.core_type<tc>, window_params = [{pipeline_mode = #tpu.pipeline_mode<synchronous>, transform_indices = @transform_0, window_bounds = array<i64: 16, 62>}, {pipeline_mode = #tpu.pipeline_mode<synchronous>, transform_indices = @transform_1, window_bounds = array<i64: 16, 144>}, {pipeline_mode = #tpu.pipeline_mode<synchronous>, transform_indices = @transform_2, window_bounds = array<i64: 16, 144>}, {pipeline_mode = #tpu.pipeline_mode<synchronous>, transform_indices = @transform_3, window_bounds = array<i64: 16, 1>}, {pipeline_mode = #tpu.pipeline_mode<synchronous>, transform_indices = @transform_4, window_bounds = array<i64: 16, 1>}, {pipeline_mode = #tpu.pipeline_mode<synchronous>, transform_indices = @transform_5, window_bounds = array<i64: 16, 1>}, {pipeline_mode = #tpu.pipeline_mode<synchronous>, transform_indices = @transform_6, window_bounds = array<i64: 16, 1>}, {pipeline_mode = #tpu.pipeline_mode<synchronous>, transform_indices = @transform_7, window_bounds = array<i64: 1, 52>}, {pipeline_mode = #tpu.pipeline_mode<synchronous>, transform_indices = @transform_8, window_bounds = array<i64: 32, 288>}, {pipeline_mode = #tpu.pipeline_mode<synchronous>, transform_indices = @transform_9, window_bounds = array<i64: 32, 288>}, {pipeline_mode = #tpu.pipeline_mode<synchronous>, transform_indices = @transform_10, window_bounds = array<i64: 32, 1>}, {pipeline_mode = #tpu.pipeline_mode<synchronous>, transform_indices = @transform_11, window_bounds = array<i64: 32, 1>}, {pipeline_mode = #tpu.pipeline_mode<synchronous>, transform_indices = @transform_12, window_bounds = array<i64: 32, 1>}, {pipeline_mode = #tpu.pipeline_mode<synchronous>, transform_indices = @transform_13, window_bounds = array<i64: 32, 1>}, {pipeline_mode = #tpu.pipeline_mode<synchronous>, transform_indices = @transform_14, window_bounds = array<i64: 1, 34>}, {pipeline_mode = #tpu.pipeline_mode<synchronous>, transform_indices = @transform_15, window_bounds = array<i64: 32, 42>}, {pipeline_mode = #tpu.pipeline_mode<synchronous>, transform_indices = @transform_16, window_bounds = array<i64: 18, 2>}, {pipeline_mode = #tpu.pipeline_mode<synchronous>, transform_indices = @transform_17, window_bounds = array<i64: 64, 32>}, {pipeline_mode = #tpu.pipeline_mode<synchronous>, transform_indices = @transform_18, window_bounds = array<i64: 64, 32>}, {pipeline_mode = #tpu.pipeline_mode<synchronous>, transform_indices = @transform_19, window_bounds = array<i64: 64, 1>}, {pipeline_mode = #tpu.pipeline_mode<synchronous>, transform_indices = @transform_20, window_bounds = array<i64: 64, 64>}, {pipeline_mode = #tpu.pipeline_mode<synchronous>, transform_indices = @transform_21, window_bounds = array<i64: 64, 1>}, {pipeline_mode = #tpu.pipeline_mode<synchronous>, transform_indices = @transform_22, window_bounds = array<i64: 10, 64>}, {pipeline_mode = #tpu.pipeline_mode<synchronous>, transform_indices = @transform_23, window_bounds = array<i64: 10, 1>}, {pipeline_mode = #tpu.pipeline_mode<synchronous>, transform_indices = @transform_24, window_bounds = array<i64: 10, 2>}]} {
    %c0 = arith.constant 0 : index
    %c0_0 = arith.constant 0 : index
    %0 = vector.load %arg1[%c0, %c0_0] : memref<16x62xf32, #tpu.memory_space<vmem>>, vector<16x62xf32>
    %c0_1 = arith.constant 0 : index
    %c0_2 = arith.constant 0 : index
    %1 = vector.load %arg2[%c0_1, %c0_2] : memref<16x144xf32, #tpu.memory_space<vmem>>, vector<16x144xf32>
    %c0_3 = arith.constant 0 : index
    %c0_4 = arith.constant 0 : index
    %2 = vector.load %arg3[%c0_3, %c0_4] : memref<16x144xf32, #tpu.memory_space<vmem>>, vector<16x144xf32>
    %c0_5 = arith.constant 0 : index
    %c0_6 = arith.constant 0 : index
    %3 = vector.load %arg4[%c0_5, %c0_6] : memref<16x1xf32, #tpu.memory_space<vmem>>, vector<16x1xf32>
    %c0_7 = arith.constant 0 : index
    %c0_8 = arith.constant 0 : index
    %4 = vector.load %arg5[%c0_7, %c0_8] : memref<16x1xf32, #tpu.memory_space<vmem>>, vector<16x1xf32>
    %c0_9 = arith.constant 0 : index
    %c0_10 = arith.constant 0 : index
    %5 = vector.load %arg6[%c0_9, %c0_10] : memref<16x1xf32, #tpu.memory_space<vmem>>, vector<16x1xf32>
    %c0_11 = arith.constant 0 : index
    %c0_12 = arith.constant 0 : index
    %6 = vector.load %arg7[%c0_11, %c0_12] : memref<16x1xf32, #tpu.memory_space<vmem>>, vector<16x1xf32>
    %c0_13 = arith.constant 0 : index
    %c0_14 = arith.constant 0 : index
    %7 = vector.load %arg8[%c0_13, %c0_14] : memref<1x52xf32, #tpu.memory_space<vmem>>, vector<1x52xf32>
    %8 = vector.extract_strided_slice %0 {offsets = [0, 0], sizes = [16, 52], strides = [1, 1]} : vector<16x62xf32> to vector<16x52xf32>
    %c0_15 = arith.constant 0 : index
    %c0_16 = arith.constant 0 : index
    %9 = vector.load %arg26[%c0_15, %c0_16] : memref<144x52xf32, #tpu.memory_space<vmem>>, vector<16x52xf32>
    tpu.vector_store %arg26[%c0_15, %c0_16], %8 {strides = array<i32>} : memref<144x52xf32, #tpu.memory_space<vmem>>, vector<16x52xf32>,
    %10 = vector.extract_strided_slice %0 {offsets = [0, 1], sizes = [16, 52], strides = [1, 1]} : vector<16x62xf32> to vector<16x52xf32>
    %c16 = arith.constant 16 : index
    %c0_17 = arith.constant 0 : index
    %11 = vector.load %arg26[%c16, %c0_17] : memref<144x52xf32, #tpu.memory_space<vmem>>, vector<16x52xf32>
    tpu.vector_store %arg26[%c16, %c0_17], %10 {strides = array<i32>} : memref<144x52xf32, #tpu.memory_space<vmem>>, vector<16x52xf32>,
    %12 = vector.extract_strided_slice %0 {offsets = [0, 2], sizes = [16, 52], strides = [1, 1]} : vector<16x62xf32> to vector<16x52xf32>
    %c32 = arith.constant 32 : index
    %c0_18 = arith.constant 0 : index
    %13 = vector.load %arg26[%c32, %c0_18] : memref<144x52xf32, #tpu.memory_space<vmem>>, vector<16x52xf32>
    tpu.vector_store %arg26[%c32, %c0_18], %12 {strides = array<i32>} : memref<144x52xf32, #tpu.memory_space<vmem>>, vector<16x52xf32>,
    %14 = vector.extract_strided_slice %0 {offsets = [0, 4], sizes = [16, 52], strides = [1, 1]} : vector<16x62xf32> to vector<16x52xf32>
    %c48 = arith.constant 48 : index
    %c0_19 = arith.constant 0 : index
    %15 = vector.load %arg26[%c48, %c0_19] : memref<144x52xf32, #tpu.memory_space<vmem>>, vector<16x52xf32>
    tpu.vector_store %arg26[%c48, %c0_19], %14 {strides = array<i32>} : memref<144x52xf32, #tpu.memory_space<vmem>>, vector<16x52xf32>,
    %16 = vector.extract_strided_slice %0 {offsets = [0, 5], sizes = [16, 52], strides = [1, 1]} : vector<16x62xf32> to vector<16x52xf32>
    %c64 = arith.constant 64 : index
    %c0_20 = arith.constant 0 : index
    %17 = vector.load %arg26[%c64, %c0_20] : memref<144x52xf32, #tpu.memory_space<vmem>>, vector<16x52xf32>
    tpu.vector_store %arg26[%c64, %c0_20], %16 {strides = array<i32>} : memref<144x52xf32, #tpu.memory_space<vmem>>, vector<16x52xf32>,
    %18 = vector.extract_strided_slice %0 {offsets = [0, 6], sizes = [16, 52], strides = [1, 1]} : vector<16x62xf32> to vector<16x52xf32>
    %c80 = arith.constant 80 : index
    %c0_21 = arith.constant 0 : index
    %19 = vector.load %arg26[%c80, %c0_21] : memref<144x52xf32, #tpu.memory_space<vmem>>, vector<16x52xf32>
    tpu.vector_store %arg26[%c80, %c0_21], %18 {strides = array<i32>} : memref<144x52xf32, #tpu.memory_space<vmem>>, vector<16x52xf32>,
    %20 = vector.extract_strided_slice %0 {offsets = [0, 8], sizes = [16, 52], strides = [1, 1]} : vector<16x62xf32> to vector<16x52xf32>
    %c96 = arith.constant 96 : index
    %c0_22 = arith.constant 0 : index
    %21 = vector.load %arg26[%c96, %c0_22] : memref<144x52xf32, #tpu.memory_space<vmem>>, vector<16x52xf32>
    tpu.vector_store %arg26[%c96, %c0_22], %20 {strides = array<i32>} : memref<144x52xf32, #tpu.memory_space<vmem>>, vector<16x52xf32>,
    %22 = vector.extract_strided_slice %0 {offsets = [0, 9], sizes = [16, 52], strides = [1, 1]} : vector<16x62xf32> to vector<16x52xf32>
    %c112 = arith.constant 112 : index
    %c0_23 = arith.constant 0 : index
    %23 = vector.load %arg26[%c112, %c0_23] : memref<144x52xf32, #tpu.memory_space<vmem>>, vector<16x52xf32>
    tpu.vector_store %arg26[%c112, %c0_23], %22 {strides = array<i32>} : memref<144x52xf32, #tpu.memory_space<vmem>>, vector<16x52xf32>,
    %24 = vector.extract_strided_slice %0 {offsets = [0, 10], sizes = [16, 52], strides = [1, 1]} : vector<16x62xf32> to vector<16x52xf32>
    %c128 = arith.constant 128 : index
    %c0_24 = arith.constant 0 : index
    %25 = vector.load %arg26[%c128, %c0_24] : memref<144x52xf32, #tpu.memory_space<vmem>>, vector<16x52xf32>
    tpu.vector_store %arg26[%c128, %c0_24], %24 {strides = array<i32>} : memref<144x52xf32, #tpu.memory_space<vmem>>, vector<16x52xf32>,
    %c0_25 = arith.constant 0 : index
    %c0_26 = arith.constant 0 : index
    %26 = vector.load %arg26[%c0_25, %c0_26] : memref<144x52xf32, #tpu.memory_space<vmem>>, vector<144x52xf32>
    %cst = arith.constant dense<0.000000e+00> : vector<16x52xf32>
    %27 = tpu.matmul %1, %26, %cst {dimension_numbers = #tpu.dot_dimension_numbers<[1], [0], [0], [1], [0, 0, 1, 1], [], []>} : vector<16x144xf32>, vector<144x52xf32>, vector<16x52xf32> -> vector<16x52xf32>
    %28 = vector.broadcast %3 : vector<16x1xf32> to vector<16x52xf32>
    %29 = arith.mulf %27, %28 : vector<16x52xf32>
    %30 = vector.broadcast %4 : vector<16x1xf32> to vector<16x52xf32>
    %31 = arith.addf %29, %30 : vector<16x52xf32>
    %cst_27 = arith.constant 0.000000e+00 : f32
    %32 = vector.broadcast %cst_27 : f32 to vector<16x52xf32>
    %33 = arith.maximumf %31, %32 : vector<16x52xf32>
    %34 = vector.broadcast %7 : vector<1x52xf32> to vector<16x52xf32>
    %35 = arith.mulf %33, %34 : vector<16x52xf32>
    %36 = vector.extract_strided_slice %35 {offsets = [0, 0], sizes = [16, 42], strides = [1, 1]} : vector<16x52xf32> to vector<16x42xf32>
    %c0_28 = arith.constant 0 : index
    %c0_29 = arith.constant 0 : index
    %37 = vector.load %arg27[%c0_28, %c0_29] : memref<144x42xf32, #tpu.memory_space<vmem>>, vector<16x42xf32>
    tpu.vector_store %arg27[%c0_28, %c0_29], %36 {strides = array<i32>} : memref<144x42xf32, #tpu.memory_space<vmem>>, vector<16x42xf32>,
    %38 = vector.extract_strided_slice %35 {offsets = [0, 1], sizes = [16, 42], strides = [1, 1]} : vector<16x52xf32> to vector<16x42xf32>
    %c16_30 = arith.constant 16 : index
    %c0_31 = arith.constant 0 : index
    %39 = vector.load %arg27[%c16_30, %c0_31] : memref<144x42xf32, #tpu.memory_space<vmem>>, vector<16x42xf32>
    tpu.vector_store %arg27[%c16_30, %c0_31], %38 {strides = array<i32>} : memref<144x42xf32, #tpu.memory_space<vmem>>, vector<16x42xf32>,
    %40 = vector.extract_strided_slice %35 {offsets = [0, 2], sizes = [16, 42], strides = [1, 1]} : vector<16x52xf32> to vector<16x42xf32>
    %c32_32 = arith.constant 32 : index
    %c0_33 = arith.constant 0 : index
    %41 = vector.load %arg27[%c32_32, %c0_33] : memref<144x42xf32, #tpu.memory_space<vmem>>, vector<16x42xf32>
    tpu.vector_store %arg27[%c32_32, %c0_33], %40 {strides = array<i32>} : memref<144x42xf32, #tpu.memory_space<vmem>>, vector<16x42xf32>,
    %42 = vector.extract_strided_slice %35 {offsets = [0, 4], sizes = [16, 42], strides = [1, 1]} : vector<16x52xf32> to vector<16x42xf32>
    %c48_34 = arith.constant 48 : index
    %c0_35 = arith.constant 0 : index
    %43 = vector.load %arg27[%c48_34, %c0_35] : memref<144x42xf32, #tpu.memory_space<vmem>>, vector<16x42xf32>
    tpu.vector_store %arg27[%c48_34, %c0_35], %42 {strides = array<i32>} : memref<144x42xf32, #tpu.memory_space<vmem>>, vector<16x42xf32>,
    %44 = vector.extract_strided_slice %35 {offsets = [0, 5], sizes = [16, 42], strides = [1, 1]} : vector<16x52xf32> to vector<16x42xf32>
    %c64_36 = arith.constant 64 : index
    %c0_37 = arith.constant 0 : index
    %45 = vector.load %arg27[%c64_36, %c0_37] : memref<144x42xf32, #tpu.memory_space<vmem>>, vector<16x42xf32>
    tpu.vector_store %arg27[%c64_36, %c0_37], %44 {strides = array<i32>} : memref<144x42xf32, #tpu.memory_space<vmem>>, vector<16x42xf32>,
    %46 = vector.extract_strided_slice %35 {offsets = [0, 6], sizes = [16, 42], strides = [1, 1]} : vector<16x52xf32> to vector<16x42xf32>
    %c80_38 = arith.constant 80 : index
    %c0_39 = arith.constant 0 : index
    %47 = vector.load %arg27[%c80_38, %c0_39] : memref<144x42xf32, #tpu.memory_space<vmem>>, vector<16x42xf32>
    tpu.vector_store %arg27[%c80_38, %c0_39], %46 {strides = array<i32>} : memref<144x42xf32, #tpu.memory_space<vmem>>, vector<16x42xf32>,
    %48 = vector.extract_strided_slice %35 {offsets = [0, 8], sizes = [16, 42], strides = [1, 1]} : vector<16x52xf32> to vector<16x42xf32>
    %c96_40 = arith.constant 96 : index
    %c0_41 = arith.constant 0 : index
    %49 = vector.load %arg27[%c96_40, %c0_41] : memref<144x42xf32, #tpu.memory_space<vmem>>, vector<16x42xf32>
    tpu.vector_store %arg27[%c96_40, %c0_41], %48 {strides = array<i32>} : memref<144x42xf32, #tpu.memory_space<vmem>>, vector<16x42xf32>,
    %50 = vector.extract_strided_slice %35 {offsets = [0, 9], sizes = [16, 42], strides = [1, 1]} : vector<16x52xf32> to vector<16x42xf32>
    %c112_42 = arith.constant 112 : index
    %c0_43 = arith.constant 0 : index
    %51 = vector.load %arg27[%c112_42, %c0_43] : memref<144x42xf32, #tpu.memory_space<vmem>>, vector<16x42xf32>
    tpu.vector_store %arg27[%c112_42, %c0_43], %50 {strides = array<i32>} : memref<144x42xf32, #tpu.memory_space<vmem>>, vector<16x42xf32>,
    %52 = vector.extract_strided_slice %35 {offsets = [0, 10], sizes = [16, 42], strides = [1, 1]} : vector<16x52xf32> to vector<16x42xf32>
    %c128_44 = arith.constant 128 : index
    %c0_45 = arith.constant 0 : index
    %53 = vector.load %arg27[%c128_44, %c0_45] : memref<144x42xf32, #tpu.memory_space<vmem>>, vector<16x42xf32>
    tpu.vector_store %arg27[%c128_44, %c0_45], %52 {strides = array<i32>} : memref<144x42xf32, #tpu.memory_space<vmem>>, vector<16x42xf32>,
    %c0_46 = arith.constant 0 : index
    %c0_47 = arith.constant 0 : index
    %54 = vector.load %arg27[%c0_46, %c0_47] : memref<144x42xf32, #tpu.memory_space<vmem>>, vector<144x42xf32>
    %cst_48 = arith.constant dense<0.000000e+00> : vector<16x42xf32>
    %55 = tpu.matmul %2, %54, %cst_48 {dimension_numbers = #tpu.dot_dimension_numbers<[1], [0], [0], [1], [0, 0, 1, 1], [], []>} : vector<16x144xf32>, vector<144x42xf32>, vector<16x42xf32> -> vector<16x42xf32>
    %56 = vector.broadcast %5 : vector<16x1xf32> to vector<16x42xf32>
    %57 = arith.mulf %55, %56 : vector<16x42xf32>
    %58 = vector.broadcast %6 : vector<16x1xf32> to vector<16x42xf32>
    %59 = arith.addf %57, %58 : vector<16x42xf32>
    %60 = vector.extract_strided_slice %7 {offsets = [0, 5], sizes = [1, 42], strides = [1, 1]} : vector<1x52xf32> to vector<1x42xf32>
    %cst_49 = arith.constant 0.000000e+00 : f32
    %61 = vector.broadcast %cst_49 : f32 to vector<16x42xf32>
    %62 = arith.maximumf %59, %61 : vector<16x42xf32>
    %63 = vector.broadcast %60 : vector<1x42xf32> to vector<16x42xf32>
    %64 = arith.mulf %62, %63 : vector<16x42xf32>
    %65 = vector.extract_strided_slice %0 {offsets = [0, 10], sizes = [16, 42], strides = [1, 1]} : vector<16x62xf32> to vector<16x42xf32>
    %cst_50 = arith.constant 0.000000e+00 : f32
    %66 = vector.broadcast %cst_50 : f32 to vector<16x42xf32>
    %67 = arith.maximumf %65, %66 : vector<16x42xf32>
    %68 = vector.extract_strided_slice %64 {offsets = [0, 0], sizes = [16, 32], strides = [1, 1]} : vector<16x42xf32> to vector<16x32xf32>
    %69 = vector.extract_strided_slice %67 {offsets = [0, 0], sizes = [16, 32], strides = [1, 1]} : vector<16x42xf32> to vector<16x32xf32>
    %70 = vector.extract_strided_slice %64 {offsets = [0, 1], sizes = [16, 32], strides = [1, 1]} : vector<16x42xf32> to vector<16x32xf32>
    %71 = arith.maximumf %68, %70 : vector<16x32xf32>
    %72 = vector.extract_strided_slice %67 {offsets = [0, 1], sizes = [16, 32], strides = [1, 1]} : vector<16x42xf32> to vector<16x32xf32>
    %73 = arith.maximumf %69, %72 : vector<16x32xf32>
    %74 = vector.extract_strided_slice %64 {offsets = [0, 2], sizes = [16, 32], strides = [1, 1]} : vector<16x42xf32> to vector<16x32xf32>
    %75 = arith.maximumf %71, %74 : vector<16x32xf32>
    %76 = vector.extract_strided_slice %67 {offsets = [0, 2], sizes = [16, 32], strides = [1, 1]} : vector<16x42xf32> to vector<16x32xf32>
    %77 = arith.maximumf %73, %76 : vector<16x32xf32>
    %78 = vector.extract_strided_slice %64 {offsets = [0, 4], sizes = [16, 32], strides = [1, 1]} : vector<16x42xf32> to vector<16x32xf32>
    %79 = arith.maximumf %75, %78 : vector<16x32xf32>
    %80 = vector.extract_strided_slice %67 {offsets = [0, 4], sizes = [16, 32], strides = [1, 1]} : vector<16x42xf32> to vector<16x32xf32>
    %81 = arith.maximumf %77, %80 : vector<16x32xf32>
    %82 = vector.extract_strided_slice %64 {offsets = [0, 5], sizes = [16, 32], strides = [1, 1]} : vector<16x42xf32> to vector<16x32xf32>
    %83 = arith.maximumf %79, %82 : vector<16x32xf32>
    %84 = vector.extract_strided_slice %67 {offsets = [0, 5], sizes = [16, 32], strides = [1, 1]} : vector<16x42xf32> to vector<16x32xf32>
    %85 = arith.maximumf %81, %84 : vector<16x32xf32>
    %86 = vector.extract_strided_slice %64 {offsets = [0, 6], sizes = [16, 32], strides = [1, 1]} : vector<16x42xf32> to vector<16x32xf32>
    %87 = arith.maximumf %83, %86 : vector<16x32xf32>
    %88 = vector.extract_strided_slice %67 {offsets = [0, 6], sizes = [16, 32], strides = [1, 1]} : vector<16x42xf32> to vector<16x32xf32>
    %89 = arith.maximumf %85, %88 : vector<16x32xf32>
    %90 = vector.extract_strided_slice %64 {offsets = [0, 8], sizes = [16, 32], strides = [1, 1]} : vector<16x42xf32> to vector<16x32xf32>
    %91 = arith.maximumf %87, %90 : vector<16x32xf32>
    %92 = vector.extract_strided_slice %67 {offsets = [0, 8], sizes = [16, 32], strides = [1, 1]} : vector<16x42xf32> to vector<16x32xf32>
    %93 = arith.maximumf %89, %92 : vector<16x32xf32>
    %94 = vector.extract_strided_slice %64 {offsets = [0, 9], sizes = [16, 32], strides = [1, 1]} : vector<16x42xf32> to vector<16x32xf32>
    %95 = arith.maximumf %91, %94 : vector<16x32xf32>
    %96 = vector.extract_strided_slice %67 {offsets = [0, 9], sizes = [16, 32], strides = [1, 1]} : vector<16x42xf32> to vector<16x32xf32>
    %97 = arith.maximumf %93, %96 : vector<16x32xf32>
    %98 = vector.extract_strided_slice %64 {offsets = [0, 10], sizes = [16, 32], strides = [1, 1]} : vector<16x42xf32> to vector<16x32xf32>
    %99 = arith.maximumf %95, %98 : vector<16x32xf32>
    %100 = vector.extract_strided_slice %67 {offsets = [0, 10], sizes = [16, 32], strides = [1, 1]} : vector<16x42xf32> to vector<16x32xf32>
    %101 = arith.maximumf %97, %100 : vector<16x32xf32>
    %c0_51 = arith.constant 0 : index
    %c0_52 = arith.constant 0 : index
    %102 = vector.load %arg16[%c0_51, %c0_52] : memref<32x42xf32, #tpu.memory_space<vmem>>, vector<32x42xf32>
    %cst_53 = arith.constant dense<0.000000e+00> : vector<16x42xf32>
    %103 = tpu.matmul %99, %102, %cst_53 {dimension_numbers = #tpu.dot_dimension_numbers<[1], [0], [0], [1], [0, 0, 1, 1], [], []>} : vector<16x32xf32>, vector<32x42xf32>, vector<16x42xf32> -> vector<16x42xf32>
    %c0_54 = arith.constant 0 : index
    %c0_55 = arith.constant 0 : index
    %104 = vector.load %arg30[%c0_54, %c0_55] : memref<32x42xf32, #tpu.memory_space<vmem>>, vector<16x42xf32>
    tpu.vector_store %arg30[%c0_54, %c0_55], %103 {strides = array<i32>} : memref<32x42xf32, #tpu.memory_space<vmem>>, vector<16x42xf32>,
    %cst_56 = arith.constant dense<0.000000e+00> : vector<16x42xf32>
    %105 = tpu.matmul %101, %102, %cst_56 {dimension_numbers = #tpu.dot_dimension_numbers<[1], [0], [0], [1], [0, 0, 1, 1], [], []>} : vector<16x32xf32>, vector<32x42xf32>, vector<16x42xf32> -> vector<16x42xf32>
    %c16_57 = arith.constant 16 : index
    %c0_58 = arith.constant 0 : index
    %106 = vector.load %arg30[%c16_57, %c0_58] : memref<32x42xf32, #tpu.memory_space<vmem>>, vector<16x42xf32>
    tpu.vector_store %arg30[%c16_57, %c0_58], %105 {strides = array<i32>} : memref<32x42xf32, #tpu.memory_space<vmem>>, vector<16x42xf32>,
    %c0_59 = arith.constant 0 : index
    %c0_60 = arith.constant 0 : index
    %107 = vector.load %arg30[%c0_59, %c0_60] : memref<32x42xf32, #tpu.memory_space<vmem>>, vector<32x42xf32>
    %c0_61 = arith.constant 0 : index
    %c0_62 = arith.constant 0 : index
    %108 = vector.load %arg9[%c0_61, %c0_62] : memref<32x288xf32, #tpu.memory_space<vmem>>, vector<32x288xf32>
    %c0_63 = arith.constant 0 : index
    %c0_64 = arith.constant 0 : index
    %109 = vector.load %arg10[%c0_63, %c0_64] : memref<32x288xf32, #tpu.memory_space<vmem>>, vector<32x288xf32>
    %c0_65 = arith.constant 0 : index
    %c0_66 = arith.constant 0 : index
    %110 = vector.load %arg11[%c0_65, %c0_66] : memref<32x1xf32, #tpu.memory_space<vmem>>, vector<32x1xf32>
    %c0_67 = arith.constant 0 : index
    %c0_68 = arith.constant 0 : index
    %111 = vector.load %arg12[%c0_67, %c0_68] : memref<32x1xf32, #tpu.memory_space<vmem>>, vector<32x1xf32>
    %c0_69 = arith.constant 0 : index
    %c0_70 = arith.constant 0 : index
    %112 = vector.load %arg13[%c0_69, %c0_70] : memref<32x1xf32, #tpu.memory_space<vmem>>, vector<32x1xf32>
    %c0_71 = arith.constant 0 : index
    %c0_72 = arith.constant 0 : index
    %113 = vector.load %arg14[%c0_71, %c0_72] : memref<32x1xf32, #tpu.memory_space<vmem>>, vector<32x1xf32>
    %c0_73 = arith.constant 0 : index
    %c0_74 = arith.constant 0 : index
    %114 = vector.load %arg15[%c0_73, %c0_74] : memref<1x34xf32, #tpu.memory_space<vmem>>, vector<1x34xf32>
    %115 = vector.extract_strided_slice %107 {offsets = [0, 0], sizes = [32, 34], strides = [1, 1]} : vector<32x42xf32> to vector<32x34xf32>
    %c0_75 = arith.constant 0 : index
    %c0_76 = arith.constant 0 : index
    %116 = vector.load %arg28[%c0_75, %c0_76] : memref<288x34xf32, #tpu.memory_space<vmem>>, vector<32x34xf32>
    tpu.vector_store %arg28[%c0_75, %c0_76], %115 {strides = array<i32>} : memref<288x34xf32, #tpu.memory_space<vmem>>, vector<32x34xf32>,
    %117 = vector.extract_strided_slice %107 {offsets = [0, 1], sizes = [32, 34], strides = [1, 1]} : vector<32x42xf32> to vector<32x34xf32>
    %c32_77 = arith.constant 32 : index
    %c0_78 = arith.constant 0 : index
    %118 = vector.load %arg28[%c32_77, %c0_78] : memref<288x34xf32, #tpu.memory_space<vmem>>, vector<32x34xf32>
    tpu.vector_store %arg28[%c32_77, %c0_78], %117 {strides = array<i32>} : memref<288x34xf32, #tpu.memory_space<vmem>>, vector<32x34xf32>,
    %119 = vector.extract_strided_slice %107 {offsets = [0, 2], sizes = [32, 34], strides = [1, 1]} : vector<32x42xf32> to vector<32x34xf32>
    %c64_79 = arith.constant 64 : index
    %c0_80 = arith.constant 0 : index
    %120 = vector.load %arg28[%c64_79, %c0_80] : memref<288x34xf32, #tpu.memory_space<vmem>>, vector<32x34xf32>
    tpu.vector_store %arg28[%c64_79, %c0_80], %119 {strides = array<i32>} : memref<288x34xf32, #tpu.memory_space<vmem>>, vector<32x34xf32>,
    %121 = vector.extract_strided_slice %107 {offsets = [0, 3], sizes = [32, 34], strides = [1, 1]} : vector<32x42xf32> to vector<32x34xf32>
    %c96_81 = arith.constant 96 : index
    %c0_82 = arith.constant 0 : index
    %122 = vector.load %arg28[%c96_81, %c0_82] : memref<288x34xf32, #tpu.memory_space<vmem>>, vector<32x34xf32>
    tpu.vector_store %arg28[%c96_81, %c0_82], %121 {strides = array<i32>} : memref<288x34xf32, #tpu.memory_space<vmem>>, vector<32x34xf32>,
    %123 = vector.extract_strided_slice %107 {offsets = [0, 4], sizes = [32, 34], strides = [1, 1]} : vector<32x42xf32> to vector<32x34xf32>
    %c128_83 = arith.constant 128 : index
    %c0_84 = arith.constant 0 : index
    %124 = vector.load %arg28[%c128_83, %c0_84] : memref<288x34xf32, #tpu.memory_space<vmem>>, vector<32x34xf32>
    tpu.vector_store %arg28[%c128_83, %c0_84], %123 {strides = array<i32>} : memref<288x34xf32, #tpu.memory_space<vmem>>, vector<32x34xf32>,
    %125 = vector.extract_strided_slice %107 {offsets = [0, 5], sizes = [32, 34], strides = [1, 1]} : vector<32x42xf32> to vector<32x34xf32>
    %c160 = arith.constant 160 : index
    %c0_85 = arith.constant 0 : index
    %126 = vector.load %arg28[%c160, %c0_85] : memref<288x34xf32, #tpu.memory_space<vmem>>, vector<32x34xf32>
    tpu.vector_store %arg28[%c160, %c0_85], %125 {strides = array<i32>} : memref<288x34xf32, #tpu.memory_space<vmem>>, vector<32x34xf32>,
    %127 = vector.extract_strided_slice %107 {offsets = [0, 6], sizes = [32, 34], strides = [1, 1]} : vector<32x42xf32> to vector<32x34xf32>
    %c192 = arith.constant 192 : index
    %c0_86 = arith.constant 0 : index
    %128 = vector.load %arg28[%c192, %c0_86] : memref<288x34xf32, #tpu.memory_space<vmem>>, vector<32x34xf32>
    tpu.vector_store %arg28[%c192, %c0_86], %127 {strides = array<i32>} : memref<288x34xf32, #tpu.memory_space<vmem>>, vector<32x34xf32>,
    %129 = vector.extract_strided_slice %107 {offsets = [0, 7], sizes = [32, 34], strides = [1, 1]} : vector<32x42xf32> to vector<32x34xf32>
    %c224 = arith.constant 224 : index
    %c0_87 = arith.constant 0 : index
    %130 = vector.load %arg28[%c224, %c0_87] : memref<288x34xf32, #tpu.memory_space<vmem>>, vector<32x34xf32>
    tpu.vector_store %arg28[%c224, %c0_87], %129 {strides = array<i32>} : memref<288x34xf32, #tpu.memory_space<vmem>>, vector<32x34xf32>,
    %131 = vector.extract_strided_slice %107 {offsets = [0, 8], sizes = [32, 34], strides = [1, 1]} : vector<32x42xf32> to vector<32x34xf32>
    %c256 = arith.constant 256 : index
    %c0_88 = arith.constant 0 : index
    %132 = vector.load %arg28[%c256, %c0_88] : memref<288x34xf32, #tpu.memory_space<vmem>>, vector<32x34xf32>
    tpu.vector_store %arg28[%c256, %c0_88], %131 {strides = array<i32>} : memref<288x34xf32, #tpu.memory_space<vmem>>, vector<32x34xf32>,
    %c0_89 = arith.constant 0 : index
    %c0_90 = arith.constant 0 : index
    %133 = vector.load %arg28[%c0_89, %c0_90] : memref<288x34xf32, #tpu.memory_space<vmem>>, vector<288x34xf32>
    %cst_91 = arith.constant dense<0.000000e+00> : vector<32x34xf32>
    %134 = tpu.matmul %108, %133, %cst_91 {dimension_numbers = #tpu.dot_dimension_numbers<[1], [0], [0], [1], [0, 0, 1, 1], [], []>} : vector<32x288xf32>, vector<288x34xf32>, vector<32x34xf32> -> vector<32x34xf32>
    %135 = vector.broadcast %110 : vector<32x1xf32> to vector<32x34xf32>
    %136 = arith.mulf %134, %135 : vector<32x34xf32>
    %137 = vector.broadcast %111 : vector<32x1xf32> to vector<32x34xf32>
    %138 = arith.addf %136, %137 : vector<32x34xf32>
    %cst_92 = arith.constant 0.000000e+00 : f32
    %139 = vector.broadcast %cst_92 : f32 to vector<32x34xf32>
    %140 = arith.maximumf %138, %139 : vector<32x34xf32>
    %141 = vector.broadcast %114 : vector<1x34xf32> to vector<32x34xf32>
    %142 = arith.mulf %140, %141 : vector<32x34xf32>
    %143 = vector.extract_strided_slice %142 {offsets = [0, 0], sizes = [32, 26], strides = [1, 1]} : vector<32x34xf32> to vector<32x26xf32>
    %c0_93 = arith.constant 0 : index
    %c0_94 = arith.constant 0 : index
    %144 = vector.load %arg29[%c0_93, %c0_94] : memref<288x26xf32, #tpu.memory_space<vmem>>, vector<32x26xf32>
    tpu.vector_store %arg29[%c0_93, %c0_94], %143 {strides = array<i32>} : memref<288x26xf32, #tpu.memory_space<vmem>>, vector<32x26xf32>,
    %145 = vector.extract_strided_slice %142 {offsets = [0, 1], sizes = [32, 26], strides = [1, 1]} : vector<32x34xf32> to vector<32x26xf32>
    %c32_95 = arith.constant 32 : index
    %c0_96 = arith.constant 0 : index
    %146 = vector.load %arg29[%c32_95, %c0_96] : memref<288x26xf32, #tpu.memory_space<vmem>>, vector<32x26xf32>
    tpu.vector_store %arg29[%c32_95, %c0_96], %145 {strides = array<i32>} : memref<288x26xf32, #tpu.memory_space<vmem>>, vector<32x26xf32>,
    %147 = vector.extract_strided_slice %142 {offsets = [0, 2], sizes = [32, 26], strides = [1, 1]} : vector<32x34xf32> to vector<32x26xf32>
    %c64_97 = arith.constant 64 : index
    %c0_98 = arith.constant 0 : index
    %148 = vector.load %arg29[%c64_97, %c0_98] : memref<288x26xf32, #tpu.memory_space<vmem>>, vector<32x26xf32>
    tpu.vector_store %arg29[%c64_97, %c0_98], %147 {strides = array<i32>} : memref<288x26xf32, #tpu.memory_space<vmem>>, vector<32x26xf32>,
    %149 = vector.extract_strided_slice %142 {offsets = [0, 3], sizes = [32, 26], strides = [1, 1]} : vector<32x34xf32> to vector<32x26xf32>
    %c96_99 = arith.constant 96 : index
    %c0_100 = arith.constant 0 : index
    %150 = vector.load %arg29[%c96_99, %c0_100] : memref<288x26xf32, #tpu.memory_space<vmem>>, vector<32x26xf32>
    tpu.vector_store %arg29[%c96_99, %c0_100], %149 {strides = array<i32>} : memref<288x26xf32, #tpu.memory_space<vmem>>, vector<32x26xf32>,
    %151 = vector.extract_strided_slice %142 {offsets = [0, 4], sizes = [32, 26], strides = [1, 1]} : vector<32x34xf32> to vector<32x26xf32>
    %c128_101 = arith.constant 128 : index
    %c0_102 = arith.constant 0 : index
    %152 = vector.load %arg29[%c128_101, %c0_102] : memref<288x26xf32, #tpu.memory_space<vmem>>, vector<32x26xf32>
    tpu.vector_store %arg29[%c128_101, %c0_102], %151 {strides = array<i32>} : memref<288x26xf32, #tpu.memory_space<vmem>>, vector<32x26xf32>,
    %153 = vector.extract_strided_slice %142 {offsets = [0, 5], sizes = [32, 26], strides = [1, 1]} : vector<32x34xf32> to vector<32x26xf32>
    %c160_103 = arith.constant 160 : index
    %c0_104 = arith.constant 0 : index
    %154 = vector.load %arg29[%c160_103, %c0_104] : memref<288x26xf32, #tpu.memory_space<vmem>>, vector<32x26xf32>
    tpu.vector_store %arg29[%c160_103, %c0_104], %153 {strides = array<i32>} : memref<288x26xf32, #tpu.memory_space<vmem>>, vector<32x26xf32>,
    %155 = vector.extract_strided_slice %142 {offsets = [0, 6], sizes = [32, 26], strides = [1, 1]} : vector<32x34xf32> to vector<32x26xf32>
    %c192_105 = arith.constant 192 : index
    %c0_106 = arith.constant 0 : index
    %156 = vector.load %arg29[%c192_105, %c0_106] : memref<288x26xf32, #tpu.memory_space<vmem>>, vector<32x26xf32>
    tpu.vector_store %arg29[%c192_105, %c0_106], %155 {strides = array<i32>} : memref<288x26xf32, #tpu.memory_space<vmem>>, vector<32x26xf32>,
    %157 = vector.extract_strided_slice %142 {offsets = [0, 7], sizes = [32, 26], strides = [1, 1]} : vector<32x34xf32> to vector<32x26xf32>
    %c224_107 = arith.constant 224 : index
    %c0_108 = arith.constant 0 : index
    %158 = vector.load %arg29[%c224_107, %c0_108] : memref<288x26xf32, #tpu.memory_space<vmem>>, vector<32x26xf32>
    tpu.vector_store %arg29[%c224_107, %c0_108], %157 {strides = array<i32>} : memref<288x26xf32, #tpu.memory_space<vmem>>, vector<32x26xf32>,
    %159 = vector.extract_strided_slice %142 {offsets = [0, 8], sizes = [32, 26], strides = [1, 1]} : vector<32x34xf32> to vector<32x26xf32>
    %c256_109 = arith.constant 256 : index
    %c0_110 = arith.constant 0 : index
    %160 = vector.load %arg29[%c256_109, %c0_110] : memref<288x26xf32, #tpu.memory_space<vmem>>, vector<32x26xf32>
    tpu.vector_store %arg29[%c256_109, %c0_110], %159 {strides = array<i32>} : memref<288x26xf32, #tpu.memory_space<vmem>>, vector<32x26xf32>,
    %c0_111 = arith.constant 0 : index
    %c0_112 = arith.constant 0 : index
    %161 = vector.load %arg29[%c0_111, %c0_112] : memref<288x26xf32, #tpu.memory_space<vmem>>, vector<288x26xf32>
    %cst_113 = arith.constant dense<0.000000e+00> : vector<32x26xf32>
    %162 = tpu.matmul %109, %161, %cst_113 {dimension_numbers = #tpu.dot_dimension_numbers<[1], [0], [0], [1], [0, 0, 1, 1], [], []>} : vector<32x288xf32>, vector<288x26xf32>, vector<32x26xf32> -> vector<32x26xf32>
    %163 = vector.broadcast %112 : vector<32x1xf32> to vector<32x26xf32>
    %164 = arith.mulf %162, %163 : vector<32x26xf32>
    %165 = vector.broadcast %113 : vector<32x1xf32> to vector<32x26xf32>
    %166 = arith.addf %164, %165 : vector<32x26xf32>
    %167 = vector.extract_strided_slice %114 {offsets = [0, 4], sizes = [1, 26], strides = [1, 1]} : vector<1x34xf32> to vector<1x26xf32>
    %cst_114 = arith.constant 0.000000e+00 : f32
    %168 = vector.broadcast %cst_114 : f32 to vector<32x26xf32>
    %169 = arith.maximumf %166, %168 : vector<32x26xf32>
    %170 = vector.broadcast %167 : vector<1x26xf32> to vector<32x26xf32>
    %171 = arith.mulf %169, %170 : vector<32x26xf32>
    %172 = vector.extract_strided_slice %107 {offsets = [0, 8], sizes = [32, 26], strides = [1, 1]} : vector<32x42xf32> to vector<32x26xf32>
    %cst_115 = arith.constant 0.000000e+00 : f32
    %173 = vector.broadcast %cst_115 : f32 to vector<32x26xf32>
    %174 = arith.maximumf %172, %173 : vector<32x26xf32>
    %175 = vector.extract_strided_slice %171 {offsets = [0, 0], sizes = [32, 18], strides = [1, 1]} : vector<32x26xf32> to vector<32x18xf32>
    %176 = vector.extract_strided_slice %174 {offsets = [0, 0], sizes = [32, 18], strides = [1, 1]} : vector<32x26xf32> to vector<32x18xf32>
    %177 = vector.extract_strided_slice %171 {offsets = [0, 1], sizes = [32, 18], strides = [1, 1]} : vector<32x26xf32> to vector<32x18xf32>
    %178 = arith.maximumf %175, %177 : vector<32x18xf32>
    %179 = vector.extract_strided_slice %174 {offsets = [0, 1], sizes = [32, 18], strides = [1, 1]} : vector<32x26xf32> to vector<32x18xf32>
    %180 = arith.maximumf %176, %179 : vector<32x18xf32>
    %181 = vector.extract_strided_slice %171 {offsets = [0, 2], sizes = [32, 18], strides = [1, 1]} : vector<32x26xf32> to vector<32x18xf32>
    %182 = arith.maximumf %178, %181 : vector<32x18xf32>
    %183 = vector.extract_strided_slice %174 {offsets = [0, 2], sizes = [32, 18], strides = [1, 1]} : vector<32x26xf32> to vector<32x18xf32>
    %184 = arith.maximumf %180, %183 : vector<32x18xf32>
    %185 = vector.extract_strided_slice %171 {offsets = [0, 3], sizes = [32, 18], strides = [1, 1]} : vector<32x26xf32> to vector<32x18xf32>
    %186 = arith.maximumf %182, %185 : vector<32x18xf32>
    %187 = vector.extract_strided_slice %174 {offsets = [0, 3], sizes = [32, 18], strides = [1, 1]} : vector<32x26xf32> to vector<32x18xf32>
    %188 = arith.maximumf %184, %187 : vector<32x18xf32>
    %189 = vector.extract_strided_slice %171 {offsets = [0, 4], sizes = [32, 18], strides = [1, 1]} : vector<32x26xf32> to vector<32x18xf32>
    %190 = arith.maximumf %186, %189 : vector<32x18xf32>
    %191 = vector.extract_strided_slice %174 {offsets = [0, 4], sizes = [32, 18], strides = [1, 1]} : vector<32x26xf32> to vector<32x18xf32>
    %192 = arith.maximumf %188, %191 : vector<32x18xf32>
    %193 = vector.extract_strided_slice %171 {offsets = [0, 5], sizes = [32, 18], strides = [1, 1]} : vector<32x26xf32> to vector<32x18xf32>
    %194 = arith.maximumf %190, %193 : vector<32x18xf32>
    %195 = vector.extract_strided_slice %174 {offsets = [0, 5], sizes = [32, 18], strides = [1, 1]} : vector<32x26xf32> to vector<32x18xf32>
    %196 = arith.maximumf %192, %195 : vector<32x18xf32>
    %197 = vector.extract_strided_slice %171 {offsets = [0, 6], sizes = [32, 18], strides = [1, 1]} : vector<32x26xf32> to vector<32x18xf32>
    %198 = arith.maximumf %194, %197 : vector<32x18xf32>
    %199 = vector.extract_strided_slice %174 {offsets = [0, 6], sizes = [32, 18], strides = [1, 1]} : vector<32x26xf32> to vector<32x18xf32>
    %200 = arith.maximumf %196, %199 : vector<32x18xf32>
    %201 = vector.extract_strided_slice %171 {offsets = [0, 7], sizes = [32, 18], strides = [1, 1]} : vector<32x26xf32> to vector<32x18xf32>
    %202 = arith.maximumf %198, %201 : vector<32x18xf32>
    %203 = vector.extract_strided_slice %174 {offsets = [0, 7], sizes = [32, 18], strides = [1, 1]} : vector<32x26xf32> to vector<32x18xf32>
    %204 = arith.maximumf %200, %203 : vector<32x18xf32>
    %205 = vector.extract_strided_slice %171 {offsets = [0, 8], sizes = [32, 18], strides = [1, 1]} : vector<32x26xf32> to vector<32x18xf32>
    %206 = arith.maximumf %202, %205 : vector<32x18xf32>
    %207 = vector.extract_strided_slice %174 {offsets = [0, 8], sizes = [32, 18], strides = [1, 1]} : vector<32x26xf32> to vector<32x18xf32>
    %208 = arith.maximumf %204, %207 : vector<32x18xf32>
    %c0_116 = arith.constant 0 : index
    %c0_117 = arith.constant 0 : index
    %209 = vector.load %arg17[%c0_116, %c0_117] : memref<18x2xf32, #tpu.memory_space<vmem>>, vector<18x2xf32>
    %cst_118 = arith.constant dense<0.000000e+00> : vector<32x2xf32>
    %210 = tpu.matmul %206, %209, %cst_118 {dimension_numbers = #tpu.dot_dimension_numbers<[1], [0], [0], [1], [0, 0, 1, 1], [], []>} : vector<32x18xf32>, vector<18x2xf32>, vector<32x2xf32> -> vector<32x2xf32>
    %cst_119 = arith.constant dense<0.000000e+00> : vector<32x2xf32>
    %211 = tpu.matmul %208, %209, %cst_119 {dimension_numbers = #tpu.dot_dimension_numbers<[1], [0], [0], [1], [0, 0, 1, 1], [], []>} : vector<32x18xf32>, vector<18x2xf32>, vector<32x2xf32> -> vector<32x2xf32>
    %c0_120 = arith.constant 0 : index
    %c0_121 = arith.constant 0 : index
    %212 = vector.load %arg18[%c0_120, %c0_121] : memref<64x32xf32, #tpu.memory_space<vmem>>, vector<64x32xf32>
    %cst_122 = arith.constant dense<0.000000e+00> : vector<64x2xf32>
    %213 = tpu.matmul %212, %210, %cst_122 {dimension_numbers = #tpu.dot_dimension_numbers<[1], [0], [0], [1], [0, 0, 1, 1], [], []>} : vector<64x32xf32>, vector<32x2xf32>, vector<64x2xf32> -> vector<64x2xf32>
    %c0_123 = arith.constant 0 : index
    %c0_124 = arith.constant 0 : index
    %214 = vector.load %arg19[%c0_123, %c0_124] : memref<64x32xf32, #tpu.memory_space<vmem>>, vector<64x32xf32>
    %cst_125 = arith.constant dense<0.000000e+00> : vector<64x2xf32>
    %215 = tpu.matmul %214, %211, %cst_125 {dimension_numbers = #tpu.dot_dimension_numbers<[1], [0], [0], [1], [0, 0, 1, 1], [], []>} : vector<64x32xf32>, vector<32x2xf32>, vector<64x2xf32> -> vector<64x2xf32>
    %216 = arith.addf %213, %215 : vector<64x2xf32>
    %c0_126 = arith.constant 0 : index
    %c0_127 = arith.constant 0 : index
    %217 = vector.load %arg20[%c0_126, %c0_127] : memref<64x1xf32, #tpu.memory_space<vmem>>, vector<64x1xf32>
    %218 = vector.broadcast %217 : vector<64x1xf32> to vector<64x2xf32>
    %219 = arith.addf %216, %218 : vector<64x2xf32>
    %cst_128 = arith.constant 0.000000e+00 : f32
    %220 = vector.broadcast %cst_128 : f32 to vector<64x2xf32>
    %221 = arith.maximumf %219, %220 : vector<64x2xf32>
    %c0_129 = arith.constant 0 : index
    %c0_130 = arith.constant 0 : index
    %222 = vector.load %arg21[%c0_129, %c0_130] : memref<64x64xf32, #tpu.memory_space<vmem>>, vector<64x64xf32>
    %cst_131 = arith.constant dense<0.000000e+00> : vector<64x2xf32>
    %223 = tpu.matmul %222, %221, %cst_131 {dimension_numbers = #tpu.dot_dimension_numbers<[1], [0], [0], [1], [0, 0, 1, 1], [], []>} : vector<64x64xf32>, vector<64x2xf32>, vector<64x2xf32> -> vector<64x2xf32>
    %c0_132 = arith.constant 0 : index
    %c0_133 = arith.constant 0 : index
    %224 = vector.load %arg22[%c0_132, %c0_133] : memref<64x1xf32, #tpu.memory_space<vmem>>, vector<64x1xf32>
    %225 = vector.broadcast %224 : vector<64x1xf32> to vector<64x2xf32>
    %226 = arith.addf %223, %225 : vector<64x2xf32>
    %cst_134 = arith.constant 0.000000e+00 : f32
    %227 = vector.broadcast %cst_134 : f32 to vector<64x2xf32>
    %228 = arith.maximumf %226, %227 : vector<64x2xf32>
    %c0_135 = arith.constant 0 : index
    %c0_136 = arith.constant 0 : index
    %229 = vector.load %arg23[%c0_135, %c0_136] : memref<10x64xf32, #tpu.memory_space<vmem>>, vector<10x64xf32>
    %cst_137 = arith.constant dense<0.000000e+00> : vector<10x2xf32>
    %230 = tpu.matmul %229, %228, %cst_137 {dimension_numbers = #tpu.dot_dimension_numbers<[1], [0], [0], [1], [0, 0, 1, 1], [], []>} : vector<10x64xf32>, vector<64x2xf32>, vector<10x2xf32> -> vector<10x2xf32>
    %c0_138 = arith.constant 0 : index
    %c0_139 = arith.constant 0 : index
    %231 = vector.load %arg24[%c0_138, %c0_139] : memref<10x1xf32, #tpu.memory_space<vmem>>, vector<10x1xf32>
    %232 = vector.broadcast %231 : vector<10x1xf32> to vector<10x2xf32>
    %233 = arith.addf %230, %232 : vector<10x2xf32>
    %c0_140 = arith.constant 0 : index
    %c0_141 = arith.constant 0 : index
    %234 = vector.load %arg25[%c0_140, %c0_141] : memref<10x2xf32, #tpu.memory_space<vmem>>, vector<10x2xf32>
    tpu.vector_store %arg25[%c0_140, %c0_141], %233 {strides = array<i32>} : memref<10x2xf32, #tpu.memory_space<vmem>>, vector<10x2xf32>,
    return
  }
  func.func @transform_0(%arg0: i32) -> (i32, i32) {
    %c0_i32 = arith.constant 0 : i32
    %c0_i32_0 = arith.constant 0 : i32
    %c0_i32_1 = arith.constant 0 : i32
    return %c0_i32, %c0_i32_0 : i32, i32
  }
  func.func @transform_1(%arg0: i32) -> (i32, i32) {
    %c0_i32 = arith.constant 0 : i32
    %c0_i32_0 = arith.constant 0 : i32
    %c0_i32_1 = arith.constant 0 : i32
    return %c0_i32, %c0_i32_0 : i32, i32
  }
  func.func @transform_2(%arg0: i32) -> (i32, i32) {
    %c0_i32 = arith.constant 0 : i32
    %c0_i32_0 = arith.constant 0 : i32
    %c0_i32_1 = arith.constant 0 : i32
    return %c0_i32, %c0_i32_0 : i32, i32
  }
  func.func @transform_3(%arg0: i32) -> (i32, i32) {
    %c0_i32 = arith.constant 0 : i32
    %c0_i32_0 = arith.constant 0 : i32
    %c0_i32_1 = arith.constant 0 : i32
    return %c0_i32, %c0_i32_0 : i32, i32
  }
  func.func @transform_4(%arg0: i32) -> (i32, i32) {
    %c0_i32 = arith.constant 0 : i32
    %c0_i32_0 = arith.constant 0 : i32
    %c0_i32_1 = arith.constant 0 : i32
    return %c0_i32, %c0_i32_0 : i32, i32
  }
  func.func @transform_5(%arg0: i32) -> (i32, i32) {
    %c0_i32 = arith.constant 0 : i32
    %c0_i32_0 = arith.constant 0 : i32
    %c0_i32_1 = arith.constant 0 : i32
    return %c0_i32, %c0_i32_0 : i32, i32
  }
  func.func @transform_6(%arg0: i32) -> (i32, i32) {
    %c0_i32 = arith.constant 0 : i32
    %c0_i32_0 = arith.constant 0 : i32
    %c0_i32_1 = arith.constant 0 : i32
    return %c0_i32, %c0_i32_0 : i32, i32
  }
  func.func @transform_7(%arg0: i32) -> (i32, i32) {
    %c0_i32 = arith.constant 0 : i32
    %c0_i32_0 = arith.constant 0 : i32
    %c0_i32_1 = arith.constant 0 : i32
    return %c0_i32, %c0_i32_0 : i32, i32
  }
  func.func @transform_8(%arg0: i32) -> (i32, i32) {
    %c0_i32 = arith.constant 0 : i32
    %c0_i32_0 = arith.constant 0 : i32
    %c0_i32_1 = arith.constant 0 : i32
    return %c0_i32, %c0_i32_0 : i32, i32
  }
  func.func @transform_9(%arg0: i32) -> (i32, i32) {
    %c0_i32 = arith.constant 0 : i32
    %c0_i32_0 = arith.constant 0 : i32
    %c0_i32_1 = arith.constant 0 : i32
    return %c0_i32, %c0_i32_0 : i32, i32
  }
  func.func @transform_10(%arg0: i32) -> (i32, i32) {
    %c0_i32 = arith.constant 0 : i32
    %c0_i32_0 = arith.constant 0 : i32
    %c0_i32_1 = arith.constant 0 : i32
    return %c0_i32, %c0_i32_0 : i32, i32
  }
  func.func @transform_11(%arg0: i32) -> (i32, i32) {
    %c0_i32 = arith.constant 0 : i32
    %c0_i32_0 = arith.constant 0 : i32
    %c0_i32_1 = arith.constant 0 : i32
    return %c0_i32, %c0_i32_0 : i32, i32
  }
  func.func @transform_12(%arg0: i32) -> (i32, i32) {
    %c0_i32 = arith.constant 0 : i32
    %c0_i32_0 = arith.constant 0 : i32
    %c0_i32_1 = arith.constant 0 : i32
    return %c0_i32, %c0_i32_0 : i32, i32
  }
  func.func @transform_13(%arg0: i32) -> (i32, i32) {
    %c0_i32 = arith.constant 0 : i32
    %c0_i32_0 = arith.constant 0 : i32
    %c0_i32_1 = arith.constant 0 : i32
    return %c0_i32, %c0_i32_0 : i32, i32
  }
  func.func @transform_14(%arg0: i32) -> (i32, i32) {
    %c0_i32 = arith.constant 0 : i32
    %c0_i32_0 = arith.constant 0 : i32
    %c0_i32_1 = arith.constant 0 : i32
    return %c0_i32, %c0_i32_0 : i32, i32
  }
  func.func @transform_15(%arg0: i32) -> (i32, i32) {
    %c0_i32 = arith.constant 0 : i32
    %c0_i32_0 = arith.constant 0 : i32
    %c0_i32_1 = arith.constant 0 : i32
    return %c0_i32, %c0_i32_0 : i32, i32
  }
  func.func @transform_16(%arg0: i32) -> (i32, i32) {
    %c0_i32 = arith.constant 0 : i32
    %c0_i32_0 = arith.constant 0 : i32
    %c0_i32_1 = arith.constant 0 : i32
    return %c0_i32, %c0_i32_0 : i32, i32
  }
  func.func @transform_17(%arg0: i32) -> (i32, i32) {
    %c0_i32 = arith.constant 0 : i32
    %c0_i32_0 = arith.constant 0 : i32
    %c0_i32_1 = arith.constant 0 : i32
    return %c0_i32, %c0_i32_0 : i32, i32
  }
  func.func @transform_18(%arg0: i32) -> (i32, i32) {
    %c0_i32 = arith.constant 0 : i32
    %c0_i32_0 = arith.constant 0 : i32
    %c0_i32_1 = arith.constant 0 : i32
    return %c0_i32, %c0_i32_0 : i32, i32
  }
  func.func @transform_19(%arg0: i32) -> (i32, i32) {
    %c0_i32 = arith.constant 0 : i32
    %c0_i32_0 = arith.constant 0 : i32
    %c0_i32_1 = arith.constant 0 : i32
    return %c0_i32, %c0_i32_0 : i32, i32
  }
  func.func @transform_20(%arg0: i32) -> (i32, i32) {
    %c0_i32 = arith.constant 0 : i32
    %c0_i32_0 = arith.constant 0 : i32
    %c0_i32_1 = arith.constant 0 : i32
    return %c0_i32, %c0_i32_0 : i32, i32
  }
  func.func @transform_21(%arg0: i32) -> (i32, i32) {
    %c0_i32 = arith.constant 0 : i32
    %c0_i32_0 = arith.constant 0 : i32
    %c0_i32_1 = arith.constant 0 : i32
    return %c0_i32, %c0_i32_0 : i32, i32
  }
  func.func @transform_22(%arg0: i32) -> (i32, i32) {
    %c0_i32 = arith.constant 0 : i32
    %c0_i32_0 = arith.constant 0 : i32
    %c0_i32_1 = arith.constant 0 : i32
    return %c0_i32, %c0_i32_0 : i32, i32
  }
  func.func @transform_23(%arg0: i32) -> (i32, i32) {
    %c0_i32 = arith.constant 0 : i32
    %c0_i32_0 = arith.constant 0 : i32
    %c0_i32_1 = arith.constant 0 : i32
    return %c0_i32, %c0_i32_0 : i32, i32
  }
  func.func @transform_24(%arg0: i32) -> (i32, i32) {
    %c0_i32 = arith.constant 0 : i32
    %c0_i32_0 = arith.constant 0 : i32
    %c0_i32_1 = arith.constant 0 : i32
    return %c0_i32, %c0_i32_0 : i32, i32
  }
}

</mosaic_0001>

<llo_original>
// kernel: rescnn_forward.4
$region0: #{rescnn_forward.4}
  #allocation0 [shape = 'u32[]', space=smem, size = 0x4, offset = 0x4, fixed_abs, tag = 'smem constant byte address 0x4 - core index']
  #allocation1 [shape = 'u32[144,128]{1,0:T(1,128)}', space=vmem, size = 0x12000, scoped, tag = 'internal scratch']
  %s0 = inlined_call_operand.vmem [shape: f32[9,27,512], index: 0, kind: input, shape index: {}]
  %s1 = inlined_call_operand.vmem [shape: f32[4,27], index: 1, kind: input, shape index: {}]
  %s2 = inlined_call_operand.vmem [shape: f32[4,1], index: 2, kind: input, shape index: {}]
  %s3 = inlined_call_operand.vmem [shape: f32[4,512], index: 3, kind: output, shape index: {}]
  %s4 = sld [smem:[#allocation0]]
  $region68: #{rescnn_forward.4} parent=0
    _
  %s6 = ssub.s32 1, %s4
  %s7 = scalar_select 0, %s6, %s4
  $region1: #{rescnn_forward.4} parent=0
    #allocation2 [shape = 'u8[589824]{0}', space=vmem, size = 0x90000, scoped, tag = 'input window, operand 0']
    loop: start=0, step=1, limit=4
    $region2: #{rescnn_forward.4} parent=1 // loop_pre_header
      _
    $region3: #{rescnn_forward.4} parent=1 // loop_header
      %s9 = sphi 0, %s13
      %p10 = scmp.ge.s32.totalorder %s9, 4
      %s19 = sphi 0, %s21
      %s22 = sphi 0, %s19
      %s23 = sphi 0, %s22
      %s39 = sphi 0, %s23
      %s43 = sphi 0, %s43
      %s45 = sphi 0, %s43
      %s46 = sphi 0, %s45
      %s60 = sphi 0, %s46
      %s64 = sphi 0, %s64
      %s66 = sphi 0, %s64
      %s67 = sphi 0, %s66
      %s81 = sphi 0, %s67
      %s87 = sphi 0, %s89
      %s90 = sphi 0, %s87
      %s91 = sphi 0, %s90
      %s107 = sphi 0, %s91
    $region4: #{rescnn_forward.4} parent=1 // loop_header_branch
      %12 = sbr.rel (%p10) target = $region8
    $region5: #{rescnn_forward.4} parent=1 // loop_body
      %s14 = ssub.s32 %s9, 1
      %s15 = ssub.s32 %s9, 2
      %s16 = sadd.s32 %s9, 1
      %s17 = ssub.s32 %s9, %s16
      %p18 = scmp.eq.s32.totalorder %s17, 0
      %s20 = sadd.s32 %s19, 1
      %s21 = scalar_select %p18, %s19, %s20
      %p24 = pneg %p18
      %p25 = scmp.eq.s32.totalorder %s9, 1
      %p26 = por %p24, %p25
      %p27 = scmp.ne.s32.totalorder %s19, %s22
      %p28 = scmp.eq.s32.totalorder %s9, 0
      %p29 = por %p27, %p28
      %p30 = scmp.ne.s32.totalorder %s19, %s22
      %p31 = scmp.eq.s32.totalorder %s14, 1
      %p32 = por %p30, %p31
      %p33 = scmp.ne.s32.totalorder %s22, %s23
      %p34 = scmp.eq.s32.totalorder %s14, 0
      %p35 = por %p33, %p34
      %p36 = scmp.ne.s32.totalorder %s22, %s23
      %p37 = scmp.eq.s32.totalorder %s15, 1
      %p38 = por %p36, %p37
      %p40 = scmp.ne.s32.totalorder %s23, %s39
      %p41 = scmp.eq.s32.totalorder %s15, 0
      %p42 = por %p40, %p41
      %s44 = sadd.s32 %s43, 1
      %p47 = scmp.eq.s32.totalorder %s9, 1
      %p48 = scmp.ne.s32.totalorder %s43, %s45
      %p49 = scmp.eq.s32.totalorder %s9, 0
      %p50 = por %p48, %p49
      %p51 = scmp.ne.s32.totalorder %s43, %s45
      %p52 = scmp.eq.s32.totalorder %s14, 1
      %p53 = por %p51, %p52
      %p54 = scmp.ne.s32.totalorder %s45, %s46
      %p55 = scmp.eq.s32.totalorder %s14, 0
      %p56 = por %p54, %p55
      %p57 = scmp.ne.s32.totalorder %s45, %s46
      %p58 = scmp.eq.s32.totalorder %s15, 1
      %p59 = por %p57, %p58
      %p61 = scmp.ne.s32.totalorder %s46, %s60
      %p62 = scmp.eq.s32.totalorder %s15, 0
      %p63 = por %p61, %p62
      %s65 = sadd.s32 %s64, 1
      %p68 = scmp.eq.s32.totalorder %s9, 1
      %p69 = scmp.ne.s32.totalorder %s64, %s66
      %p70 = scmp.eq.s32.totalorder %s9, 0
      %p71 = por %p69, %p70
      %p72 = scmp.ne.s32.totalorder %s64, %s66
      %p73 = scmp.eq.s32.totalorder %s14, 1
      %p74 = por %p72, %p73
      %p75 = scmp.ne.s32.totalorder %s66, %s67
      %p76 = scmp.eq.s32.totalorder %s14, 0
      %p77 = por %p75, %p76
      %p78 = scmp.ne.s32.totalorder %s66, %s67
      %p79 = scmp.eq.s32.totalorder %s15, 1
      %p80 = por %p78, %p79
      %p82 = scmp.ne.s32.totalorder %s67, %s81
      %p83 = scmp.eq.s32.totalorder %s15, 0
      %p84 = por %p82, %p83
      %s85 = ssub.s32 %s9, %s16
      %p86 = scmp.eq.s32.totalorder %s85, 0
      %s88 = sadd.s32 %s87, 1
      %s89 = scalar_select %p86, %s87, %s88
      %p92 = pneg %p86
      %p93 = scmp.eq.s32.totalorder %s9, 1
      %p94 = por %p92, %p93
      %p95 = scmp.ne.s32.totalorder %s87, %s90
      %p96 = scmp.eq.s32.totalorder %s9, 0
      %p97 = por %p95, %p96
      %p98 = scmp.ne.s32.totalorder %s87, %s90
      %p99 = scmp.eq.s32.totalorder %s14, 1
      %p100 = por %p98, %p99
      %p101 = scmp.ne.s32.totalorder %s90, %s91
      %p102 = scmp.eq.s32.totalorder %s14, 0
      %p103 = por %p101, %p102
      %p104 = scmp.ne.s32.totalorder %s90, %s91
      %p105 = scmp.eq.s32.totalorder %s15, 1
      %p106 = por %p104, %p105
      %p108 = scmp.ne.s32.totalorder %s91, %s107
      %p109 = scmp.eq.s32.totalorder %s15, 0
      %p110 = por %p108, %p109
      %p111 = scmp.le.s32.totalorder 1, %s9
      %p112 = scmp.lt.s32.totalorder %s9, 3
      %p113 = pnand %p111, %p112
      %p114 = pneg %p113
      // Predicated region
      $region9: #{rescnn_forward.4} parent=5 // pred_check
        _
      $region10: #{rescnn_forward.4} parent=5 // pred_check_branch
        %116 = sbr.rel (%p113) target = $region12
      $region11: #{rescnn_forward.4} parent=5 // pred_region
        %s117 = ssub.s32 %s9, 1
        // Predicated region
        $region13: #{rescnn_forward.4} parent=11 // pred_check
          %p118 = pneg %p56
        $region14: #{rescnn_forward.4} parent=11 // pred_check_branch
          %120 = sbr.rel (%p118) target = $region16
        $region15: #{rescnn_forward.4} parent=11 // pred_region
          _
        $region16: #{rescnn_forward.4} parent=11 // pred_fallthru
          _
        // Predicated region
        $region17: #{rescnn_forward.4} parent=11 // pred_check
          %p121 = pneg %p77
        $region18: #{rescnn_forward.4} parent=11 // pred_check_branch
          %123 = sbr.rel (%p121) target = $region20
        $region19: #{rescnn_forward.4} parent=11 // pred_region
          _
        $region20: #{rescnn_forward.4} parent=11 // pred_fallthru
          _
      $region12: #{rescnn_forward.4} parent=5 // pred_fallthru
        _
      %p124 = scmp.lt.s32.totalorder %s9, 2
      // Predicated region
      $region21: #{rescnn_forward.4} parent=5 // pred_check
        %p125 = pneg %p124
      $region22: #{rescnn_forward.4} parent=5 // pred_check_branch
        %127 = sbr.rel (%p125) target = $region24
      $region23: #{rescnn_forward.4} parent=5 // pred_region
        // Predicated region
        $region25: #{rescnn_forward.4} parent=23 // pred_check
          %p128 = pneg %p29
        $region26: #{rescnn_forward.4} parent=23 // pred_check_branch
          %130 = sbr.rel (%p128) target = $region28
        $region27: #{rescnn_forward.4} parent=23 // pred_region
          %s131 = sand.u32 %s19, 1
          %s132 = sand.u32 %s19, 1
          %s133 = smul.addr %s132, 576
          %s134 = scalar_lea.vmem [#allocation2], %s133
          %s135 = smul.u32 2, %s9
          %s136 = smul.addr %s135, 8
          %s137 = scalar_lea.vmem %s0, %s136
          // Predicated region
          $region29: #{rescnn_forward.4} parent=27 // pred_check
            _
          $region30: #{rescnn_forward.4} parent=27 // pred_check_branch
            %139 = sbr.rel (0) target = $region32
          $region31: #{rescnn_forward.4} parent=27 // pred_region
            // Predicated region
            $region33: #{rescnn_forward.4} parent=31 // pred_check
              _
            $region34: #{rescnn_forward.4} parent=31 // pred_check_branch
              %141 = sbr.rel (0) target = $region36
            $region35: #{rescnn_forward.4} parent=31 // pred_region
              loop: start=0, step=1, limit=1
              $region37: #{rescnn_forward.4} parent=35 // loop_pre_header
                _
              $region38: #{rescnn_forward.4} parent=35 // loop_header
                %s143 = sphi 0, %s147
                %p144 = scmp.ge.s32.totalorder %s143, 1
                %s148 = sphi %s137, %s137
                %s149 = sphi %s134, %s134
              $region39: #{rescnn_forward.4} parent=35 // loop_header_branch
                %146 = sbr.rel (%p144) target = $region43
              $region40: #{rescnn_forward.4} parent=35 // loop_body
                %v150 = vld [vmem:[%s148] sm:$0xff]
                %151 = vst [vmem:[%s149] sm:$0xff] %v150
                %v152 = vld [vmem:[%s148 + $0x8] sm:$0xff]
                %153 = vst [vmem:[%s149 + $0x8] sm:$0xff] %v152
                %v154 = vld [vmem:[%s148 + $0x20] sm:$0xff]
                %155 = vst [vmem:[%s149 + $0x10] sm:$0xff] %v154
                %v156 = vld [vmem:[%s148 + $0x28] sm:$0xff]
                %157 = vst [vmem:[%s149 + $0x18] sm:$0xff] %v156
                %v158 = vld [vmem:[%s148 + $0x40] sm:$0xff]
                %159 = vst [vmem:[%s149 + $0x20] sm:$0xff] %v158
                %v160 = vld [vmem:[%s148 + $0x48] sm:$0xff]
                %161 = vst [vmem:[%s149 + $0x28] sm:$0xff] %v160
                %v162 = vld [vmem:[%s148 + $0x60] sm:$0xff]
                %163 = vst [vmem:[%s149 + $0x30] sm:$0xff] %v162
                %v164 = vld [vmem:[%s148 + $0x68] sm:$0xff]
                %165 = vst [vmem:[%s149 + $0x38] sm:$0xff] %v164
                %v166 = vld [vmem:[%s148 + $0x80] sm:$0xff]
                %167 = vst [vmem:[%s149 + $0x40] sm:$0xff] %v166
                %v168 = vld [vmem:[%s148 + $0x88] sm:$0xff]
                %169 = vst [vmem:[%s149 + $0x48] sm:$0xff] %v168
                %v170 = vld [vmem:[%s148 + $0xa0] sm:$0xff]
                %171 = vst [vmem:[%s149 + $0x50] sm:$0xff] %v170
                %v172 = vld [vmem:[%s148 + $0xa8] sm:$0xff]
                %173 = vst [vmem:[%s149 + $0x58] sm:$0xff] %v172
                %v174 = vld [vmem:[%s148 + $0xc0] sm:$0xff]
                %175 = vst [vmem:[%s149 + $0x60] sm:$0xff] %v174
                %v176 = vld [vmem:[%s148 + $0xc8] sm:$0xff]
                %177 = vst [vmem:[%s149 + $0x68] sm:$0xff] %v176
                %v178 = vld [vmem:[%s148 + $0xe0] sm:$0xff]
                %179 = vst [vmem:[%s149 + $0x70] sm:$0xff] %v178
                %v180 = vld [vmem:[%s148 + $0xe8] sm:$0xff]
                %181 = vst [vmem:[%s149 + $0x78] sm:$0xff] %v180
                %v182 = vld [vmem:[%s148 + $0x100] sm:$0xff]
                %183 = vst [vmem:[%s149 + $0x80] sm:$0xff] %v182
                %v184 = vld [vmem:[%s148 + $0x108] sm:$0xff]
                %185 = vst [vmem:[%s149 + $0x88] sm:$0xff] %v184
                %v186 = vld [vmem:[%s148 + $0x120] sm:$0xff]
                %187 = vst [vmem:[%s149 + $0x90] sm:$0xff] %v186
                %v188 = vld [vmem:[%s148 + $0x128] sm:$0xff]
                %189 = vst [vmem:[%s149 + $0x98] sm:$0xff] %v188
                %v190 = vld [vmem:[%s148 + $0x140] sm:$0xff]
                %191 = vst [vmem:[%s149 + $0xa0] sm:$0xff] %v190
                %v192 = vld [vmem:[%s148 + $0x148] sm:$0xff]
                %193 = vst [vmem:[%s149 + $0xa8] sm:$0xff] %v192
                %v194 = vld [vmem:[%s148 + $0x160] sm:$0xff]
                %195 = vst [vmem:[%s149 + $0xb0] sm:$0xff] %v194
                %v196 = vld [vmem:[%s148 + $0x168] sm:$0xff]
                %197 = vst [vmem:[%s149 + $0xb8] sm:$0xff] %v196
                %v198 = vld [vmem:[%s148 + $0x180] sm:$0xff]
                %199 = vst [vmem:[%s149 + $0xc0] sm:$0xff] %v198
                %v200 = vld [vmem:[%s148 + $0x188] sm:$0xff]
                %201 = vst [vmem:[%s149 + $0xc8] sm:$0xff] %v200
                %v202 = vld [vmem:[%s148 + $0x1a0] sm:$0xff]
                %203 = vst [vmem:[%s149 + $0xd0] sm:$0xff] %v202
                %v204 = vld [vmem:[%s148 + $0x1a8] sm:$0xff]
                %205 = vst [vmem:[%s149 + $0xd8] sm:$0xff] %v204
                %v206 = vld [vmem:[%s148 + $0x1c0] sm:$0xff]
                %207 = vst [vmem:[%s149 + $0xe0] sm:$0xff] %v206
                %v208 = vld [vmem:[%s148 + $0x1c8] sm:$0xff]
                %209 = vst [vmem:[%s149 + $0xe8] sm:$0xff] %v208
                %v210 = vld [vmem:[%s148 + $0x1e0] sm:$0xff]
                %211 = vst [vmem:[%s149 + $0xf0] sm:$0xff] %v210
                %v212 = vld [vmem:[%s148 + $0x1e8] sm:$0xff]
                %213 = vst [vmem:[%s149 + $0xf8] sm:$0xff] %v212
                %v214 = vld [vmem:[%s148 + $0x200] sm:$0xff]
                %215 = vst [vmem:[%s149 + $0x100] sm:$0xff] %v214
                %v216 = vld [vmem:[%s148 + $0x208] sm:$0xff]
                %217 = vst [vmem:[%s149 + $0x108] sm:$0xff] %v216
                %v218 = vld [vmem:[%s148 + $0x220] sm:$0xff]
                %219 = vst [vmem:[%s149 + $0x110] sm:$0xff] %v218
                %v220 = vld [vmem:[%s148 + $0x228] sm:$0xff]
                %221 = vst [vmem:[%s149 + $0x118] sm:$0xff] %v220
                %v222 = vld [vmem:[%s148 + $0x240] sm:$0xff]
                %223 = vst [vmem:[%s149 + $0x120] sm:$0xff] %v222
                %v224 = vld [vmem:[%s148 + $0x248] sm:$0xff]
                %225 = vst [vmem:[%s149 + $0x128] sm:$0xff] %v224
                %v226 = vld [vmem:[%s148 + $0x260] sm:$0xff]
                %227 = vst [vmem:[%s149 + $0x130] sm:$0xff] %v226
                %v228 = vld [vmem:[%s148 + $0x268] sm:$0xff]
                %229 = vst [vmem:[%s149 + $0x138] sm:$0xff] %v228
                %v230 = vld [vmem:[%s148 + $0x280] sm:$0xff]
                %231 = vst [vmem:[%s149 + $0x140] sm:$0xff] %v230
                %v232 = vld [vmem:[%s148 + $0x288] sm:$0xff]
                %233 = vst [vmem:[%s149 + $0x148] sm:$0xff] %v232
                %v234 = vld [vmem:[%s148 + $0x2a0] sm:$0xff]
                %235 = vst [vmem:[%s149 + $0x150] sm:$0xff] %v234
                %v236 = vld [vmem:[%s148 + $0x2a8] sm:$0xff]
                %237 = vst [vmem:[%s149 + $0x158] sm:$0xff] %v236
                %v238 = vld [vmem:[%s148 + $0x2c0] sm:$0xff]
                %239 = vst [vmem:[%s149 + $0x160] sm:$0xff] %v238
                %v240 = vld [vmem:[%s148 + $0x2c8] sm:$0xff]
                %241 = vst [vmem:[%s149 + $0x168] sm:$0xff] %v240
                %v242 = vld [vmem:[%s148 + $0x2e0] sm:$0xff]
                %243 = vst [vmem:[%s149 + $0x170] sm:$0xff] %v242
                %v244 = vld [vmem:[%s148 + $0x2e8] sm:$0xff]
                %245 = vst [vmem:[%s149 + $0x178] sm:$0xff] %v244
                %v246 = vld [vmem:[%s148 + $0x300] sm:$0xff]
                %247 = vst [vmem:[%s149 + $0x180] sm:$0xff] %v246
                %v248 = vld [vmem:[%s148 + $0x308] sm:$0xff]
                %249 = vst [vmem:[%s149 + $0x188] sm:$0xff] %v248
                %v250 = vld [vmem:[%s148 + $0x320] sm:$0xff]
                %251 = vst [vmem:[%s149 + $0x190] sm:$0xff] %v250
                %v252 = vld [vmem:[%s148 + $0x328] sm:$0xff]
                %253 = vst [vmem:[%s149 + $0x198] sm:$0xff] %v252
                %v254 = vld [vmem:[%s148 + $0x340] sm:$0xff]
                %255 = vst [vmem:[%s149 + $0x1a0] sm:$0xff] %v254
                %v256 = vld [vmem:[%s148 + $0x348] sm:$0xff]
                %257 = vst [vmem:[%s149 + $0x1a8] sm:$0xff] %v256
                %v258 = vld [vmem:[%s148 + $0x360] sm:$0xff]
                %259 = vst [vmem:[%s149 + $0x1b0] sm:$0xff] %v258
                %v260 = vld [vmem:[%s148 + $0x368] sm:$0xff]
                %261 = vst [vmem:[%s149 + $0x1b8] sm:$0xff] %v260
                %v262 = vld [vmem:[%s148 + $0x380] sm:$0xff]
                %263 = vst [vmem:[%s149 + $0x1c0] sm:$0xff] %v262
                %v264 = vld [vmem:[%s148 + $0x388] sm:$0xff]
                %265 = vst [vmem:[%s149 + $0x1c8] sm:$0xff] %v264
                %v266 = vld [vmem:[%s148 + $0x3a0] sm:$0xff]
                %267 = vst [vmem:[%s149 + $0x1d0] sm:$0xff] %v266
                %v268 = vld [vmem:[%s148 + $0x3a8] sm:$0xff]
                %269 = vst [vmem:[%s149 + $0x1d8] sm:$0xff] %v268
                %v270 = vld [vmem:[%s148 + $0x3c0] sm:$0xff]
                %271 = vst [vmem:[%s149 + $0x1e0] sm:$0xff] %v270
                %v272 = vld [vmem:[%s148 + $0x3c8] sm:$0xff]
                %273 = vst [vmem:[%s149 + $0x1e8] sm:$0xff] %v272
                %v274 = vld [vmem:[%s148 + $0x3e0] sm:$0xff]
                %275 = vst [vmem:[%s149 + $0x1f0] sm:$0xff] %v274
                %v276 = vld [vmem:[%s148 + $0x3e8] sm:$0xff]
                %277 = vst [vmem:[%s149 + $0x1f8] sm:$0xff] %v276
                %v278 = vld [vmem:[%s148 + $0x400] sm:$0xff]
                %279 = vst [vmem:[%s149 + $0x200] sm:$0xff] %v278
                %v280 = vld [vmem:[%s148 + $0x408] sm:$0xff]
                %281 = vst [vmem:[%s149 + $0x208] sm:$0xff] %v280
                %v282 = vld [vmem:[%s148 + $0x420] sm:$0xff]
                %283 = vst [vmem:[%s149 + $0x210] sm:$0xff] %v282
                %v284 = vld [vmem:[%s148 + $0x428] sm:$0xff]
                %285 = vst [vmem:[%s149 + $0x218] sm:$0xff] %v284
                %v286 = vld [vmem:[%s148 + $0x440] sm:$0xff]
                %287 = vst [vmem:[%s149 + $0x220] sm:$0xff] %v286
                %v288 = vld [vmem:[%s148 + $0x448] sm:$0xff]
                %289 = vst [vmem:[%s149 + $0x228] sm:$0xff] %v288
                %v290 = vld [vmem:[%s148 + $0x460] sm:$0xff]
                %291 = vst [vmem:[%s149 + $0x230] sm:$0xff] %v290
                %v292 = vld [vmem:[%s148 + $0x468] sm:$0xff]
                %293 = vst [vmem:[%s149 + $0x238] sm:$0xff] %v292
              $region41: #{rescnn_forward.4} parent=35 // loop_footer
                %s147 = sadd.s32 1, %s143
              $region42: #{rescnn_forward.4} parent=35 // loop_footer_branch
                %142 = sbr.rel target = $region38
              $region43: #{rescnn_forward.4} parent=35 // loop_exit
                _
            $region36: #{rescnn_forward.4} parent=31 // pred_fallthru
              _
            // Predicated region
            $region44: #{rescnn_forward.4} parent=31 // pred_check
              _
            $region45: #{rescnn_forward.4} parent=31 // pred_check_branch
              %295 = sbr.rel target = $region47
            $region46: #{rescnn_forward.4} parent=31 // pred_region
              _
            $region47: #{rescnn_forward.4} parent=31 // pred_fallthru
              _
          $region32: #{rescnn_forward.4} parent=27 // pred_fallthru
            _
          %296 = vnop
        $region28: #{rescnn_forward.4} parent=23 // pred_fallthru
          _
      $region24: #{rescnn_forward.4} parent=5 // pred_fallthru
        _
      %p297 = scmp.le.s32.totalorder 1, %s9
      %p298 = scmp.lt.s32.totalorder %s9, 3
      %p299 = pnand %p297, %p298
      %p300 = pneg %p299
      // Predicated region
      $region48: #{rescnn_forward.4} parent=5 // pred_check
        _
      $region49: #{rescnn_forward.4} parent=5 // pred_check_branch
        %302 = sbr.rel (%p299) target = $region51
      $region50: #{rescnn_forward.4} parent=5 // pred_region
        %s303 = ssub.s32 %s9, 1
        %s304 = sand.u32 %s22, 1
        %s305 = sand.u32 %s22, 1
        %s306 = smul.addr %s305, 576
        %s307 = scalar_lea.vmem [#allocation2], %s306
        // Predicated region
        $region52: #{rescnn_forward.4} parent=50 // pred_check
          %p308 = pneg %p35
        $region53: #{rescnn_forward.4} parent=50 // pred_check_branch
          %310 = sbr.rel (%p308) target = $region55
        $region54: #{rescnn_forward.4} parent=50 // pred_region
          _
        $region55: #{rescnn_forward.4} parent=50 // pred_fallthru
          _
        %s311 = sand.u32 %s22, 1
        %s312 = sand.u32 %s22, 1
        %s313 = smul.addr %s312, 576
        %s314 = scalar_lea.vmem [#allocation2], %s313
        %p315 = pneg %p35
        %p316 = pneg %p32
        %p317 = pneg %p56
        %p318 = pneg %p53
        %p319 = pneg %p77
        %p320 = pneg %p74
        %p321 = pneg %p103
        %p322 = pneg %p100
        %s323 = smul.u32 2, %s14
        %p324 = scmp.lt.s32.totalorder %s323, 3
        %s325 = scalar_select %p324, %s323, 3
        %s326 = smul.addr %s325, 4
        %s327 = scalar_lea.vmem %s3, %s326
        %s328 = smul.u32 2, %s14
        %s329 = smul.u32 2, %s14
        %p330 = scmp.lt.s32.totalorder %s329, 3
        %s331 = scalar_select %p330, %s329, 3
        %s332 = smul.addr %s331, 4
        %s333 = scalar_lea.vmem %s3, %s332
        %s334 = smul.u32 2, %s14
        %v335 = vld [vmem:[%s1] sm:$0xf]
        %v336 = vld [vmem:[%s307] sm:$0xff]
        %v337 = vld [vmem:[%s307 + $0x8] sm:$0xff]
        %v338 = vld [vmem:[%s307 + $0x10] sm:$0xff]
        %v339 = vld [vmem:[%s307 + $0x18] sm:$0xff]
        %v340 = vld [vmem:[%s307 + $0x20] sm:$0xff]
        %v341 = vld [vmem:[%s307 + $0x28] sm:$0xff]
        %v342 = vld [vmem:[%s307 + $0x30] sm:$0x7]
        %v343 = vld [vmem:[%s307 + $0x38] sm:$0x7]
        %vm344 = vcmask 220160
        %v346 = vsel %vm344, %v335, 0
        %vm348 = vcmask 1042432
        %v350 = vsel %vm348, %v342, 0
        %v353 = vsel %vm348, %v343, 0
        %355 = vmatprep.subr.mxu0 %v337
        %356 = vmatpush1.msra.mxu0 %v336
        %357 = vmatprep.subr.mxu0 %v339
        %358 = vmatpush1.msra.mxu0 %v338
        %359 = vmatprep.subr.mxu0 %v341
        %360 = vmatpush1.msra.mxu0 %v340
        %361 = vmatprep.subr.mxu0 %v353
        %362 = vmatpush1.msra.mxu0 %v350
        %363 = vmatprep.subr.mxu0 0.0
        %364 = vmatpush1.msra.mxu0 0.0
        %365 = vmatprep.subr.mxu0 0.0
        %366 = vmatpush1.msra.mxu0 0.0
        %367 = vmatprep.subr.mxu0 0.0
        %368 = vmatpush1.msra.mxu0 0.0
        %369 = vmatprep.subr.mxu0 0.0
        %370 = vmatpush1.msra.mxu0 0.0
        %371 = vmatprep.subr.mxu0 0.0
        %372 = vmatpush1.msra.mxu0 0.0
        %373 = vmatprep.subr.mxu0 0.0
        %374 = vmatpush1.msra.mxu0 0.0
        %375 = vmatprep.subr.mxu0 0.0
        %376 = vmatpush1.msra.mxu0 0.0
        %377 = vmatprep.subr.mxu0 0.0
        %378 = vmatpush1.msra.mxu0 0.0
        %379 = vmatprep.subr.mxu0 0.0
        %380 = vmatpush1.msra.mxu0 0.0
        %381 = vmatprep.subr.mxu0 0.0
        %382 = vmatpush1.msra.mxu0 0.0
        %383 = vmatprep.subr.mxu0 0.0
        %384 = vmatpush1.msra.mxu0 0.0
        %385 = vmatprep.subr.mxu0 0.0
        %386 = vmatpush1.msra.mxu0 0.0
        %387 = vmatprep.subr.mxu0 0.0
        %388 = vmatpush1.msra.mxu0 0.0
        %389 = vmatprep.subr.mxu0 0.0
        %390 = vmatpush1.msra.mxu0 0.0
        %391 = vmatprep.subr.mxu0 0.0
        %392 = vmatpush1.msra.mxu0 0.0
        %393 = vmatprep.subr.mxu0 0.0
        %394 = vmatpush1.msra.mxu0 0.0
        %395 = vmatprep.subr.mxu0 0.0
        %396 = vmatpush1.msra.mxu0 0.0
        %397 = vmatprep.subr.mxu0 0.0
        %398 = vmatpush1.msra.mxu0 0.0
        %399 = vmatprep.subr.mxu0 0.0
        %400 = vmatpush1.msra.mxu0 0.0
        %401 = vmatprep.subr.mxu0 0.0
        %402 = vmatpush1.msra.mxu0 0.0
        %403 = vmatprep.subr.mxu0 0.0
        %404 = vmatpush1.msra.mxu0 0.0
        %405 = vmatprep.subr.mxu0 0.0
        %406 = vmatpush1.msra.mxu0 0.0
        %407 = vmatprep.subr.mxu0 0.0
        %408 = vmatpush1.msra.mxu0 0.0
        %409 = vmatprep.subr.mxu0 0.0
        %410 = vmatpush1.msra.mxu0 0.0
        %411 = vmatprep.subr.mxu0 0.0
        %412 = vmatpush1.msra.mxu0 0.0
        %413 = vmatprep.subr.mxu0 0.0
        %414 = vmatpush1.msra.mxu0 0.0
        %415 = vmatprep.subr.mxu0 0.0
        %416 = vmatpush1.msra.mxu0 0.0
        %417 = vmatprep.subr.mxu0 0.0
        %418 = vmatpush1.msra.mxu0 0.0
        %419 = vmatprep.mubr.f32.mxu0 0.0
        %420 = vmatmul.mubr.f32.gmra.mrb[0].mxu0 %v346
        %v421 = vpop.f32.mrb[0].mxu0
        %v422 = vadd.f32 0.0, %v421
        %v423 = vpop.f32.mrb[0].mxu0
        %v424 = vadd.f32 0.0, %v423
        %425 = vdwg.mxu0
        %s426 = scalar_lea.vmem %s307, 64 [#allocation2]
        %v427 = vld [vmem:[%s426] sm:$0xff]
        %v428 = vld [vmem:[%s426 + $0x8] sm:$0xff]
        %v429 = vld [vmem:[%s426 + $0x10] sm:$0xff]
        %v430 = vld [vmem:[%s426 + $0x18] sm:$0xff]
        %v431 = vld [vmem:[%s426 + $0x20] sm:$0xff]
        %v432 = vld [vmem:[%s426 + $0x28] sm:$0xff]
        %v433 = vld [vmem:[%s426 + $0x30] sm:$0x7]
        %v434 = vld [vmem:[%s426 + $0x38] sm:$0x7]
        %v436 = vsel %vm348, %v433, 0
        %v439 = vsel %vm348, %v434, 0
        %441 = vmatprep.subr.mxu0 %v428
        %442 = vmatpush1.msra.mxu0 %v427
        %443 = vmatprep.subr.mxu0 %v430
        %444 = vmatpush1.msra.mxu0 %v429
        %445 = vmatprep.subr.mxu0 %v432
        %446 = vmatpush1.msra.mxu0 %v431
        %447 = vmatprep.subr.mxu0 %v439
        %448 = vmatpush1.msra.mxu0 %v436
        %449 = vmatprep.subr.mxu0 0.0
        %450 = vmatpush1.msra.mxu0 0.0
        %451 = vmatprep.subr.mxu0 0.0
        %452 = vmatpush1.msra.mxu0 0.0
        %453 = vmatprep.subr.mxu0 0.0
        %454 = vmatpush1.msra.mxu0 0.0
        %455 = vmatprep.subr.mxu0 0.0
        %456 = vmatpush1.msra.mxu0 0.0
        %457 = vmatprep.subr.mxu0 0.0
        %458 = vmatpush1.msra.mxu0 0.0
        %459 = vmatprep.subr.mxu0 0.0
        %460 = vmatpush1.msra.mxu0 0.0
        %461 = vmatprep.subr.mxu0 0.0
        %462 = vmatpush1.msra.mxu0 0.0
        %463 = vmatprep.subr.mxu0 0.0
        %464 = vmatpush1.msra.mxu0 0.0
        %465 = vmatprep.subr.mxu0 0.0
        %466 = vmatpush1.msra.mxu0 0.0
        %467 = vmatprep.subr.mxu0 0.0
        %468 = vmatpush1.msra.mxu0 0.0
        %469 = vmatprep.subr.mxu0 0.0
        %470 = vmatpush1.msra.mxu0 0.0
        %471 = vmatprep.subr.mxu0 0.0
        %472 = vmatpush1.msra.mxu0 0.0
        %473 = vmatprep.subr.mxu0 0.0
        %474 = vmatpush1.msra.mxu0 0.0
        %475 = vmatprep.subr.mxu0 0.0
        %476 = vmatpush1.msra.mxu0 0.0
        %477 = vmatprep.subr.mxu0 0.0
        %478 = vmatpush1.msra.mxu0 0.0
        %479 = vmatprep.subr.mxu0 0.0
        %480 = vmatpush1.msra.mxu0 0.0
        %481 = vmatprep.subr.mxu0 0.0
        %482 = vmatpush1.msra.mxu0 0.0
        %483 = vmatprep.subr.mxu0 0.0
        %484 = vmatpush1.msra.mxu0 0.0
        %485 = vmatprep.subr.mxu0 0.0
        %486 = vmatpush1.msra.mxu0 0.0
        %487 = vmatprep.subr.mxu0 0.0
        %488 = vmatpush1.msra.mxu0 0.0
        %489 = vmatprep.subr.mxu0 0.0
        %490 = vmatpush1.msra.mxu0 0.0
        %491 = vmatprep.subr.mxu0 0.0
        %492 = vmatpush1.msra.mxu0 0.0
        %493 = vmatprep.subr.mxu0 0.0
        %494 = vmatpush1.msra.mxu0 0.0
        %495 = vmatprep.subr.mxu0 0.0
        %496 = vmatpush1.msra.mxu0 0.0
        %497 = vmatprep.subr.mxu0 0.0
        %498 = vmatpush1.msra.mxu0 0.0
        %499 = vmatprep.subr.mxu0 0.0
        %500 = vmatpush1.msra.mxu0 0.0
        %501 = vmatprep.subr.mxu0 0.0
        %502 = vmatpush1.msra.mxu0 0.0
        %503 = vmatprep.subr.mxu0 0.0
        %504 = vmatpush1.msra.mxu0 0.0
        %505 = vmatprep.mubr.f32.mxu0 0.0
        %506 = vmatmul.mubr.f32.gmra.mrb[0].mxu0 %v346
        %v507 = vpop.f32.mrb[0].mxu0
        %v508 = vadd.f32 0.0, %v507
        %v509 = vpop.f32.mrb[0].mxu0
        %v510 = vadd.f32 0.0, %v509
        %511 = vdwg.mxu0
        %v512 = vmax.f32 %v422, %v508
        %v513 = vmax.f32 %v424, %v510
        %s514 = scalar_lea.vmem %s307, 128 [#allocation2]
        %v515 = vld [vmem:[%s514] sm:$0xff]
        %v516 = vld [vmem:[%s514 + $0x8] sm:$0xff]
        %v517 = vld [vmem:[%s514 + $0x10] sm:$0xff]
        %v518 = vld [vmem:[%s514 + $0x18] sm:$0xff]
        %v519 = vld [vmem:[%s514 + $0x20] sm:$0xff]
        %v520 = vld [vmem:[%s514 + $0x28] sm:$0xff]
        %v521 = vld [vmem:[%s514 + $0x30] sm:$0x7]
        %v522 = vld [vmem:[%s514 + $0x38] sm:$0x7]
        %v524 = vsel %vm348, %v521, 0
        %v527 = vsel %vm348, %v522, 0
        %529 = vmatprep.subr.mxu0 %v516
        %530 = vmatpush1.msra.mxu0 %v515
        %531 = vmatprep.subr.mxu0 %v518
        %532 = vmatpush1.msra.mxu0 %v517
        %533 = vmatprep.subr.mxu0 %v520
        %534 = vmatpush1.msra.mxu0 %v519
        %535 = vmatprep.subr.mxu0 %v527
        %536 = vmatpush1.msra.mxu0 %v524
        %537 = vmatprep.subr.mxu0 0.0
        %538 = vmatpush1.msra.mxu0 0.0
        %539 = vmatprep.subr.mxu0 0.0
        %540 = vmatpush1.msra.mxu0 0.0
        %541 = vmatprep.subr.mxu0 0.0
        %542 = vmatpush1.msra.mxu0 0.0
        %543 = vmatprep.subr.mxu0 0.0
        %544 = vmatpush1.msra.mxu0 0.0
        %545 = vmatprep.subr.mxu0 0.0
        %546 = vmatpush1.msra.mxu0 0.0
        %547 = vmatprep.subr.mxu0 0.0
        %548 = vmatpush1.msra.mxu0 0.0
        %549 = vmatprep.subr.mxu0 0.0
        %550 = vmatpush1.msra.mxu0 0.0
        %551 = vmatprep.subr.mxu0 0.0
        %552 = vmatpush1.msra.mxu0 0.0
        %553 = vmatprep.subr.mxu0 0.0
        %554 = vmatpush1.msra.mxu0 0.0
        %555 = vmatprep.subr.mxu0 0.0
        %556 = vmatpush1.msra.mxu0 0.0
        %557 = vmatprep.subr.mxu0 0.0
        %558 = vmatpush1.msra.mxu0 0.0
        %559 = vmatprep.subr.mxu0 0.0
        %560 = vmatpush1.msra.mxu0 0.0
        %561 = vmatprep.subr.mxu0 0.0
        %562 = vmatpush1.msra.mxu0 0.0
        %563 = vmatprep.subr.mxu0 0.0
        %564 = vmatpush1.msra.mxu0 0.0
        %565 = vmatprep.subr.mxu0 0.0
        %566 = vmatpush1.msra.mxu0 0.0
        %567 = vmatprep.subr.mxu0 0.0
        %568 = vmatpush1.msra.mxu0 0.0
        %569 = vmatprep.subr.mxu0 0.0
        %570 = vmatpush1.msra.mxu0 0.0
        %571 = vmatprep.subr.mxu0 0.0
        %572 = vmatpush1.msra.mxu0 0.0
        %573 = vmatprep.subr.mxu0 0.0
        %574 = vmatpush1.msra.mxu0 0.0
        %575 = vmatprep.subr.mxu0 0.0
        %576 = vmatpush1.msra.mxu0 0.0
        %577 = vmatprep.subr.mxu0 0.0
        %578 = vmatpush1.msra.mxu0 0.0
        %579 = vmatprep.subr.mxu0 0.0
        %580 = vmatpush1.msra.mxu0 0.0
        %581 = vmatprep.subr.mxu0 0.0
        %582 = vmatpush1.msra.mxu0 0.0
        %583 = vmatprep.subr.mxu0 0.0
        %584 = vmatpush1.msra.mxu0 0.0
        %585 = vmatprep.subr.mxu0 0.0
        %586 = vmatpush1.msra.mxu0 0.0
        %587 = vmatprep.subr.mxu0 0.0
        %588 = vmatpush1.msra.mxu0 0.0
        %589 = vmatprep.subr.mxu0 0.0
        %590 = vmatpush1.msra.mxu0 0.0
        %591 = vmatprep.subr.mxu0 0.0
        %592 = vmatpush1.msra.mxu0 0.0
        %593 = vmatprep.mubr.f32.mxu0 0.0
        %594 = vmatmul.mubr.f32.gmra.mrb[0].mxu0 %v346
        %v595 = vpop.f32.mrb[0].mxu0
        %v596 = vadd.f32 0.0, %v595
        %v597 = vpop.f32.mrb[0].mxu0
        %v598 = vadd.f32 0.0, %v597
        %599 = vdwg.mxu0
        %v600 = vmax.f32 %v512, %v596
        %v601 = vmax.f32 %v513, %v598
        %s602 = scalar_lea.vmem %s307, 192 [#allocation2]
        %v603 = vld [vmem:[%s602] sm:$0xff]
        %v604 = vld [vmem:[%s602 + $0x8] sm:$0xff]
        %v605 = vld [vmem:[%s602 + $0x10] sm:$0xff]
        %v606 = vld [vmem:[%s602 + $0x18] sm:$0xff]
        %v607 = vld [vmem:[%s602 + $0x20] sm:$0xff]
        %v608 = vld [vmem:[%s602 + $0x28] sm:$0xff]
        %v609 = vld [vmem:[%s602 + $0x30] sm:$0x7]
        %v610 = vld [vmem:[%s602 + $0x38] sm:$0x7]
        %v612 = vsel %vm348, %v609, 0
        %v615 = vsel %vm348, %v610, 0
        %617 = vmatprep.subr.mxu0 %v604
        %618 = vmatpush1.msra.mxu0 %v603
        %619 = vmatprep.subr.mxu0 %v606
        %620 = vmatpush1.msra.mxu0 %v605
        %621 = vmatprep.subr.mxu0 %v608
        %622 = vmatpush1.msra.mxu0 %v607
        %623 = vmatprep.subr.mxu0 %v615
        %624 = vmatpush1.msra.mxu0 %v612
        %625 = vmatprep.subr.mxu0 0.0
        %626 = vmatpush1.msra.mxu0 0.0
        %627 = vmatprep.subr.mxu0 0.0
        %628 = vmatpush1.msra.mxu0 0.0
        %629 = vmatprep.subr.mxu0 0.0
        %630 = vmatpush1.msra.mxu0 0.0
        %631 = vmatprep.subr.mxu0 0.0
        %632 = vmatpush1.msra.mxu0 0.0
        %633 = vmatprep.subr.mxu0 0.0
        %634 = vmatpush1.msra.mxu0 0.0
        %635 = vmatprep.subr.mxu0 0.0
        %636 = vmatpush1.msra.mxu0 0.0
        %637 = vmatprep.subr.mxu0 0.0
        %638 = vmatpush1.msra.mxu0 0.0
        %639 = vmatprep.subr.mxu0 0.0
        %640 = vmatpush1.msra.mxu0 0.0
        %641 = vmatprep.subr.mxu0 0.0
        %642 = vmatpush1.msra.mxu0 0.0
        %643 = vmatprep.subr.mxu0 0.0
        %644 = vmatpush1.msra.mxu0 0.0
        %645 = vmatprep.subr.mxu0 0.0
        %646 = vmatpush1.msra.mxu0 0.0
        %647 = vmatprep.subr.mxu0 0.0
        %648 = vmatpush1.msra.mxu0 0.0
        %649 = vmatprep.subr.mxu0 0.0
        %650 = vmatpush1.msra.mxu0 0.0
        %651 = vmatprep.subr.mxu0 0.0
        %652 = vmatpush1.msra.mxu0 0.0
        %653 = vmatprep.subr.mxu0 0.0
        %654 = vmatpush1.msra.mxu0 0.0
        %655 = vmatprep.subr.mxu0 0.0
        %656 = vmatpush1.msra.mxu0 0.0
        %657 = vmatprep.subr.mxu0 0.0
        %658 = vmatpush1.msra.mxu0 0.0
        %659 = vmatprep.subr.mxu0 0.0
        %660 = vmatpush1.msra.mxu0 0.0
        %661 = vmatprep.subr.mxu0 0.0
        %662 = vmatpush1.msra.mxu0 0.0
        %663 = vmatprep.subr.mxu0 0.0
        %664 = vmatpush1.msra.mxu0 0.0
        %665 = vmatprep.subr.mxu0 0.0
        %666 = vmatpush1.msra.mxu0 0.0
        %667 = vmatprep.subr.mxu0 0.0
        %668 = vmatpush1.msra.mxu0 0.0
        %669 = vmatprep.subr.mxu0 0.0
        %670 = vmatpush1.msra.mxu0 0.0
        %671 = vmatprep.subr.mxu0 0.0
        %672 = vmatpush1.msra.mxu0 0.0
        %673 = vmatprep.subr.mxu0 0.0
        %674 = vmatpush1.msra.mxu0 0.0
        %675 = vmatprep.subr.mxu0 0.0
        %676 = vmatpush1.msra.mxu0 0.0
        %677 = vmatprep.subr.mxu0 0.0
        %678 = vmatpush1.msra.mxu0 0.0
        %679 = vmatprep.subr.mxu0 0.0
        %680 = vmatpush1.msra.mxu0 0.0
        %681 = vmatprep.mubr.f32.mxu0 0.0
        %682 = vmatmul.mubr.f32.gmra.mrb[0].mxu0 %v346
        %v683 = vpop.f32.mrb[0].mxu0
        %v684 = vadd.f32 0.0, %v683
        %v685 = vpop.f32.mrb[0].mxu0
        %v686 = vadd.f32 0.0, %v685
        %687 = vdwg.mxu0
        %v688 = vmax.f32 %v600, %v684
        %v689 = vmax.f32 %v601, %v686
        %s690 = scalar_lea.vmem %s307, 256 [#allocation2]
        %v691 = vld [vmem:[%s690] sm:$0xff]
        %v692 = vld [vmem:[%s690 + $0x8] sm:$0xff]
        %v693 = vld [vmem:[%s690 + $0x10] sm:$0xff]
        %v694 = vld [vmem:[%s690 + $0x18] sm:$0xff]
        %v695 = vld [vmem:[%s690 + $0x20] sm:$0xff]
        %v696 = vld [vmem:[%s690 + $0x28] sm:$0xff]
        %v697 = vld [vmem:[%s690 + $0x30] sm:$0x7]
        %v698 = vld [vmem:[%s690 + $0x38] sm:$0x7]
        %v700 = vsel %vm348, %v697, 0
        %v703 = vsel %vm348, %v698, 0
        %705 = vmatprep.subr.mxu0 %v692
        %706 = vmatpush1.msra.mxu0 %v691
        %707 = vmatprep.subr.mxu0 %v694
        %708 = vmatpush1.msra.mxu0 %v693
        %709 = vmatprep.subr.mxu0 %v696
        %710 = vmatpush1.msra.mxu0 %v695
        %711 = vmatprep.subr.mxu0 %v703
        %712 = vmatpush1.msra.mxu0 %v700
        %713 = vmatprep.subr.mxu0 0.0
        %714 = vmatpush1.msra.mxu0 0.0
        %715 = vmatprep.subr.mxu0 0.0
        %716 = vmatpush1.msra.mxu0 0.0
        %717 = vmatprep.subr.mxu0 0.0
        %718 = vmatpush1.msra.mxu0 0.0
        %719 = vmatprep.subr.mxu0 0.0
        %720 = vmatpush1.msra.mxu0 0.0
        %721 = vmatprep.subr.mxu0 0.0
        %722 = vmatpush1.msra.mxu0 0.0
        %723 = vmatprep.subr.mxu0 0.0
        %724 = vmatpush1.msra.mxu0 0.0
        %725 = vmatprep.subr.mxu0 0.0
        %726 = vmatpush1.msra.mxu0 0.0
        %727 = vmatprep.subr.mxu0 0.0
        %728 = vmatpush1.msra.mxu0 0.0
        %729 = vmatprep.subr.mxu0 0.0
        %730 = vmatpush1.msra.mxu0 0.0
        %731 = vmatprep.subr.mxu0 0.0
        %732 = vmatpush1.msra.mxu0 0.0
        %733 = vmatprep.subr.mxu0 0.0
        %734 = vmatpush1.msra.mxu0 0.0
        %735 = vmatprep.subr.mxu0 0.0
        %736 = vmatpush1.msra.mxu0 0.0
        %737 = vmatprep.subr.mxu0 0.0
        %738 = vmatpush1.msra.mxu0 0.0
        %739 = vmatprep.subr.mxu0 0.0
        %740 = vmatpush1.msra.mxu0 0.0
        %741 = vmatprep.subr.mxu0 0.0
        %742 = vmatpush1.msra.mxu0 0.0
        %743 = vmatprep.subr.mxu0 0.0
        %744 = vmatpush1.msra.mxu0 0.0
        %745 = vmatprep.subr.mxu0 0.0
        %746 = vmatpush1.msra.mxu0 0.0
        %747 = vmatprep.subr.mxu0 0.0
        %748 = vmatpush1.msra.mxu0 0.0
        %749 = vmatprep.subr.mxu0 0.0
        %750 = vmatpush1.msra.mxu0 0.0
        %751 = vmatprep.subr.mxu0 0.0
        %752 = vmatpush1.msra.mxu0 0.0
        %753 = vmatprep.subr.mxu0 0.0
        %754 = vmatpush1.msra.mxu0 0.0
        %755 = vmatprep.subr.mxu0 0.0
        %756 = vmatpush1.msra.mxu0 0.0
        %757 = vmatprep.subr.mxu0 0.0
        %758 = vmatpush1.msra.mxu0 0.0
        %759 = vmatprep.subr.mxu0 0.0
        %760 = vmatpush1.msra.mxu0 0.0
        %761 = vmatprep.subr.mxu0 0.0
        %762 = vmatpush1.msra.mxu0 0.0
        %763 = vmatprep.subr.mxu0 0.0
        %764 = vmatpush1.msra.mxu0 0.0
        %765 = vmatprep.subr.mxu0 0.0
        %766 = vmatpush1.msra.mxu0 0.0
        %767 = vmatprep.subr.mxu0 0.0
        %768 = vmatpush1.msra.mxu0 0.0
        %769 = vmatprep.mubr.f32.mxu0 0.0
        %770 = vmatmul.mubr.f32.gmra.mrb[0].mxu0 %v346
        %v771 = vpop.f32.mrb[0].mxu0
        %v772 = vadd.f32 0.0, %v771
        %v773 = vpop.f32.mrb[0].mxu0
        %v774 = vadd.f32 0.0, %v773
        %775 = vdwg.mxu0
        %v776 = vmax.f32 %v688, %v772
        %v777 = vmax.f32 %v689, %v774
        %s778 = scalar_lea.vmem %s307, 320 [#allocation2]
        %v779 = vld [vmem:[%s778] sm:$0xff]
        %v780 = vld [vmem:[%s778 + $0x8] sm:$0xff]
        %v781 = vld [vmem:[%s778 + $0x10] sm:$0xff]
        %v782 = vld [vmem:[%s778 + $0x18] sm:$0xff]
        %v783 = vld [vmem:[%s778 + $0x20] sm:$0xff]
        %v784 = vld [vmem:[%s778 + $0x28] sm:$0xff]
        %v785 = vld [vmem:[%s778 + $0x30] sm:$0x7]
        %v786 = vld [vmem:[%s778 + $0x38] sm:$0x7]
        %v788 = vsel %vm348, %v785, 0
        %v791 = vsel %vm348, %v786, 0
        %793 = vmatprep.subr.mxu0 %v780
        %794 = vmatpush1.msra.mxu0 %v779
        %795 = vmatprep.subr.mxu0 %v782
        %796 = vmatpush1.msra.mxu0 %v781
        %797 = vmatprep.subr.mxu0 %v784
        %798 = vmatpush1.msra.mxu0 %v783
        %799 = vmatprep.subr.mxu0 %v791
        %800 = vmatpush1.msra.mxu0 %v788
        %801 = vmatprep.subr.mxu0 0.0
        %802 = vmatpush1.msra.mxu0 0.0
        %803 = vmatprep.subr.mxu0 0.0
        %804 = vmatpush1.msra.mxu0 0.0
        %805 = vmatprep.subr.mxu0 0.0
        %806 = vmatpush1.msra.mxu0 0.0
        %807 = vmatprep.subr.mxu0 0.0
        %808 = vmatpush1.msra.mxu0 0.0
        %809 = vmatprep.subr.mxu0 0.0
        %810 = vmatpush1.msra.mxu0 0.0
        %811 = vmatprep.subr.mxu0 0.0
        %812 = vmatpush1.msra.mxu0 0.0
        %813 = vmatprep.subr.mxu0 0.0
        %814 = vmatpush1.msra.mxu0 0.0
        %815 = vmatprep.subr.mxu0 0.0
        %816 = vmatpush1.msra.mxu0 0.0
        %817 = vmatprep.subr.mxu0 0.0
        %818 = vmatpush1.msra.mxu0 0.0
        %819 = vmatprep.subr.mxu0 0.0
        %820 = vmatpush1.msra.mxu0 0.0
        %821 = vmatprep.subr.mxu0 0.0
        %822 = vmatpush1.msra.mxu0 0.0
        %823 = vmatprep.subr.mxu0 0.0
        %824 = vmatpush1.msra.mxu0 0.0
        %825 = vmatprep.subr.mxu0 0.0
        %826 = vmatpush1.msra.mxu0 0.0
        %827 = vmatprep.subr.mxu0 0.0
        %828 = vmatpush1.msra.mxu0 0.0
        %829 = vmatprep.subr.mxu0 0.0
        %830 = vmatpush1.msra.mxu0 0.0
        %831 = vmatprep.subr.mxu0 0.0
        %832 = vmatpush1.msra.mxu0 0.0
        %833 = vmatprep.subr.mxu0 0.0
        %834 = vmatpush1.msra.mxu0 0.0
        %835 = vmatprep.subr.mxu0 0.0
        %836 = vmatpush1.msra.mxu0 0.0
        %837 = vmatprep.subr.mxu0 0.0
        %838 = vmatpush1.msra.mxu0 0.0
        %839 = vmatprep.subr.mxu0 0.0
        %840 = vmatpush1.msra.mxu0 0.0
        %841 = vmatprep.subr.mxu0 0.0
        %842 = vmatpush1.msra.mxu0 0.0
        %843 = vmatprep.subr.mxu0 0.0
        %844 = vmatpush1.msra.mxu0 0.0
        %845 = vmatprep.subr.mxu0 0.0
        %846 = vmatpush1.msra.mxu0 0.0
        %847 = vmatprep.subr.mxu0 0.0
        %848 = vmatpush1.msra.mxu0 0.0
        %849 = vmatprep.subr.mxu0 0.0
        %850 = vmatpush1.msra.mxu0 0.0
        %851 = vmatprep.subr.mxu0 0.0
        %852 = vmatpush1.msra.mxu0 0.0
        %853 = vmatprep.subr.mxu0 0.0
        %854 = vmatpush1.msra.mxu0 0.0
        %855 = vmatprep.subr.mxu0 0.0
        %856 = vmatpush1.msra.mxu0 0.0
        %857 = vmatprep.mubr.f32.mxu0 0.0
        %858 = vmatmul.mubr.f32.gmra.mrb[0].mxu0 %v346
        %v859 = vpop.f32.mrb[0].mxu0
        %v860 = vadd.f32 0.0, %v859
        %v861 = vpop.f32.mrb[0].mxu0
        %v862 = vadd.f32 0.0, %v861
        %863 = vdwg.mxu0
        %v864 = vmax.f32 %v776, %v860
        %v865 = vmax.f32 %v777, %v862
        %s866 = scalar_lea.vmem %s307, 384 [#allocation2]
        %v867 = vld [vmem:[%s866] sm:$0xff]
        %v868 = vld [vmem:[%s866 + $0x8] sm:$0xff]
        %v869 = vld [vmem:[%s866 + $0x10] sm:$0xff]
        %v870 = vld [vmem:[%s866 + $0x18] sm:$0xff]
        %v871 = vld [vmem:[%s866 + $0x20] sm:$0xff]
        %v872 = vld [vmem:[%s866 + $0x28] sm:$0xff]
        %v873 = vld [vmem:[%s866 + $0x30] sm:$0x7]
        %v874 = vld [vmem:[%s866 + $0x38] sm:$0x7]
        %v876 = vsel %vm348, %v873, 0
        %v879 = vsel %vm348, %v874, 0
        %881 = vmatprep.subr.mxu0 %v868
        %882 = vmatpush1.msra.mxu0 %v867
        %883 = vmatprep.subr.mxu0 %v870
        %884 = vmatpush1.msra.mxu0 %v869
        %885 = vmatprep.subr.mxu0 %v872
        %886 = vmatpush1.msra.mxu0 %v871
        %887 = vmatprep.subr.mxu0 %v879
        %888 = vmatpush1.msra.mxu0 %v876
        %889 = vmatprep.subr.mxu0 0.0
        %890 = vmatpush1.msra.mxu0 0.0
        %891 = vmatprep.subr.mxu0 0.0
        %892 = vmatpush1.msra.mxu0 0.0
        %893 = vmatprep.subr.mxu0 0.0
        %894 = vmatpush1.msra.mxu0 0.0
        %895 = vmatprep.subr.mxu0 0.0
        %896 = vmatpush1.msra.mxu0 0.0
        %897 = vmatprep.subr.mxu0 0.0
        %898 = vmatpush1.msra.mxu0 0.0
        %899 = vmatprep.subr.mxu0 0.0
        %900 = vmatpush1.msra.mxu0 0.0
        %901 = vmatprep.subr.mxu0 0.0
        %902 = vmatpush1.msra.mxu0 0.0
        %903 = vmatprep.subr.mxu0 0.0
        %904 = vmatpush1.msra.mxu0 0.0
        %905 = vmatprep.subr.mxu0 0.0
        %906 = vmatpush1.msra.mxu0 0.0
        %907 = vmatprep.subr.mxu0 0.0
        %908 = vmatpush1.msra.mxu0 0.0
        %909 = vmatprep.subr.mxu0 0.0
        %910 = vmatpush1.msra.mxu0 0.0
        %911 = vmatprep.subr.mxu0 0.0
        %912 = vmatpush1.msra.mxu0 0.0
        %913 = vmatprep.subr.mxu0 0.0
        %914 = vmatpush1.msra.mxu0 0.0
        %915 = vmatprep.subr.mxu0 0.0
        %916 = vmatpush1.msra.mxu0 0.0
        %917 = vmatprep.subr.mxu0 0.0
        %918 = vmatpush1.msra.mxu0 0.0
        %919 = vmatprep.subr.mxu0 0.0
        %920 = vmatpush1.msra.mxu0 0.0
        %921 = vmatprep.subr.mxu0 0.0
        %922 = vmatpush1.msra.mxu0 0.0
        %923 = vmatprep.subr.mxu0 0.0
        %924 = vmatpush1.msra.mxu0 0.0
        %925 = vmatprep.subr.mxu0 0.0
        %926 = vmatpush1.msra.mxu0 0.0
        %927 = vmatprep.subr.mxu0 0.0
        %928 = vmatpush1.msra.mxu0 0.0
        %929 = vmatprep.subr.mxu0 0.0
        %930 = vmatpush1.msra.mxu0 0.0
        %931 = vmatprep.subr.mxu0 0.0
        %932 = vmatpush1.msra.mxu0 0.0
        %933 = vmatprep.subr.mxu0 0.0
        %934 = vmatpush1.msra.mxu0 0.0
        %935 = vmatprep.subr.mxu0 0.0
        %936 = vmatpush1.msra.mxu0 0.0
        %937 = vmatprep.subr.mxu0 0.0
        %938 = vmatpush1.msra.mxu0 0.0
        %939 = vmatprep.subr.mxu0 0.0
        %940 = vmatpush1.msra.mxu0 0.0
        %941 = vmatprep.subr.mxu0 0.0
        %942 = vmatpush1.msra.mxu0 0.0
        %943 = vmatprep.subr.mxu0 0.0
        %944 = vmatpush1.msra.mxu0 0.0
        %945 = vmatprep.mubr.f32.mxu0 0.0
        %946 = vmatmul.mubr.f32.gmra.mrb[0].mxu0 %v346
        %v947 = vpop.f32.mrb[0].mxu0
        %v948 = vadd.f32 0.0, %v947
        %v949 = vpop.f32.mrb[0].mxu0
        %v950 = vadd.f32 0.0, %v949
        %951 = vdwg.mxu0
        %v952 = vmax.f32 %v864, %v948
        %v953 = vmax.f32 %v865, %v950
        %s954 = scalar_lea.vmem %s307, 448 [#allocation2]
        %v955 = vld [vmem:[%s954] sm:$0xff]
        %v956 = vld [vmem:[%s954 + $0x8] sm:$0xff]
        %v957 = vld [vmem:[%s954 + $0x10] sm:$0xff]
        %v958 = vld [vmem:[%s954 + $0x18] sm:$0xff]
        %v959 = vld [vmem:[%s954 + $0x20] sm:$0xff]
        %v960 = vld [vmem:[%s954 + $0x28] sm:$0xff]
        %v961 = vld [vmem:[%s954 + $0x30] sm:$0x7]
        %v962 = vld [vmem:[%s954 + $0x38] sm:$0x7]
        %v964 = vsel %vm348, %v961, 0
        %v967 = vsel %vm348, %v962, 0
        %969 = vmatprep.subr.mxu0 %v956
        %970 = vmatpush1.msra.mxu0 %v955
        %971 = vmatprep.subr.mxu0 %v958
        %972 = vmatpush1.msra.mxu0 %v957
        %973 = vmatprep.subr.mxu0 %v960
        %974 = vmatpush1.msra.mxu0 %v959
        %975 = vmatprep.subr.mxu0 %v967
        %976 = vmatpush1.msra.mxu0 %v964
        %977 = vmatprep.subr.mxu0 0.0
        %978 = vmatpush1.msra.mxu0 0.0
        %979 = vmatprep.subr.mxu0 0.0
        %980 = vmatpush1.msra.mxu0 0.0
        %981 = vmatprep.subr.mxu0 0.0
        %982 = vmatpush1.msra.mxu0 0.0
        %983 = vmatprep.subr.mxu0 0.0
        %984 = vmatpush1.msra.mxu0 0.0
        %985 = vmatprep.subr.mxu0 0.0
        %986 = vmatpush1.msra.mxu0 0.0
        %987 = vmatprep.subr.mxu0 0.0
        %988 = vmatpush1.msra.mxu0 0.0
        %989 = vmatprep.subr.mxu0 0.0
        %990 = vmatpush1.msra.mxu0 0.0
        %991 = vmatprep.subr.mxu0 0.0
        %992 = vmatpush1.msra.mxu0 0.0
        %993 = vmatprep.subr.mxu0 0.0
        %994 = vmatpush1.msra.mxu0 0.0
        %995 = vmatprep.subr.mxu0 0.0
        %996 = vmatpush1.msra.mxu0 0.0
        %997 = vmatprep.subr.mxu0 0.0
        %998 = vmatpush1.msra.mxu0 0.0
        %999 = vmatprep.subr.mxu0 0.0
        %1000 = vmatpush1.msra.mxu0 0.0
        %1001 = vmatprep.subr.mxu0 0.0
        %1002 = vmatpush1.msra.mxu0 0.0
        %1003 = vmatprep.subr.mxu0 0.0
        %1004 = vmatpush1.msra.mxu0 0.0
        %1005 = vmatprep.subr.mxu0 0.0
        %1006 = vmatpush1.msra.mxu0 0.0
        %1007 = vmatprep.subr.mxu0 0.0
        %1008 = vmatpush1.msra.mxu0 0.0
        %1009 = vmatprep.subr.mxu0 0.0
        %1010 = vmatpush1.msra.mxu0 0.0
        %1011 = vmatprep.subr.mxu0 0.0
        %1012 = vmatpush1.msra.mxu0 0.0
        %1013 = vmatprep.subr.mxu0 0.0
        %1014 = vmatpush1.msra.mxu0 0.0
        %1015 = vmatprep.subr.mxu0 0.0
        %1016 = vmatpush1.msra.mxu0 0.0
        %1017 = vmatprep.subr.mxu0 0.0
        %1018 = vmatpush1.msra.mxu0 0.0
        %1019 = vmatprep.subr.mxu0 0.0
        %1020 = vmatpush1.msra.mxu0 0.0
        %1021 = vmatprep.subr.mxu0 0.0
        %1022 = vmatpush1.msra.mxu0 0.0
        %1023 = vmatprep.subr.mxu0 0.0
        %1024 = vmatpush1.msra.mxu0 0.0
        %1025 = vmatprep.subr.mxu0 0.0
        %1026 = vmatpush1.msra.mxu0 0.0
        %1027 = vmatprep.subr.mxu0 0.0
        %1028 = vmatpush1.msra.mxu0 0.0
        %1029 = vmatprep.subr.mxu0 0.0
        %1030 = vmatpush1.msra.mxu0 0.0
        %1031 = vmatprep.subr.mxu0 0.0
        %1032 = vmatpush1.msra.mxu0 0.0
        %1033 = vmatprep.mubr.f32.mxu0 0.0
        %1034 = vmatmul.mubr.f32.gmra.mrb[0].mxu0 %v346
        %v1035 = vpop.f32.mrb[0].mxu0
        %v1036 = vadd.f32 0.0, %v1035
        %v1037 = vpop.f32.mrb[0].mxu0
        %v1038 = vadd.f32 0.0, %v1037
        %1039 = vdwg.mxu0
        %v1040 = vmax.f32 %v952, %v1036
        %v1041 = vmax.f32 %v953, %v1038
        %s1042 = scalar_lea.vmem %s307, 512 [#allocation2]
        %v1043 = vld [vmem:[%s1042] sm:$0xff]
        %v1044 = vld [vmem:[%s1042 + $0x8] sm:$0xff]
        %v1045 = vld [vmem:[%s1042 + $0x10] sm:$0xff]
        %v1046 = vld [vmem:[%s1042 + $0x18] sm:$0xff]
        %v1047 = vld [vmem:[%s1042 + $0x20] sm:$0xff]
        %v1048 = vld [vmem:[%s1042 + $0x28] sm:$0xff]
        %v1049 = vld [vmem:[%s1042 + $0x30] sm:$0x7]
        %v1050 = vld [vmem:[%s1042 + $0x38] sm:$0x7]
        %v1052 = vsel %vm348, %v1049, 0
        %v1055 = vsel %vm348, %v1050, 0
        %1057 = vmatprep.subr.mxu0 %v1044
        %1058 = vmatpush1.msra.mxu0 %v1043
        %1059 = vmatprep.subr.mxu0 %v1046
        %1060 = vmatpush1.msra.mxu0 %v1045
        %1061 = vmatprep.subr.mxu0 %v1048
        %1062 = vmatpush1.msra.mxu0 %v1047
        %1063 = vmatprep.subr.mxu0 %v1055
        %1064 = vmatpush1.msra.mxu0 %v1052
        %1065 = vmatprep.subr.mxu0 0.0
        %1066 = vmatpush1.msra.mxu0 0.0
        %1067 = vmatprep.subr.mxu0 0.0
        %1068 = vmatpush1.msra.mxu0 0.0
        %1069 = vmatprep.subr.mxu0 0.0
        %1070 = vmatpush1.msra.mxu0 0.0
        %1071 = vmatprep.subr.mxu0 0.0
        %1072 = vmatpush1.msra.mxu0 0.0
        %1073 = vmatprep.subr.mxu0 0.0
        %1074 = vmatpush1.msra.mxu0 0.0
        %1075 = vmatprep.subr.mxu0 0.0
        %1076 = vmatpush1.msra.mxu0 0.0
        %1077 = vmatprep.subr.mxu0 0.0
        %1078 = vmatpush1.msra.mxu0 0.0
        %1079 = vmatprep.subr.mxu0 0.0
        %1080 = vmatpush1.msra.mxu0 0.0
        %1081 = vmatprep.subr.mxu0 0.0
        %1082 = vmatpush1.msra.mxu0 0.0
        %1083 = vmatprep.subr.mxu0 0.0
        %1084 = vmatpush1.msra.mxu0 0.0
        %1085 = vmatprep.subr.mxu0 0.0
        %1086 = vmatpush1.msra.mxu0 0.0
        %1087 = vmatprep.subr.mxu0 0.0
        %1088 = vmatpush1.msra.mxu0 0.0
        %1089 = vmatprep.subr.mxu0 0.0
        %1090 = vmatpush1.msra.mxu0 0.0
        %1091 = vmatprep.subr.mxu0 0.0
        %1092 = vmatpush1.msra.mxu0 0.0
        %1093 = vmatprep.subr.mxu0 0.0
        %1094 = vmatpush1.msra.mxu0 0.0
        %1095 = vmatprep.subr.mxu0 0.0
        %1096 = vmatpush1.msra.mxu0 0.0
        %1097 = vmatprep.subr.mxu0 0.0
        %1098 = vmatpush1.msra.mxu0 0.0
        %1099 = vmatprep.subr.mxu0 0.0
        %1100 = vmatpush1.msra.mxu0 0.0
        %1101 = vmatprep.subr.mxu0 0.0
        %1102 = vmatpush1.msra.mxu0 0.0
        %1103 = vmatprep.subr.mxu0 0.0
        %1104 = vmatpush1.msra.mxu0 0.0
        %1105 = vmatprep.subr.mxu0 0.0
        %1106 = vmatpush1.msra.mxu0 0.0
        %1107 = vmatprep.subr.mxu0 0.0
        %1108 = vmatpush1.msra.mxu0 0.0
        %1109 = vmatprep.subr.mxu0 0.0
        %1110 = vmatpush1.msra.mxu0 0.0
        %1111 = vmatprep.subr.mxu0 0.0
        %1112 = vmatpush1.msra.mxu0 0.0
        %1113 = vmatprep.subr.mxu0 0.0
        %1114 = vmatpush1.msra.mxu0 0.0
        %1115 = vmatprep.subr.mxu0 0.0
        %1116 = vmatpush1.msra.mxu0 0.0
        %1117 = vmatprep.subr.mxu0 0.0
        %1118 = vmatpush1.msra.mxu0 0.0
        %1119 = vmatprep.subr.mxu0 0.0
        %1120 = vmatpush1.msra.mxu0 0.0
        %1121 = vmatprep.mubr.f32.mxu0 0.0
        %1122 = vmatmul.mubr.f32.gmra.mrb[0].mxu0 %v346
        %v1123 = vpop.f32.mrb[0].mxu0
        %v1124 = vadd.f32 0.0, %v1123
        %v1125 = vpop.f32.mrb[0].mxu0
        %v1126 = vadd.f32 0.0, %v1125
        %1127 = vdwg.mxu0
        %v1128 = vmax.f32 %v1040, %v1124
        %v1129 = vmax.f32 %v1041, %v1126
        %v1130 = vld [vmem:[%s2] sm:$0xf]
        %1132 = vset.pattern.permute.xlu0 0
        %1133 = vperm.xlu0 %1132, %v1130
        %v1134 = vpop.permute.xlu0 %1133
        %v1136 = vadd.f32 %v1128, %v1134
        %v1137 = vadd.f32 %v1129, %v1134
        %v1140 = vcombine.low %v1136, %v1137
        %1142 = vst [vmem:[%s333] sm:$0xff] %v1140
        %s1143 = smul.u32 2, %s14
        %p1144 = scmp.lt.s32.totalorder %s1143, 3
        %s1145 = scalar_select %p1144, %s1143, 3
        %s1146 = smul.addr %s1145, 4
        %s1147 = scalar_lea.vmem %s3, %s1146
        // Predicated region
        $region56: #{rescnn_forward.4} parent=50 // pred_check
          %p1148 = pneg %p100
        $region57: #{rescnn_forward.4} parent=50 // pred_check_branch
          %1150 = sbr.rel (%p1148) target = $region59
        $region58: #{rescnn_forward.4} parent=50 // pred_region
          %s1151 = smul.u32 2, %s14
        $region59: #{rescnn_forward.4} parent=50 // pred_fallthru
          _
      $region51: #{rescnn_forward.4} parent=5 // pred_fallthru
        _
      %p1152 = scmp.le.s32.totalorder 2, %s9
      // Predicated region
      $region60: #{rescnn_forward.4} parent=5 // pred_check
        %p1153 = pneg %p1152
      $region61: #{rescnn_forward.4} parent=5 // pred_check_branch
        %1155 = sbr.rel (%p1153) target = $region63
      $region62: #{rescnn_forward.4} parent=5 // pred_region
        %s1156 = ssub.s32 %s9, 2
        // Predicated region
        $region64: #{rescnn_forward.4} parent=62 // pred_check
          %p1157 = pneg %p106
        $region65: #{rescnn_forward.4} parent=62 // pred_check_branch
          %1159 = sbr.rel (%p1157) target = $region67
        $region66: #{rescnn_forward.4} parent=62 // pred_region
          %s1160 = smul.u32 2, %s15
          %p1161 = scmp.lt.s32.totalorder %s1160, 3
          %s1162 = scalar_select %p1161, %s1160, 3
          %s1163 = smul.addr %s1162, 4
          %s1164 = scalar_lea.vmem %s3, %s1163
        $region67: #{rescnn_forward.4} parent=62 // pred_fallthru
          _
      $region63: #{rescnn_forward.4} parent=5 // pred_fallthru
        _
    $region6: #{rescnn_forward.4} parent=1 // loop_footer
      %s13 = sadd.s32 1, %s9
    $region7: #{rescnn_forward.4} parent=1 // loop_footer_branch
      %8 = sbr.rel target = $region3
    $region8: #{rescnn_forward.4} parent=1 // loop_exit
      _

// kernel: rescnn_forward.5
$region0: #{rescnn_forward.5}
  #allocation0 [shape = 'u32[]', space=smem, size = 0x4, offset = 0x4, fixed_abs, tag = 'smem constant byte address 0x4 - core index']
  #allocation1 [shape = 'u32[144,128]{1,0:T(1,128)}', space=vmem, size = 0x12000, scoped, tag = 'internal scratch']
  #allocation2 [shape = 'f32[36,400]{1,0:T(8,128)}', space=vmem, size = 0x14000, scoped, tag = 'scratch operand']
  #allocation3 [shape = 'f32[36,362]{1,0:T(8,128)}', space=vmem, size = 0xf000, scoped, tag = 'scratch operand']
  %s0 = inlined_call_operand.vmem [shape: f32[2,4,438], index: 0, kind: input, shape index: {}]
  %s1 = inlined_call_operand.vmem [shape: f32[4,36], index: 1, kind: input, shape index: {}]
  %s2 = inlined_call_operand.vmem [shape: f32[4,36], index: 2, kind: input, shape index: {}]
  %s3 = inlined_call_operand.vmem [shape: f32[4,1], index: 3, kind: input, shape index: {}]
  %s4 = inlined_call_operand.vmem [shape: f32[4,1], index: 4, kind: input, shape index: {}]
  %s5 = inlined_call_operand.vmem [shape: f32[4,1], index: 5, kind: input, shape index: {}]
  %s6 = inlined_call_operand.vmem [shape: f32[4,1], index: 6, kind: input, shape index: {}]
  %s7 = inlined_call_operand.vmem [shape: f32[1,400], index: 7, kind: input, shape index: {}]
  %s8 = inlined_call_operand.vmem [shape: f32[2,8,324], index: 8, kind: output, shape index: {}]
  %s9 = sld [smem:[#allocation0]]
  $region65: #{rescnn_forward.5} parent=0
    _
  %s11 = ssub.s32 1, %s9
  %s12 = scalar_select 0, %s11, %s9
  loop: start=0, step=1, limit=4
  $region2: #{rescnn_forward.5} parent=0 // loop_pre_header
    _
  $region3: #{rescnn_forward.5} parent=0 // loop_header
    %s14 = sphi 0, %s18
    %p15 = scmp.ge.s32.totalorder %s14, 4
    %s24 = sphi 0, %s26
    %s27 = sphi 0, %s24
    %s28 = sphi 0, %s27
    %s44 = sphi 0, %s28
    %s48 = sphi 0, %s48
    %s50 = sphi 0, %s48
    %s51 = sphi 0, %s50
    %s65 = sphi 0, %s51
    %s69 = sphi 0, %s69
    %s71 = sphi 0, %s69
    %s72 = sphi 0, %s71
    %s86 = sphi 0, %s72
    %s90 = sphi 0, %s90
    %s92 = sphi 0, %s90
    %s93 = sphi 0, %s92
    %s107 = sphi 0, %s93
    %s111 = sphi 0, %s111
    %s113 = sphi 0, %s111
    %s114 = sphi 0, %s113
    %s128 = sphi 0, %s114
    %s132 = sphi 0, %s132
    %s134 = sphi 0, %s132
    %s135 = sphi 0, %s134
    %s149 = sphi 0, %s135
    %s153 = sphi 0, %s153
    %s155 = sphi 0, %s153
    %s156 = sphi 0, %s155
    %s170 = sphi 0, %s156
    %s174 = sphi 0, %s174
    %s176 = sphi 0, %s174
    %s177 = sphi 0, %s176
    %s191 = sphi 0, %s177
    %s197 = sphi 0, %s199
    %s200 = sphi 0, %s197
    %s201 = sphi 0, %s200
    %s217 = sphi 0, %s201
  $region4: #{rescnn_forward.5} parent=0 // loop_header_branch
    %17 = sbr.rel (%p15) target = $region8
  $region5: #{rescnn_forward.5} parent=0 // loop_body
    %s19 = ssub.s32 %s14, 1
    %s20 = ssub.s32 %s14, 2
    %s21 = sadd.s32 %s14, 1
    %s22 = ssub.s32 %s14, %s21
    %p23 = scmp.eq.s32.totalorder %s22, 0
    %s25 = sadd.s32 %s24, 1
    %s26 = scalar_select %p23, %s24, %s25
    %p29 = pneg %p23
    %p30 = scmp.eq.s32.totalorder %s14, 1
    %p31 = por %p29, %p30
    %p32 = scmp.ne.s32.totalorder %s24, %s27
    %p33 = scmp.eq.s32.totalorder %s14, 0
    %p34 = por %p32, %p33
    %p35 = scmp.ne.s32.totalorder %s24, %s27
    %p36 = scmp.eq.s32.totalorder %s19, 1
    %p37 = por %p35, %p36
    %p38 = scmp.ne.s32.totalorder %s27, %s28
    %p39 = scmp.eq.s32.totalorder %s19, 0
    %p40 = por %p38, %p39
    %p41 = scmp.ne.s32.totalorder %s27, %s28
    %p42 = scmp.eq.s32.totalorder %s20, 1
    %p43 = por %p41, %p42
    %p45 = scmp.ne.s32.totalorder %s28, %s44
    %p46 = scmp.eq.s32.totalorder %s20, 0
    %p47 = por %p45, %p46
    %s49 = sadd.s32 %s48, 1
    %p52 = scmp.eq.s32.totalorder %s14, 1
    %p53 = scmp.ne.s32.totalorder %s48, %s50
    %p54 = scmp.eq.s32.totalorder %s14, 0
    %p55 = por %p53, %p54
    %p56 = scmp.ne.s32.totalorder %s48, %s50
    %p57 = scmp.eq.s32.totalorder %s19, 1
    %p58 = por %p56, %p57
    %p59 = scmp.ne.s32.totalorder %s50, %s51
    %p60 = scmp.eq.s32.totalorder %s19, 0
    %p61 = por %p59, %p60
    %p62 = scmp.ne.s32.totalorder %s50, %s51
    %p63 = scmp.eq.s32.totalorder %s20, 1
    %p64 = por %p62, %p63
    %p66 = scmp.ne.s32.totalorder %s51, %s65
    %p67 = scmp.eq.s32.totalorder %s20, 0
    %p68 = por %p66, %p67
    %s70 = sadd.s32 %s69, 1
    %p73 = scmp.eq.s32.totalorder %s14, 1
    %p74 = scmp.ne.s32.totalorder %s69, %s71
    %p75 = scmp.eq.s32.totalorder %s14, 0
    %p76 = por %p74, %p75
    %p77 = scmp.ne.s32.totalorder %s69, %s71
    %p78 = scmp.eq.s32.totalorder %s19, 1
    %p79 = por %p77, %p78
    %p80 = scmp.ne.s32.totalorder %s71, %s72
    %p81 = scmp.eq.s32.totalorder %s19, 0
    %p82 = por %p80, %p81
    %p83 = scmp.ne.s32.totalorder %s71, %s72
    %p84 = scmp.eq.s32.totalorder %s20, 1
    %p85 = por %p83, %p84
    %p87 = scmp.ne.s32.totalorder %s72, %s86
    %p88 = scmp.eq.s32.totalorder %s20, 0
    %p89 = por %p87, %p88
    %s91 = sadd.s32 %s90, 1
    %p94 = scmp.eq.s32.totalorder %s14, 1
    %p95 = scmp.ne.s32.totalorder %s90, %s92
    %p96 = scmp.eq.s32.totalorder %s14, 0
    %p97 = por %p95, %p96
    %p98 = scmp.ne.s32.totalorder %s90, %s92
    %p99 = scmp.eq.s32.totalorder %s19, 1
    %p100 = por %p98, %p99
    %p101 = scmp.ne.s32.totalorder %s92, %s93
    %p102 = scmp.eq.s32.totalorder %s19, 0
    %p103 = por %p101, %p102
    %p104 = scmp.ne.s32.totalorder %s92, %s93
    %p105 = scmp.eq.s32.totalorder %s20, 1
    %p106 = por %p104, %p105
    %p108 = scmp.ne.s32.totalorder %s93, %s107
    %p109 = scmp.eq.s32.totalorder %s20, 0
    %p110 = por %p108, %p109
    %s112 = sadd.s32 %s111, 1
    %p115 = scmp.eq.s32.totalorder %s14, 1
    %p116 = scmp.ne.s32.totalorder %s111, %s113
    %p117 = scmp.eq.s32.totalorder %s14, 0
    %p118 = por %p116, %p117
    %p119 = scmp.ne.s32.totalorder %s111, %s113
    %p120 = scmp.eq.s32.totalorder %s19, 1
    %p121 = por %p119, %p120
    %p122 = scmp.ne.s32.totalorder %s113, %s114
    %p123 = scmp.eq.s32.totalorder %s19, 0
    %p124 = por %p122, %p123
    %p125 = scmp.ne.s32.totalorder %s113, %s114
    %p126 = scmp.eq.s32.totalorder %s20, 1
    %p127 = por %p125, %p126
    %p129 = scmp.ne.s32.totalorder %s114, %s128
    %p130 = scmp.eq.s32.totalorder %s20, 0
    %p131 = por %p129, %p130
    %s133 = sadd.s32 %s132, 1
    %p136 = scmp.eq.s32.totalorder %s14, 1
    %p137 = scmp.ne.s32.totalorder %s132, %s134
    %p138 = scmp.eq.s32.totalorder %s14, 0
    %p139 = por %p137, %p138
    %p140 = scmp.ne.s32.totalorder %s132, %s134
    %p141 = scmp.eq.s32.totalorder %s19, 1
    %p142 = por %p140, %p141
    %p143 = scmp.ne.s32.totalorder %s134, %s135
    %p144 = scmp.eq.s32.totalorder %s19, 0
    %p145 = por %p143, %p144
    %p146 = scmp.ne.s32.totalorder %s134, %s135
    %p147 = scmp.eq.s32.totalorder %s20, 1
    %p148 = por %p146, %p147
    %p150 = scmp.ne.s32.totalorder %s135, %s149
    %p151 = scmp.eq.s32.totalorder %s20, 0
    %p152 = por %p150, %p151
    %s154 = sadd.s32 %s153, 1
    %p157 = scmp.eq.s32.totalorder %s14, 1
    %p158 = scmp.ne.s32.totalorder %s153, %s155
    %p159 = scmp.eq.s32.totalorder %s14, 0
    %p160 = por %p158, %p159
    %p161 = scmp.ne.s32.totalorder %s153, %s155
    %p162 = scmp.eq.s32.totalorder %s19, 1
    %p163 = por %p161, %p162
    %p164 = scmp.ne.s32.totalorder %s155, %s156
    %p165 = scmp.eq.s32.totalorder %s19, 0
    %p166 = por %p164, %p165
    %p167 = scmp.ne.s32.totalorder %s155, %s156
    %p168 = scmp.eq.s32.totalorder %s20, 1
    %p169 = por %p167, %p168
    %p171 = scmp.ne.s32.totalorder %s156, %s170
    %p172 = scmp.eq.s32.totalorder %s20, 0
    %p173 = por %p171, %p172
    %s175 = sadd.s32 %s174, 1
    %p178 = scmp.eq.s32.totalorder %s14, 1
    %p179 = scmp.ne.s32.totalorder %s174, %s176
    %p180 = scmp.eq.s32.totalorder %s14, 0
    %p181 = por %p179, %p180
    %p182 = scmp.ne.s32.totalorder %s174, %s176
    %p183 = scmp.eq.s32.totalorder %s19, 1
    %p184 = por %p182, %p183
    %p185 = scmp.ne.s32.totalorder %s176, %s177
    %p186 = scmp.eq.s32.totalorder %s19, 0
    %p187 = por %p185, %p186
    %p188 = scmp.ne.s32.totalorder %s176, %s177
    %p189 = scmp.eq.s32.totalorder %s20, 1
    %p190 = por %p188, %p189
    %p192 = scmp.ne.s32.totalorder %s177, %s191
    %p193 = scmp.eq.s32.totalorder %s20, 0
    %p194 = por %p192, %p193
    %s195 = ssub.s32 %s14, %s21
    %p196 = scmp.eq.s32.totalorder %s195, 0
    %s198 = sadd.s32 %s197, 1
    %s199 = scalar_select %p196, %s197, %s198
    %p202 = pneg %p196
    %p203 = scmp.eq.s32.totalorder %s14, 1
    %p204 = por %p202, %p203
    %p205 = scmp.ne.s32.totalorder %s197, %s200
    %p206 = scmp.eq.s32.totalorder %s14, 0
    %p207 = por %p205, %p206
    %p208 = scmp.ne.s32.totalorder %s197, %s200
    %p209 = scmp.eq.s32.totalorder %s19, 1
    %p210 = por %p208, %p209
    %p211 = scmp.ne.s32.totalorder %s200, %s201
    %p212 = scmp.eq.s32.totalorder %s19, 0
    %p213 = por %p211, %p212
    %p214 = scmp.ne.s32.totalorder %s200, %s201
    %p215 = scmp.eq.s32.totalorder %s20, 1
    %p216 = por %p214, %p215
    %p218 = scmp.ne.s32.totalorder %s201, %s217
    %p219 = scmp.eq.s32.totalorder %s20, 0
    %p220 = por %p218, %p219
    %p221 = scmp.le.s32.totalorder 1, %s14
    %p222 = scmp.lt.s32.totalorder %s14, 3
    %p223 = pnand %p221, %p222
    %p224 = pneg %p223
    // Predicated region
    $region9: #{rescnn_forward.5} parent=5 // pred_check
      _
    $region10: #{rescnn_forward.5} parent=5 // pred_check_branch
      %226 = sbr.rel (%p223) target = $region12
    $region11: #{rescnn_forward.5} parent=5 // pred_region
      %s227 = ssub.s32 %s14, 1
      // Predicated region
      $region13: #{rescnn_forward.5} parent=11 // pred_check
        %p228 = pneg %p61
      $region14: #{rescnn_forward.5} parent=11 // pred_check_branch
        %230 = sbr.rel (%p228) target = $region16
      $region15: #{rescnn_forward.5} parent=11 // pred_region
        _
      $region16: #{rescnn_forward.5} parent=11 // pred_fallthru
        _
      // Predicated region
      $region17: #{rescnn_forward.5} parent=11 // pred_check
        %p231 = pneg %p82
      $region18: #{rescnn_forward.5} parent=11 // pred_check_branch
        %233 = sbr.rel (%p231) target = $region20
      $region19: #{rescnn_forward.5} parent=11 // pred_region
        _
      $region20: #{rescnn_forward.5} parent=11 // pred_fallthru
        _
      // Predicated region
      $region21: #{rescnn_forward.5} parent=11 // pred_check
        %p234 = pneg %p103
      $region22: #{rescnn_forward.5} parent=11 // pred_check_branch
        %236 = sbr.rel (%p234) target = $region24
      $region23: #{rescnn_forward.5} parent=11 // pred_region
        _
      $region24: #{rescnn_forward.5} parent=11 // pred_fallthru
        _
      // Predicated region
      $region25: #{rescnn_forward.5} parent=11 // pred_check
        %p237 = pneg %p124
      $region26: #{rescnn_forward.5} parent=11 // pred_check_branch
        %239 = sbr.rel (%p237) target = $region28
      $region27: #{rescnn_forward.5} parent=11 // pred_region
        _
      $region28: #{rescnn_forward.5} parent=11 // pred_fallthru
        _
      // Predicated region
      $region29: #{rescnn_forward.5} parent=11 // pred_check
        %p240 = pneg %p145
      $region30: #{rescnn_forward.5} parent=11 // pred_check_branch
        %242 = sbr.rel (%p240) target = $region32
      $region31: #{rescnn_forward.5} parent=11 // pred_region
        _
      $region32: #{rescnn_forward.5} parent=11 // pred_fallthru
        _
      // Predicated region
      $region33: #{rescnn_forward.5} parent=11 // pred_check
        %p243 = pneg %p166
      $region34: #{rescnn_forward.5} parent=11 // pred_check_branch
        %245 = sbr.rel (%p243) target = $region36
      $region35: #{rescnn_forward.5} parent=11 // pred_region
        _
      $region36: #{rescnn_forward.5} parent=11 // pred_fallthru
        _
      // Predicated region
      $region37: #{rescnn_forward.5} parent=11 // pred_check
        %p246 = pneg %p187
      $region38: #{rescnn_forward.5} parent=11 // pred_check_branch
        %248 = sbr.rel (%p246) target = $region40
      $region39: #{rescnn_forward.5} parent=11 // pred_region
        _
      $region40: #{rescnn_forward.5} parent=11 // pred_fallthru
        _
    $region12: #{rescnn_forward.5} parent=5 // pred_fallthru
      _
    %p249 = scmp.lt.s32.totalorder %s14, 2
    // Predicated region
    $region41: #{rescnn_forward.5} parent=5 // pred_check
      %p250 = pneg %p249
    $region42: #{rescnn_forward.5} parent=5 // pred_check_branch
      %252 = sbr.rel (%p250) target = $region44
    $region43: #{rescnn_forward.5} parent=5 // pred_region
      // Predicated region
      $region45: #{rescnn_forward.5} parent=43 // pred_check
        %p253 = pneg %p34
      $region46: #{rescnn_forward.5} parent=43 // pred_check_branch
        %255 = sbr.rel (%p253) target = $region48
      $region47: #{rescnn_forward.5} parent=43 // pred_region
        %p256 = scmp.lt.s32.totalorder %s14, 1
        %s257 = scalar_select %p256, %s14, 1
        %s258 = smul.addr %s257, 4
        %s259 = smul.addr %s258, 4
        %s260 = scalar_lea.vmem %s0, %s259
      $region48: #{rescnn_forward.5} parent=43 // pred_fallthru
        _
    $region44: #{rescnn_forward.5} parent=5 // pred_fallthru
      _
    %p261 = scmp.le.s32.totalorder 1, %s14
    %p262 = scmp.lt.s32.totalorder %s14, 3
    %p263 = pnand %p261, %p262
    %p264 = pneg %p263
    // Predicated region
    $region49: #{rescnn_forward.5} parent=5 // pred_check
      _
    $region50: #{rescnn_forward.5} parent=5 // pred_check_branch
      %266 = sbr.rel (%p263) target = $region52
    $region51: #{rescnn_forward.5} parent=5 // pred_region
      %s267 = ssub.s32 %s14, 1
      %p268 = scmp.lt.s32.totalorder %s19, 1
      %s269 = scalar_select %p268, %s19, 1
      %s270 = smul.addr %s269, 4
      %s271 = smul.addr %s270, 4
      %s272 = scalar_lea.vmem %s0, %s271
      %p273 = pneg %p40
      %p274 = pneg %p37
      %p275 = pneg %p61
      %p276 = pneg %p58
      %p277 = pneg %p82
      %p278 = pneg %p79
      %p279 = pneg %p103
      %p280 = pneg %p100
      %p281 = pneg %p124
      %p282 = pneg %p121
      %p283 = pneg %p145
      %p284 = pneg %p142
      %p285 = pneg %p166
      %p286 = pneg %p163
      %p287 = pneg %p187
      %p288 = pneg %p184
      %p289 = pneg %p213
      %p290 = pneg %p210
      %p291 = scmp.lt.s32.totalorder %s19, 1
      %s292 = scalar_select %p291, %s19, 1
      %s293 = smul.addr %s292, 3
      %s294 = smul.addr %s293, 8
      %s295 = scalar_lea.vmem %s8, %s294
      %p296 = scmp.lt.s32.totalorder %s19, 1
      %s297 = scalar_select %p296, %s19, 1
      %s298 = smul.addr %s297, 4
      %s299 = smul.addr %s298, 4
      %s300 = scalar_lea.vmem %s0, %s299
      %p301 = scmp.lt.s32.totalorder %s19, 1
      %s302 = scalar_select %p301, %s19, 1
      %s303 = smul.addr %s302, 3
      %s304 = smul.addr %s303, 8
      %s305 = scalar_lea.vmem %s8, %s304
      %v306 = vld [vmem:[%s300] sm:$0xff]
      %v307 = vld [vmem:[%s300 + $0x8] sm:$0xff]
      %v308 = vld [vmem:[%s1] sm:$0xf]
      %v309 = vld [vmem:[%s2] sm:$0xf]
      %v310 = vld [vmem:[%s3] sm:$0xf]
      %v311 = vld [vmem:[%s4] sm:$0xf]
      %v312 = vld [vmem:[%s5] sm:$0xf]
      %v313 = vld [vmem:[%s6] sm:$0xf]
      %v314 = vld [vmem:[%s7] sm:$0xf]
      %v317 = vcombine.high %v306, %v306
      %v318 = vcombine.high %v307, %v307
      %321 = vst [vmem:[#allocation2] sm:$0xf] %v306
      %322 = vst [vmem:[#allocation2 + $0x8] sm:$0xf] %v317
      %323 = vst [vmem:[#allocation2 + $0x10] sm:$0xf] %v307
      %vm324 = vcmask 125952
      %325 = vst.msk [vmem:[#allocation2 + $0x18] sm:$0xf] %vm324, %v318
      %v326 = vcombine.low %v306, %v306
      %v327 = vcombine.low %v307, %v307
      %328 = vrot.lane.b32.xlu0 %v326, 127
      %v329 = vpop.permute.xlu0 %328
      %330 = vrot.lane.b32.xlu0 %v306, 127
      %v331 = vpop.permute.xlu0 %330
      %332 = vrot.lane.b32.xlu0 %v327, 127
      %v333 = vpop.permute.xlu0 %332
      %334 = vrot.lane.b32.xlu0 %v307, 127
      %v335 = vpop.permute.xlu0 %334
      %vm336 = vcmask 1039360
      %v337 = vsel %vm336, %v329, %v331
      %v338 = vsel %vm336, %v331, %v333
      %v339 = vsel %vm336, %v333, %v335
      %344 = vst [vmem:[#allocation2] sm:$0xf0] %v337
      %345 = vst [vmem:[#allocation2 + $0x8] sm:$0xf0] %v338
      %346 = vst [vmem:[#allocation2 + $0x10] sm:$0xf0] %v339
      %vm347 = vcmask 130052
      %348 = vst.msk [vmem:[#allocation2 + $0x18] sm:$0xf0] %vm347, %v335
      %349 = vrot.lane.b32.xlu0 %v306, 126
      %v350 = vpop.permute.xlu0 %349
      %351 = vrot.lane.b32.xlu0 %v317, 126
      %v352 = vpop.permute.xlu0 %351
      %353 = vrot.lane.b32.xlu0 %v307, 126
      %v354 = vpop.permute.xlu0 %353
      %355 = vrot.lane.b32.xlu0 %v318, 126
      %v356 = vpop.permute.xlu0 %355
      %vm357 = vcmask 1031168
      %v358 = vsel %vm357, %v350, %v352
      %v359 = vsel %vm357, %v352, %v354
      %v360 = vsel %vm357, %v354, %v356
      %365 = vst [vmem:[#allocation2 + $0x20] sm:$0xf] %v358
      %366 = vst [vmem:[#allocation2 + $0x28] sm:$0xf] %v359
      %367 = vst [vmem:[#allocation2 + $0x30] sm:$0xf] %v360
      %368 = vst.msk [vmem:[#allocation2 + $0x38] sm:$0xf] %vm324, %v356
      %369 = vrot.lane.b32.xlu0 %v326, 110
      %v370 = vpop.permute.xlu0 %369
      %371 = vrot.lane.b32.xlu0 %v306, 110
      %v372 = vpop.permute.xlu0 %371
      %373 = vrot.lane.b32.xlu0 %v327, 110
      %v374 = vpop.permute.xlu0 %373
      %375 = vrot.lane.b32.xlu0 %v307, 110
      %v376 = vpop.permute.xlu0 %375
      %vm377 = vcmask 900096
      %v378 = vsel %vm377, %v370, %v372
      %v379 = vsel %vm377, %v372, %v374
      %v380 = vsel %vm377, %v374, %v376
      %385 = vst [vmem:[#allocation2 + $0x20] sm:$0xf0] %v378
      %386 = vst [vmem:[#allocation2 + $0x28] sm:$0xf0] %v379
      %387 = vst [vmem:[#allocation2 + $0x30] sm:$0xf0] %v380
      %388 = vst.msk [vmem:[#allocation2 + $0x38] sm:$0xf0] %vm347, %v376
      %389 = vrot.lane.b32.xlu0 %v306, 109
      %v390 = vpop.permute.xlu0 %389
      %391 = vrot.lane.b32.xlu0 %v317, 109
      %v392 = vpop.permute.xlu0 %391
      %393 = vrot.lane.b32.xlu0 %v307, 109
      %v394 = vpop.permute.xlu0 %393
      %395 = vrot.lane.b32.xlu0 %v318, 109
      %v396 = vpop.permute.xlu0 %395
      %vm397 = vcmask 891904
      %v398 = vsel %vm397, %v390, %v392
      %v399 = vsel %vm397, %v392, %v394
      %v400 = vsel %vm397, %v394, %v396
      %405 = vst [vmem:[#allocation2 + $0x40] sm:$0xf] %v398
      %406 = vst [vmem:[#allocation2 + $0x48] sm:$0xf] %v399
      %407 = vst [vmem:[#allocation2 + $0x50] sm:$0xf] %v400
      %408 = vst.msk [vmem:[#allocation2 + $0x58] sm:$0xf] %vm324, %v396
      %409 = vrot.lane.b32.xlu0 %v326, 108
      %v410 = vpop.permute.xlu0 %409
      %411 = vrot.lane.b32.xlu0 %v306, 108
      %v412 = vpop.permute.xlu0 %411
      %413 = vrot.lane.b32.xlu0 %v327, 108
      %v414 = vpop.permute.xlu0 %413
      %415 = vrot.lane.b32.xlu0 %v307, 108
      %v416 = vpop.permute.xlu0 %415
      %vm417 = vcmask 883712
      %v418 = vsel %vm417, %v410, %v412
      %v419 = vsel %vm417, %v412, %v414
      %v420 = vsel %vm417, %v414, %v416
      %425 = vst [vmem:[#allocation2 + $0x40] sm:$0xf0] %v418
      %426 = vst [vmem:[#allocation2 + $0x48] sm:$0xf0] %v419
      %427 = vst [vmem:[#allocation2 + $0x50] sm:$0xf0] %v420
      %428 = vst.msk [vmem:[#allocation2 + $0x58] sm:$0xf0] %vm347, %v416
      %429 = vrot.lane.b32.xlu0 %v306, 92
      %v430 = vpop.permute.xlu0 %429
      %431 = vrot.lane.b32.xlu0 %v317, 92
      %v432 = vpop.permute.xlu0 %431
      %433 = vrot.lane.b32.xlu0 %v307, 92
      %v434 = vpop.permute.xlu0 %433
      %435 = vrot.lane.b32.xlu0 %v318, 92
      %v436 = vpop.permute.xlu0 %435
      %vm437 = vcmask 752640
      %v438 = vsel %vm437, %v430, %v432
      %v439 = vsel %vm437, %v432, %v434
      %v440 = vsel %vm437, %v434, %v436
      %445 = vst [vmem:[#allocation2 + $0x60] sm:$0xf] %v438
      %446 = vst [vmem:[#allocation2 + $0x68] sm:$0xf] %v439
      %447 = vst [vmem:[#allocation2 + $0x70] sm:$0xf] %v440
      %448 = vst.msk [vmem:[#allocation2 + $0x78] sm:$0xf] %vm324, %v436
      %449 = vrot.lane.b32.xlu0 %v326, 91
      %v450 = vpop.permute.xlu0 %449
      %451 = vrot.lane.b32.xlu0 %v306, 91
      %v452 = vpop.permute.xlu0 %451
      %453 = vrot.lane.b32.xlu0 %v327, 91
      %v454 = vpop.permute.xlu0 %453
      %455 = vrot.lane.b32.xlu0 %v307, 91
      %v456 = vpop.permute.xlu0 %455
      %vm457 = vcmask 744448
      %v458 = vsel %vm457, %v450, %v452
      %v459 = vsel %vm457, %v452, %v454
      %v460 = vsel %vm457, %v454, %v456
      %465 = vst [vmem:[#allocation2 + $0x60] sm:$0xf0] %v458
      %466 = vst [vmem:[#allocation2 + $0x68] sm:$0xf0] %v459
      %467 = vst [vmem:[#allocation2 + $0x70] sm:$0xf0] %v460
      %468 = vst.msk [vmem:[#allocation2 + $0x78] sm:$0xf0] %vm347, %v456
      %469 = vrot.lane.b32.xlu0 %v306, 90
      %v470 = vpop.permute.xlu0 %469
      %471 = vrot.lane.b32.xlu0 %v317, 90
      %v472 = vpop.permute.xlu0 %471
      %473 = vrot.lane.b32.xlu0 %v307, 90
      %v474 = vpop.permute.xlu0 %473
      %475 = vrot.lane.b32.xlu0 %v318, 90
      %v476 = vpop.permute.xlu0 %475
      %vm477 = vcmask 736256
      %v478 = vsel %vm477, %v470, %v472
      %v479 = vsel %vm477, %v472, %v474
      %v480 = vsel %vm477, %v474, %v476
      %485 = vst [vmem:[#allocation2 + $0x80] sm:$0xf] %v478
      %486 = vst [vmem:[#allocation2 + $0x88] sm:$0xf] %v479
      %487 = vst [vmem:[#allocation2 + $0x90] sm:$0xf] %v480
      %488 = vst.msk [vmem:[#allocation2 + $0x98] sm:$0xf] %vm324, %v476
      %v489 = vld [vmem:[#allocation2] sm:$0xff]
      %v490 = vld [vmem:[#allocation2 + $0x8] sm:$0xff]
      %v491 = vld [vmem:[#allocation2 + $0x10] sm:$0xff]
      %v492 = vld [vmem:[#allocation2 + $0x18] sm:$0xff]
      %v493 = vld [vmem:[#allocation2 + $0x20] sm:$0xff]
      %v494 = vld [vmem:[#allocation2 + $0x28] sm:$0xff]
      %v495 = vld [vmem:[#allocation2 + $0x30] sm:$0xff]
      %v496 = vld [vmem:[#allocation2 + $0x38] sm:$0xff]
      %v497 = vld [vmem:[#allocation2 + $0x40] sm:$0xff]
      %v498 = vld [vmem:[#allocation2 + $0x48] sm:$0xff]
      %v499 = vld [vmem:[#allocation2 + $0x50] sm:$0xff]
      %v500 = vld [vmem:[#allocation2 + $0x58] sm:$0xff]
      %v501 = vld [vmem:[#allocation2 + $0x60] sm:$0xff]
      %v502 = vld [vmem:[#allocation2 + $0x68] sm:$0xff]
      %v503 = vld [vmem:[#allocation2 + $0x70] sm:$0xff]
      %v504 = vld [vmem:[#allocation2 + $0x78] sm:$0xff]
      %v505 = vld [vmem:[#allocation2 + $0x80] sm:$0xf]
      %v506 = vld [vmem:[#allocation2 + $0x88] sm:$0xf]
      %v507 = vld [vmem:[#allocation2 + $0x90] sm:$0xf]
      %v508 = vld [vmem:[#allocation2 + $0x98] sm:$0xf]
      %vm509 = vcmask 293888
      %v511 = vsel %vm509, %v308, 0
      %vm513 = vcmask 1043456
      %v515 = vsel %vm513, %v505, 0
      %v518 = vsel %vm513, %v506, 0
      %v521 = vsel %vm513, %v507, 0
      %v524 = vsel %vm513, %v508, 0
      %526 = vmatprep.subr.mxu0 %v490
      %527 = vmatpush1.msra.mxu0 %v489
      %528 = vmatprep.subr.mxu0 %v494
      %529 = vmatpush1.msra.mxu0 %v493
      %530 = vmatprep.subr.mxu0 %v498
      %531 = vmatpush1.msra.mxu0 %v497
      %532 = vmatprep.subr.mxu0 %v502
      %533 = vmatpush1.msra.mxu0 %v501
      %534 = vmatprep.subr.mxu0 %v518
      %535 = vmatpush1.msra.mxu0 %v515
      %536 = vmatprep.subr.mxu0 0.0
      %537 = vmatpush1.msra.mxu0 0.0
      %538 = vmatprep.subr.mxu0 0.0
      %539 = vmatpush1.msra.mxu0 0.0
      %540 = vmatprep.subr.mxu0 0.0
      %541 = vmatpush1.msra.mxu0 0.0
      %542 = vmatprep.subr.mxu0 0.0
      %543 = vmatpush1.msra.mxu0 0.0
      %544 = vmatprep.subr.mxu0 0.0
      %545 = vmatpush1.msra.mxu0 0.0
      %546 = vmatprep.subr.mxu0 0.0
      %547 = vmatpush1.msra.mxu0 0.0
      %548 = vmatprep.subr.mxu0 0.0
      %549 = vmatpush1.msra.mxu0 0.0
      %550 = vmatprep.subr.mxu0 0.0
      %551 = vmatpush1.msra.mxu0 0.0
      %552 = vmatprep.subr.mxu0 0.0
      %553 = vmatpush1.msra.mxu0 0.0
      %554 = vmatprep.subr.mxu0 0.0
      %555 = vmatpush1.msra.mxu0 0.0
      %556 = vmatprep.subr.mxu0 0.0
      %557 = vmatpush1.msra.mxu0 0.0
      %558 = vmatprep.subr.mxu0 0.0
      %559 = vmatpush1.msra.mxu0 0.0
      %560 = vmatprep.subr.mxu0 0.0
      %561 = vmatpush1.msra.mxu0 0.0
      %562 = vmatprep.subr.mxu0 0.0
      %563 = vmatpush1.msra.mxu0 0.0
      %564 = vmatprep.subr.mxu0 0.0
      %565 = vmatpush1.msra.mxu0 0.0
      %566 = vmatprep.subr.mxu0 0.0
      %567 = vmatpush1.msra.mxu0 0.0
      %568 = vmatprep.subr.mxu0 0.0
      %569 = vmatpush1.msra.mxu0 0.0
      %570 = vmatprep.subr.mxu0 0.0
      %571 = vmatpush1.msra.mxu0 0.0
      %572 = vmatprep.subr.mxu0 0.0
      %573 = vmatpush1.msra.mxu0 0.0
      %574 = vmatprep.subr.mxu0 0.0
      %575 = vmatpush1.msra.mxu0 0.0
      %576 = vmatprep.subr.mxu0 0.0
      %577 = vmatpush1.msra.mxu0 0.0
      %578 = vmatprep.subr.mxu0 0.0
      %579 = vmatpush1.msra.mxu0 0.0
      %580 = vmatprep.subr.mxu0 0.0
      %581 = vmatpush1.msra.mxu0 0.0
      %582 = vmatprep.subr.mxu0 0.0
      %583 = vmatpush1.msra.mxu0 0.0
      %584 = vmatprep.subr.mxu0 0.0
      %585 = vmatpush1.msra.mxu0 0.0
      %586 = vmatprep.subr.mxu0 0.0
      %587 = vmatpush1.msra.mxu0 0.0
      %588 = vmatprep.subr.mxu0 0.0
      %589 = vmatpush1.msra.mxu0 0.0
      %590 = vmatprep.mubr.f32.mxu0 0.0
      %591 = vmatmul.mubr.f32.gmra.mrb[0].mxu0 %v511
      %v592 = vpop.f32.mrb[0].mxu0
      %v593 = vadd.f32 0.0, %v592
      %v594 = vpop.f32.mrb[0].mxu0
      %v595 = vadd.f32 0.0, %v594
      %596 = vdwg.mxu0
      %597 = vmatprep.subr.mxu0 %v492
      %598 = vmatpush1.msra.mxu0 %v491
      %599 = vmatprep.subr.mxu0 %v496
      %600 = vmatpush1.msra.mxu0 %v495
      %601 = vmatprep.subr.mxu0 %v500
      %602 = vmatpush1.msra.mxu0 %v499
      %603 = vmatprep.subr.mxu0 %v504
      %604 = vmatpush1.msra.mxu0 %v503
      %605 = vmatprep.subr.mxu0 %v524
      %606 = vmatpush1.msra.mxu0 %v521
      %607 = vmatprep.subr.mxu0 0.0
      %608 = vmatpush1.msra.mxu0 0.0
      %609 = vmatprep.subr.mxu0 0.0
      %610 = vmatpush1.msra.mxu0 0.0
      %611 = vmatprep.subr.mxu0 0.0
      %612 = vmatpush1.msra.mxu0 0.0
      %613 = vmatprep.subr.mxu0 0.0
      %614 = vmatpush1.msra.mxu0 0.0
      %615 = vmatprep.subr.mxu0 0.0
      %616 = vmatpush1.msra.mxu0 0.0
      %617 = vmatprep.subr.mxu0 0.0
      %618 = vmatpush1.msra.mxu0 0.0
      %619 = vmatprep.subr.mxu0 0.0
      %620 = vmatpush1.msra.mxu0 0.0
      %621 = vmatprep.subr.mxu0 0.0
      %622 = vmatpush1.msra.mxu0 0.0
      %623 = vmatprep.subr.mxu0 0.0
      %624 = vmatpush1.msra.mxu0 0.0
      %625 = vmatprep.subr.mxu0 0.0
      %626 = vmatpush1.msra.mxu0 0.0
      %627 = vmatprep.subr.mxu0 0.0
      %628 = vmatpush1.msra.mxu0 0.0
      %629 = vmatprep.subr.mxu0 0.0
      %630 = vmatpush1.msra.mxu0 0.0
      %631 = vmatprep.subr.mxu0 0.0
      %632 = vmatpush1.msra.mxu0 0.0
      %633 = vmatprep.subr.mxu0 0.0
      %634 = vmatpush1.msra.mxu0 0.0
      %635 = vmatprep.subr.mxu0 0.0
      %636 = vmatpush1.msra.mxu0 0.0
      %637 = vmatprep.subr.mxu0 0.0
      %638 = vmatpush1.msra.mxu0 0.0
      %639 = vmatprep.subr.mxu0 0.0
      %640 = vmatpush1.msra.mxu0 0.0
      %641 = vmatprep.subr.mxu0 0.0
      %642 = vmatpush1.msra.mxu0 0.0
      %643 = vmatprep.subr.mxu0 0.0
      %644 = vmatpush1.msra.mxu0 0.0
      %645 = vmatprep.subr.mxu0 0.0
      %646 = vmatpush1.msra.mxu0 0.0
      %647 = vmatprep.subr.mxu0 0.0
      %648 = vmatpush1.msra.mxu0 0.0
      %649 = vmatprep.subr.mxu0 0.0
      %650 = vmatpush1.msra.mxu0 0.0
      %651 = vmatprep.subr.mxu0 0.0
      %652 = vmatpush1.msra.mxu0 0.0
      %653 = vmatprep.subr.mxu0 0.0
      %654 = vmatpush1.msra.mxu0 0.0
      %655 = vmatprep.subr.mxu0 0.0
      %656 = vmatpush1.msra.mxu0 0.0
      %657 = vmatprep.subr.mxu0 0.0
      %658 = vmatpush1.msra.mxu0 0.0
      %659 = vmatprep.subr.mxu0 0.0
      %660 = vmatpush1.msra.mxu0 0.0
      %661 = vmatprep.mubr.f32.mxu0 0.0
      %662 = vmatmul.mubr.f32.gmra.mrb[0].mxu0 %v511
      %v663 = vpop.f32.mrb[0].mxu0
      %v664 = vadd.f32 0.0, %v663
      %v665 = vpop.f32.mrb[0].mxu0
      %v666 = vadd.f32 0.0, %v665
      %667 = vdwg.mxu0
      %669 = vset.pattern.permute.xlu0 0
      %670 = vperm.xlu0 %669, %v310
      %v671 = vpop.permute.xlu0 %670
      %v673 = vmul.f32 %v593, %v671
      %v674 = vmul.f32 %v595, %v671
      %v675 = vmul.f32 %v664, %v671
      %v676 = vmul.f32 %v666, %v671
      %678 = vset.pattern.permute.xlu0 0
      %679 = vperm.xlu0 %678, %v311
      %v680 = vpop.permute.xlu0 %679
      %v682 = vadd.f32 %v673, %v680
      %v683 = vadd.f32 %v674, %v680
      %v684 = vadd.f32 %v675, %v680
      %v685 = vadd.f32 %v676, %v680
      %v686 = vmax.f32 %v682, 0.0
      %v687 = vmax.f32 %v683, 0.0
      %v688 = vmax.f32 %v684, 0.0
      %v689 = vmax.f32 %v685, 0.0
      %v691 = vlaneseq
      %v692 = vshrl.u32 %v691, 7
      %v693 = vsub.s32 0, %v692
      %v694 = vrot.slane %v314, %v693
      %v695 = vlaneseq
      %v696 = vshrl.u32 %v695, 7
      %v697 = vsub.s32 1, %v696
      %v698 = vrot.slane %v314, %v697
      %v699 = vlaneseq
      %v700 = vshrl.u32 %v699, 7
      %v701 = vsub.s32 2, %v700
      %v702 = vrot.slane %v314, %v701
      %v703 = vlaneseq
      %v704 = vshrl.u32 %v703, 7
      %v705 = vsub.s32 3, %v704
      %v706 = vrot.slane %v314, %v705
      %v711 = vmul.f32 %v686, %v694
      %v712 = vmul.f32 %v687, %v698
      %v713 = vmul.f32 %v688, %v702
      %v714 = vmul.f32 %v689, %v706
      %715 = vst [vmem:[#allocation3] sm:$0xf] %v711
      %716 = vst [vmem:[#allocation3 + $0x8] sm:$0xf] %v712
      %vm717 = vcmask 863232
      %718 = vst.msk [vmem:[#allocation3 + $0x10] sm:$0xf] %vm717, %v713
      %v722 = vrot.slane %v711, 4
      %v723 = vrot.slane %v712, 4
      %v724 = vrot.slane %v713, 4
      %725 = vrot.lane.b32.xlu0 %v722, 127
      %v726 = vpop.permute.xlu0 %725
      %727 = vrot.lane.b32.xlu0 %v723, 127
      %v728 = vpop.permute.xlu0 %727
      %729 = vrot.lane.b32.xlu0 %v724, 127
      %v730 = vpop.permute.xlu0 %729
      %v731 = vsel %vm336, %v726, %v728
      %v732 = vsel %vm336, %v728, %v730
      %736 = vst [vmem:[#allocation3] sm:$0xf0] %v731
      %737 = vst [vmem:[#allocation3 + $0x8] sm:$0xf0] %v732
      %vm738 = vcmask 867332
      %739 = vst.msk [vmem:[#allocation3 + $0x10] sm:$0xf0] %vm738, %v730
      %740 = vrot.lane.b32.xlu0 %v711, 126
      %v741 = vpop.permute.xlu0 %740
      %742 = vrot.lane.b32.xlu0 %v712, 126
      %v743 = vpop.permute.xlu0 %742
      %744 = vrot.lane.b32.xlu0 %v713, 126
      %v745 = vpop.permute.xlu0 %744
      %v746 = vsel %vm357, %v741, %v743
      %v747 = vsel %vm357, %v743, %v745
      %751 = vst [vmem:[#allocation3 + $0x18] sm:$0xf] %v746
      %752 = vst [vmem:[#allocation3 + $0x20] sm:$0xf] %v747
      %753 = vst.msk [vmem:[#allocation3 + $0x28] sm:$0xf] %vm717, %v745
      %754 = vrot.lane.b32.xlu0 %v722, 110
      %v755 = vpop.permute.xlu0 %754
      %756 = vrot.lane.b32.xlu0 %v723, 110
      %v757 = vpop.permute.xlu0 %756
      %758 = vrot.lane.b32.xlu0 %v724, 110
      %v759 = vpop.permute.xlu0 %758
      %v760 = vsel %vm377, %v755, %v757
      %v761 = vsel %vm377, %v757, %v759
      %765 = vst [vmem:[#allocation3 + $0x18] sm:$0xf0] %v760
      %766 = vst [vmem:[#allocation3 + $0x20] sm:$0xf0] %v761
      %767 = vst.msk [vmem:[#allocation3 + $0x28] sm:$0xf0] %vm738, %v759
      %768 = vrot.lane.b32.xlu0 %v711, 109
      %v769 = vpop.permute.xlu0 %768
      %770 = vrot.lane.b32.xlu0 %v712, 109
      %v771 = vpop.permute.xlu0 %770
      %772 = vrot.lane.b32.xlu0 %v713, 109
      %v773 = vpop.permute.xlu0 %772
      %v774 = vsel %vm397, %v769, %v771
      %v775 = vsel %vm397, %v771, %v773
      %779 = vst [vmem:[#allocation3 + $0x30] sm:$0xf] %v774
      %780 = vst [vmem:[#allocation3 + $0x38] sm:$0xf] %v775
      %781 = vst.msk [vmem:[#allocation3 + $0x40] sm:$0xf] %vm717, %v773
      %782 = vrot.lane.b32.xlu0 %v722, 108
      %v783 = vpop.permute.xlu0 %782
      %784 = vrot.lane.b32.xlu0 %v723, 108
      %v785 = vpop.permute.xlu0 %784
      %786 = vrot.lane.b32.xlu0 %v724, 108
      %v787 = vpop.permute.xlu0 %786
      %v788 = vsel %vm417, %v783, %v785
      %v789 = vsel %vm417, %v785, %v787
      %793 = vst [vmem:[#allocation3 + $0x30] sm:$0xf0] %v788
      %794 = vst [vmem:[#allocation3 + $0x38] sm:$0xf0] %v789
      %795 = vst.msk [vmem:[#allocation3 + $0x40] sm:$0xf0] %vm738, %v787
      %797 = vrot.lane.b32.xlu0 %v711, 92
      %v798 = vpop.permute.xlu0 %797
      %799 = vrot.lane.b32.xlu0 %v712, 92
      %v800 = vpop.permute.xlu0 %799
      %801 = vrot.lane.b32.xlu0 %v713, 92
      %v802 = vpop.permute.xlu0 %801
      %803 = vrot.lane.b32.xlu0 %v714, 92
      %v804 = vpop.permute.xlu0 %803
      %v805 = vsel %vm437, %v798, %v800
      %v806 = vsel %vm437, %v800, %v802
      %v807 = vsel %vm437, %v802, %v804
      %811 = vst [vmem:[#allocation3 + $0x48] sm:$0xf] %v805
      %812 = vst [vmem:[#allocation3 + $0x50] sm:$0xf] %v806
      %813 = vst.msk [vmem:[#allocation3 + $0x58] sm:$0xf] %vm717, %v807
      %v814 = vrot.slane %v714, 4
      %815 = vrot.lane.b32.xlu0 %v722, 91
      %v816 = vpop.permute.xlu0 %815
      %817 = vrot.lane.b32.xlu0 %v723, 91
      %v818 = vpop.permute.xlu0 %817
      %819 = vrot.lane.b32.xlu0 %v724, 91
      %v820 = vpop.permute.xlu0 %819
      %821 = vrot.lane.b32.xlu0 %v814, 91
      %v822 = vpop.permute.xlu0 %821
      %v823 = vsel %vm457, %v816, %v818
      %v824 = vsel %vm457, %v818, %v820
      %v825 = vsel %vm457, %v820, %v822
      %829 = vst [vmem:[#allocation3 + $0x48] sm:$0xf0] %v823
      %830 = vst [vmem:[#allocation3 + $0x50] sm:$0xf0] %v824
      %831 = vst.msk [vmem:[#allocation3 + $0x58] sm:$0xf0] %vm738, %v825
      %832 = vrot.lane.b32.xlu0 %v711, 90
      %v833 = vpop.permute.xlu0 %832
      %834 = vrot.lane.b32.xlu0 %v712, 90
      %v835 = vpop.permute.xlu0 %834
      %836 = vrot.lane.b32.xlu0 %v713, 90
      %v837 = vpop.permute.xlu0 %836
      %838 = vrot.lane.b32.xlu0 %v714, 90
      %v839 = vpop.permute.xlu0 %838
      %v840 = vsel %vm477, %v833, %v835
      %v841 = vsel %vm477, %v835, %v837
      %v842 = vsel %vm477, %v837, %v839
      %846 = vst [vmem:[#allocation3 + $0x60] sm:$0xf] %v840
      %847 = vst [vmem:[#allocation3 + $0x68] sm:$0xf] %v841
      %848 = vst.msk [vmem:[#allocation3 + $0x70] sm:$0xf] %vm717, %v842
      %v849 = vld [vmem:[#allocation3] sm:$0xff]
      %v850 = vld [vmem:[#allocation3 + $0x8] sm:$0xff]
      %v851 = vld [vmem:[#allocation3 + $0x10] sm:$0xff]
      %v852 = vld [vmem:[#allocation3 + $0x18] sm:$0xff]
      %v853 = vld [vmem:[#allocation3 + $0x20] sm:$0xff]
      %v854 = vld [vmem:[#allocation3 + $0x28] sm:$0xff]
      %v855 = vld [vmem:[#allocation3 + $0x30] sm:$0xff]
      %v856 = vld [vmem:[#allocation3 + $0x38] sm:$0xff]
      %v857 = vld [vmem:[#allocation3 + $0x40] sm:$0xff]
      %v858 = vld [vmem:[#allocation3 + $0x48] sm:$0xff]
      %v859 = vld [vmem:[#allocation3 + $0x50] sm:$0xff]
      %v860 = vld [vmem:[#allocation3 + $0x58] sm:$0xff]
      %v861 = vld [vmem:[#allocation3 + $0x60] sm:$0xf]
      %v862 = vld [vmem:[#allocation3 + $0x68] sm:$0xf]
      %v863 = vld [vmem:[#allocation3 + $0x70] sm:$0xf]
      %v865 = vsel %vm509, %v309, 0
      %v868 = vsel %vm513, %v861, 0
      %v871 = vsel %vm513, %v862, 0
      %v874 = vsel %vm513, %v863, 0
      %876 = vmatprep.subr.mxu0 %v850
      %877 = vmatpush1.msra.mxu0 %v849
      %878 = vmatprep.subr.mxu0 %v853
      %879 = vmatpush1.msra.mxu0 %v852
      %880 = vmatprep.subr.mxu0 %v856
      %881 = vmatpush1.msra.mxu0 %v855
      %882 = vmatprep.subr.mxu0 %v859
      %883 = vmatpush1.msra.mxu0 %v858
      %884 = vmatprep.subr.mxu0 %v871
      %885 = vmatpush1.msra.mxu0 %v868
      %886 = vmatprep.subr.mxu0 0.0
      %887 = vmatpush1.msra.mxu0 0.0
      %888 = vmatprep.subr.mxu0 0.0
      %889 = vmatpush1.msra.mxu0 0.0
      %890 = vmatprep.subr.mxu0 0.0
      %891 = vmatpush1.msra.mxu0 0.0
      %892 = vmatprep.subr.mxu0 0.0
      %893 = vmatpush1.msra.mxu0 0.0
      %894 = vmatprep.subr.mxu0 0.0
      %895 = vmatpush1.msra.mxu0 0.0
      %896 = vmatprep.subr.mxu0 0.0
      %897 = vmatpush1.msra.mxu0 0.0
      %898 = vmatprep.subr.mxu0 0.0
      %899 = vmatpush1.msra.mxu0 0.0
      %900 = vmatprep.subr.mxu0 0.0
      %901 = vmatpush1.msra.mxu0 0.0
      %902 = vmatprep.subr.mxu0 0.0
      %903 = vmatpush1.msra.mxu0 0.0
      %904 = vmatprep.subr.mxu0 0.0
      %905 = vmatpush1.msra.mxu0 0.0
      %906 = vmatprep.subr.mxu0 0.0
      %907 = vmatpush1.msra.mxu0 0.0
      %908 = vmatprep.subr.mxu0 0.0
      %909 = vmatpush1.msra.mxu0 0.0
      %910 = vmatprep.subr.mxu0 0.0
      %911 = vmatpush1.msra.mxu0 0.0
      %912 = vmatprep.subr.mxu0 0.0
      %913 = vmatpush1.msra.mxu0 0.0
      %914 = vmatprep.subr.mxu0 0.0
      %915 = vmatpush1.msra.mxu0 0.0
      %916 = vmatprep.subr.mxu0 0.0
      %917 = vmatpush1.msra.mxu0 0.0
      %918 = vmatprep.subr.mxu0 0.0
      %919 = vmatpush1.msra.mxu0 0.0
      %920 = vmatprep.subr.mxu0 0.0
      %921 = vmatpush1.msra.mxu0 0.0
      %922 = vmatprep.subr.mxu0 0.0
      %923 = vmatpush1.msra.mxu0 0.0
      %924 = vmatprep.subr.mxu0 0.0
      %925 = vmatpush1.msra.mxu0 0.0
      %926 = vmatprep.subr.mxu0 0.0
      %927 = vmatpush1.msra.mxu0 0.0
      %928 = vmatprep.subr.mxu0 0.0
      %929 = vmatpush1.msra.mxu0 0.0
      %930 = vmatprep.subr.mxu0 0.0
      %931 = vmatpush1.msra.mxu0 0.0
      %932 = vmatprep.subr.mxu0 0.0
      %933 = vmatpush1.msra.mxu0 0.0
      %934 = vmatprep.subr.mxu0 0.0
      %935 = vmatpush1.msra.mxu0 0.0
      %936 = vmatprep.subr.mxu0 0.0
      %937 = vmatpush1.msra.mxu0 0.0
      %938 = vmatprep.subr.mxu0 0.0
      %939 = vmatpush1.msra.mxu0 0.0
      %940 = vmatprep.mubr.f32.mxu0 0.0
      %941 = vmatmul.mubr.f32.gmra.mrb[0].mxu0 %v865
      %v942 = vpop.f32.mrb[0].mxu0
      %v943 = vadd.f32 0.0, %v942
      %v944 = vpop.f32.mrb[0].mxu0
      %v945 = vadd.f32 0.0, %v944
      %946 = vdwg.mxu0
      %947 = vmatprep.subr.mxu0 0.0
      %948 = vmatpush1.msra.mxu0 %v851
      %949 = vmatprep.subr.mxu0 0.0
      %950 = vmatpush1.msra.mxu0 %v854
      %951 = vmatprep.subr.mxu0 0.0
      %952 = vmatpush1.msra.mxu0 %v857
      %953 = vmatprep.subr.mxu0 0.0
      %954 = vmatpush1.msra.mxu0 %v860
      %955 = vmatprep.subr.mxu0 0.0
      %956 = vmatpush1.msra.mxu0 %v874
      %957 = vmatprep.subr.mxu0 0.0
      %958 = vmatpush1.msra.mxu0 0.0
      %959 = vmatprep.subr.mxu0 0.0
      %960 = vmatpush1.msra.mxu0 0.0
      %961 = vmatprep.subr.mxu0 0.0
      %962 = vmatpush1.msra.mxu0 0.0
      %963 = vmatprep.subr.mxu0 0.0
      %964 = vmatpush1.msra.mxu0 0.0
      %965 = vmatprep.subr.mxu0 0.0
      %966 = vmatpush1.msra.mxu0 0.0
      %967 = vmatprep.subr.mxu0 0.0
      %968 = vmatpush1.msra.mxu0 0.0
      %969 = vmatprep.subr.mxu0 0.0
      %970 = vmatpush1.msra.mxu0 0.0
      %971 = vmatprep.subr.mxu0 0.0
      %972 = vmatpush1.msra.mxu0 0.0
      %973 = vmatprep.subr.mxu0 0.0
      %974 = vmatpush1.msra.mxu0 0.0
      %975 = vmatprep.subr.mxu0 0.0
      %976 = vmatpush1.msra.mxu0 0.0
      %977 = vmatprep.subr.mxu0 0.0
      %978 = vmatpush1.msra.mxu0 0.0
      %979 = vmatprep.subr.mxu0 0.0
      %980 = vmatpush1.msra.mxu0 0.0
      %981 = vmatprep.subr.mxu0 0.0
      %982 = vmatpush1.msra.mxu0 0.0
      %983 = vmatprep.subr.mxu0 0.0
      %984 = vmatpush1.msra.mxu0 0.0
      %985 = vmatprep.subr.mxu0 0.0
      %986 = vmatpush1.msra.mxu0 0.0
      %987 = vmatprep.subr.mxu0 0.0
      %988 = vmatpush1.msra.mxu0 0.0
      %989 = vmatprep.subr.mxu0 0.0
      %990 = vmatpush1.msra.mxu0 0.0
      %991 = vmatprep.subr.mxu0 0.0
      %992 = vmatpush1.msra.mxu0 0.0
      %993 = vmatprep.subr.mxu0 0.0
      %994 = vmatpush1.msra.mxu0 0.0
      %995 = vmatprep.subr.mxu0 0.0
      %996 = vmatpush1.msra.mxu0 0.0
      %997 = vmatprep.subr.mxu0 0.0
      %998 = vmatpush1.msra.mxu0 0.0
      %999 = vmatprep.subr.mxu0 0.0
      %1000 = vmatpush1.msra.mxu0 0.0
      %1001 = vmatprep.subr.mxu0 0.0
      %1002 = vmatpush1.msra.mxu0 0.0
      %1003 = vmatprep.subr.mxu0 0.0
      %1004 = vmatpush1.msra.mxu0 0.0
      %1005 = vmatprep.subr.mxu0 0.0
      %1006 = vmatpush1.msra.mxu0 0.0
      %1007 = vmatprep.subr.mxu0 0.0
      %1008 = vmatpush1.msra.mxu0 0.0
      %1009 = vmatprep.subr.mxu0 0.0
      %1010 = vmatpush1.msra.mxu0 0.0
      %1011 = vmatprep.mubr.f32.mxu0 0.0
      %1012 = vmatmul.mubr.f32.gmra.mrb[0].mxu0 %v865
      %v1013 = vpop.f32.mrb[0].mxu0
      %v1014 = vadd.f32 0.0, %v1013
      %v1015 = vpop.f32.mrb[0].mxu0
      %1016 = vdwg.mxu0
      %1018 = vset.pattern.permute.xlu0 0
      %1019 = vperm.xlu0 %1018, %v312
      %v1020 = vpop.permute.xlu0 %1019
      %v1022 = vmul.f32 %v943, %v1020
      %v1023 = vmul.f32 %v945, %v1020
      %v1024 = vmul.f32 %v1014, %v1020
      %1026 = vset.pattern.permute.xlu0 0
      %1027 = vperm.xlu0 %1026, %v313
      %v1028 = vpop.permute.xlu0 %1027
      %v1030 = vadd.f32 %v1022, %v1028
      %v1031 = vadd.f32 %v1023, %v1028
      %v1032 = vadd.f32 %v1024, %v1028
      %v1033 = vmax.f32 %v1030, 0.0
      %v1034 = vmax.f32 %v1031, 0.0
      %v1035 = vmax.f32 %v1032, 0.0
      %1036 = vrot.lane.b32.xlu0 %v694, 109
      %v1037 = vpop.permute.xlu0 %1036
      %1038 = vrot.lane.b32.xlu0 %v698, 109
      %v1039 = vpop.permute.xlu0 %1038
      %1040 = vrot.lane.b32.xlu0 %v702, 109
      %v1041 = vpop.permute.xlu0 %1040
      %v1042 = vsel %vm397, %v1037, %v1039
      %v1043 = vsel %vm397, %v1039, %v1041
      %v1047 = vmul.f32 %v1033, %v1042
      %v1048 = vmul.f32 %v1034, %v1043
      %v1049 = vmul.f32 %v1035, %v1041
      %v1050 = vmax.f32 %v306, 0.0
      %v1051 = vmax.f32 %v307, 0.0
      %1055 = vrot.lane.b32.xlu0 %v1047, 127
      %v1056 = vpop.permute.xlu0 %1055
      %1057 = vrot.lane.b32.xlu0 %v1048, 127
      %v1058 = vpop.permute.xlu0 %1057
      %1059 = vrot.lane.b32.xlu0 %v1049, 127
      %v1060 = vpop.permute.xlu0 %1059
      %v1061 = vsel %vm336, %v1056, %v1058
      %v1062 = vsel %vm336, %v1058, %v1060
      %v1066 = vmax.f32 %v1047, %v1061
      %v1067 = vmax.f32 %v1048, %v1062
      %v1068 = vmax.f32 %v1049, %v1060
      %1071 = vrot.lane.b32.xlu0 %v1050, 127
      %v1072 = vpop.permute.xlu0 %1071
      %1073 = vrot.lane.b32.xlu0 %v1051, 127
      %v1074 = vpop.permute.xlu0 %1073
      %v1075 = vrot.slane %v1072, 4
      %v1076 = vrot.slane %v1074, 4
      %v1077 = vsel %vm513, %v1075, %v1076
      %v1078 = vsel %vm336, %v1072, %v1077
      %v1081 = vmax.f32 %v1050, %v1078
      %v1082 = vmax.f32 %v1051, %v1074
      %1083 = vrot.lane.b32.xlu0 %v1047, 126
      %v1084 = vpop.permute.xlu0 %1083
      %1085 = vrot.lane.b32.xlu0 %v1048, 126
      %v1086 = vpop.permute.xlu0 %1085
      %1087 = vrot.lane.b32.xlu0 %v1049, 126
      %v1088 = vpop.permute.xlu0 %1087
      %v1089 = vsel %vm357, %v1084, %v1086
      %v1090 = vsel %vm357, %v1086, %v1088
      %v1094 = vmax.f32 %v1066, %v1089
      %v1095 = vmax.f32 %v1067, %v1090
      %v1096 = vmax.f32 %v1068, %v1088
      %1097 = vrot.lane.b32.xlu0 %v1050, 126
      %v1098 = vpop.permute.xlu0 %1097
      %1099 = vrot.lane.b32.xlu0 %v1051, 126
      %v1100 = vpop.permute.xlu0 %1099
      %v1101 = vrot.slane %v1098, 4
      %v1102 = vrot.slane %v1100, 4
      %v1103 = vsel %vm513, %v1101, %v1102
      %v1104 = vsel %vm357, %v1098, %v1103
      %v1107 = vmax.f32 %v1081, %v1104
      %v1108 = vmax.f32 %v1082, %v1100
      %1109 = vrot.lane.b32.xlu0 %v1047, 110
      %v1110 = vpop.permute.xlu0 %1109
      %1111 = vrot.lane.b32.xlu0 %v1048, 110
      %v1112 = vpop.permute.xlu0 %1111
      %1113 = vrot.lane.b32.xlu0 %v1049, 110
      %v1114 = vpop.permute.xlu0 %1113
      %v1115 = vsel %vm377, %v1110, %v1112
      %v1116 = vsel %vm377, %v1112, %v1114
      %v1120 = vmax.f32 %v1094, %v1115
      %v1121 = vmax.f32 %v1095, %v1116
      %v1122 = vmax.f32 %v1096, %v1114
      %1123 = vrot.lane.b32.xlu0 %v1050, 110
      %v1124 = vpop.permute.xlu0 %1123
      %1125 = vrot.lane.b32.xlu0 %v1051, 110
      %v1126 = vpop.permute.xlu0 %1125
      %v1127 = vrot.slane %v1124, 4
      %v1128 = vrot.slane %v1126, 4
      %v1129 = vsel %vm513, %v1127, %v1128
      %v1130 = vsel %vm377, %v1124, %v1129
      %v1133 = vmax.f32 %v1107, %v1130
      %v1134 = vmax.f32 %v1108, %v1126
      %1135 = vrot.lane.b32.xlu0 %v1047, 109
      %v1136 = vpop.permute.xlu0 %1135
      %1137 = vrot.lane.b32.xlu0 %v1048, 109
      %v1138 = vpop.permute.xlu0 %1137
      %1139 = vrot.lane.b32.xlu0 %v1049, 109
      %v1140 = vpop.permute.xlu0 %1139
      %v1141 = vsel %vm397, %v1136, %v1138
      %v1142 = vsel %vm397, %v1138, %v1140
      %v1146 = vmax.f32 %v1120, %v1141
      %v1147 = vmax.f32 %v1121, %v1142
      %v1148 = vmax.f32 %v1122, %v1140
      %1149 = vrot.lane.b32.xlu0 %v1050, 109
      %v1150 = vpop.permute.xlu0 %1149
      %1151 = vrot.lane.b32.xlu0 %v1051, 109
      %v1152 = vpop.permute.xlu0 %1151
      %v1153 = vrot.slane %v1150, 4
      %v1154 = vrot.slane %v1152, 4
      %v1155 = vsel %vm513, %v1153, %v1154
      %v1156 = vsel %vm397, %v1150, %v1155
      %v1159 = vmax.f32 %v1133, %v1156
      %v1160 = vmax.f32 %v1134, %v1152
      %1161 = vrot.lane.b32.xlu0 %v1047, 108
      %v1162 = vpop.permute.xlu0 %1161
      %1163 = vrot.lane.b32.xlu0 %v1048, 108
      %v1164 = vpop.permute.xlu0 %1163
      %1165 = vrot.lane.b32.xlu0 %v1049, 108
      %v1166 = vpop.permute.xlu0 %1165
      %v1167 = vsel %vm417, %v1162, %v1164
      %v1168 = vsel %vm417, %v1164, %v1166
      %v1172 = vmax.f32 %v1146, %v1167
      %v1173 = vmax.f32 %v1147, %v1168
      %v1174 = vmax.f32 %v1148, %v1166
      %1175 = vrot.lane.b32.xlu0 %v1050, 108
      %v1176 = vpop.permute.xlu0 %1175
      %1177 = vrot.lane.b32.xlu0 %v1051, 108
      %v1178 = vpop.permute.xlu0 %1177
      %v1179 = vrot.slane %v1176, 4
      %v1180 = vrot.slane %v1178, 4
      %v1181 = vsel %vm513, %v1179, %v1180
      %v1182 = vsel %vm417, %v1176, %v1181
      %v1185 = vmax.f32 %v1159, %v1182
      %v1186 = vmax.f32 %v1160, %v1178
      %1187 = vrot.lane.b32.xlu0 %v1047, 92
      %v1188 = vpop.permute.xlu0 %1187
      %1189 = vrot.lane.b32.xlu0 %v1048, 92
      %v1190 = vpop.permute.xlu0 %1189
      %1191 = vrot.lane.b32.xlu0 %v1049, 92
      %v1192 = vpop.permute.xlu0 %1191
      %v1193 = vsel %vm437, %v1188, %v1190
      %v1194 = vsel %vm437, %v1190, %v1192
      %v1198 = vmax.f32 %v1172, %v1193
      %v1199 = vmax.f32 %v1173, %v1194
      %v1200 = vmax.f32 %v1174, %v1192
      %1201 = vrot.lane.b32.xlu0 %v1050, 92
      %v1202 = vpop.permute.xlu0 %1201
      %1203 = vrot.lane.b32.xlu0 %v1051, 92
      %v1204 = vpop.permute.xlu0 %1203
      %v1205 = vrot.slane %v1202, 4
      %v1206 = vrot.slane %v1204, 4
      %v1207 = vsel %vm513, %v1205, %v1206
      %v1208 = vsel %vm437, %v1202, %v1207
      %v1209 = vsel %vm437, %v1204, %v1206
      %v1212 = vmax.f32 %v1185, %v1208
      %v1213 = vmax.f32 %v1186, %v1209
      %1214 = vrot.lane.b32.xlu0 %v1047, 91
      %v1215 = vpop.permute.xlu0 %1214
      %1216 = vrot.lane.b32.xlu0 %v1048, 91
      %v1217 = vpop.permute.xlu0 %1216
      %1218 = vrot.lane.b32.xlu0 %v1049, 91
      %v1219 = vpop.permute.xlu0 %1218
      %v1220 = vsel %vm457, %v1215, %v1217
      %v1221 = vsel %vm457, %v1217, %v1219
      %v1225 = vmax.f32 %v1198, %v1220
      %v1226 = vmax.f32 %v1199, %v1221
      %v1227 = vmax.f32 %v1200, %v1219
      %1228 = vrot.lane.b32.xlu0 %v1050, 91
      %v1229 = vpop.permute.xlu0 %1228
      %1230 = vrot.lane.b32.xlu0 %v1051, 91
      %v1231 = vpop.permute.xlu0 %1230
      %v1232 = vrot.slane %v1229, 4
      %v1233 = vrot.slane %v1231, 4
      %v1234 = vsel %vm513, %v1232, %v1233
      %v1235 = vsel %vm457, %v1229, %v1234
      %v1236 = vsel %vm457, %v1231, %v1233
      %v1239 = vmax.f32 %v1212, %v1235
      %v1240 = vmax.f32 %v1213, %v1236
      %1241 = vrot.lane.b32.xlu0 %v1047, 90
      %v1242 = vpop.permute.xlu0 %1241
      %1243 = vrot.lane.b32.xlu0 %v1048, 90
      %v1244 = vpop.permute.xlu0 %1243
      %1245 = vrot.lane.b32.xlu0 %v1049, 90
      %v1246 = vpop.permute.xlu0 %1245
      %v1247 = vsel %vm477, %v1242, %v1244
      %v1248 = vsel %vm477, %v1244, %v1246
      %v1252 = vmax.f32 %v1225, %v1247
      %v1253 = vmax.f32 %v1226, %v1248
      %v1254 = vmax.f32 %v1227, %v1246
      %1255 = vrot.lane.b32.xlu0 %v1050, 90
      %v1256 = vpop.permute.xlu0 %1255
      %1257 = vrot.lane.b32.xlu0 %v1051, 90
      %v1258 = vpop.permute.xlu0 %1257
      %v1259 = vrot.slane %v1256, 4
      %v1260 = vrot.slane %v1258, 4
      %v1261 = vsel %vm513, %v1259, %v1260
      %v1262 = vsel %vm477, %v1256, %v1261
      %v1263 = vsel %vm477, %v1258, %v1260
      %v1266 = vmax.f32 %v1239, %v1262
      %v1267 = vmax.f32 %v1240, %v1263
      %1268 = vst [vmem:[%s305] sm:$0xf] %v1252
      %1269 = vst [vmem:[%s305 + $0x8] sm:$0xf] %v1253
      %vm1270 = vcmask 551936
      %1271 = vst.msk [vmem:[%s305 + $0x10] sm:$0xf] %vm1270, %v1254
      %v1274 = vcombine.low %v1266, %v1266
      %v1275 = vcombine.low %v1267, %v1267
      %1276 = vrot.lane.b32.xlu0 %v1274, 90
      %v1277 = vpop.permute.xlu0 %1276
      %1278 = vrot.lane.b32.xlu0 %v1266, 90
      %v1279 = vpop.permute.xlu0 %1278
      %1280 = vrot.lane.b32.xlu0 %v1275, 90
      %v1281 = vpop.permute.xlu0 %1280
      %v1282 = vsel %vm477, %v1277, %v1279
      %v1283 = vsel %vm477, %v1279, %v1281
      %1287 = vst [vmem:[%s305] sm:$0xf0] %v1282
      %1288 = vst [vmem:[%s305 + $0x8] sm:$0xf0] %v1283
      %vm1289 = vcmask 556036
      %1290 = vst.msk [vmem:[%s305 + $0x10] sm:$0xf0] %vm1289, %v1281
      %p1291 = scmp.lt.s32.totalorder %s19, 1
      %s1292 = scalar_select %p1291, %s19, 1
      %s1293 = smul.addr %s1292, 3
      %s1294 = smul.addr %s1293, 8
      %s1295 = scalar_lea.vmem %s8, %s1294
      // Predicated region
      $region53: #{rescnn_forward.5} parent=51 // pred_check
        %p1296 = pneg %p210
      $region54: #{rescnn_forward.5} parent=51 // pred_check_branch
        %1298 = sbr.rel (%p1296) target = $region56
      $region55: #{rescnn_forward.5} parent=51 // pred_region
        _
      $region56: #{rescnn_forward.5} parent=51 // pred_fallthru
        _
    $region52: #{rescnn_forward.5} parent=5 // pred_fallthru
      _
    %p1299 = scmp.le.s32.totalorder 2, %s14
    // Predicated region
    $region57: #{rescnn_forward.5} parent=5 // pred_check
      %p1300 = pneg %p1299
    $region58: #{rescnn_forward.5} parent=5 // pred_check_branch
      %1302 = sbr.rel (%p1300) target = $region60
    $region59: #{rescnn_forward.5} parent=5 // pred_region
      %s1303 = ssub.s32 %s14, 2
      // Predicated region
      $region61: #{rescnn_forward.5} parent=59 // pred_check
        %p1304 = pneg %p216
      $region62: #{rescnn_forward.5} parent=59 // pred_check_branch
        %1306 = sbr.rel (%p1304) target = $region64
      $region63: #{rescnn_forward.5} parent=59 // pred_region
        %p1307 = scmp.lt.s32.totalorder %s20, 1
        %s1308 = scalar_select %p1307, %s20, 1
        %s1309 = smul.addr %s1308, 3
        %s1310 = smul.addr %s1309, 8
        %s1311 = scalar_lea.vmem %s8, %s1310
      $region64: #{rescnn_forward.5} parent=59 // pred_fallthru
        _
    $region60: #{rescnn_forward.5} parent=5 // pred_fallthru
      _
  $region6: #{rescnn_forward.5} parent=0 // loop_footer
    %s18 = sadd.s32 1, %s14
  $region7: #{rescnn_forward.5} parent=0 // loop_footer_branch
    %13 = sbr.rel target = $region3
  $region8: #{rescnn_forward.5} parent=0 // loop_exit
    _

// kernel: rescnn_forward.6
$region0: #{rescnn_forward.6}
  #allocation0 [shape = 'u32[]', space=smem, size = 0x4, offset = 0x4, fixed_abs, tag = 'smem constant byte address 0x4 - core index']
  #allocation1 [shape = 'u32[144,128]{1,0:T(1,128)}', space=vmem, size = 0x12000, scoped, tag = 'internal scratch']
  #allocation2 [shape = 'f32[72,100]{1,0:T(8,128)}', space=vmem, size = 0x9000, scoped, tag = 'scratch operand']
  #allocation3 [shape = 'f32[72,82]{1,0:T(8,128)}', space=vmem, size = 0x9000, scoped, tag = 'scratch operand']
  %s0 = inlined_call_operand.vmem [shape: f32[2,8,118], index: 0, kind: input, shape index: {}]
  %s1 = inlined_call_operand.vmem [shape: f32[8,72], index: 1, kind: input, shape index: {}]
  %s2 = inlined_call_operand.vmem [shape: f32[8,72], index: 2, kind: input, shape index: {}]
  %s3 = inlined_call_operand.vmem [shape: f32[8,1], index: 3, kind: input, shape index: {}]
  %s4 = inlined_call_operand.vmem [shape: f32[8,1], index: 4, kind: input, shape index: {}]
  %s5 = inlined_call_operand.vmem [shape: f32[8,1], index: 5, kind: input, shape index: {}]
  %s6 = inlined_call_operand.vmem [shape: f32[8,1], index: 6, kind: input, shape index: {}]
  %s7 = inlined_call_operand.vmem [shape: f32[1,100], index: 7, kind: input, shape index: {}]
  %s8 = inlined_call_operand.vmem [shape: f32[2,16,64], index: 8, kind: output, shape index: {}]
  %s9 = sld [smem:[#allocation0]]
  $region65: #{rescnn_forward.6} parent=0
    _
  %s11 = ssub.s32 1, %s9
  %s12 = scalar_select 0, %s11, %s9
  loop: start=0, step=1, limit=4
  $region2: #{rescnn_forward.6} parent=0 // loop_pre_header
    _
  $region3: #{rescnn_forward.6} parent=0 // loop_header
    %s14 = sphi 0, %s18
    %p15 = scmp.ge.s32.totalorder %s14, 4
    %s24 = sphi 0, %s26
    %s27 = sphi 0, %s24
    %s28 = sphi 0, %s27
    %s44 = sphi 0, %s28
    %s48 = sphi 0, %s48
    %s50 = sphi 0, %s48
    %s51 = sphi 0, %s50
    %s65 = sphi 0, %s51
    %s69 = sphi 0, %s69
    %s71 = sphi 0, %s69
    %s72 = sphi 0, %s71
    %s86 = sphi 0, %s72
    %s90 = sphi 0, %s90
    %s92 = sphi 0, %s90
    %s93 = sphi 0, %s92
    %s107 = sphi 0, %s93
    %s111 = sphi 0, %s111
    %s113 = sphi 0, %s111
    %s114 = sphi 0, %s113
    %s128 = sphi 0, %s114
    %s132 = sphi 0, %s132
    %s134 = sphi 0, %s132
    %s135 = sphi 0, %s134
    %s149 = sphi 0, %s135
    %s153 = sphi 0, %s153
    %s155 = sphi 0, %s153
    %s156 = sphi 0, %s155
    %s170 = sphi 0, %s156
    %s174 = sphi 0, %s174
    %s176 = sphi 0, %s174
    %s177 = sphi 0, %s176
    %s191 = sphi 0, %s177
    %s197 = sphi 0, %s199
    %s200 = sphi 0, %s197
    %s201 = sphi 0, %s200
    %s217 = sphi 0, %s201
  $region4: #{rescnn_forward.6} parent=0 // loop_header_branch
    %17 = sbr.rel (%p15) target = $region8
  $region5: #{rescnn_forward.6} parent=0 // loop_body
    %s19 = ssub.s32 %s14, 1
    %s20 = ssub.s32 %s14, 2
    %s21 = sadd.s32 %s14, 1
    %s22 = ssub.s32 %s14, %s21
    %p23 = scmp.eq.s32.totalorder %s22, 0
    %s25 = sadd.s32 %s24, 1
    %s26 = scalar_select %p23, %s24, %s25
    %p29 = pneg %p23
    %p30 = scmp.eq.s32.totalorder %s14, 1
    %p31 = por %p29, %p30
    %p32 = scmp.ne.s32.totalorder %s24, %s27
    %p33 = scmp.eq.s32.totalorder %s14, 0
    %p34 = por %p32, %p33
    %p35 = scmp.ne.s32.totalorder %s24, %s27
    %p36 = scmp.eq.s32.totalorder %s19, 1
    %p37 = por %p35, %p36
    %p38 = scmp.ne.s32.totalorder %s27, %s28
    %p39 = scmp.eq.s32.totalorder %s19, 0
    %p40 = por %p38, %p39
    %p41 = scmp.ne.s32.totalorder %s27, %s28
    %p42 = scmp.eq.s32.totalorder %s20, 1
    %p43 = por %p41, %p42
    %p45 = scmp.ne.s32.totalorder %s28, %s44
    %p46 = scmp.eq.s32.totalorder %s20, 0
    %p47 = por %p45, %p46
    %s49 = sadd.s32 %s48, 1
    %p52 = scmp.eq.s32.totalorder %s14, 1
    %p53 = scmp.ne.s32.totalorder %s48, %s50
    %p54 = scmp.eq.s32.totalorder %s14, 0
    %p55 = por %p53, %p54
    %p56 = scmp.ne.s32.totalorder %s48, %s50
    %p57 = scmp.eq.s32.totalorder %s19, 1
    %p58 = por %p56, %p57
    %p59 = scmp.ne.s32.totalorder %s50, %s51
    %p60 = scmp.eq.s32.totalorder %s19, 0
    %p61 = por %p59, %p60
    %p62 = scmp.ne.s32.totalorder %s50, %s51
    %p63 = scmp.eq.s32.totalorder %s20, 1
    %p64 = por %p62, %p63
    %p66 = scmp.ne.s32.totalorder %s51, %s65
    %p67 = scmp.eq.s32.totalorder %s20, 0
    %p68 = por %p66, %p67
    %s70 = sadd.s32 %s69, 1
    %p73 = scmp.eq.s32.totalorder %s14, 1
    %p74 = scmp.ne.s32.totalorder %s69, %s71
    %p75 = scmp.eq.s32.totalorder %s14, 0
    %p76 = por %p74, %p75
    %p77 = scmp.ne.s32.totalorder %s69, %s71
    %p78 = scmp.eq.s32.totalorder %s19, 1
    %p79 = por %p77, %p78
    %p80 = scmp.ne.s32.totalorder %s71, %s72
    %p81 = scmp.eq.s32.totalorder %s19, 0
    %p82 = por %p80, %p81
    %p83 = scmp.ne.s32.totalorder %s71, %s72
    %p84 = scmp.eq.s32.totalorder %s20, 1
    %p85 = por %p83, %p84
    %p87 = scmp.ne.s32.totalorder %s72, %s86
    %p88 = scmp.eq.s32.totalorder %s20, 0
    %p89 = por %p87, %p88
    %s91 = sadd.s32 %s90, 1
    %p94 = scmp.eq.s32.totalorder %s14, 1
    %p95 = scmp.ne.s32.totalorder %s90, %s92
    %p96 = scmp.eq.s32.totalorder %s14, 0
    %p97 = por %p95, %p96
    %p98 = scmp.ne.s32.totalorder %s90, %s92
    %p99 = scmp.eq.s32.totalorder %s19, 1
    %p100 = por %p98, %p99
    %p101 = scmp.ne.s32.totalorder %s92, %s93
    %p102 = scmp.eq.s32.totalorder %s19, 0
    %p103 = por %p101, %p102
    %p104 = scmp.ne.s32.totalorder %s92, %s93
    %p105 = scmp.eq.s32.totalorder %s20, 1
    %p106 = por %p104, %p105
    %p108 = scmp.ne.s32.totalorder %s93, %s107
    %p109 = scmp.eq.s32.totalorder %s20, 0
    %p110 = por %p108, %p109
    %s112 = sadd.s32 %s111, 1
    %p115 = scmp.eq.s32.totalorder %s14, 1
    %p116 = scmp.ne.s32.totalorder %s111, %s113
    %p117 = scmp.eq.s32.totalorder %s14, 0
    %p118 = por %p116, %p117
    %p119 = scmp.ne.s32.totalorder %s111, %s113
    %p120 = scmp.eq.s32.totalorder %s19, 1
    %p121 = por %p119, %p120
    %p122 = scmp.ne.s32.totalorder %s113, %s114
    %p123 = scmp.eq.s32.totalorder %s19, 0
    %p124 = por %p122, %p123
    %p125 = scmp.ne.s32.totalorder %s113, %s114
    %p126 = scmp.eq.s32.totalorder %s20, 1
    %p127 = por %p125, %p126
    %p129 = scmp.ne.s32.totalorder %s114, %s128
    %p130 = scmp.eq.s32.totalorder %s20, 0
    %p131 = por %p129, %p130
    %s133 = sadd.s32 %s132, 1
    %p136 = scmp.eq.s32.totalorder %s14, 1
    %p137 = scmp.ne.s32.totalorder %s132, %s134
    %p138 = scmp.eq.s32.totalorder %s14, 0
    %p139 = por %p137, %p138
    %p140 = scmp.ne.s32.totalorder %s132, %s134
    %p141 = scmp.eq.s32.totalorder %s19, 1
    %p142 = por %p140, %p141
    %p143 = scmp.ne.s32.totalorder %s134, %s135
    %p144 = scmp.eq.s32.totalorder %s19, 0
    %p145 = por %p143, %p144
    %p146 = scmp.ne.s32.totalorder %s134, %s135
    %p147 = scmp.eq.s32.totalorder %s20, 1
    %p148 = por %p146, %p147
    %p150 = scmp.ne.s32.totalorder %s135, %s149
    %p151 = scmp.eq.s32.totalorder %s20, 0
    %p152 = por %p150, %p151
    %s154 = sadd.s32 %s153, 1
    %p157 = scmp.eq.s32.totalorder %s14, 1
    %p158 = scmp.ne.s32.totalorder %s153, %s155
    %p159 = scmp.eq.s32.totalorder %s14, 0
    %p160 = por %p158, %p159
    %p161 = scmp.ne.s32.totalorder %s153, %s155
    %p162 = scmp.eq.s32.totalorder %s19, 1
    %p163 = por %p161, %p162
    %p164 = scmp.ne.s32.totalorder %s155, %s156
    %p165 = scmp.eq.s32.totalorder %s19, 0
    %p166 = por %p164, %p165
    %p167 = scmp.ne.s32.totalorder %s155, %s156
    %p168 = scmp.eq.s32.totalorder %s20, 1
    %p169 = por %p167, %p168
    %p171 = scmp.ne.s32.totalorder %s156, %s170
    %p172 = scmp.eq.s32.totalorder %s20, 0
    %p173 = por %p171, %p172
    %s175 = sadd.s32 %s174, 1
    %p178 = scmp.eq.s32.totalorder %s14, 1
    %p179 = scmp.ne.s32.totalorder %s174, %s176
    %p180 = scmp.eq.s32.totalorder %s14, 0
    %p181 = por %p179, %p180
    %p182 = scmp.ne.s32.totalorder %s174, %s176
    %p183 = scmp.eq.s32.totalorder %s19, 1
    %p184 = por %p182, %p183
    %p185 = scmp.ne.s32.totalorder %s176, %s177
    %p186 = scmp.eq.s32.totalorder %s19, 0
    %p187 = por %p185, %p186
    %p188 = scmp.ne.s32.totalorder %s176, %s177
    %p189 = scmp.eq.s32.totalorder %s20, 1
    %p190 = por %p188, %p189
    %p192 = scmp.ne.s32.totalorder %s177, %s191
    %p193 = scmp.eq.s32.totalorder %s20, 0
    %p194 = por %p192, %p193
    %s195 = ssub.s32 %s14, %s21
    %p196 = scmp.eq.s32.totalorder %s195, 0
    %s198 = sadd.s32 %s197, 1
    %s199 = scalar_select %p196, %s197, %s198
    %p202 = pneg %p196
    %p203 = scmp.eq.s32.totalorder %s14, 1
    %p204 = por %p202, %p203
    %p205 = scmp.ne.s32.totalorder %s197, %s200
    %p206 = scmp.eq.s32.totalorder %s14, 0
    %p207 = por %p205, %p206
    %p208 = scmp.ne.s32.totalorder %s197, %s200
    %p209 = scmp.eq.s32.totalorder %s19, 1
    %p210 = por %p208, %p209
    %p211 = scmp.ne.s32.totalorder %s200, %s201
    %p212 = scmp.eq.s32.totalorder %s19, 0
    %p213 = por %p211, %p212
    %p214 = scmp.ne.s32.totalorder %s200, %s201
    %p215 = scmp.eq.s32.totalorder %s20, 1
    %p216 = por %p214, %p215
    %p218 = scmp.ne.s32.totalorder %s201, %s217
    %p219 = scmp.eq.s32.totalorder %s20, 0
    %p220 = por %p218, %p219
    %p221 = scmp.le.s32.totalorder 1, %s14
    %p222 = scmp.lt.s32.totalorder %s14, 3
    %p223 = pnand %p221, %p222
    %p224 = pneg %p223
    // Predicated region
    $region9: #{rescnn_forward.6} parent=5 // pred_check
      _
    $region10: #{rescnn_forward.6} parent=5 // pred_check_branch
      %226 = sbr.rel (%p223) target = $region12
    $region11: #{rescnn_forward.6} parent=5 // pred_region
      %s227 = ssub.s32 %s14, 1
      // Predicated region
      $region13: #{rescnn_forward.6} parent=11 // pred_check
        %p228 = pneg %p61
      $region14: #{rescnn_forward.6} parent=11 // pred_check_branch
        %230 = sbr.rel (%p228) target = $region16
      $region15: #{rescnn_forward.6} parent=11 // pred_region
        _
      $region16: #{rescnn_forward.6} parent=11 // pred_fallthru
        _
      // Predicated region
      $region17: #{rescnn_forward.6} parent=11 // pred_check
        %p231 = pneg %p82
      $region18: #{rescnn_forward.6} parent=11 // pred_check_branch
        %233 = sbr.rel (%p231) target = $region20
      $region19: #{rescnn_forward.6} parent=11 // pred_region
        _
      $region20: #{rescnn_forward.6} parent=11 // pred_fallthru
        _
      // Predicated region
      $region21: #{rescnn_forward.6} parent=11 // pred_check
        %p234 = pneg %p103
      $region22: #{rescnn_forward.6} parent=11 // pred_check_branch
        %236 = sbr.rel (%p234) target = $region24
      $region23: #{rescnn_forward.6} parent=11 // pred_region
        _
      $region24: #{rescnn_forward.6} parent=11 // pred_fallthru
        _
      // Predicated region
      $region25: #{rescnn_forward.6} parent=11 // pred_check
        %p237 = pneg %p124
      $region26: #{rescnn_forward.6} parent=11 // pred_check_branch
        %239 = sbr.rel (%p237) target = $region28
      $region27: #{rescnn_forward.6} parent=11 // pred_region
        _
      $region28: #{rescnn_forward.6} parent=11 // pred_fallthru
        _
      // Predicated region
      $region29: #{rescnn_forward.6} parent=11 // pred_check
        %p240 = pneg %p145
      $region30: #{rescnn_forward.6} parent=11 // pred_check_branch
        %242 = sbr.rel (%p240) target = $region32
      $region31: #{rescnn_forward.6} parent=11 // pred_region
        _
      $region32: #{rescnn_forward.6} parent=11 // pred_fallthru
        _
      // Predicated region
      $region33: #{rescnn_forward.6} parent=11 // pred_check
        %p243 = pneg %p166
      $region34: #{rescnn_forward.6} parent=11 // pred_check_branch
        %245 = sbr.rel (%p243) target = $region36
      $region35: #{rescnn_forward.6} parent=11 // pred_region
        _
      $region36: #{rescnn_forward.6} parent=11 // pred_fallthru
        _
      // Predicated region
      $region37: #{rescnn_forward.6} parent=11 // pred_check
        %p246 = pneg %p187
      $region38: #{rescnn_forward.6} parent=11 // pred_check_branch
        %248 = sbr.rel (%p246) target = $region40
      $region39: #{rescnn_forward.6} parent=11 // pred_region
        _
      $region40: #{rescnn_forward.6} parent=11 // pred_fallthru
        _
    $region12: #{rescnn_forward.6} parent=5 // pred_fallthru
      _
    %p249 = scmp.lt.s32.totalorder %s14, 2
    // Predicated region
    $region41: #{rescnn_forward.6} parent=5 // pred_check
      %p250 = pneg %p249
    $region42: #{rescnn_forward.6} parent=5 // pred_check_branch
      %252 = sbr.rel (%p250) target = $region44
    $region43: #{rescnn_forward.6} parent=5 // pred_region
      // Predicated region
      $region45: #{rescnn_forward.6} parent=43 // pred_check
        %p253 = pneg %p34
      $region46: #{rescnn_forward.6} parent=43 // pred_check_branch
        %255 = sbr.rel (%p253) target = $region48
      $region47: #{rescnn_forward.6} parent=43 // pred_region
        %p256 = scmp.lt.s32.totalorder %s14, 1
        %s257 = scalar_select %p256, %s14, 1
        %s258 = smul.addr %s257, 8
        %s259 = scalar_lea.vmem %s0, %s258
      $region48: #{rescnn_forward.6} parent=43 // pred_fallthru
        _
    $region44: #{rescnn_forward.6} parent=5 // pred_fallthru
      _
    %p260 = scmp.le.s32.totalorder 1, %s14
    %p261 = scmp.lt.s32.totalorder %s14, 3
    %p262 = pnand %p260, %p261
    %p263 = pneg %p262
    // Predicated region
    $region49: #{rescnn_forward.6} parent=5 // pred_check
      _
    $region50: #{rescnn_forward.6} parent=5 // pred_check_branch
      %265 = sbr.rel (%p262) target = $region52
    $region51: #{rescnn_forward.6} parent=5 // pred_region
      %s266 = ssub.s32 %s14, 1
      %p267 = scmp.lt.s32.totalorder %s19, 1
      %s268 = scalar_select %p267, %s19, 1
      %s269 = smul.addr %s268, 8
      %s270 = scalar_lea.vmem %s0, %s269
      %p271 = pneg %p40
      %p272 = pneg %p37
      %p273 = pneg %p61
      %p274 = pneg %p58
      %p275 = pneg %p82
      %p276 = pneg %p79
      %p277 = pneg %p103
      %p278 = pneg %p100
      %p279 = pneg %p124
      %p280 = pneg %p121
      %p281 = pneg %p145
      %p282 = pneg %p142
      %p283 = pneg %p166
      %p284 = pneg %p163
      %p285 = pneg %p187
      %p286 = pneg %p184
      %p287 = pneg %p213
      %p288 = pneg %p210
      %p289 = scmp.lt.s32.totalorder %s19, 1
      %s290 = scalar_select %p289, %s19, 1
      %s291 = smul.addr %s290, 2
      %s292 = smul.addr %s291, 8
      %s293 = scalar_lea.vmem %s8, %s292
      %p294 = scmp.lt.s32.totalorder %s19, 1
      %s295 = scalar_select %p294, %s19, 1
      %s296 = smul.addr %s295, 8
      %s297 = scalar_lea.vmem %s0, %s296
      %p298 = scmp.lt.s32.totalorder %s19, 1
      %s299 = scalar_select %p298, %s19, 1
      %s300 = smul.addr %s299, 2
      %s301 = smul.addr %s300, 8
      %s302 = scalar_lea.vmem %s8, %s301
      %v303 = vld [vmem:[%s297] sm:$0xff]
      %v304 = vld [vmem:[%s1] sm:$0xff]
      %v305 = vld [vmem:[%s2] sm:$0xff]
      %v306 = vld [vmem:[%s3] sm:$0xff]
      %v307 = vld [vmem:[%s4] sm:$0xff]
      %v308 = vld [vmem:[%s5] sm:$0xff]
      %v309 = vld [vmem:[%s6] sm:$0xff]
      %v310 = vld [vmem:[%s7] sm:$0x1]
      %vm311 = vcmask 818176
      %312 = vst.msk [vmem:[#allocation2] sm:$0xff] %vm311, %v303
      %314 = vrot.lane.b32.xlu0 %v303, 127
      %v315 = vpop.permute.xlu0 %314
      %317 = vst.msk [vmem:[#allocation2 + $0x8] sm:$0xff] %vm311, %v315
      %318 = vrot.lane.b32.xlu0 %v303, 126
      %v319 = vpop.permute.xlu0 %318
      %321 = vst.msk [vmem:[#allocation2 + $0x10] sm:$0xff] %vm311, %v319
      %322 = vrot.lane.b32.xlu0 %v303, 120
      %v323 = vpop.permute.xlu0 %322
      %325 = vst.msk [vmem:[#allocation2 + $0x18] sm:$0xff] %vm311, %v323
      %326 = vrot.lane.b32.xlu0 %v303, 119
      %v327 = vpop.permute.xlu0 %326
      %329 = vst.msk [vmem:[#allocation2 + $0x20] sm:$0xff] %vm311, %v327
      %330 = vrot.lane.b32.xlu0 %v303, 118
      %v331 = vpop.permute.xlu0 %330
      %333 = vst.msk [vmem:[#allocation2 + $0x28] sm:$0xff] %vm311, %v331
      %334 = vrot.lane.b32.xlu0 %v303, 112
      %v335 = vpop.permute.xlu0 %334
      %337 = vst.msk [vmem:[#allocation2 + $0x30] sm:$0xff] %vm311, %v335
      %338 = vrot.lane.b32.xlu0 %v303, 111
      %v339 = vpop.permute.xlu0 %338
      %341 = vst.msk [vmem:[#allocation2 + $0x38] sm:$0xff] %vm311, %v339
      %342 = vrot.lane.b32.xlu0 %v303, 110
      %v343 = vpop.permute.xlu0 %342
      %345 = vst.msk [vmem:[#allocation2 + $0x40] sm:$0xff] %vm311, %v343
      %v346 = vld [vmem:[#allocation2] sm:$0xff]
      %v347 = vld [vmem:[#allocation2 + $0x8] sm:$0xff]
      %v348 = vld [vmem:[#allocation2 + $0x10] sm:$0xff]
      %v349 = vld [vmem:[#allocation2 + $0x18] sm:$0xff]
      %v350 = vld [vmem:[#allocation2 + $0x20] sm:$0xff]
      %v351 = vld [vmem:[#allocation2 + $0x28] sm:$0xff]
      %v352 = vld [vmem:[#allocation2 + $0x30] sm:$0xff]
      %v353 = vld [vmem:[#allocation2 + $0x38] sm:$0xff]
      %v354 = vld [vmem:[#allocation2 + $0x40] sm:$0xff]
      %vm355 = vcmask 588800
      %v357 = vsel %vm355, %v304, 0
      %359 = vmatprep.subr.mxu0 0.0
      %360 = vmatpush1.msra.mxu0 %v346
      %361 = vmatprep.subr.mxu0 0.0
      %362 = vmatpush1.msra.mxu0 %v347
      %363 = vmatprep.subr.mxu0 0.0
      %364 = vmatpush1.msra.mxu0 %v348
      %365 = vmatprep.subr.mxu0 0.0
      %366 = vmatpush1.msra.mxu0 %v349
      %367 = vmatprep.subr.mxu0 0.0
      %368 = vmatpush1.msra.mxu0 %v350
      %369 = vmatprep.subr.mxu0 0.0
      %370 = vmatpush1.msra.mxu0 %v351
      %371 = vmatprep.subr.mxu0 0.0
      %372 = vmatpush1.msra.mxu0 %v352
      %373 = vmatprep.subr.mxu0 0.0
      %374 = vmatpush1.msra.mxu0 %v353
      %375 = vmatprep.subr.mxu0 0.0
      %376 = vmatpush1.msra.mxu0 %v354
      %377 = vmatprep.subr.mxu0 0.0
      %378 = vmatpush1.msra.mxu0 0.0
      %379 = vmatprep.subr.mxu0 0.0
      %380 = vmatpush1.msra.mxu0 0.0
      %381 = vmatprep.subr.mxu0 0.0
      %382 = vmatpush1.msra.mxu0 0.0
      %383 = vmatprep.subr.mxu0 0.0
      %384 = vmatpush1.msra.mxu0 0.0
      %385 = vmatprep.subr.mxu0 0.0
      %386 = vmatpush1.msra.mxu0 0.0
      %387 = vmatprep.subr.mxu0 0.0
      %388 = vmatpush1.msra.mxu0 0.0
      %389 = vmatprep.subr.mxu0 0.0
      %390 = vmatpush1.msra.mxu0 0.0
      %391 = vmatprep.subr.mxu0 0.0
      %392 = vmatpush1.msra.mxu0 0.0
      %393 = vmatprep.subr.mxu0 0.0
      %394 = vmatpush1.msra.mxu0 0.0
      %395 = vmatprep.subr.mxu0 0.0
      %396 = vmatpush1.msra.mxu0 0.0
      %397 = vmatprep.subr.mxu0 0.0
      %398 = vmatpush1.msra.mxu0 0.0
      %399 = vmatprep.subr.mxu0 0.0
      %400 = vmatpush1.msra.mxu0 0.0
      %401 = vmatprep.subr.mxu0 0.0
      %402 = vmatpush1.msra.mxu0 0.0
      %403 = vmatprep.subr.mxu0 0.0
      %404 = vmatpush1.msra.mxu0 0.0
      %405 = vmatprep.subr.mxu0 0.0
      %406 = vmatpush1.msra.mxu0 0.0
      %407 = vmatprep.subr.mxu0 0.0
      %408 = vmatpush1.msra.mxu0 0.0
      %409 = vmatprep.subr.mxu0 0.0
      %410 = vmatpush1.msra.mxu0 0.0
      %411 = vmatprep.subr.mxu0 0.0
      %412 = vmatpush1.msra.mxu0 0.0
      %413 = vmatprep.subr.mxu0 0.0
      %414 = vmatpush1.msra.mxu0 0.0
      %415 = vmatprep.subr.mxu0 0.0
      %416 = vmatpush1.msra.mxu0 0.0
      %417 = vmatprep.subr.mxu0 0.0
      %418 = vmatpush1.msra.mxu0 0.0
      %419 = vmatprep.subr.mxu0 0.0
      %420 = vmatpush1.msra.mxu0 0.0
      %421 = vmatprep.subr.mxu0 0.0
      %422 = vmatpush1.msra.mxu0 0.0
      %423 = vmatprep.mubr.f32.mxu0 0.0
      %424 = vmatmul.mubr.f32.gmra.mrb[0].mxu0 %v357
      %v425 = vpop.f32.mrb[0].mxu0
      %v426 = vadd.f32 0.0, %v425
      %v427 = vpop.f32.mrb[0].mxu0
      %428 = vdwg.mxu0
      %430 = vset.pattern.permute.xlu0 0
      %431 = vperm.xlu0 %430, %v306
      %v432 = vpop.permute.xlu0 %431
      %v434 = vmul.f32 %v426, %v432
      %436 = vset.pattern.permute.xlu0 0
      %437 = vperm.xlu0 %436, %v307
      %v438 = vpop.permute.xlu0 %437
      %v440 = vadd.f32 %v434, %v438
      %v441 = vmax.f32 %v440, 0.0
      %v443 = vlaneseq
      %v444 = vshrl.u32 %v443, 7
      %v445 = vsub.s32 0, %v444
      %v446 = vrot.slane %v310, %v445
      %v448 = vmul.f32 %v441, %v446
      %vm449 = vcmask 670720
      %450 = vst.msk [vmem:[#allocation3] sm:$0xff] %vm449, %v448
      %452 = vrot.lane.b32.xlu0 %v448, 127
      %v453 = vpop.permute.xlu0 %452
      %455 = vst.msk [vmem:[#allocation3 + $0x8] sm:$0xff] %vm449, %v453
      %456 = vrot.lane.b32.xlu0 %v448, 126
      %v457 = vpop.permute.xlu0 %456
      %459 = vst.msk [vmem:[#allocation3 + $0x10] sm:$0xff] %vm449, %v457
      %460 = vrot.lane.b32.xlu0 %v448, 120
      %v461 = vpop.permute.xlu0 %460
      %463 = vst.msk [vmem:[#allocation3 + $0x18] sm:$0xff] %vm449, %v461
      %464 = vrot.lane.b32.xlu0 %v448, 119
      %v465 = vpop.permute.xlu0 %464
      %467 = vst.msk [vmem:[#allocation3 + $0x20] sm:$0xff] %vm449, %v465
      %468 = vrot.lane.b32.xlu0 %v448, 118
      %v469 = vpop.permute.xlu0 %468
      %471 = vst.msk [vmem:[#allocation3 + $0x28] sm:$0xff] %vm449, %v469
      %472 = vrot.lane.b32.xlu0 %v448, 112
      %v473 = vpop.permute.xlu0 %472
      %475 = vst.msk [vmem:[#allocation3 + $0x30] sm:$0xff] %vm449, %v473
      %476 = vrot.lane.b32.xlu0 %v448, 111
      %v477 = vpop.permute.xlu0 %476
      %479 = vst.msk [vmem:[#allocation3 + $0x38] sm:$0xff] %vm449, %v477
      %480 = vrot.lane.b32.xlu0 %v448, 110
      %v481 = vpop.permute.xlu0 %480
      %483 = vst.msk [vmem:[#allocation3 + $0x40] sm:$0xff] %vm449, %v481
      %v484 = vld [vmem:[#allocation3] sm:$0xff]
      %v485 = vld [vmem:[#allocation3 + $0x8] sm:$0xff]
      %v486 = vld [vmem:[#allocation3 + $0x10] sm:$0xff]
      %v487 = vld [vmem:[#allocation3 + $0x18] sm:$0xff]
      %v488 = vld [vmem:[#allocation3 + $0x20] sm:$0xff]
      %v489 = vld [vmem:[#allocation3 + $0x28] sm:$0xff]
      %v490 = vld [vmem:[#allocation3 + $0x30] sm:$0xff]
      %v491 = vld [vmem:[#allocation3 + $0x38] sm:$0xff]
      %v492 = vld [vmem:[#allocation3 + $0x40] sm:$0xff]
      %v494 = vsel %vm355, %v305, 0
      %496 = vmatprep.subr.mxu0 0.0
      %497 = vmatpush1.msra.mxu0 %v484
      %498 = vmatprep.subr.mxu0 0.0
      %499 = vmatpush1.msra.mxu0 %v485
      %500 = vmatprep.subr.mxu0 0.0
      %501 = vmatpush1.msra.mxu0 %v486
      %502 = vmatprep.subr.mxu0 0.0
      %503 = vmatpush1.msra.mxu0 %v487
      %504 = vmatprep.subr.mxu0 0.0
      %505 = vmatpush1.msra.mxu0 %v488
      %506 = vmatprep.subr.mxu0 0.0
      %507 = vmatpush1.msra.mxu0 %v489
      %508 = vmatprep.subr.mxu0 0.0
      %509 = vmatpush1.msra.mxu0 %v490
      %510 = vmatprep.subr.mxu0 0.0
      %511 = vmatpush1.msra.mxu0 %v491
      %512 = vmatprep.subr.mxu0 0.0
      %513 = vmatpush1.msra.mxu0 %v492
      %514 = vmatprep.subr.mxu0 0.0
      %515 = vmatpush1.msra.mxu0 0.0
      %516 = vmatprep.subr.mxu0 0.0
      %517 = vmatpush1.msra.mxu0 0.0
      %518 = vmatprep.subr.mxu0 0.0
      %519 = vmatpush1.msra.mxu0 0.0
      %520 = vmatprep.subr.mxu0 0.0
      %521 = vmatpush1.msra.mxu0 0.0
      %522 = vmatprep.subr.mxu0 0.0
      %523 = vmatpush1.msra.mxu0 0.0
      %524 = vmatprep.subr.mxu0 0.0
      %525 = vmatpush1.msra.mxu0 0.0
      %526 = vmatprep.subr.mxu0 0.0
      %527 = vmatpush1.msra.mxu0 0.0
      %528 = vmatprep.subr.mxu0 0.0
      %529 = vmatpush1.msra.mxu0 0.0
      %530 = vmatprep.subr.mxu0 0.0
      %531 = vmatpush1.msra.mxu0 0.0
      %532 = vmatprep.subr.mxu0 0.0
      %533 = vmatpush1.msra.mxu0 0.0
      %534 = vmatprep.subr.mxu0 0.0
      %535 = vmatpush1.msra.mxu0 0.0
      %536 = vmatprep.subr.mxu0 0.0
      %537 = vmatpush1.msra.mxu0 0.0
      %538 = vmatprep.subr.mxu0 0.0
      %539 = vmatpush1.msra.mxu0 0.0
      %540 = vmatprep.subr.mxu0 0.0
      %541 = vmatpush1.msra.mxu0 0.0
      %542 = vmatprep.subr.mxu0 0.0
      %543 = vmatpush1.msra.mxu0 0.0
      %544 = vmatprep.subr.mxu0 0.0
      %545 = vmatpush1.msra.mxu0 0.0
      %546 = vmatprep.subr.mxu0 0.0
      %547 = vmatpush1.msra.mxu0 0.0
      %548 = vmatprep.subr.mxu0 0.0
      %549 = vmatpush1.msra.mxu0 0.0
      %550 = vmatprep.subr.mxu0 0.0
      %551 = vmatpush1.msra.mxu0 0.0
      %552 = vmatprep.subr.mxu0 0.0
      %553 = vmatpush1.msra.mxu0 0.0
      %554 = vmatprep.subr.mxu0 0.0
      %555 = vmatpush1.msra.mxu0 0.0
      %556 = vmatprep.subr.mxu0 0.0
      %557 = vmatpush1.msra.mxu0 0.0
      %558 = vmatprep.subr.mxu0 0.0
      %559 = vmatpush1.msra.mxu0 0.0
      %560 = vmatprep.mubr.f32.mxu0 0.0
      %561 = vmatmul.mubr.f32.gmra.mrb[0].mxu0 %v494
      %v562 = vpop.f32.mrb[0].mxu0
      %v563 = vadd.f32 0.0, %v562
      %v564 = vpop.f32.mrb[0].mxu0
      %565 = vdwg.mxu0
      %567 = vset.pattern.permute.xlu0 0
      %568 = vperm.xlu0 %567, %v308
      %v569 = vpop.permute.xlu0 %568
      %v571 = vmul.f32 %v563, %v569
      %573 = vset.pattern.permute.xlu0 0
      %574 = vperm.xlu0 %573, %v309
      %v575 = vpop.permute.xlu0 %574
      %v577 = vadd.f32 %v571, %v575
      %v578 = vmax.f32 %v577, 0.0
      %579 = vrot.lane.b32.xlu0 %v446, 119
      %v580 = vpop.permute.xlu0 %579
      %v582 = vmul.f32 %v578, %v580
      %v583 = vmax.f32 %v303, 0.0
      %585 = vrot.lane.b32.xlu0 %v582, 127
      %v586 = vpop.permute.xlu0 %585
      %v588 = vmax.f32 %v582, %v586
      %590 = vrot.lane.b32.xlu0 %v583, 127
      %v591 = vpop.permute.xlu0 %590
      %v593 = vmax.f32 %v583, %v591
      %594 = vrot.lane.b32.xlu0 %v582, 126
      %v595 = vpop.permute.xlu0 %594
      %v597 = vmax.f32 %v588, %v595
      %598 = vrot.lane.b32.xlu0 %v583, 126
      %v599 = vpop.permute.xlu0 %598
      %v601 = vmax.f32 %v593, %v599
      %602 = vrot.lane.b32.xlu0 %v582, 120
      %v603 = vpop.permute.xlu0 %602
      %v605 = vmax.f32 %v597, %v603
      %606 = vrot.lane.b32.xlu0 %v583, 120
      %v607 = vpop.permute.xlu0 %606
      %v609 = vmax.f32 %v601, %v607
      %610 = vrot.lane.b32.xlu0 %v582, 119
      %v611 = vpop.permute.xlu0 %610
      %v613 = vmax.f32 %v605, %v611
      %614 = vrot.lane.b32.xlu0 %v583, 119
      %v615 = vpop.permute.xlu0 %614
      %v617 = vmax.f32 %v609, %v615
      %618 = vrot.lane.b32.xlu0 %v582, 118
      %v619 = vpop.permute.xlu0 %618
      %v621 = vmax.f32 %v613, %v619
      %622 = vrot.lane.b32.xlu0 %v583, 118
      %v623 = vpop.permute.xlu0 %622
      %v625 = vmax.f32 %v617, %v623
      %626 = vrot.lane.b32.xlu0 %v582, 112
      %v627 = vpop.permute.xlu0 %626
      %v629 = vmax.f32 %v621, %v627
      %630 = vrot.lane.b32.xlu0 %v583, 112
      %v631 = vpop.permute.xlu0 %630
      %v633 = vmax.f32 %v625, %v631
      %634 = vrot.lane.b32.xlu0 %v582, 111
      %v635 = vpop.permute.xlu0 %634
      %v637 = vmax.f32 %v629, %v635
      %638 = vrot.lane.b32.xlu0 %v583, 111
      %v639 = vpop.permute.xlu0 %638
      %v641 = vmax.f32 %v633, %v639
      %642 = vrot.lane.b32.xlu0 %v582, 110
      %v643 = vpop.permute.xlu0 %642
      %v645 = vmax.f32 %v637, %v643
      %646 = vrot.lane.b32.xlu0 %v583, 110
      %v647 = vpop.permute.xlu0 %646
      %v649 = vmax.f32 %v641, %v647
      %vm650 = vcmask 523264
      %651 = vst.msk [vmem:[%s302] sm:$0xff] %vm650, %v645
      %653 = vrot.lane.b32.xlu0 %v649, 110
      %v654 = vpop.permute.xlu0 %653
      %656 = vst.msk [vmem:[%s302 + $0x8] sm:$0xff] %vm650, %v654
      %p657 = scmp.lt.s32.totalorder %s19, 1
      %s658 = scalar_select %p657, %s19, 1
      %s659 = smul.addr %s658, 2
      %s660 = smul.addr %s659, 8
      %s661 = scalar_lea.vmem %s8, %s660
      // Predicated region
      $region53: #{rescnn_forward.6} parent=51 // pred_check
        %p662 = pneg %p210
      $region54: #{rescnn_forward.6} parent=51 // pred_check_branch
        %664 = sbr.rel (%p662) target = $region56
      $region55: #{rescnn_forward.6} parent=51 // pred_region
        _
      $region56: #{rescnn_forward.6} parent=51 // pred_fallthru
        _
    $region52: #{rescnn_forward.6} parent=5 // pred_fallthru
      _
    %p665 = scmp.le.s32.totalorder 2, %s14
    // Predicated region
    $region57: #{rescnn_forward.6} parent=5 // pred_check
      %p666 = pneg %p665
    $region58: #{rescnn_forward.6} parent=5 // pred_check_branch
      %668 = sbr.rel (%p666) target = $region60
    $region59: #{rescnn_forward.6} parent=5 // pred_region
      %s669 = ssub.s32 %s14, 2
      // Predicated region
      $region61: #{rescnn_forward.6} parent=59 // pred_check
        %p670 = pneg %p216
      $region62: #{rescnn_forward.6} parent=59 // pred_check_branch
        %672 = sbr.rel (%p670) target = $region64
      $region63: #{rescnn_forward.6} parent=59 // pred_region
        %p673 = scmp.lt.s32.totalorder %s20, 1
        %s674 = scalar_select %p673, %s20, 1
        %s675 = smul.addr %s674, 2
        %s676 = smul.addr %s675, 8
        %s677 = scalar_lea.vmem %s8, %s676
      $region64: #{rescnn_forward.6} parent=59 // pred_fallthru
        _
    $region60: #{rescnn_forward.6} parent=5 // pred_fallthru
      _
  $region6: #{rescnn_forward.6} parent=0 // loop_footer
    %s18 = sadd.s32 1, %s14
  $region7: #{rescnn_forward.6} parent=0 // loop_footer_branch
    %13 = sbr.rel target = $region3
  $region8: #{rescnn_forward.6} parent=0 // loop_exit
    _

// kernel: rescnn_forward.7
$region0: #{rescnn_forward.7}
  #allocation0 [shape = 'u32[]', space=smem, size = 0x4, offset = 0x4, fixed_abs, tag = 'smem constant byte address 0x4 - core index']
  #allocation1 [shape = 'u32[144,128]{1,0:T(1,128)}', space=vmem, size = 0x12000, scoped, tag = 'internal scratch']
  #allocation2 [shape = 'f32[144,52]{1,0:T(8,128)}', space=vmem, size = 0x12000, scoped, tag = 'scratch operand']
  #allocation3 [shape = 'f32[144,42]{1,0:T(8,128)}', space=vmem, size = 0x12000, scoped, tag = 'scratch operand']
  #allocation4 [shape = 'f32[288,34]{1,0:T(8,128)}', space=vmem, size = 0x24000, scoped, tag = 'scratch operand']
  #allocation5 [shape = 'f32[288,26]{1,0:T(8,128)}', space=vmem, size = 0x24000, scoped, tag = 'scratch operand']
  #allocation6 [shape = 'f32[32,42]{1,0:T(8,128)}', space=vmem, size = 0x4000, scoped, tag = 'scratch operand']
  %s0 = inlined_call_operand.vmem [shape: f32[16,62], index: 0, kind: input, shape index: {}]
  %s1 = inlined_call_operand.vmem [shape: f32[16,144], index: 1, kind: input, shape index: {}]
  %s2 = inlined_call_operand.vmem [shape: f32[16,144], index: 2, kind: input, shape index: {}]
  %s3 = inlined_call_operand.vmem [shape: f32[16,1], index: 3, kind: input, shape index: {}]
  %s4 = inlined_call_operand.vmem [shape: f32[16,1], index: 4, kind: input, shape index: {}]
  %s5 = inlined_call_operand.vmem [shape: f32[16,1], index: 5, kind: input, shape index: {}]
  %s6 = inlined_call_operand.vmem [shape: f32[16,1], index: 6, kind: input, shape index: {}]
  %s7 = inlined_call_operand.vmem [shape: f32[1,52], index: 7, kind: input, shape index: {}]
  %s8 = inlined_call_operand.vmem [shape: f32[32,288], index: 8, kind: input, shape index: {}]
  %s9 = inlined_call_operand.vmem [shape: f32[32,288], index: 9, kind: input, shape index: {}]
  %s10 = inlined_call_operand.vmem [shape: f32[32,1], index: 10, kind: input, shape index: {}]
  %s11 = inlined_call_operand.vmem [shape: f32[32,1], index: 11, kind: input, shape index: {}]
  %s12 = inlined_call_operand.vmem [shape: f32[32,1], index: 12, kind: input, shape index: {}]
  %s13 = inlined_call_operand.vmem [shape: f32[32,1], index: 13, kind: input, shape index: {}]
  %s14 = inlined_call_operand.vmem [shape: f32[1,34], index: 14, kind: input, shape index: {}]
  %s15 = inlined_call_operand.vmem [shape: f32[32,42], index: 15, kind: input, shape index: {}]
  %s16 = inlined_call_operand.vmem [shape: f32[18,2], index: 16, kind: input, shape index: {}]
  %s17 = inlined_call_operand.vmem [shape: f32[64,32], index: 17, kind: input, shape index: {}]
  %s18 = inlined_call_operand.vmem [shape: f32[64,32], index: 18, kind: input, shape index: {}]
  %s19 = inlined_call_operand.vmem [shape: f32[64,1], index: 19, kind: input, shape index: {}]
  %s20 = inlined_call_operand.vmem [shape: f32[64,64], index: 20, kind: input, shape index: {}]
  %s21 = inlined_call_operand.vmem [shape: f32[64,1], index: 21, kind: input, shape index: {}]
  %s22 = inlined_call_operand.vmem [shape: f32[10,64], index: 22, kind: input, shape index: {}]
  %s23 = inlined_call_operand.vmem [shape: f32[10,1], index: 23, kind: input, shape index: {}]
  %s24 = inlined_call_operand.vmem [shape: f32[10,2], index: 24, kind: output, shape index: {}]
  %s25 = sld [smem:[#allocation0]]
  $region106: #{rescnn_forward.7} parent=0
    _
  %s27 = ssub.s32 1, %s25
  %s28 = scalar_select 0, %s27, %s25
  // Predicated region
  $region2: #{rescnn_forward.7} parent=0 // pred_check
    _
  $region3: #{rescnn_forward.7} parent=0 // pred_check_branch
    %30 = sbr.rel (0) target = $region5
  $region4: #{rescnn_forward.7} parent=0 // pred_region
    _
  $region5: #{rescnn_forward.7} parent=0 // pred_fallthru
    _
  // Predicated region
  $region6: #{rescnn_forward.7} parent=0 // pred_check
    _
  $region7: #{rescnn_forward.7} parent=0 // pred_check_branch
    %32 = sbr.rel (0) target = $region9
  $region8: #{rescnn_forward.7} parent=0 // pred_region
    _
  $region9: #{rescnn_forward.7} parent=0 // pred_fallthru
    _
  // Predicated region
  $region10: #{rescnn_forward.7} parent=0 // pred_check
    _
  $region11: #{rescnn_forward.7} parent=0 // pred_check_branch
    %34 = sbr.rel (0) target = $region13
  $region12: #{rescnn_forward.7} parent=0 // pred_region
    _
  $region13: #{rescnn_forward.7} parent=0 // pred_fallthru
    _
  // Predicated region
  $region14: #{rescnn_forward.7} parent=0 // pred_check
    _
  $region15: #{rescnn_forward.7} parent=0 // pred_check_branch
    %36 = sbr.rel (0) target = $region17
  $region16: #{rescnn_forward.7} parent=0 // pred_region
    _
  $region17: #{rescnn_forward.7} parent=0 // pred_fallthru
    _
  // Predicated region
  $region18: #{rescnn_forward.7} parent=0 // pred_check
    _
  $region19: #{rescnn_forward.7} parent=0 // pred_check_branch
    %38 = sbr.rel (0) target = $region21
  $region20: #{rescnn_forward.7} parent=0 // pred_region
    _
  $region21: #{rescnn_forward.7} parent=0 // pred_fallthru
    _
  // Predicated region
  $region22: #{rescnn_forward.7} parent=0 // pred_check
    _
  $region23: #{rescnn_forward.7} parent=0 // pred_check_branch
    %40 = sbr.rel (0) target = $region25
  $region24: #{rescnn_forward.7} parent=0 // pred_region
    _
  $region25: #{rescnn_forward.7} parent=0 // pred_fallthru
    _
  // Predicated region
  $region26: #{rescnn_forward.7} parent=0 // pred_check
    _
  $region27: #{rescnn_forward.7} parent=0 // pred_check_branch
    %42 = sbr.rel (0) target = $region29
  $region28: #{rescnn_forward.7} parent=0 // pred_region
    _
  $region29: #{rescnn_forward.7} parent=0 // pred_fallthru
    _
  // Predicated region
  $region30: #{rescnn_forward.7} parent=0 // pred_check
    _
  $region31: #{rescnn_forward.7} parent=0 // pred_check_branch
    %44 = sbr.rel (0) target = $region33
  $region32: #{rescnn_forward.7} parent=0 // pred_region
    _
  $region33: #{rescnn_forward.7} parent=0 // pred_fallthru
    _
  // Predicated region
  $region34: #{rescnn_forward.7} parent=0 // pred_check
    _
  $region35: #{rescnn_forward.7} parent=0 // pred_check_branch
    %46 = sbr.rel (0) target = $region37
  $region36: #{rescnn_forward.7} parent=0 // pred_region
    _
  $region37: #{rescnn_forward.7} parent=0 // pred_fallthru
    _
  // Predicated region
  $region38: #{rescnn_forward.7} parent=0 // pred_check
    _
  $region39: #{rescnn_forward.7} parent=0 // pred_check_branch
    %48 = sbr.rel (0) target = $region41
  $region40: #{rescnn_forward.7} parent=0 // pred_region
    _
  $region41: #{rescnn_forward.7} parent=0 // pred_fallthru
    _
  // Predicated region
  $region42: #{rescnn_forward.7} parent=0 // pred_check
    _
  $region43: #{rescnn_forward.7} parent=0 // pred_check_branch
    %50 = sbr.rel (0) target = $region45
  $region44: #{rescnn_forward.7} parent=0 // pred_region
    _
  $region45: #{rescnn_forward.7} parent=0 // pred_fallthru
    _
  // Predicated region
  $region46: #{rescnn_forward.7} parent=0 // pred_check
    _
  $region47: #{rescnn_forward.7} parent=0 // pred_check_branch
    %52 = sbr.rel (0) target = $region49
  $region48: #{rescnn_forward.7} parent=0 // pred_region
    _
  $region49: #{rescnn_forward.7} parent=0 // pred_fallthru
    _
  // Predicated region
  $region50: #{rescnn_forward.7} parent=0 // pred_check
    _
  $region51: #{rescnn_forward.7} parent=0 // pred_check_branch
    %54 = sbr.rel (0) target = $region53
  $region52: #{rescnn_forward.7} parent=0 // pred_region
    _
  $region53: #{rescnn_forward.7} parent=0 // pred_fallthru
    _
  // Predicated region
  $region54: #{rescnn_forward.7} parent=0 // pred_check
    _
  $region55: #{rescnn_forward.7} parent=0 // pred_check_branch
    %56 = sbr.rel (0) target = $region57
  $region56: #{rescnn_forward.7} parent=0 // pred_region
    _
  $region57: #{rescnn_forward.7} parent=0 // pred_fallthru
    _
  // Predicated region
  $region58: #{rescnn_forward.7} parent=0 // pred_check
    _
  $region59: #{rescnn_forward.7} parent=0 // pred_check_branch
    %58 = sbr.rel (0) target = $region61
  $region60: #{rescnn_forward.7} parent=0 // pred_region
    _
  $region61: #{rescnn_forward.7} parent=0 // pred_fallthru
    _
  // Predicated region
  $region62: #{rescnn_forward.7} parent=0 // pred_check
    _
  $region63: #{rescnn_forward.7} parent=0 // pred_check_branch
    %60 = sbr.rel (0) target = $region65
  $region64: #{rescnn_forward.7} parent=0 // pred_region
    _
  $region65: #{rescnn_forward.7} parent=0 // pred_fallthru
    _
  // Predicated region
  $region66: #{rescnn_forward.7} parent=0 // pred_check
    _
  $region67: #{rescnn_forward.7} parent=0 // pred_check_branch
    %62 = sbr.rel (0) target = $region69
  $region68: #{rescnn_forward.7} parent=0 // pred_region
    _
  $region69: #{rescnn_forward.7} parent=0 // pred_fallthru
    _
  // Predicated region
  $region70: #{rescnn_forward.7} parent=0 // pred_check
    _
  $region71: #{rescnn_forward.7} parent=0 // pred_check_branch
    %64 = sbr.rel (0) target = $region73
  $region72: #{rescnn_forward.7} parent=0 // pred_region
    _
  $region73: #{rescnn_forward.7} parent=0 // pred_fallthru
    _
  // Predicated region
  $region74: #{rescnn_forward.7} parent=0 // pred_check
    _
  $region75: #{rescnn_forward.7} parent=0 // pred_check_branch
    %66 = sbr.rel (0) target = $region77
  $region76: #{rescnn_forward.7} parent=0 // pred_region
    _
  $region77: #{rescnn_forward.7} parent=0 // pred_fallthru
    _
  // Predicated region
  $region78: #{rescnn_forward.7} parent=0 // pred_check
    _
  $region79: #{rescnn_forward.7} parent=0 // pred_check_branch
    %68 = sbr.rel (0) target = $region81
  $region80: #{rescnn_forward.7} parent=0 // pred_region
    _
  $region81: #{rescnn_forward.7} parent=0 // pred_fallthru
    _
  // Predicated region
  $region82: #{rescnn_forward.7} parent=0 // pred_check
    _
  $region83: #{rescnn_forward.7} parent=0 // pred_check_branch
    %70 = sbr.rel (0) target = $region85
  $region84: #{rescnn_forward.7} parent=0 // pred_region
    _
  $region85: #{rescnn_forward.7} parent=0 // pred_fallthru
    _
  // Predicated region
  $region86: #{rescnn_forward.7} parent=0 // pred_check
    _
  $region87: #{rescnn_forward.7} parent=0 // pred_check_branch
    %72 = sbr.rel (0) target = $region89
  $region88: #{rescnn_forward.7} parent=0 // pred_region
    _
  $region89: #{rescnn_forward.7} parent=0 // pred_fallthru
    _
  // Predicated region
  $region90: #{rescnn_forward.7} parent=0 // pred_check
    _
  $region91: #{rescnn_forward.7} parent=0 // pred_check_branch
    %74 = sbr.rel (0) target = $region93
  $region92: #{rescnn_forward.7} parent=0 // pred_region
    _
  $region93: #{rescnn_forward.7} parent=0 // pred_fallthru
    _
  // Predicated region
  $region94: #{rescnn_forward.7} parent=0 // pred_check
    _
  $region95: #{rescnn_forward.7} parent=0 // pred_check_branch
    %76 = sbr.rel (0) target = $region97
  $region96: #{rescnn_forward.7} parent=0 // pred_region
    _
  $region97: #{rescnn_forward.7} parent=0 // pred_fallthru
    _
  %v77 = vld [vmem:[%s0] sm:$0xff]
  %v78 = vld [vmem:[%s0 + $0x8] sm:$0xff]
  %v79 = vld [vmem:[%s1] sm:$0xff]
  %v80 = vld [vmem:[%s1 + $0x8] sm:$0xff]
  %v81 = vld [vmem:[%s1 + $0x10] sm:$0xff]
  %v82 = vld [vmem:[%s1 + $0x18] sm:$0xff]
  %v83 = vld [vmem:[%s2] sm:$0xff]
  %v84 = vld [vmem:[%s2 + $0x8] sm:$0xff]
  %v85 = vld [vmem:[%s2 + $0x10] sm:$0xff]
  %v86 = vld [vmem:[%s2 + $0x18] sm:$0xff]
  %v87 = vld [vmem:[%s3] sm:$0xff]
  %v88 = vld [vmem:[%s3 + $0x8] sm:$0xff]
  %v89 = vld [vmem:[%s4] sm:$0xff]
  %v90 = vld [vmem:[%s4 + $0x8] sm:$0xff]
  %v91 = vld [vmem:[%s5] sm:$0xff]
  %v92 = vld [vmem:[%s5 + $0x8] sm:$0xff]
  %v93 = vld [vmem:[%s6] sm:$0xff]
  %v94 = vld [vmem:[%s6 + $0x8] sm:$0xff]
  %v95 = vld [vmem:[%s7] sm:$0x1]
  %vm96 = vcmask 424960
  %97 = vst.msk [vmem:[#allocation2] sm:$0xff] %vm96, %v77
  %98 = vst.msk [vmem:[#allocation2 + $0x8] sm:$0xff] %vm96, %v78
  %101 = vrot.lane.b32.xlu0 %v77, 127
  %v102 = vpop.permute.xlu0 %101
  %103 = vrot.lane.b32.xlu0 %v78, 127
  %v104 = vpop.permute.xlu0 %103
  %107 = vst.msk [vmem:[#allocation2 + $0x10] sm:$0xff] %vm96, %v102
  %108 = vst.msk [vmem:[#allocation2 + $0x18] sm:$0xff] %vm96, %v104
  %109 = vrot.lane.b32.xlu0 %v77, 126
  %v110 = vpop.permute.xlu0 %109
  %111 = vrot.lane.b32.xlu0 %v78, 126
  %v112 = vpop.permute.xlu0 %111
  %115 = vst.msk [vmem:[#allocation2 + $0x20] sm:$0xff] %vm96, %v110
  %116 = vst.msk [vmem:[#allocation2 + $0x28] sm:$0xff] %vm96, %v112
  %117 = vrot.lane.b32.xlu0 %v77, 124
  %v118 = vpop.permute.xlu0 %117
  %119 = vrot.lane.b32.xlu0 %v78, 124
  %v120 = vpop.permute.xlu0 %119
  %123 = vst.msk [vmem:[#allocation2 + $0x30] sm:$0xff] %vm96, %v118
  %124 = vst.msk [vmem:[#allocation2 + $0x38] sm:$0xff] %vm96, %v120
  %125 = vrot.lane.b32.xlu0 %v77, 123
  %v126 = vpop.permute.xlu0 %125
  %127 = vrot.lane.b32.xlu0 %v78, 123
  %v128 = vpop.permute.xlu0 %127
  %131 = vst.msk [vmem:[#allocation2 + $0x40] sm:$0xff] %vm96, %v126
  %132 = vst.msk [vmem:[#allocation2 + $0x48] sm:$0xff] %vm96, %v128
  %133 = vrot.lane.b32.xlu0 %v77, 122
  %v134 = vpop.permute.xlu0 %133
  %135 = vrot.lane.b32.xlu0 %v78, 122
  %v136 = vpop.permute.xlu0 %135
  %139 = vst.msk [vmem:[#allocation2 + $0x50] sm:$0xff] %vm96, %v134
  %140 = vst.msk [vmem:[#allocation2 + $0x58] sm:$0xff] %vm96, %v136
  %141 = vrot.lane.b32.xlu0 %v77, 120
  %v142 = vpop.permute.xlu0 %141
  %143 = vrot.lane.b32.xlu0 %v78, 120
  %v144 = vpop.permute.xlu0 %143
  %147 = vst.msk [vmem:[#allocation2 + $0x60] sm:$0xff] %vm96, %v142
  %148 = vst.msk [vmem:[#allocation2 + $0x68] sm:$0xff] %vm96, %v144
  %149 = vrot.lane.b32.xlu0 %v77, 119
  %v150 = vpop.permute.xlu0 %149
  %151 = vrot.lane.b32.xlu0 %v78, 119
  %v152 = vpop.permute.xlu0 %151
  %155 = vst.msk [vmem:[#allocation2 + $0x70] sm:$0xff] %vm96, %v150
  %156 = vst.msk [vmem:[#allocation2 + $0x78] sm:$0xff] %vm96, %v152
  %157 = vrot.lane.b32.xlu0 %v77, 118
  %v158 = vpop.permute.xlu0 %157
  %159 = vrot.lane.b32.xlu0 %v78, 118
  %v160 = vpop.permute.xlu0 %159
  %163 = vst.msk [vmem:[#allocation2 + $0x80] sm:$0xff] %vm96, %v158
  %164 = vst.msk [vmem:[#allocation2 + $0x88] sm:$0xff] %vm96, %v160
  %v165 = vld [vmem:[#allocation2] sm:$0xff]
  %v166 = vld [vmem:[#allocation2 + $0x8] sm:$0xff]
  %v167 = vld [vmem:[#allocation2 + $0x10] sm:$0xff]
  %v168 = vld [vmem:[#allocation2 + $0x18] sm:$0xff]
  %v169 = vld [vmem:[#allocation2 + $0x20] sm:$0xff]
  %v170 = vld [vmem:[#allocation2 + $0x28] sm:$0xff]
  %v171 = vld [vmem:[#allocation2 + $0x30] sm:$0xff]
  %v172 = vld [vmem:[#allocation2 + $0x38] sm:$0xff]
  %v173 = vld [vmem:[#allocation2 + $0x40] sm:$0xff]
  %v174 = vld [vmem:[#allocation2 + $0x48] sm:$0xff]
  %v175 = vld [vmem:[#allocation2 + $0x50] sm:$0xff]
  %v176 = vld [vmem:[#allocation2 + $0x58] sm:$0xff]
  %v177 = vld [vmem:[#allocation2 + $0x60] sm:$0xff]
  %v178 = vld [vmem:[#allocation2 + $0x68] sm:$0xff]
  %v179 = vld [vmem:[#allocation2 + $0x70] sm:$0xff]
  %v180 = vld [vmem:[#allocation2 + $0x78] sm:$0xff]
  %v181 = vld [vmem:[#allocation2 + $0x80] sm:$0xff]
  %v182 = vld [vmem:[#allocation2 + $0x88] sm:$0xff]
  %vm183 = vcmask 130048
  %v185 = vsel %vm183, %v80, 0
  %v188 = vsel %vm183, %v82, 0
  %190 = vmatprep.subr.mxu0 0.0
  %191 = vmatpush1.msra.mxu0 %v165
  %192 = vmatprep.subr.mxu0 0.0
  %193 = vmatpush1.msra.mxu0 %v166
  %194 = vmatprep.subr.mxu0 0.0
  %195 = vmatpush1.msra.mxu0 %v167
  %196 = vmatprep.subr.mxu0 0.0
  %197 = vmatpush1.msra.mxu0 %v168
  %198 = vmatprep.subr.mxu0 0.0
  %199 = vmatpush1.msra.mxu0 %v169
  %200 = vmatprep.subr.mxu0 0.0
  %201 = vmatpush1.msra.mxu0 %v170
  %202 = vmatprep.subr.mxu0 0.0
  %203 = vmatpush1.msra.mxu0 %v171
  %204 = vmatprep.subr.mxu0 0.0
  %205 = vmatpush1.msra.mxu0 %v172
  %206 = vmatprep.subr.mxu0 0.0
  %207 = vmatpush1.msra.mxu0 %v173
  %208 = vmatprep.subr.mxu0 0.0
  %209 = vmatpush1.msra.mxu0 %v174
  %210 = vmatprep.subr.mxu0 0.0
  %211 = vmatpush1.msra.mxu0 %v175
  %212 = vmatprep.subr.mxu0 0.0
  %213 = vmatpush1.msra.mxu0 %v176
  %214 = vmatprep.subr.mxu0 0.0
  %215 = vmatpush1.msra.mxu0 %v177
  %216 = vmatprep.subr.mxu0 0.0
  %217 = vmatpush1.msra.mxu0 %v178
  %218 = vmatprep.subr.mxu0 0.0
  %219 = vmatpush1.msra.mxu0 %v179
  %220 = vmatprep.subr.mxu0 0.0
  %221 = vmatpush1.msra.mxu0 %v180
  %222 = vmatprep.subr.mxu0 0.0
  %223 = vmatpush1.msra.mxu0 %v181
  %224 = vmatprep.subr.mxu0 0.0
  %225 = vmatpush1.msra.mxu0 %v182
  %226 = vmatprep.subr.mxu0 0.0
  %227 = vmatpush1.msra.mxu0 0.0
  %228 = vmatprep.subr.mxu0 0.0
  %229 = vmatpush1.msra.mxu0 0.0
  %230 = vmatprep.subr.mxu0 0.0
  %231 = vmatpush1.msra.mxu0 0.0
  %232 = vmatprep.subr.mxu0 0.0
  %233 = vmatpush1.msra.mxu0 0.0
  %234 = vmatprep.subr.mxu0 0.0
  %235 = vmatpush1.msra.mxu0 0.0
  %236 = vmatprep.subr.mxu0 0.0
  %237 = vmatpush1.msra.mxu0 0.0
  %238 = vmatprep.subr.mxu0 0.0
  %239 = vmatpush1.msra.mxu0 0.0
  %240 = vmatprep.subr.mxu0 0.0
  %241 = vmatpush1.msra.mxu0 0.0
  %242 = vmatprep.subr.mxu0 0.0
  %243 = vmatpush1.msra.mxu0 0.0
  %244 = vmatprep.subr.mxu0 0.0
  %245 = vmatpush1.msra.mxu0 0.0
  %246 = vmatprep.subr.mxu0 0.0
  %247 = vmatpush1.msra.mxu0 0.0
  %248 = vmatprep.subr.mxu0 0.0
  %249 = vmatpush1.msra.mxu0 0.0
  %250 = vmatprep.subr.mxu0 0.0
  %251 = vmatpush1.msra.mxu0 0.0
  %252 = vmatprep.subr.mxu0 0.0
  %253 = vmatpush1.msra.mxu0 0.0
  %254 = vmatprep.mubr.f32.mxu0 %v185
  %255 = vmatmul.mubr.f32.gmra.mrb[0].mxu0 %v79
  %v256 = vpop.f32.mrb[0].mxu0
  %v257 = vadd.f32 0.0, %v256
  %v258 = vpop.f32.mrb[0].mxu0
  %259 = vmatprep.mubr.f32.mxu0 %v188
  %260 = vmatmul.mubr.f32.gmra.mrb[0].mxu0 %v81
  %v261 = vpop.f32.mrb[0].mxu0
  %v262 = vadd.f32 0.0, %v261
  %v263 = vpop.f32.mrb[0].mxu0
  %264 = vdwg.mxu0
  %266 = vset.pattern.permute.xlu0 0
  %267 = vperm.xlu0 %266, %v87
  %v268 = vpop.permute.xlu0 %267
  %271 = vset.pattern.permute.xlu0 0
  %272 = vperm.xlu0 %271, %v88
  %v273 = vpop.permute.xlu0 %272
  %v275 = vmul.f32 %v257, %v268
  %v276 = vmul.f32 %v262, %v273
  %278 = vset.pattern.permute.xlu0 0
  %279 = vperm.xlu0 %278, %v89
  %v280 = vpop.permute.xlu0 %279
  %283 = vset.pattern.permute.xlu0 0
  %284 = vperm.xlu0 %283, %v90
  %v285 = vpop.permute.xlu0 %284
  %v287 = vadd.f32 %v275, %v280
  %v288 = vadd.f32 %v276, %v285
  %v289 = vmax.f32 %v287, 0.0
  %v290 = vmax.f32 %v288, 0.0
  %v292 = vlaneseq
  %v293 = vshrl.u32 %v292, 7
  %v294 = vsub.s32 0, %v293
  %v295 = vrot.slane %v95, %v294
  %v297 = vmul.f32 %v289, %v295
  %v298 = vmul.f32 %v290, %v295
  %vm299 = vcmask 343040
  %300 = vst.msk [vmem:[#allocation3] sm:$0xff] %vm299, %v297
  %301 = vst.msk [vmem:[#allocation3 + $0x8] sm:$0xff] %vm299, %v298
  %304 = vrot.lane.b32.xlu0 %v297, 127
  %v305 = vpop.permute.xlu0 %304
  %306 = vrot.lane.b32.xlu0 %v298, 127
  %v307 = vpop.permute.xlu0 %306
  %310 = vst.msk [vmem:[#allocation3 + $0x10] sm:$0xff] %vm299, %v305
  %311 = vst.msk [vmem:[#allocation3 + $0x18] sm:$0xff] %vm299, %v307
  %312 = vrot.lane.b32.xlu0 %v297, 126
  %v313 = vpop.permute.xlu0 %312
  %314 = vrot.lane.b32.xlu0 %v298, 126
  %v315 = vpop.permute.xlu0 %314
  %318 = vst.msk [vmem:[#allocation3 + $0x20] sm:$0xff] %vm299, %v313
  %319 = vst.msk [vmem:[#allocation3 + $0x28] sm:$0xff] %vm299, %v315
  %320 = vrot.lane.b32.xlu0 %v297, 124
  %v321 = vpop.permute.xlu0 %320
  %322 = vrot.lane.b32.xlu0 %v298, 124
  %v323 = vpop.permute.xlu0 %322
  %326 = vst.msk [vmem:[#allocation3 + $0x30] sm:$0xff] %vm299, %v321
  %327 = vst.msk [vmem:[#allocation3 + $0x38] sm:$0xff] %vm299, %v323
  %328 = vrot.lane.b32.xlu0 %v297, 123
  %v329 = vpop.permute.xlu0 %328
  %330 = vrot.lane.b32.xlu0 %v298, 123
  %v331 = vpop.permute.xlu0 %330
  %334 = vst.msk [vmem:[#allocation3 + $0x40] sm:$0xff] %vm299, %v329
  %335 = vst.msk [vmem:[#allocation3 + $0x48] sm:$0xff] %vm299, %v331
  %336 = vrot.lane.b32.xlu0 %v297, 122
  %v337 = vpop.permute.xlu0 %336
  %338 = vrot.lane.b32.xlu0 %v298, 122
  %v339 = vpop.permute.xlu0 %338
  %342 = vst.msk [vmem:[#allocation3 + $0x50] sm:$0xff] %vm299, %v337
  %343 = vst.msk [vmem:[#allocation3 + $0x58] sm:$0xff] %vm299, %v339
  %344 = vrot.lane.b32.xlu0 %v297, 120
  %v345 = vpop.permute.xlu0 %344
  %346 = vrot.lane.b32.xlu0 %v298, 120
  %v347 = vpop.permute.xlu0 %346
  %350 = vst.msk [vmem:[#allocation3 + $0x60] sm:$0xff] %vm299, %v345
  %351 = vst.msk [vmem:[#allocation3 + $0x68] sm:$0xff] %vm299, %v347
  %352 = vrot.lane.b32.xlu0 %v297, 119
  %v353 = vpop.permute.xlu0 %352
  %354 = vrot.lane.b32.xlu0 %v298, 119
  %v355 = vpop.permute.xlu0 %354
  %358 = vst.msk [vmem:[#allocation3 + $0x70] sm:$0xff] %vm299, %v353
  %359 = vst.msk [vmem:[#allocation3 + $0x78] sm:$0xff] %vm299, %v355
  %360 = vrot.lane.b32.xlu0 %v297, 118
  %v361 = vpop.permute.xlu0 %360
  %362 = vrot.lane.b32.xlu0 %v298, 118
  %v363 = vpop.permute.xlu0 %362
  %366 = vst.msk [vmem:[#allocation3 + $0x80] sm:$0xff] %vm299, %v361
  %367 = vst.msk [vmem:[#allocation3 + $0x88] sm:$0xff] %vm299, %v363
  %v368 = vld [vmem:[#allocation3] sm:$0xff]
  %v369 = vld [vmem:[#allocation3 + $0x8] sm:$0xff]
  %v370 = vld [vmem:[#allocation3 + $0x10] sm:$0xff]
  %v371 = vld [vmem:[#allocation3 + $0x18] sm:$0xff]
  %v372 = vld [vmem:[#allocation3 + $0x20] sm:$0xff]
  %v373 = vld [vmem:[#allocation3 + $0x28] sm:$0xff]
  %v374 = vld [vmem:[#allocation3 + $0x30] sm:$0xff]
  %v375 = vld [vmem:[#allocation3 + $0x38] sm:$0xff]
  %v376 = vld [vmem:[#allocation3 + $0x40] sm:$0xff]
  %v377 = vld [vmem:[#allocation3 + $0x48] sm:$0xff]
  %v378 = vld [vmem:[#allocation3 + $0x50] sm:$0xff]
  %v379 = vld [vmem:[#allocation3 + $0x58] sm:$0xff]
  %v380 = vld [vmem:[#allocation3 + $0x60] sm:$0xff]
  %v381 = vld [vmem:[#allocation3 + $0x68] sm:$0xff]
  %v382 = vld [vmem:[#allocation3 + $0x70] sm:$0xff]
  %v383 = vld [vmem:[#allocation3 + $0x78] sm:$0xff]
  %v384 = vld [vmem:[#allocation3 + $0x80] sm:$0xff]
  %v385 = vld [vmem:[#allocation3 + $0x88] sm:$0xff]
  %v387 = vsel %vm183, %v84, 0
  %v390 = vsel %vm183, %v86, 0
  %392 = vmatprep.subr.mxu0 0.0
  %393 = vmatpush1.msra.mxu0 %v368
  %394 = vmatprep.subr.mxu0 0.0
  %395 = vmatpush1.msra.mxu0 %v369
  %396 = vmatprep.subr.mxu0 0.0
  %397 = vmatpush1.msra.mxu0 %v370
  %398 = vmatprep.subr.mxu0 0.0
  %399 = vmatpush1.msra.mxu0 %v371
  %400 = vmatprep.subr.mxu0 0.0
  %401 = vmatpush1.msra.mxu0 %v372
  %402 = vmatprep.subr.mxu0 0.0
  %403 = vmatpush1.msra.mxu0 %v373
  %404 = vmatprep.subr.mxu0 0.0
  %405 = vmatpush1.msra.mxu0 %v374
  %406 = vmatprep.subr.mxu0 0.0
  %407 = vmatpush1.msra.mxu0 %v375
  %408 = vmatprep.subr.mxu0 0.0
  %409 = vmatpush1.msra.mxu0 %v376
  %410 = vmatprep.subr.mxu0 0.0
  %411 = vmatpush1.msra.mxu0 %v377
  %412 = vmatprep.subr.mxu0 0.0
  %413 = vmatpush1.msra.mxu0 %v378
  %414 = vmatprep.subr.mxu0 0.0
  %415 = vmatpush1.msra.mxu0 %v379
  %416 = vmatprep.subr.mxu0 0.0
  %417 = vmatpush1.msra.mxu0 %v380
  %418 = vmatprep.subr.mxu0 0.0
  %419 = vmatpush1.msra.mxu0 %v381
  %420 = vmatprep.subr.mxu0 0.0
  %421 = vmatpush1.msra.mxu0 %v382
  %422 = vmatprep.subr.mxu0 0.0
  %423 = vmatpush1.msra.mxu0 %v383
  %424 = vmatprep.subr.mxu0 0.0
  %425 = vmatpush1.msra.mxu0 %v384
  %426 = vmatprep.subr.mxu0 0.0
  %427 = vmatpush1.msra.mxu0 %v385
  %428 = vmatprep.subr.mxu0 0.0
  %429 = vmatpush1.msra.mxu0 0.0
  %430 = vmatprep.subr.mxu0 0.0
  %431 = vmatpush1.msra.mxu0 0.0
  %432 = vmatprep.subr.mxu0 0.0
  %433 = vmatpush1.msra.mxu0 0.0
  %434 = vmatprep.subr.mxu0 0.0
  %435 = vmatpush1.msra.mxu0 0.0
  %436 = vmatprep.subr.mxu0 0.0
  %437 = vmatpush1.msra.mxu0 0.0
  %438 = vmatprep.subr.mxu0 0.0
  %439 = vmatpush1.msra.mxu0 0.0
  %440 = vmatprep.subr.mxu0 0.0
  %441 = vmatpush1.msra.mxu0 0.0
  %442 = vmatprep.subr.mxu0 0.0
  %443 = vmatpush1.msra.mxu0 0.0
  %444 = vmatprep.subr.mxu0 0.0
  %445 = vmatpush1.msra.mxu0 0.0
  %446 = vmatprep.subr.mxu0 0.0
  %447 = vmatpush1.msra.mxu0 0.0
  %448 = vmatprep.subr.mxu0 0.0
  %449 = vmatpush1.msra.mxu0 0.0
  %450 = vmatprep.subr.mxu0 0.0
  %451 = vmatpush1.msra.mxu0 0.0
  %452 = vmatprep.subr.mxu0 0.0
  %453 = vmatpush1.msra.mxu0 0.0
  %454 = vmatprep.subr.mxu0 0.0
  %455 = vmatpush1.msra.mxu0 0.0
  %456 = vmatprep.mubr.f32.mxu0 %v387
  %457 = vmatmul.mubr.f32.gmra.mrb[0].mxu0 %v83
  %v458 = vpop.f32.mrb[0].mxu0
  %v459 = vadd.f32 0.0, %v458
  %v460 = vpop.f32.mrb[0].mxu0
  %461 = vmatprep.mubr.f32.mxu0 %v390
  %462 = vmatmul.mubr.f32.gmra.mrb[0].mxu0 %v85
  %v463 = vpop.f32.mrb[0].mxu0
  %v464 = vadd.f32 0.0, %v463
  %v465 = vpop.f32.mrb[0].mxu0
  %466 = vdwg.mxu0
  %468 = vset.pattern.permute.xlu0 0
  %469 = vperm.xlu0 %468, %v91
  %v470 = vpop.permute.xlu0 %469
  %473 = vset.pattern.permute.xlu0 0
  %474 = vperm.xlu0 %473, %v92
  %v475 = vpop.permute.xlu0 %474
  %v477 = vmul.f32 %v459, %v470
  %v478 = vmul.f32 %v464, %v475
  %480 = vset.pattern.permute.xlu0 0
  %481 = vperm.xlu0 %480, %v93
  %v482 = vpop.permute.xlu0 %481
  %485 = vset.pattern.permute.xlu0 0
  %486 = vperm.xlu0 %485, %v94
  %v487 = vpop.permute.xlu0 %486
  %v489 = vadd.f32 %v477, %v482
  %v490 = vadd.f32 %v478, %v487
  %v491 = vmax.f32 %v489, 0.0
  %v492 = vmax.f32 %v490, 0.0
  %493 = vrot.lane.b32.xlu0 %v295, 123
  %v494 = vpop.permute.xlu0 %493
  %v496 = vmul.f32 %v491, %v494
  %v497 = vmul.f32 %v492, %v494
  %v498 = vmax.f32 %v77, 0.0
  %v499 = vmax.f32 %v78, 0.0
  %502 = vrot.lane.b32.xlu0 %v496, 127
  %v503 = vpop.permute.xlu0 %502
  %504 = vrot.lane.b32.xlu0 %v497, 127
  %v505 = vpop.permute.xlu0 %504
  %v508 = vmax.f32 %v496, %v503
  %v509 = vmax.f32 %v497, %v505
  %512 = vrot.lane.b32.xlu0 %v498, 127
  %v513 = vpop.permute.xlu0 %512
  %514 = vrot.lane.b32.xlu0 %v499, 127
  %v515 = vpop.permute.xlu0 %514
  %v518 = vmax.f32 %v498, %v513
  %v519 = vmax.f32 %v499, %v515
  %520 = vrot.lane.b32.xlu0 %v496, 126
  %v521 = vpop.permute.xlu0 %520
  %522 = vrot.lane.b32.xlu0 %v497, 126
  %v523 = vpop.permute.xlu0 %522
  %v526 = vmax.f32 %v508, %v521
  %v527 = vmax.f32 %v509, %v523
  %528 = vrot.lane.b32.xlu0 %v498, 126
  %v529 = vpop.permute.xlu0 %528
  %530 = vrot.lane.b32.xlu0 %v499, 126
  %v531 = vpop.permute.xlu0 %530
  %v534 = vmax.f32 %v518, %v529
  %v535 = vmax.f32 %v519, %v531
  %536 = vrot.lane.b32.xlu0 %v496, 124
  %v537 = vpop.permute.xlu0 %536
  %538 = vrot.lane.b32.xlu0 %v497, 124
  %v539 = vpop.permute.xlu0 %538
  %v542 = vmax.f32 %v526, %v537
  %v543 = vmax.f32 %v527, %v539
  %544 = vrot.lane.b32.xlu0 %v498, 124
  %v545 = vpop.permute.xlu0 %544
  %546 = vrot.lane.b32.xlu0 %v499, 124
  %v547 = vpop.permute.xlu0 %546
  %v550 = vmax.f32 %v534, %v545
  %v551 = vmax.f32 %v535, %v547
  %552 = vrot.lane.b32.xlu0 %v496, 123
  %v553 = vpop.permute.xlu0 %552
  %554 = vrot.lane.b32.xlu0 %v497, 123
  %v555 = vpop.permute.xlu0 %554
  %v558 = vmax.f32 %v542, %v553
  %v559 = vmax.f32 %v543, %v555
  %560 = vrot.lane.b32.xlu0 %v498, 123
  %v561 = vpop.permute.xlu0 %560
  %562 = vrot.lane.b32.xlu0 %v499, 123
  %v563 = vpop.permute.xlu0 %562
  %v566 = vmax.f32 %v550, %v561
  %v567 = vmax.f32 %v551, %v563
  %568 = vrot.lane.b32.xlu0 %v496, 122
  %v569 = vpop.permute.xlu0 %568
  %570 = vrot.lane.b32.xlu0 %v497, 122
  %v571 = vpop.permute.xlu0 %570
  %v574 = vmax.f32 %v558, %v569
  %v575 = vmax.f32 %v559, %v571
  %576 = vrot.lane.b32.xlu0 %v498, 122
  %v577 = vpop.permute.xlu0 %576
  %578 = vrot.lane.b32.xlu0 %v499, 122
  %v579 = vpop.permute.xlu0 %578
  %v582 = vmax.f32 %v566, %v577
  %v583 = vmax.f32 %v567, %v579
  %584 = vrot.lane.b32.xlu0 %v496, 120
  %v585 = vpop.permute.xlu0 %584
  %586 = vrot.lane.b32.xlu0 %v497, 120
  %v587 = vpop.permute.xlu0 %586
  %v590 = vmax.f32 %v574, %v585
  %v591 = vmax.f32 %v575, %v587
  %592 = vrot.lane.b32.xlu0 %v498, 120
  %v593 = vpop.permute.xlu0 %592
  %594 = vrot.lane.b32.xlu0 %v499, 120
  %v595 = vpop.permute.xlu0 %594
  %v598 = vmax.f32 %v582, %v593
  %v599 = vmax.f32 %v583, %v595
  %600 = vrot.lane.b32.xlu0 %v496, 119
  %v601 = vpop.permute.xlu0 %600
  %602 = vrot.lane.b32.xlu0 %v497, 119
  %v603 = vpop.permute.xlu0 %602
  %v606 = vmax.f32 %v590, %v601
  %v607 = vmax.f32 %v591, %v603
  %608 = vrot.lane.b32.xlu0 %v498, 119
  %v609 = vpop.permute.xlu0 %608
  %610 = vrot.lane.b32.xlu0 %v499, 119
  %v611 = vpop.permute.xlu0 %610
  %v614 = vmax.f32 %v598, %v609
  %v615 = vmax.f32 %v599, %v611
  %616 = vrot.lane.b32.xlu0 %v496, 118
  %v617 = vpop.permute.xlu0 %616
  %618 = vrot.lane.b32.xlu0 %v497, 118
  %v619 = vpop.permute.xlu0 %618
  %v622 = vmax.f32 %v606, %v617
  %v623 = vmax.f32 %v607, %v619
  %624 = vrot.lane.b32.xlu0 %v498, 118
  %v625 = vpop.permute.xlu0 %624
  %626 = vrot.lane.b32.xlu0 %v499, 118
  %v627 = vpop.permute.xlu0 %626
  %v630 = vmax.f32 %v614, %v625
  %v631 = vmax.f32 %v615, %v627
  %v632 = vld [vmem:[%s15] sm:$0xff]
  %v633 = vld [vmem:[%s15 + $0x8] sm:$0xff]
  %v634 = vld [vmem:[%s15 + $0x10] sm:$0xff]
  %v635 = vld [vmem:[%s15 + $0x18] sm:$0xff]
  %vm636 = vcmask 261120
  %v638 = vsel %vm636, %v622, 0
  %v641 = vsel %vm636, %v623, 0
  %643 = vmatprep.subr.mxu0 0.0
  %644 = vmatpush1.msra.mxu0 %v632
  %645 = vmatprep.subr.mxu0 0.0
  %646 = vmatpush1.msra.mxu0 %v633
  %647 = vmatprep.subr.mxu0 0.0
  %648 = vmatpush1.msra.mxu0 %v634
  %649 = vmatprep.subr.mxu0 0.0
  %650 = vmatpush1.msra.mxu0 %v635
  %651 = vmatprep.subr.mxu0 0.0
  %652 = vmatpush1.msra.mxu0 0.0
  %653 = vmatprep.subr.mxu0 0.0
  %654 = vmatpush1.msra.mxu0 0.0
  %655 = vmatprep.subr.mxu0 0.0
  %656 = vmatpush1.msra.mxu0 0.0
  %657 = vmatprep.subr.mxu0 0.0
  %658 = vmatpush1.msra.mxu0 0.0
  %659 = vmatprep.subr.mxu0 0.0
  %660 = vmatpush1.msra.mxu0 0.0
  %661 = vmatprep.subr.mxu0 0.0
  %662 = vmatpush1.msra.mxu0 0.0
  %663 = vmatprep.subr.mxu0 0.0
  %664 = vmatpush1.msra.mxu0 0.0
  %665 = vmatprep.subr.mxu0 0.0
  %666 = vmatpush1.msra.mxu0 0.0
  %667 = vmatprep.subr.mxu0 0.0
  %668 = vmatpush1.msra.mxu0 0.0
  %669 = vmatprep.subr.mxu0 0.0
  %670 = vmatpush1.msra.mxu0 0.0
  %671 = vmatprep.subr.mxu0 0.0
  %672 = vmatpush1.msra.mxu0 0.0
  %673 = vmatprep.subr.mxu0 0.0
  %674 = vmatpush1.msra.mxu0 0.0
  %675 = vmatprep.subr.mxu0 0.0
  %676 = vmatpush1.msra.mxu0 0.0
  %677 = vmatprep.subr.mxu0 0.0
  %678 = vmatpush1.msra.mxu0 0.0
  %679 = vmatprep.subr.mxu0 0.0
  %680 = vmatpush1.msra.mxu0 0.0
  %681 = vmatprep.subr.mxu0 0.0
  %682 = vmatpush1.msra.mxu0 0.0
  %683 = vmatprep.subr.mxu0 0.0
  %684 = vmatpush1.msra.mxu0 0.0
  %685 = vmatprep.subr.mxu0 0.0
  %686 = vmatpush1.msra.mxu0 0.0
  %687 = vmatprep.subr.mxu0 0.0
  %688 = vmatpush1.msra.mxu0 0.0
  %689 = vmatprep.subr.mxu0 0.0
  %690 = vmatpush1.msra.mxu0 0.0
  %691 = vmatprep.subr.mxu0 0.0
  %692 = vmatpush1.msra.mxu0 0.0
  %693 = vmatprep.subr.mxu0 0.0
  %694 = vmatpush1.msra.mxu0 0.0
  %695 = vmatprep.subr.mxu0 0.0
  %696 = vmatpush1.msra.mxu0 0.0
  %697 = vmatprep.subr.mxu0 0.0
  %698 = vmatpush1.msra.mxu0 0.0
  %699 = vmatprep.subr.mxu0 0.0
  %700 = vmatpush1.msra.mxu0 0.0
  %701 = vmatprep.subr.mxu0 0.0
  %702 = vmatpush1.msra.mxu0 0.0
  %703 = vmatprep.subr.mxu0 0.0
  %704 = vmatpush1.msra.mxu0 0.0
  %705 = vmatprep.subr.mxu0 0.0
  %706 = vmatpush1.msra.mxu0 0.0
  %707 = vmatprep.mubr.f32.mxu0 0.0
  %708 = vmatmul.mubr.f32.gmra.mrb[0].mxu0 %v638
  %v709 = vpop.f32.mrb[0].mxu0
  %v710 = vadd.f32 0.0, %v709
  %v711 = vpop.f32.mrb[0].mxu0
  %712 = vmatprep.mubr.f32.mxu0 0.0
  %713 = vmatmul.mubr.f32.gmra.mrb[0].mxu0 %v641
  %v714 = vpop.f32.mrb[0].mxu0
  %v715 = vadd.f32 0.0, %v714
  %v716 = vpop.f32.mrb[0].mxu0
  %717 = vdwg.mxu0
  %718 = vst.msk [vmem:[#allocation6] sm:$0xff] %vm299, %v710
  %719 = vst.msk [vmem:[#allocation6 + $0x8] sm:$0xff] %vm299, %v715
  %722 = vrot.lane.b32.xlu0 %v630, 118
  %v723 = vpop.permute.xlu0 %722
  %724 = vrot.lane.b32.xlu0 %v631, 118
  %v725 = vpop.permute.xlu0 %724
  %v726 = vsel %vm636, %v723, 0
  %v728 = vsel %vm636, %v725, 0
  %730 = vmatprep.subr.mxu0 0.0
  %731 = vmatpush1.msra.mxu0 %v632
  %732 = vmatprep.subr.mxu0 0.0
  %733 = vmatpush1.msra.mxu0 %v633
  %734 = vmatprep.subr.mxu0 0.0
  %735 = vmatpush1.msra.mxu0 %v634
  %736 = vmatprep.subr.mxu0 0.0
  %737 = vmatpush1.msra.mxu0 %v635
  %738 = vmatprep.subr.mxu0 0.0
  %739 = vmatpush1.msra.mxu0 0.0
  %740 = vmatprep.subr.mxu0 0.0
  %741 = vmatpush1.msra.mxu0 0.0
  %742 = vmatprep.subr.mxu0 0.0
  %743 = vmatpush1.msra.mxu0 0.0
  %744 = vmatprep.subr.mxu0 0.0
  %745 = vmatpush1.msra.mxu0 0.0
  %746 = vmatprep.subr.mxu0 0.0
  %747 = vmatpush1.msra.mxu0 0.0
  %748 = vmatprep.subr.mxu0 0.0
  %749 = vmatpush1.msra.mxu0 0.0
  %750 = vmatprep.subr.mxu0 0.0
  %751 = vmatpush1.msra.mxu0 0.0
  %752 = vmatprep.subr.mxu0 0.0
  %753 = vmatpush1.msra.mxu0 0.0
  %754 = vmatprep.subr.mxu0 0.0
  %755 = vmatpush1.msra.mxu0 0.0
  %756 = vmatprep.subr.mxu0 0.0
  %757 = vmatpush1.msra.mxu0 0.0
  %758 = vmatprep.subr.mxu0 0.0
  %759 = vmatpush1.msra.mxu0 0.0
  %760 = vmatprep.subr.mxu0 0.0
  %761 = vmatpush1.msra.mxu0 0.0
  %762 = vmatprep.subr.mxu0 0.0
  %763 = vmatpush1.msra.mxu0 0.0
  %764 = vmatprep.subr.mxu0 0.0
  %765 = vmatpush1.msra.mxu0 0.0
  %766 = vmatprep.subr.mxu0 0.0
  %767 = vmatpush1.msra.mxu0 0.0
  %768 = vmatprep.subr.mxu0 0.0
  %769 = vmatpush1.msra.mxu0 0.0
  %770 = vmatprep.subr.mxu0 0.0
  %771 = vmatpush1.msra.mxu0 0.0
  %772 = vmatprep.subr.mxu0 0.0
  %773 = vmatpush1.msra.mxu0 0.0
  %774 = vmatprep.subr.mxu0 0.0
  %775 = vmatpush1.msra.mxu0 0.0
  %776 = vmatprep.subr.mxu0 0.0
  %777 = vmatpush1.msra.mxu0 0.0
  %778 = vmatprep.subr.mxu0 0.0
  %779 = vmatpush1.msra.mxu0 0.0
  %780 = vmatprep.subr.mxu0 0.0
  %781 = vmatpush1.msra.mxu0 0.0
  %782 = vmatprep.subr.mxu0 0.0
  %783 = vmatpush1.msra.mxu0 0.0
  %784 = vmatprep.subr.mxu0 0.0
  %785 = vmatpush1.msra.mxu0 0.0
  %786 = vmatprep.subr.mxu0 0.0
  %787 = vmatpush1.msra.mxu0 0.0
  %788 = vmatprep.subr.mxu0 0.0
  %789 = vmatpush1.msra.mxu0 0.0
  %790 = vmatprep.subr.mxu0 0.0
  %791 = vmatpush1.msra.mxu0 0.0
  %792 = vmatprep.subr.mxu0 0.0
  %793 = vmatpush1.msra.mxu0 0.0
  %794 = vmatprep.mubr.f32.mxu0 0.0
  %795 = vmatmul.mubr.f32.gmra.mrb[0].mxu0 %v726
  %v796 = vpop.f32.mrb[0].mxu0
  %v797 = vadd.f32 0.0, %v796
  %v798 = vpop.f32.mrb[0].mxu0
  %799 = vmatprep.mubr.f32.mxu0 0.0
  %800 = vmatmul.mubr.f32.gmra.mrb[0].mxu0 %v728
  %v801 = vpop.f32.mrb[0].mxu0
  %v802 = vadd.f32 0.0, %v801
  %v803 = vpop.f32.mrb[0].mxu0
  %804 = vdwg.mxu0
  %805 = vst.msk [vmem:[#allocation6 + $0x10] sm:$0xff] %vm299, %v797
  %806 = vst.msk [vmem:[#allocation6 + $0x18] sm:$0xff] %vm299, %v802
  %v807 = vld [vmem:[#allocation6] sm:$0xff]
  %v808 = vld [vmem:[#allocation6 + $0x8] sm:$0xff]
  %v809 = vld [vmem:[#allocation6 + $0x10] sm:$0xff]
  %v810 = vld [vmem:[#allocation6 + $0x18] sm:$0xff]
  %v811 = vld [vmem:[%s8] sm:$0xff]
  %v812 = vld [vmem:[%s8 + $0x8] sm:$0xff]
  %v813 = vld [vmem:[%s8 + $0x10] sm:$0xff]
  %v814 = vld [vmem:[%s8 + $0x18] sm:$0xff]
  %v815 = vld [vmem:[%s8 + $0x20] sm:$0xff]
  %v816 = vld [vmem:[%s8 + $0x28] sm:$0xff]
  %v817 = vld [vmem:[%s8 + $0x30] sm:$0xff]
  %v818 = vld [vmem:[%s8 + $0x38] sm:$0xff]
  %v819 = vld [vmem:[%s8 + $0x40] sm:$0xff]
  %v820 = vld [vmem:[%s8 + $0x48] sm:$0xff]
  %v821 = vld [vmem:[%s8 + $0x50] sm:$0xff]
  %v822 = vld [vmem:[%s8 + $0x58] sm:$0xff]
  %v823 = vld [vmem:[%s9] sm:$0xff]
  %v824 = vld [vmem:[%s9 + $0x8] sm:$0xff]
  %v825 = vld [vmem:[%s9 + $0x10] sm:$0xff]
  %v826 = vld [vmem:[%s9 + $0x18] sm:$0xff]
  %v827 = vld [vmem:[%s9 + $0x20] sm:$0xff]
  %v828 = vld [vmem:[%s9 + $0x28] sm:$0xff]
  %v829 = vld [vmem:[%s9 + $0x30] sm:$0xff]
  %v830 = vld [vmem:[%s9 + $0x38] sm:$0xff]
  %v831 = vld [vmem:[%s9 + $0x40] sm:$0xff]
  %v832 = vld [vmem:[%s9 + $0x48] sm:$0xff]
  %v833 = vld [vmem:[%s9 + $0x50] sm:$0xff]
  %v834 = vld [vmem:[%s9 + $0x58] sm:$0xff]
  %v835 = vld [vmem:[%s10] sm:$0xff]
  %v836 = vld [vmem:[%s10 + $0x8] sm:$0xff]
  %v837 = vld [vmem:[%s10 + $0x10] sm:$0xff]
  %v838 = vld [vmem:[%s10 + $0x18] sm:$0xff]
  %v839 = vld [vmem:[%s11] sm:$0xff]
  %v840 = vld [vmem:[%s11 + $0x8] sm:$0xff]
  %v841 = vld [vmem:[%s11 + $0x10] sm:$0xff]
  %v842 = vld [vmem:[%s11 + $0x18] sm:$0xff]
  %v843 = vld [vmem:[%s12] sm:$0xff]
  %v844 = vld [vmem:[%s12 + $0x8] sm:$0xff]
  %v845 = vld [vmem:[%s12 + $0x10] sm:$0xff]
  %v846 = vld [vmem:[%s12 + $0x18] sm:$0xff]
  %v847 = vld [vmem:[%s13] sm:$0xff]
  %v848 = vld [vmem:[%s13 + $0x8] sm:$0xff]
  %v849 = vld [vmem:[%s13 + $0x10] sm:$0xff]
  %v850 = vld [vmem:[%s13 + $0x18] sm:$0xff]
  %v851 = vld [vmem:[%s14] sm:$0x1]
  %vm852 = vcmask 277504
  %853 = vst.msk [vmem:[#allocation4] sm:$0xff] %vm852, %v807
  %854 = vst.msk [vmem:[#allocation4 + $0x8] sm:$0xff] %vm852, %v808
  %855 = vst.msk [vmem:[#allocation4 + $0x10] sm:$0xff] %vm852, %v809
  %856 = vst.msk [vmem:[#allocation4 + $0x18] sm:$0xff] %vm852, %v810
  %861 = vrot.lane.b32.xlu0 %v807, 127
  %v862 = vpop.permute.xlu0 %861
  %863 = vrot.lane.b32.xlu0 %v808, 127
  %v864 = vpop.permute.xlu0 %863
  %865 = vrot.lane.b32.xlu0 %v809, 127
  %v866 = vpop.permute.xlu0 %865
  %867 = vrot.lane.b32.xlu0 %v810, 127
  %v868 = vpop.permute.xlu0 %867
  %873 = vst.msk [vmem:[#allocation4 + $0x20] sm:$0xff] %vm852, %v862
  %874 = vst.msk [vmem:[#allocation4 + $0x28] sm:$0xff] %vm852, %v864
  %875 = vst.msk [vmem:[#allocation4 + $0x30] sm:$0xff] %vm852, %v866
  %876 = vst.msk [vmem:[#allocation4 + $0x38] sm:$0xff] %vm852, %v868
  %877 = vrot.lane.b32.xlu0 %v807, 126
  %v878 = vpop.permute.xlu0 %877
  %879 = vrot.lane.b32.xlu0 %v808, 126
  %v880 = vpop.permute.xlu0 %879
  %881 = vrot.lane.b32.xlu0 %v809, 126
  %v882 = vpop.permute.xlu0 %881
  %883 = vrot.lane.b32.xlu0 %v810, 126
  %v884 = vpop.permute.xlu0 %883
  %889 = vst.msk [vmem:[#allocation4 + $0x40] sm:$0xff] %vm852, %v878
  %890 = vst.msk [vmem:[#allocation4 + $0x48] sm:$0xff] %vm852, %v880
  %891 = vst.msk [vmem:[#allocation4 + $0x50] sm:$0xff] %vm852, %v882
  %892 = vst.msk [vmem:[#allocation4 + $0x58] sm:$0xff] %vm852, %v884
  %893 = vrot.lane.b32.xlu0 %v807, 125
  %v894 = vpop.permute.xlu0 %893
  %895 = vrot.lane.b32.xlu0 %v808, 125
  %v896 = vpop.permute.xlu0 %895
  %897 = vrot.lane.b32.xlu0 %v809, 125
  %v898 = vpop.permute.xlu0 %897
  %899 = vrot.lane.b32.xlu0 %v810, 125
  %v900 = vpop.permute.xlu0 %899
  %905 = vst.msk [vmem:[#allocation4 + $0x60] sm:$0xff] %vm852, %v894
  %906 = vst.msk [vmem:[#allocation4 + $0x68] sm:$0xff] %vm852, %v896
  %907 = vst.msk [vmem:[#allocation4 + $0x70] sm:$0xff] %vm852, %v898
  %908 = vst.msk [vmem:[#allocation4 + $0x78] sm:$0xff] %vm852, %v900
  %909 = vrot.lane.b32.xlu0 %v807, 124
  %v910 = vpop.permute.xlu0 %909
  %911 = vrot.lane.b32.xlu0 %v808, 124
  %v912 = vpop.permute.xlu0 %911
  %913 = vrot.lane.b32.xlu0 %v809, 124
  %v914 = vpop.permute.xlu0 %913
  %915 = vrot.lane.b32.xlu0 %v810, 124
  %v916 = vpop.permute.xlu0 %915
  %921 = vst.msk [vmem:[#allocation4 + $0x80] sm:$0xff] %vm852, %v910
  %922 = vst.msk [vmem:[#allocation4 + $0x88] sm:$0xff] %vm852, %v912
  %923 = vst.msk [vmem:[#allocation4 + $0x90] sm:$0xff] %vm852, %v914
  %924 = vst.msk [vmem:[#allocation4 + $0x98] sm:$0xff] %vm852, %v916
  %925 = vrot.lane.b32.xlu0 %v807, 123
  %v926 = vpop.permute.xlu0 %925
  %927 = vrot.lane.b32.xlu0 %v808, 123
  %v928 = vpop.permute.xlu0 %927
  %929 = vrot.lane.b32.xlu0 %v809, 123
  %v930 = vpop.permute.xlu0 %929
  %931 = vrot.lane.b32.xlu0 %v810, 123
  %v932 = vpop.permute.xlu0 %931
  %937 = vst.msk [vmem:[#allocation4 + $0xa0] sm:$0xff] %vm852, %v926
  %938 = vst.msk [vmem:[#allocation4 + $0xa8] sm:$0xff] %vm852, %v928
  %939 = vst.msk [vmem:[#allocation4 + $0xb0] sm:$0xff] %vm852, %v930
  %940 = vst.msk [vmem:[#allocation4 + $0xb8] sm:$0xff] %vm852, %v932
  %941 = vrot.lane.b32.xlu0 %v807, 122
  %v942 = vpop.permute.xlu0 %941
  %943 = vrot.lane.b32.xlu0 %v808, 122
  %v944 = vpop.permute.xlu0 %943
  %945 = vrot.lane.b32.xlu0 %v809, 122
  %v946 = vpop.permute.xlu0 %945
  %947 = vrot.lane.b32.xlu0 %v810, 122
  %v948 = vpop.permute.xlu0 %947
  %953 = vst.msk [vmem:[#allocation4 + $0xc0] sm:$0xff] %vm852, %v942
  %954 = vst.msk [vmem:[#allocation4 + $0xc8] sm:$0xff] %vm852, %v944
  %955 = vst.msk [vmem:[#allocation4 + $0xd0] sm:$0xff] %vm852, %v946
  %956 = vst.msk [vmem:[#allocation4 + $0xd8] sm:$0xff] %vm852, %v948
  %957 = vrot.lane.b32.xlu0 %v807, 121
  %v958 = vpop.permute.xlu0 %957
  %959 = vrot.lane.b32.xlu0 %v808, 121
  %v960 = vpop.permute.xlu0 %959
  %961 = vrot.lane.b32.xlu0 %v809, 121
  %v962 = vpop.permute.xlu0 %961
  %963 = vrot.lane.b32.xlu0 %v810, 121
  %v964 = vpop.permute.xlu0 %963
  %969 = vst.msk [vmem:[#allocation4 + $0xe0] sm:$0xff] %vm852, %v958
  %970 = vst.msk [vmem:[#allocation4 + $0xe8] sm:$0xff] %vm852, %v960
  %971 = vst.msk [vmem:[#allocation4 + $0xf0] sm:$0xff] %vm852, %v962
  %972 = vst.msk [vmem:[#allocation4 + $0xf8] sm:$0xff] %vm852, %v964
  %973 = vrot.lane.b32.xlu0 %v807, 120
  %v974 = vpop.permute.xlu0 %973
  %975 = vrot.lane.b32.xlu0 %v808, 120
  %v976 = vpop.permute.xlu0 %975
  %977 = vrot.lane.b32.xlu0 %v809, 120
  %v978 = vpop.permute.xlu0 %977
  %979 = vrot.lane.b32.xlu0 %v810, 120
  %v980 = vpop.permute.xlu0 %979
  %985 = vst.msk [vmem:[#allocation4 + $0x100] sm:$0xff] %vm852, %v974
  %986 = vst.msk [vmem:[#allocation4 + $0x108] sm:$0xff] %vm852, %v976
  %987 = vst.msk [vmem:[#allocation4 + $0x110] sm:$0xff] %vm852, %v978
  %988 = vst.msk [vmem:[#allocation4 + $0x118] sm:$0xff] %vm852, %v980
  %v989 = vld [vmem:[#allocation4] sm:$0xff]
  %v990 = vld [vmem:[#allocation4 + $0x8] sm:$0xff]
  %v991 = vld [vmem:[#allocation4 + $0x10] sm:$0xff]
  %v992 = vld [vmem:[#allocation4 + $0x18] sm:$0xff]
  %v993 = vld [vmem:[#allocation4 + $0x20] sm:$0xff]
  %v994 = vld [vmem:[#allocation4 + $0x28] sm:$0xff]
  %v995 = vld [vmem:[#allocation4 + $0x30] sm:$0xff]
  %v996 = vld [vmem:[#allocation4 + $0x38] sm:$0xff]
  %v997 = vld [vmem:[#allocation4 + $0x40] sm:$0xff]
  %v998 = vld [vmem:[#allocation4 + $0x48] sm:$0xff]
  %v999 = vld [vmem:[#allocation4 + $0x50] sm:$0xff]
  %v1000 = vld [vmem:[#allocation4 + $0x58] sm:$0xff]
  %v1001 = vld [vmem:[#allocation4 + $0x60] sm:$0xff]
  %v1002 = vld [vmem:[#allocation4 + $0x68] sm:$0xff]
  %v1003 = vld [vmem:[#allocation4 + $0x70] sm:$0xff]
  %v1004 = vld [vmem:[#allocation4 + $0x78] sm:$0xff]
  %v1005 = vld [vmem:[#allocation4 + $0x80] sm:$0xff]
  %v1006 = vld [vmem:[#allocation4 + $0x88] sm:$0xff]
  %v1007 = vld [vmem:[#allocation4 + $0x90] sm:$0xff]
  %v1008 = vld [vmem:[#allocation4 + $0x98] sm:$0xff]
  %v1009 = vld [vmem:[#allocation4 + $0xa0] sm:$0xff]
  %v1010 = vld [vmem:[#allocation4 + $0xa8] sm:$0xff]
  %v1011 = vld [vmem:[#allocation4 + $0xb0] sm:$0xff]
  %v1012 = vld [vmem:[#allocation4 + $0xb8] sm:$0xff]
  %v1013 = vld [vmem:[#allocation4 + $0xc0] sm:$0xff]
  %v1014 = vld [vmem:[#allocation4 + $0xc8] sm:$0xff]
  %v1015 = vld [vmem:[#allocation4 + $0xd0] sm:$0xff]
  %v1016 = vld [vmem:[#allocation4 + $0xd8] sm:$0xff]
  %v1017 = vld [vmem:[#allocation4 + $0xe0] sm:$0xff]
  %v1018 = vld [vmem:[#allocation4 + $0xe8] sm:$0xff]
  %v1019 = vld [vmem:[#allocation4 + $0xf0] sm:$0xff]
  %v1020 = vld [vmem:[#allocation4 + $0xf8] sm:$0xff]
  %v1021 = vld [vmem:[#allocation4 + $0x100] sm:$0xff]
  %v1022 = vld [vmem:[#allocation4 + $0x108] sm:$0xff]
  %v1023 = vld [vmem:[#allocation4 + $0x110] sm:$0xff]
  %v1024 = vld [vmem:[#allocation4 + $0x118] sm:$0xff]
  %v1026 = vsel %vm636, %v813, 0
  %v1029 = vsel %vm636, %v816, 0
  %v1032 = vsel %vm636, %v819, 0
  %v1035 = vsel %vm636, %v822, 0
  %1037 = vmatprep.subr.mxu0 0.0
  %1038 = vmatpush1.msra.mxu0 %v989
  %1039 = vmatprep.subr.mxu0 0.0
  %1040 = vmatpush1.msra.mxu0 %v990
  %1041 = vmatprep.subr.mxu0 0.0
  %1042 = vmatpush1.msra.mxu0 %v991
  %1043 = vmatprep.subr.mxu0 0.0
  %1044 = vmatpush1.msra.mxu0 %v992
  %1045 = vmatprep.subr.mxu0 0.0
  %1046 = vmatpush1.msra.mxu0 %v993
  %1047 = vmatprep.subr.mxu0 0.0
  %1048 = vmatpush1.msra.mxu0 %v994
  %1049 = vmatprep.subr.mxu0 0.0
  %1050 = vmatpush1.msra.mxu0 %v995
  %1051 = vmatprep.subr.mxu0 0.0
  %1052 = vmatpush1.msra.mxu0 %v996
  %1053 = vmatprep.subr.mxu0 0.0
  %1054 = vmatpush1.msra.mxu0 %v997
  %1055 = vmatprep.subr.mxu0 0.0
  %1056 = vmatpush1.msra.mxu0 %v998
  %1057 = vmatprep.subr.mxu0 0.0
  %1058 = vmatpush1.msra.mxu0 %v999
  %1059 = vmatprep.subr.mxu0 0.0
  %1060 = vmatpush1.msra.mxu0 %v1000
  %1061 = vmatprep.subr.mxu0 0.0
  %1062 = vmatpush1.msra.mxu0 %v1001
  %1063 = vmatprep.subr.mxu0 0.0
  %1064 = vmatpush1.msra.mxu0 %v1002
  %1065 = vmatprep.subr.mxu0 0.0
  %1066 = vmatpush1.msra.mxu0 %v1003
  %1067 = vmatprep.subr.mxu0 0.0
  %1068 = vmatpush1.msra.mxu0 %v1004
  %1069 = vmatprep.subr.mxu0 0.0
  %1070 = vmatpush1.msra.mxu0 %v1005
  %1071 = vmatprep.subr.mxu0 0.0
  %1072 = vmatpush1.msra.mxu0 %v1006
  %1073 = vmatprep.subr.mxu0 0.0
  %1074 = vmatpush1.msra.mxu0 %v1007
  %1075 = vmatprep.subr.mxu0 0.0
  %1076 = vmatpush1.msra.mxu0 %v1008
  %1077 = vmatprep.subr.mxu0 0.0
  %1078 = vmatpush1.msra.mxu0 %v1009
  %1079 = vmatprep.subr.mxu0 0.0
  %1080 = vmatpush1.msra.mxu0 %v1010
  %1081 = vmatprep.subr.mxu0 0.0
  %1082 = vmatpush1.msra.mxu0 %v1011
  %1083 = vmatprep.subr.mxu0 0.0
  %1084 = vmatpush1.msra.mxu0 %v1012
  %1085 = vmatprep.subr.mxu0 0.0
  %1086 = vmatpush1.msra.mxu0 %v1013
  %1087 = vmatprep.subr.mxu0 0.0
  %1088 = vmatpush1.msra.mxu0 %v1014
  %1089 = vmatprep.subr.mxu0 0.0
  %1090 = vmatpush1.msra.mxu0 %v1015
  %1091 = vmatprep.subr.mxu0 0.0
  %1092 = vmatpush1.msra.mxu0 %v1016
  %1093 = vmatprep.subr.mxu0 0.0
  %1094 = vmatpush1.msra.mxu0 %v1017
  %1095 = vmatprep.subr.mxu0 0.0
  %1096 = vmatpush1.msra.mxu0 %v1018
  %1097 = vmatprep.subr.mxu0 0.0
  %1098 = vmatpush1.msra.mxu0 %v1019
  %1099 = vmatprep.subr.mxu0 0.0
  %1100 = vmatpush1.msra.mxu0 %v1020
  %1101 = vmatprep.mubr.f32.mxu0 %v812
  %1102 = vmatmul.mubr.f32.gmra.mrb[0].mxu0 %v811
  %v1103 = vpop.f32.mrb[0].mxu0
  %v1104 = vadd.f32 0.0, %v1103
  %v1105 = vpop.f32.mrb[0].mxu0
  %1106 = vmatprep.mubr.f32.mxu0 %v815
  %1107 = vmatmul.mubr.f32.gmra.mrb[0].mxu0 %v814
  %v1108 = vpop.f32.mrb[0].mxu0
  %v1109 = vadd.f32 0.0, %v1108
  %v1110 = vpop.f32.mrb[0].mxu0
  %1111 = vmatprep.mubr.f32.mxu0 %v818
  %1112 = vmatmul.mubr.f32.gmra.mrb[0].mxu0 %v817
  %v1113 = vpop.f32.mrb[0].mxu0
  %v1114 = vadd.f32 0.0, %v1113
  %v1115 = vpop.f32.mrb[0].mxu0
  %1116 = vmatprep.mubr.f32.mxu0 %v821
  %1117 = vmatmul.mubr.f32.gmra.mrb[0].mxu0 %v820
  %v1118 = vpop.f32.mrb[0].mxu0
  %v1119 = vadd.f32 0.0, %v1118
  %v1120 = vpop.f32.mrb[0].mxu0
  %1121 = vdwg.mxu0
  %1122 = vmatprep.subr.mxu0 0.0
  %1123 = vmatpush1.msra.mxu0 %v1021
  %1124 = vmatprep.subr.mxu0 0.0
  %1125 = vmatpush1.msra.mxu0 %v1022
  %1126 = vmatprep.subr.mxu0 0.0
  %1127 = vmatpush1.msra.mxu0 %v1023
  %1128 = vmatprep.subr.mxu0 0.0
  %1129 = vmatpush1.msra.mxu0 %v1024
  %1130 = vmatprep.subr.mxu0 0.0
  %1131 = vmatpush1.msra.mxu0 0.0
  %1132 = vmatprep.subr.mxu0 0.0
  %1133 = vmatpush1.msra.mxu0 0.0
  %1134 = vmatprep.subr.mxu0 0.0
  %1135 = vmatpush1.msra.mxu0 0.0
  %1136 = vmatprep.subr.mxu0 0.0
  %1137 = vmatpush1.msra.mxu0 0.0
  %1138 = vmatprep.subr.mxu0 0.0
  %1139 = vmatpush1.msra.mxu0 0.0
  %1140 = vmatprep.subr.mxu0 0.0
  %1141 = vmatpush1.msra.mxu0 0.0
  %1142 = vmatprep.subr.mxu0 0.0
  %1143 = vmatpush1.msra.mxu0 0.0
  %1144 = vmatprep.subr.mxu0 0.0
  %1145 = vmatpush1.msra.mxu0 0.0
  %1146 = vmatprep.subr.mxu0 0.0
  %1147 = vmatpush1.msra.mxu0 0.0
  %1148 = vmatprep.subr.mxu0 0.0
  %1149 = vmatpush1.msra.mxu0 0.0
  %1150 = vmatprep.subr.mxu0 0.0
  %1151 = vmatpush1.msra.mxu0 0.0
  %1152 = vmatprep.subr.mxu0 0.0
  %1153 = vmatpush1.msra.mxu0 0.0
  %1154 = vmatprep.subr.mxu0 0.0
  %1155 = vmatpush1.msra.mxu0 0.0
  %1156 = vmatprep.subr.mxu0 0.0
  %1157 = vmatpush1.msra.mxu0 0.0
  %1158 = vmatprep.subr.mxu0 0.0
  %1159 = vmatpush1.msra.mxu0 0.0
  %1160 = vmatprep.subr.mxu0 0.0
  %1161 = vmatpush1.msra.mxu0 0.0
  %1162 = vmatprep.subr.mxu0 0.0
  %1163 = vmatpush1.msra.mxu0 0.0
  %1164 = vmatprep.subr.mxu0 0.0
  %1165 = vmatpush1.msra.mxu0 0.0
  %1166 = vmatprep.subr.mxu0 0.0
  %1167 = vmatpush1.msra.mxu0 0.0
  %1168 = vmatprep.subr.mxu0 0.0
  %1169 = vmatpush1.msra.mxu0 0.0
  %1170 = vmatprep.subr.mxu0 0.0
  %1171 = vmatpush1.msra.mxu0 0.0
  %1172 = vmatprep.subr.mxu0 0.0
  %1173 = vmatpush1.msra.mxu0 0.0
  %1174 = vmatprep.subr.mxu0 0.0
  %1175 = vmatpush1.msra.mxu0 0.0
  %1176 = vmatprep.subr.mxu0 0.0
  %1177 = vmatpush1.msra.mxu0 0.0
  %1178 = vmatprep.subr.mxu0 0.0
  %1179 = vmatpush1.msra.mxu0 0.0
  %1180 = vmatprep.subr.mxu0 0.0
  %1181 = vmatpush1.msra.mxu0 0.0
  %1182 = vmatprep.subr.mxu0 0.0
  %1183 = vmatpush1.msra.mxu0 0.0
  %1184 = vmatprep.subr.mxu0 0.0
  %1185 = vmatpush1.msra.mxu0 0.0
  %1186 = vmatprep.mubr.f32.mxu0 0.0
  %1187 = vmatmul.mubr.f32.gmra.mrb[0].mxu0 %v1026
  %v1188 = vpop.f32.mrb[0].mxu0
  %v1189 = vadd.f32 %v1104, %v1188
  %v1190 = vpop.f32.mrb[0].mxu0
  %1191 = vmatprep.mubr.f32.mxu0 0.0
  %1192 = vmatmul.mubr.f32.gmra.mrb[0].mxu0 %v1029
  %v1193 = vpop.f32.mrb[0].mxu0
  %v1194 = vadd.f32 %v1109, %v1193
  %v1195 = vpop.f32.mrb[0].mxu0
  %1196 = vmatprep.mubr.f32.mxu0 0.0
  %1197 = vmatmul.mubr.f32.gmra.mrb[0].mxu0 %v1032
  %v1198 = vpop.f32.mrb[0].mxu0
  %v1199 = vadd.f32 %v1114, %v1198
  %v1200 = vpop.f32.mrb[0].mxu0
  %1201 = vmatprep.mubr.f32.mxu0 0.0
  %1202 = vmatmul.mubr.f32.gmra.mrb[0].mxu0 %v1035
  %v1203 = vpop.f32.mrb[0].mxu0
  %v1204 = vadd.f32 %v1119, %v1203
  %v1205 = vpop.f32.mrb[0].mxu0
  %1206 = vdwg.mxu0
  %1208 = vset.pattern.permute.xlu0 0
  %1209 = vperm.xlu0 %1208, %v835
  %v1210 = vpop.permute.xlu0 %1209
  %1213 = vset.pattern.permute.xlu0 0
  %1214 = vperm.xlu0 %1213, %v836
  %v1215 = vpop.permute.xlu0 %1214
  %1218 = vset.pattern.permute.xlu0 0
  %1219 = vperm.xlu0 %1218, %v837
  %v1220 = vpop.permute.xlu0 %1219
  %1223 = vset.pattern.permute.xlu0 0
  %1224 = vperm.xlu0 %1223, %v838
  %v1225 = vpop.permute.xlu0 %1224
  %v1227 = vmul.f32 %v1189, %v1210
  %v1228 = vmul.f32 %v1194, %v1215
  %v1229 = vmul.f32 %v1199, %v1220
  %v1230 = vmul.f32 %v1204, %v1225
  %1232 = vset.pattern.permute.xlu0 0
  %1233 = vperm.xlu0 %1232, %v839
  %v1234 = vpop.permute.xlu0 %1233
  %1237 = vset.pattern.permute.xlu0 0
  %1238 = vperm.xlu0 %1237, %v840
  %v1239 = vpop.permute.xlu0 %1238
  %1242 = vset.pattern.permute.xlu0 0
  %1243 = vperm.xlu0 %1242, %v841
  %v1244 = vpop.permute.xlu0 %1243
  %1247 = vset.pattern.permute.xlu0 0
  %1248 = vperm.xlu0 %1247, %v842
  %v1249 = vpop.permute.xlu0 %1248
  %v1251 = vadd.f32 %v1227, %v1234
  %v1252 = vadd.f32 %v1228, %v1239
  %v1253 = vadd.f32 %v1229, %v1244
  %v1254 = vadd.f32 %v1230, %v1249
  %v1255 = vmax.f32 %v1251, 0.0
  %v1256 = vmax.f32 %v1252, 0.0
  %v1257 = vmax.f32 %v1253, 0.0
  %v1258 = vmax.f32 %v1254, 0.0
  %v1260 = vlaneseq
  %v1261 = vshrl.u32 %v1260, 7
  %v1262 = vsub.s32 0, %v1261
  %v1263 = vrot.slane %v851, %v1262
  %v1265 = vmul.f32 %v1255, %v1263
  %v1266 = vmul.f32 %v1256, %v1263
  %v1267 = vmul.f32 %v1257, %v1263
  %v1268 = vmul.f32 %v1258, %v1263
  %vm1269 = vcmask 211968
  %1270 = vst.msk [vmem:[#allocation5] sm:$0xff] %vm1269, %v1265
  %1271 = vst.msk [vmem:[#allocation5 + $0x8] sm:$0xff] %vm1269, %v1266
  %1272 = vst.msk [vmem:[#allocation5 + $0x10] sm:$0xff] %vm1269, %v1267
  %1273 = vst.msk [vmem:[#allocation5 + $0x18] sm:$0xff] %vm1269, %v1268
  %1278 = vrot.lane.b32.xlu0 %v1265, 127
  %v1279 = vpop.permute.xlu0 %1278
  %1280 = vrot.lane.b32.xlu0 %v1266, 127
  %v1281 = vpop.permute.xlu0 %1280
  %1282 = vrot.lane.b32.xlu0 %v1267, 127
  %v1283 = vpop.permute.xlu0 %1282
  %1284 = vrot.lane.b32.xlu0 %v1268, 127
  %v1285 = vpop.permute.xlu0 %1284
  %1290 = vst.msk [vmem:[#allocation5 + $0x20] sm:$0xff] %vm1269, %v1279
  %1291 = vst.msk [vmem:[#allocation5 + $0x28] sm:$0xff] %vm1269, %v1281
  %1292 = vst.msk [vmem:[#allocation5 + $0x30] sm:$0xff] %vm1269, %v1283
  %1293 = vst.msk [vmem:[#allocation5 + $0x38] sm:$0xff] %vm1269, %v1285
  %1294 = vrot.lane.b32.xlu0 %v1265, 126
  %v1295 = vpop.permute.xlu0 %1294
  %1296 = vrot.lane.b32.xlu0 %v1266, 126
  %v1297 = vpop.permute.xlu0 %1296
  %1298 = vrot.lane.b32.xlu0 %v1267, 126
  %v1299 = vpop.permute.xlu0 %1298
  %1300 = vrot.lane.b32.xlu0 %v1268, 126
  %v1301 = vpop.permute.xlu0 %1300
  %1306 = vst.msk [vmem:[#allocation5 + $0x40] sm:$0xff] %vm1269, %v1295
  %1307 = vst.msk [vmem:[#allocation5 + $0x48] sm:$0xff] %vm1269, %v1297
  %1308 = vst.msk [vmem:[#allocation5 + $0x50] sm:$0xff] %vm1269, %v1299
  %1309 = vst.msk [vmem:[#allocation5 + $0x58] sm:$0xff] %vm1269, %v1301
  %1310 = vrot.lane.b32.xlu0 %v1265, 125
  %v1311 = vpop.permute.xlu0 %1310
  %1312 = vrot.lane.b32.xlu0 %v1266, 125
  %v1313 = vpop.permute.xlu0 %1312
  %1314 = vrot.lane.b32.xlu0 %v1267, 125
  %v1315 = vpop.permute.xlu0 %1314
  %1316 = vrot.lane.b32.xlu0 %v1268, 125
  %v1317 = vpop.permute.xlu0 %1316
  %1322 = vst.msk [vmem:[#allocation5 + $0x60] sm:$0xff] %vm1269, %v1311
  %1323 = vst.msk [vmem:[#allocation5 + $0x68] sm:$0xff] %vm1269, %v1313
  %1324 = vst.msk [vmem:[#allocation5 + $0x70] sm:$0xff] %vm1269, %v1315
  %1325 = vst.msk [vmem:[#allocation5 + $0x78] sm:$0xff] %vm1269, %v1317
  %1326 = vrot.lane.b32.xlu0 %v1265, 124
  %v1327 = vpop.permute.xlu0 %1326
  %1328 = vrot.lane.b32.xlu0 %v1266, 124
  %v1329 = vpop.permute.xlu0 %1328
  %1330 = vrot.lane.b32.xlu0 %v1267, 124
  %v1331 = vpop.permute.xlu0 %1330
  %1332 = vrot.lane.b32.xlu0 %v1268, 124
  %v1333 = vpop.permute.xlu0 %1332
  %1338 = vst.msk [vmem:[#allocation5 + $0x80] sm:$0xff] %vm1269, %v1327
  %1339 = vst.msk [vmem:[#allocation5 + $0x88] sm:$0xff] %vm1269, %v1329
  %1340 = vst.msk [vmem:[#allocation5 + $0x90] sm:$0xff] %vm1269, %v1331
  %1341 = vst.msk [vmem:[#allocation5 + $0x98] sm:$0xff] %vm1269, %v1333
  %1342 = vrot.lane.b32.xlu0 %v1265, 123
  %v1343 = vpop.permute.xlu0 %1342
  %1344 = vrot.lane.b32.xlu0 %v1266, 123
  %v1345 = vpop.permute.xlu0 %1344
  %1346 = vrot.lane.b32.xlu0 %v1267, 123
  %v1347 = vpop.permute.xlu0 %1346
  %1348 = vrot.lane.b32.xlu0 %v1268, 123
  %v1349 = vpop.permute.xlu0 %1348
  %1354 = vst.msk [vmem:[#allocation5 + $0xa0] sm:$0xff] %vm1269, %v1343
  %1355 = vst.msk [vmem:[#allocation5 + $0xa8] sm:$0xff] %vm1269, %v1345
  %1356 = vst.msk [vmem:[#allocation5 + $0xb0] sm:$0xff] %vm1269, %v1347
  %1357 = vst.msk [vmem:[#allocation5 + $0xb8] sm:$0xff] %vm1269, %v1349
  %1358 = vrot.lane.b32.xlu0 %v1265, 122
  %v1359 = vpop.permute.xlu0 %1358
  %1360 = vrot.lane.b32.xlu0 %v1266, 122
  %v1361 = vpop.permute.xlu0 %1360
  %1362 = vrot.lane.b32.xlu0 %v1267, 122
  %v1363 = vpop.permute.xlu0 %1362
  %1364 = vrot.lane.b32.xlu0 %v1268, 122
  %v1365 = vpop.permute.xlu0 %1364
  %1370 = vst.msk [vmem:[#allocation5 + $0xc0] sm:$0xff] %vm1269, %v1359
  %1371 = vst.msk [vmem:[#allocation5 + $0xc8] sm:$0xff] %vm1269, %v1361
  %1372 = vst.msk [vmem:[#allocation5 + $0xd0] sm:$0xff] %vm1269, %v1363
  %1373 = vst.msk [vmem:[#allocation5 + $0xd8] sm:$0xff] %vm1269, %v1365
  %1374 = vrot.lane.b32.xlu0 %v1265, 121
  %v1375 = vpop.permute.xlu0 %1374
  %1376 = vrot.lane.b32.xlu0 %v1266, 121
  %v1377 = vpop.permute.xlu0 %1376
  %1378 = vrot.lane.b32.xlu0 %v1267, 121
  %v1379 = vpop.permute.xlu0 %1378
  %1380 = vrot.lane.b32.xlu0 %v1268, 121
  %v1381 = vpop.permute.xlu0 %1380
  %1386 = vst.msk [vmem:[#allocation5 + $0xe0] sm:$0xff] %vm1269, %v1375
  %1387 = vst.msk [vmem:[#allocation5 + $0xe8] sm:$0xff] %vm1269, %v1377
  %1388 = vst.msk [vmem:[#allocation5 + $0xf0] sm:$0xff] %vm1269, %v1379
  %1389 = vst.msk [vmem:[#allocation5 + $0xf8] sm:$0xff] %vm1269, %v1381
  %1390 = vrot.lane.b32.xlu0 %v1265, 120
  %v1391 = vpop.permute.xlu0 %1390
  %1392 = vrot.lane.b32.xlu0 %v1266, 120
  %v1393 = vpop.permute.xlu0 %1392
  %1394 = vrot.lane.b32.xlu0 %v1267, 120
  %v1395 = vpop.permute.xlu0 %1394
  %1396 = vrot.lane.b32.xlu0 %v1268, 120
  %v1397 = vpop.permute.xlu0 %1396
  %1402 = vst.msk [vmem:[#allocation5 + $0x100] sm:$0xff] %vm1269, %v1391
  %1403 = vst.msk [vmem:[#allocation5 + $0x108] sm:$0xff] %vm1269, %v1393
  %1404 = vst.msk [vmem:[#allocation5 + $0x110] sm:$0xff] %vm1269, %v1395
  %1405 = vst.msk [vmem:[#allocation5 + $0x118] sm:$0xff] %vm1269, %v1397
  %v1406 = vld [vmem:[#allocation5] sm:$0xff]
  %v1407 = vld [vmem:[#allocation5 + $0x8] sm:$0xff]
  %v1408 = vld [vmem:[#allocation5 + $0x10] sm:$0xff]
  %v1409 = vld [vmem:[#allocation5 + $0x18] sm:$0xff]
  %v1410 = vld [vmem:[#allocation5 + $0x20] sm:$0xff]
  %v1411 = vld [vmem:[#allocation5 + $0x28] sm:$0xff]
  %v1412 = vld [vmem:[#allocation5 + $0x30] sm:$0xff]
  %v1413 = vld [vmem:[#allocation5 + $0x38] sm:$0xff]
  %v1414 = vld [vmem:[#allocation5 + $0x40] sm:$0xff]
  %v1415 = vld [vmem:[#allocation5 + $0x48] sm:$0xff]
  %v1416 = vld [vmem:[#allocation5 + $0x50] sm:$0xff]
  %v1417 = vld [vmem:[#allocation5 + $0x58] sm:$0xff]
  %v1418 = vld [vmem:[#allocation5 + $0x60] sm:$0xff]
  %v1419 = vld [vmem:[#allocation5 + $0x68] sm:$0xff]
  %v1420 = vld [vmem:[#allocation5 + $0x70] sm:$0xff]
  %v1421 = vld [vmem:[#allocation5 + $0x78] sm:$0xff]
  %v1422 = vld [vmem:[#allocation5 + $0x80] sm:$0xff]
  %v1423 = vld [vmem:[#allocation5 + $0x88] sm:$0xff]
  %v1424 = vld [vmem:[#allocation5 + $0x90] sm:$0xff]
  %v1425 = vld [vmem:[#allocation5 + $0x98] sm:$0xff]
  %v1426 = vld [vmem:[#allocation5 + $0xa0] sm:$0xff]
  %v1427 = vld [vmem:[#allocation5 + $0xa8] sm:$0xff]
  %v1428 = vld [vmem:[#allocation5 + $0xb0] sm:$0xff]
  %v1429 = vld [vmem:[#allocation5 + $0xb8] sm:$0xff]
  %v1430 = vld [vmem:[#allocation5 + $0xc0] sm:$0xff]
  %v1431 = vld [vmem:[#allocation5 + $0xc8] sm:$0xff]
  %v1432 = vld [vmem:[#allocation5 + $0xd0] sm:$0xff]
  %v1433 = vld [vmem:[#allocation5 + $0xd8] sm:$0xff]
  %v1434 = vld [vmem:[#allocation5 + $0xe0] sm:$0xff]
  %v1435 = vld [vmem:[#allocation5 + $0xe8] sm:$0xff]
  %v1436 = vld [vmem:[#allocation5 + $0xf0] sm:$0xff]
  %v1437 = vld [vmem:[#allocation5 + $0xf8] sm:$0xff]
  %v1438 = vld [vmem:[#allocation5 + $0x100] sm:$0xff]
  %v1439 = vld [vmem:[#allocation5 + $0x108] sm:$0xff]
  %v1440 = vld [vmem:[#allocation5 + $0x110] sm:$0xff]
  %v1441 = vld [vmem:[#allocation5 + $0x118] sm:$0xff]
  %v1443 = vsel %vm636, %v825, 0
  %v1446 = vsel %vm636, %v828, 0
  %v1449 = vsel %vm636, %v831, 0
  %v1452 = vsel %vm636, %v834, 0
  %1454 = vmatprep.subr.mxu0 0.0
  %1455 = vmatpush1.msra.mxu0 %v1406
  %1456 = vmatprep.subr.mxu0 0.0
  %1457 = vmatpush1.msra.mxu0 %v1407
  %1458 = vmatprep.subr.mxu0 0.0
  %1459 = vmatpush1.msra.mxu0 %v1408
  %1460 = vmatprep.subr.mxu0 0.0
  %1461 = vmatpush1.msra.mxu0 %v1409
  %1462 = vmatprep.subr.mxu0 0.0
  %1463 = vmatpush1.msra.mxu0 %v1410
  %1464 = vmatprep.subr.mxu0 0.0
  %1465 = vmatpush1.msra.mxu0 %v1411
  %1466 = vmatprep.subr.mxu0 0.0
  %1467 = vmatpush1.msra.mxu0 %v1412
  %1468 = vmatprep.subr.mxu0 0.0
  %1469 = vmatpush1.msra.mxu0 %v1413
  %1470 = vmatprep.subr.mxu0 0.0
  %1471 = vmatpush1.msra.mxu0 %v1414
  %1472 = vmatprep.subr.mxu0 0.0
  %1473 = vmatpush1.msra.mxu0 %v1415
  %1474 = vmatprep.subr.mxu0 0.0
  %1475 = vmatpush1.msra.mxu0 %v1416
  %1476 = vmatprep.subr.mxu0 0.0
  %1477 = vmatpush1.msra.mxu0 %v1417
  %1478 = vmatprep.subr.mxu0 0.0
  %1479 = vmatpush1.msra.mxu0 %v1418
  %1480 = vmatprep.subr.mxu0 0.0
  %1481 = vmatpush1.msra.mxu0 %v1419
  %1482 = vmatprep.subr.mxu0 0.0
  %1483 = vmatpush1.msra.mxu0 %v1420
  %1484 = vmatprep.subr.mxu0 0.0
  %1485 = vmatpush1.msra.mxu0 %v1421
  %1486 = vmatprep.subr.mxu0 0.0
  %1487 = vmatpush1.msra.mxu0 %v1422
  %1488 = vmatprep.subr.mxu0 0.0
  %1489 = vmatpush1.msra.mxu0 %v1423
  %1490 = vmatprep.subr.mxu0 0.0
  %1491 = vmatpush1.msra.mxu0 %v1424
  %1492 = vmatprep.subr.mxu0 0.0
  %1493 = vmatpush1.msra.mxu0 %v1425
  %1494 = vmatprep.subr.mxu0 0.0
  %1495 = vmatpush1.msra.mxu0 %v1426
  %1496 = vmatprep.subr.mxu0 0.0
  %1497 = vmatpush1.msra.mxu0 %v1427
  %1498 = vmatprep.subr.mxu0 0.0
  %1499 = vmatpush1.msra.mxu0 %v1428
  %1500 = vmatprep.subr.mxu0 0.0
  %1501 = vmatpush1.msra.mxu0 %v1429
  %1502 = vmatprep.subr.mxu0 0.0
  %1503 = vmatpush1.msra.mxu0 %v1430
  %1504 = vmatprep.subr.mxu0 0.0
  %1505 = vmatpush1.msra.mxu0 %v1431
  %1506 = vmatprep.subr.mxu0 0.0
  %1507 = vmatpush1.msra.mxu0 %v1432
  %1508 = vmatprep.subr.mxu0 0.0
  %1509 = vmatpush1.msra.mxu0 %v1433
  %1510 = vmatprep.subr.mxu0 0.0
  %1511 = vmatpush1.msra.mxu0 %v1434
  %1512 = vmatprep.subr.mxu0 0.0
  %1513 = vmatpush1.msra.mxu0 %v1435
  %1514 = vmatprep.subr.mxu0 0.0
  %1515 = vmatpush1.msra.mxu0 %v1436
  %1516 = vmatprep.subr.mxu0 0.0
  %1517 = vmatpush1.msra.mxu0 %v1437
  %1518 = vmatprep.mubr.f32.mxu0 %v824
  %1519 = vmatmul.mubr.f32.gmra.mrb[0].mxu0 %v823
  %v1520 = vpop.f32.mrb[0].mxu0
  %v1521 = vadd.f32 0.0, %v1520
  %v1522 = vpop.f32.mrb[0].mxu0
  %1523 = vmatprep.mubr.f32.mxu0 %v827
  %1524 = vmatmul.mubr.f32.gmra.mrb[0].mxu0 %v826
  %v1525 = vpop.f32.mrb[0].mxu0
  %v1526 = vadd.f32 0.0, %v1525
  %v1527 = vpop.f32.mrb[0].mxu0
  %1528 = vmatprep.mubr.f32.mxu0 %v830
  %1529 = vmatmul.mubr.f32.gmra.mrb[0].mxu0 %v829
  %v1530 = vpop.f32.mrb[0].mxu0
  %v1531 = vadd.f32 0.0, %v1530
  %v1532 = vpop.f32.mrb[0].mxu0
  %1533 = vmatprep.mubr.f32.mxu0 %v833
  %1534 = vmatmul.mubr.f32.gmra.mrb[0].mxu0 %v832
  %v1535 = vpop.f32.mrb[0].mxu0
  %v1536 = vadd.f32 0.0, %v1535
  %v1537 = vpop.f32.mrb[0].mxu0
  %1538 = vdwg.mxu0
  %1539 = vmatprep.subr.mxu0 0.0
  %1540 = vmatpush1.msra.mxu0 %v1438
  %1541 = vmatprep.subr.mxu0 0.0
  %1542 = vmatpush1.msra.mxu0 %v1439
  %1543 = vmatprep.subr.mxu0 0.0
  %1544 = vmatpush1.msra.mxu0 %v1440
  %1545 = vmatprep.subr.mxu0 0.0
  %1546 = vmatpush1.msra.mxu0 %v1441
  %1547 = vmatprep.subr.mxu0 0.0
  %1548 = vmatpush1.msra.mxu0 0.0
  %1549 = vmatprep.subr.mxu0 0.0
  %1550 = vmatpush1.msra.mxu0 0.0
  %1551 = vmatprep.subr.mxu0 0.0
  %1552 = vmatpush1.msra.mxu0 0.0
  %1553 = vmatprep.subr.mxu0 0.0
  %1554 = vmatpush1.msra.mxu0 0.0
  %1555 = vmatprep.subr.mxu0 0.0
  %1556 = vmatpush1.msra.mxu0 0.0
  %1557 = vmatprep.subr.mxu0 0.0
  %1558 = vmatpush1.msra.mxu0 0.0
  %1559 = vmatprep.subr.mxu0 0.0
  %1560 = vmatpush1.msra.mxu0 0.0
  %1561 = vmatprep.subr.mxu0 0.0
  %1562 = vmatpush1.msra.mxu0 0.0
  %1563 = vmatprep.subr.mxu0 0.0
  %1564 = vmatpush1.msra.mxu0 0.0
  %1565 = vmatprep.subr.mxu0 0.0
  %1566 = vmatpush1.msra.mxu0 0.0
  %1567 = vmatprep.subr.mxu0 0.0
  %1568 = vmatpush1.msra.mxu0 0.0
  %1569 = vmatprep.subr.mxu0 0.0
  %1570 = vmatpush1.msra.mxu0 0.0
  %1571 = vmatprep.subr.mxu0 0.0
  %1572 = vmatpush1.msra.mxu0 0.0
  %1573 = vmatprep.subr.mxu0 0.0
  %1574 = vmatpush1.msra.mxu0 0.0
  %1575 = vmatprep.subr.mxu0 0.0
  %1576 = vmatpush1.msra.mxu0 0.0
  %1577 = vmatprep.subr.mxu0 0.0
  %1578 = vmatpush1.msra.mxu0 0.0
  %1579 = vmatprep.subr.mxu0 0.0
  %1580 = vmatpush1.msra.mxu0 0.0
  %1581 = vmatprep.subr.mxu0 0.0
  %1582 = vmatpush1.msra.mxu0 0.0
  %1583 = vmatprep.subr.mxu0 0.0
  %1584 = vmatpush1.msra.mxu0 0.0
  %1585 = vmatprep.subr.mxu0 0.0
  %1586 = vmatpush1.msra.mxu0 0.0
  %1587 = vmatprep.subr.mxu0 0.0
  %1588 = vmatpush1.msra.mxu0 0.0
  %1589 = vmatprep.subr.mxu0 0.0
  %1590 = vmatpush1.msra.mxu0 0.0
  %1591 = vmatprep.subr.mxu0 0.0
  %1592 = vmatpush1.msra.mxu0 0.0
  %1593 = vmatprep.subr.mxu0 0.0
  %1594 = vmatpush1.msra.mxu0 0.0
  %1595 = vmatprep.subr.mxu0 0.0
  %1596 = vmatpush1.msra.mxu0 0.0
  %1597 = vmatprep.subr.mxu0 0.0
  %1598 = vmatpush1.msra.mxu0 0.0
  %1599 = vmatprep.subr.mxu0 0.0
  %1600 = vmatpush1.msra.mxu0 0.0
  %1601 = vmatprep.subr.mxu0 0.0
  %1602 = vmatpush1.msra.mxu0 0.0
  %1603 = vmatprep.mubr.f32.mxu0 0.0
  %1604 = vmatmul.mubr.f32.gmra.mrb[0].mxu0 %v1443
  %v1605 = vpop.f32.mrb[0].mxu0
  %v1606 = vadd.f32 %v1521, %v1605
  %v1607 = vpop.f32.mrb[0].mxu0
  %1608 = vmatprep.mubr.f32.mxu0 0.0
  %1609 = vmatmul.mubr.f32.gmra.mrb[0].mxu0 %v1446
  %v1610 = vpop.f32.mrb[0].mxu0
  %v1611 = vadd.f32 %v1526, %v1610
  %v1612 = vpop.f32.mrb[0].mxu0
  %1613 = vmatprep.mubr.f32.mxu0 0.0
  %1614 = vmatmul.mubr.f32.gmra.mrb[0].mxu0 %v1449
  %v1615 = vpop.f32.mrb[0].mxu0
  %v1616 = vadd.f32 %v1531, %v1615
  %v1617 = vpop.f32.mrb[0].mxu0
  %1618 = vmatprep.mubr.f32.mxu0 0.0
  %1619 = vmatmul.mubr.f32.gmra.mrb[0].mxu0 %v1452
  %v1620 = vpop.f32.mrb[0].mxu0
  %v1621 = vadd.f32 %v1536, %v1620
  %v1622 = vpop.f32.mrb[0].mxu0
  %1623 = vdwg.mxu0
  %1625 = vset.pattern.permute.xlu0 0
  %1626 = vperm.xlu0 %1625, %v843
  %v1627 = vpop.permute.xlu0 %1626
  %1630 = vset.pattern.permute.xlu0 0
  %1631 = vperm.xlu0 %1630, %v844
  %v1632 = vpop.permute.xlu0 %1631
  %1635 = vset.pattern.permute.xlu0 0
  %1636 = vperm.xlu0 %1635, %v845
  %v1637 = vpop.permute.xlu0 %1636
  %1640 = vset.pattern.permute.xlu0 0
  %1641 = vperm.xlu0 %1640, %v846
  %v1642 = vpop.permute.xlu0 %1641
  %v1644 = vmul.f32 %v1606, %v1627
  %v1645 = vmul.f32 %v1611, %v1632
  %v1646 = vmul.f32 %v1616, %v1637
  %v1647 = vmul.f32 %v1621, %v1642
  %1649 = vset.pattern.permute.xlu0 0
  %1650 = vperm.xlu0 %1649, %v847
  %v1651 = vpop.permute.xlu0 %1650
  %1654 = vset.pattern.permute.xlu0 0
  %1655 = vperm.xlu0 %1654, %v848
  %v1656 = vpop.permute.xlu0 %1655
  %1659 = vset.pattern.permute.xlu0 0
  %1660 = vperm.xlu0 %1659, %v849
  %v1661 = vpop.permute.xlu0 %1660
  %1664 = vset.pattern.permute.xlu0 0
  %1665 = vperm.xlu0 %1664, %v850
  %v1666 = vpop.permute.xlu0 %1665
  %v1668 = vadd.f32 %v1644, %v1651
  %v1669 = vadd.f32 %v1645, %v1656
  %v1670 = vadd.f32 %v1646, %v1661
  %v1671 = vadd.f32 %v1647, %v1666
  %v1672 = vmax.f32 %v1668, 0.0
  %v1673 = vmax.f32 %v1669, 0.0
  %v1674 = vmax.f32 %v1670, 0.0
  %v1675 = vmax.f32 %v1671, 0.0
  %1676 = vrot.lane.b32.xlu0 %v1263, 124
  %v1677 = vpop.permute.xlu0 %1676
  %v1679 = vmul.f32 %v1672, %v1677
  %v1680 = vmul.f32 %v1673, %v1677
  %v1681 = vmul.f32 %v1674, %v1677
  %v1682 = vmul.f32 %v1675, %v1677
  %v1683 = vmax.f32 %v807, 0.0
  %v1684 = vmax.f32 %v808, 0.0
  %v1685 = vmax.f32 %v809, 0.0
  %v1686 = vmax.f32 %v810, 0.0
  %1691 = vrot.lane.b32.xlu0 %v1679, 127
  %v1692 = vpop.permute.xlu0 %1691
  %1693 = vrot.lane.b32.xlu0 %v1680, 127
  %v1694 = vpop.permute.xlu0 %1693
  %1695 = vrot.lane.b32.xlu0 %v1681, 127
  %v1696 = vpop.permute.xlu0 %1695
  %1697 = vrot.lane.b32.xlu0 %v1682, 127
  %v1698 = vpop.permute.xlu0 %1697
  %v1703 = vmax.f32 %v1679, %v1692
  %v1704 = vmax.f32 %v1680, %v1694
  %v1705 = vmax.f32 %v1681, %v1696
  %v1706 = vmax.f32 %v1682, %v1698
  %1711 = vrot.lane.b32.xlu0 %v1683, 127
  %v1712 = vpop.permute.xlu0 %1711
  %1713 = vrot.lane.b32.xlu0 %v1684, 127
  %v1714 = vpop.permute.xlu0 %1713
  %1715 = vrot.lane.b32.xlu0 %v1685, 127
  %v1716 = vpop.permute.xlu0 %1715
  %1717 = vrot.lane.b32.xlu0 %v1686, 127
  %v1718 = vpop.permute.xlu0 %1717
  %v1723 = vmax.f32 %v1683, %v1712
  %v1724 = vmax.f32 %v1684, %v1714
  %v1725 = vmax.f32 %v1685, %v1716
  %v1726 = vmax.f32 %v1686, %v1718
  %1727 = vrot.lane.b32.xlu0 %v1679, 126
  %v1728 = vpop.permute.xlu0 %1727
  %1729 = vrot.lane.b32.xlu0 %v1680, 126
  %v1730 = vpop.permute.xlu0 %1729
  %1731 = vrot.lane.b32.xlu0 %v1681, 126
  %v1732 = vpop.permute.xlu0 %1731
  %1733 = vrot.lane.b32.xlu0 %v1682, 126
  %v1734 = vpop.permute.xlu0 %1733
  %v1739 = vmax.f32 %v1703, %v1728
  %v1740 = vmax.f32 %v1704, %v1730
  %v1741 = vmax.f32 %v1705, %v1732
  %v1742 = vmax.f32 %v1706, %v1734
  %1743 = vrot.lane.b32.xlu0 %v1683, 126
  %v1744 = vpop.permute.xlu0 %1743
  %1745 = vrot.lane.b32.xlu0 %v1684, 126
  %v1746 = vpop.permute.xlu0 %1745
  %1747 = vrot.lane.b32.xlu0 %v1685, 126
  %v1748 = vpop.permute.xlu0 %1747
  %1749 = vrot.lane.b32.xlu0 %v1686, 126
  %v1750 = vpop.permute.xlu0 %1749
  %v1755 = vmax.f32 %v1723, %v1744
  %v1756 = vmax.f32 %v1724, %v1746
  %v1757 = vmax.f32 %v1725, %v1748
  %v1758 = vmax.f32 %v1726, %v1750
  %1759 = vrot.lane.b32.xlu0 %v1679, 125
  %v1760 = vpop.permute.xlu0 %1759
  %1761 = vrot.lane.b32.xlu0 %v1680, 125
  %v1762 = vpop.permute.xlu0 %1761
  %1763 = vrot.lane.b32.xlu0 %v1681, 125
  %v1764 = vpop.permute.xlu0 %1763
  %1765 = vrot.lane.b32.xlu0 %v1682, 125
  %v1766 = vpop.permute.xlu0 %1765
  %v1771 = vmax.f32 %v1739, %v1760
  %v1772 = vmax.f32 %v1740, %v1762
  %v1773 = vmax.f32 %v1741, %v1764
  %v1774 = vmax.f32 %v1742, %v1766
  %1775 = vrot.lane.b32.xlu0 %v1683, 125
  %v1776 = vpop.permute.xlu0 %1775
  %1777 = vrot.lane.b32.xlu0 %v1684, 125
  %v1778 = vpop.permute.xlu0 %1777
  %1779 = vrot.lane.b32.xlu0 %v1685, 125
  %v1780 = vpop.permute.xlu0 %1779
  %1781 = vrot.lane.b32.xlu0 %v1686, 125
  %v1782 = vpop.permute.xlu0 %1781
  %v1787 = vmax.f32 %v1755, %v1776
  %v1788 = vmax.f32 %v1756, %v1778
  %v1789 = vmax.f32 %v1757, %v1780
  %v1790 = vmax.f32 %v1758, %v1782
  %1791 = vrot.lane.b32.xlu0 %v1679, 124
  %v1792 = vpop.permute.xlu0 %1791
  %1793 = vrot.lane.b32.xlu0 %v1680, 124
  %v1794 = vpop.permute.xlu0 %1793
  %1795 = vrot.lane.b32.xlu0 %v1681, 124
  %v1796 = vpop.permute.xlu0 %1795
  %1797 = vrot.lane.b32.xlu0 %v1682, 124
  %v1798 = vpop.permute.xlu0 %1797
  %v1803 = vmax.f32 %v1771, %v1792
  %v1804 = vmax.f32 %v1772, %v1794
  %v1805 = vmax.f32 %v1773, %v1796
  %v1806 = vmax.f32 %v1774, %v1798
  %1807 = vrot.lane.b32.xlu0 %v1683, 124
  %v1808 = vpop.permute.xlu0 %1807
  %1809 = vrot.lane.b32.xlu0 %v1684, 124
  %v1810 = vpop.permute.xlu0 %1809
  %1811 = vrot.lane.b32.xlu0 %v1685, 124
  %v1812 = vpop.permute.xlu0 %1811
  %1813 = vrot.lane.b32.xlu0 %v1686, 124
  %v1814 = vpop.permute.xlu0 %1813
  %v1819 = vmax.f32 %v1787, %v1808
  %v1820 = vmax.f32 %v1788, %v1810
  %v1821 = vmax.f32 %v1789, %v1812
  %v1822 = vmax.f32 %v1790, %v1814
  %1823 = vrot.lane.b32.xlu0 %v1679, 123
  %v1824 = vpop.permute.xlu0 %1823
  %1825 = vrot.lane.b32.xlu0 %v1680, 123
  %v1826 = vpop.permute.xlu0 %1825
  %1827 = vrot.lane.b32.xlu0 %v1681, 123
  %v1828 = vpop.permute.xlu0 %1827
  %1829 = vrot.lane.b32.xlu0 %v1682, 123
  %v1830 = vpop.permute.xlu0 %1829
  %v1835 = vmax.f32 %v1803, %v1824
  %v1836 = vmax.f32 %v1804, %v1826
  %v1837 = vmax.f32 %v1805, %v1828
  %v1838 = vmax.f32 %v1806, %v1830
  %1839 = vrot.lane.b32.xlu0 %v1683, 123
  %v1840 = vpop.permute.xlu0 %1839
  %1841 = vrot.lane.b32.xlu0 %v1684, 123
  %v1842 = vpop.permute.xlu0 %1841
  %1843 = vrot.lane.b32.xlu0 %v1685, 123
  %v1844 = vpop.permute.xlu0 %1843
  %1845 = vrot.lane.b32.xlu0 %v1686, 123
  %v1846 = vpop.permute.xlu0 %1845
  %v1851 = vmax.f32 %v1819, %v1840
  %v1852 = vmax.f32 %v1820, %v1842
  %v1853 = vmax.f32 %v1821, %v1844
  %v1854 = vmax.f32 %v1822, %v1846
  %1855 = vrot.lane.b32.xlu0 %v1679, 122
  %v1856 = vpop.permute.xlu0 %1855
  %1857 = vrot.lane.b32.xlu0 %v1680, 122
  %v1858 = vpop.permute.xlu0 %1857
  %1859 = vrot.lane.b32.xlu0 %v1681, 122
  %v1860 = vpop.permute.xlu0 %1859
  %1861 = vrot.lane.b32.xlu0 %v1682, 122
  %v1862 = vpop.permute.xlu0 %1861
  %v1867 = vmax.f32 %v1835, %v1856
  %v1868 = vmax.f32 %v1836, %v1858
  %v1869 = vmax.f32 %v1837, %v1860
  %v1870 = vmax.f32 %v1838, %v1862
  %1871 = vrot.lane.b32.xlu0 %v1683, 122
  %v1872 = vpop.permute.xlu0 %1871
  %1873 = vrot.lane.b32.xlu0 %v1684, 122
  %v1874 = vpop.permute.xlu0 %1873
  %1875 = vrot.lane.b32.xlu0 %v1685, 122
  %v1876 = vpop.permute.xlu0 %1875
  %1877 = vrot.lane.b32.xlu0 %v1686, 122
  %v1878 = vpop.permute.xlu0 %1877
  %v1883 = vmax.f32 %v1851, %v1872
  %v1884 = vmax.f32 %v1852, %v1874
  %v1885 = vmax.f32 %v1853, %v1876
  %v1886 = vmax.f32 %v1854, %v1878
  %1887 = vrot.lane.b32.xlu0 %v1679, 121
  %v1888 = vpop.permute.xlu0 %1887
  %1889 = vrot.lane.b32.xlu0 %v1680, 121
  %v1890 = vpop.permute.xlu0 %1889
  %1891 = vrot.lane.b32.xlu0 %v1681, 121
  %v1892 = vpop.permute.xlu0 %1891
  %1893 = vrot.lane.b32.xlu0 %v1682, 121
  %v1894 = vpop.permute.xlu0 %1893
  %v1899 = vmax.f32 %v1867, %v1888
  %v1900 = vmax.f32 %v1868, %v1890
  %v1901 = vmax.f32 %v1869, %v1892
  %v1902 = vmax.f32 %v1870, %v1894
  %1903 = vrot.lane.b32.xlu0 %v1683, 121
  %v1904 = vpop.permute.xlu0 %1903
  %1905 = vrot.lane.b32.xlu0 %v1684, 121
  %v1906 = vpop.permute.xlu0 %1905
  %1907 = vrot.lane.b32.xlu0 %v1685, 121
  %v1908 = vpop.permute.xlu0 %1907
  %1909 = vrot.lane.b32.xlu0 %v1686, 121
  %v1910 = vpop.permute.xlu0 %1909
  %v1915 = vmax.f32 %v1883, %v1904
  %v1916 = vmax.f32 %v1884, %v1906
  %v1917 = vmax.f32 %v1885, %v1908
  %v1918 = vmax.f32 %v1886, %v1910
  %1919 = vrot.lane.b32.xlu0 %v1679, 120
  %v1920 = vpop.permute.xlu0 %1919
  %1921 = vrot.lane.b32.xlu0 %v1680, 120
  %v1922 = vpop.permute.xlu0 %1921
  %1923 = vrot.lane.b32.xlu0 %v1681, 120
  %v1924 = vpop.permute.xlu0 %1923
  %1925 = vrot.lane.b32.xlu0 %v1682, 120
  %v1926 = vpop.permute.xlu0 %1925
  %v1931 = vmax.f32 %v1899, %v1920
  %v1932 = vmax.f32 %v1900, %v1922
  %v1933 = vmax.f32 %v1901, %v1924
  %v1934 = vmax.f32 %v1902, %v1926
  %1935 = vrot.lane.b32.xlu0 %v1683, 120
  %v1936 = vpop.permute.xlu0 %1935
  %1937 = vrot.lane.b32.xlu0 %v1684, 120
  %v1938 = vpop.permute.xlu0 %1937
  %1939 = vrot.lane.b32.xlu0 %v1685, 120
  %v1940 = vpop.permute.xlu0 %1939
  %1941 = vrot.lane.b32.xlu0 %v1686, 120
  %v1942 = vpop.permute.xlu0 %1941
  %v1947 = vmax.f32 %v1915, %v1936
  %v1948 = vmax.f32 %v1916, %v1938
  %v1949 = vmax.f32 %v1917, %v1940
  %v1950 = vmax.f32 %v1918, %v1942
  %v1951 = vld [vmem:[%s16] sm:$0xff]
  %v1952 = vld [vmem:[%s16 + $0x8] sm:$0xff]
  %v1953 = vld [vmem:[%s16 + $0x10] sm:$0x3]
  %vm1954 = vcmask 146432
  %v1956 = vsel %vm1954, %v1931, 0
  %v1959 = vsel %vm1954, %v1932, 0
  %v1962 = vsel %vm1954, %v1933, 0
  %v1965 = vsel %vm1954, %v1934, 0
  %vm1967 = vcmask 1041408
  %v1969 = vsel %vm1967, %v1953, 0
  %1971 = vmatprep.subr.mxu0 0.0
  %1972 = vmatpush1.msra.mxu0 %v1951
  %1973 = vmatprep.subr.mxu0 0.0
  %1974 = vmatpush1.msra.mxu0 %v1952
  %1975 = vmatprep.subr.mxu0 0.0
  %1976 = vmatpush1.msra.mxu0 %v1969
  %1977 = vmatprep.subr.mxu0 0.0
  %1978 = vmatpush1.msra.mxu0 0.0
  %1979 = vmatprep.subr.mxu0 0.0
  %1980 = vmatpush1.msra.mxu0 0.0
  %1981 = vmatprep.subr.mxu0 0.0
  %1982 = vmatpush1.msra.mxu0 0.0
  %1983 = vmatprep.subr.mxu0 0.0
  %1984 = vmatpush1.msra.mxu0 0.0
  %1985 = vmatprep.subr.mxu0 0.0
  %1986 = vmatpush1.msra.mxu0 0.0
  %1987 = vmatprep.subr.mxu0 0.0
  %1988 = vmatpush1.msra.mxu0 0.0
  %1989 = vmatprep.subr.mxu0 0.0
  %1990 = vmatpush1.msra.mxu0 0.0
  %1991 = vmatprep.subr.mxu0 0.0
  %1992 = vmatpush1.msra.mxu0 0.0
  %1993 = vmatprep.subr.mxu0 0.0
  %1994 = vmatpush1.msra.mxu0 0.0
  %1995 = vmatprep.subr.mxu0 0.0
  %1996 = vmatpush1.msra.mxu0 0.0
  %1997 = vmatprep.subr.mxu0 0.0
  %1998 = vmatpush1.msra.mxu0 0.0
  %1999 = vmatprep.subr.mxu0 0.0
  %2000 = vmatpush1.msra.mxu0 0.0
  %2001 = vmatprep.subr.mxu0 0.0
  %2002 = vmatpush1.msra.mxu0 0.0
  %2003 = vmatprep.subr.mxu0 0.0
  %2004 = vmatpush1.msra.mxu0 0.0
  %2005 = vmatprep.subr.mxu0 0.0
  %2006 = vmatpush1.msra.mxu0 0.0
  %2007 = vmatprep.subr.mxu0 0.0
  %2008 = vmatpush1.msra.mxu0 0.0
  %2009 = vmatprep.subr.mxu0 0.0
  %2010 = vmatpush1.msra.mxu0 0.0
  %2011 = vmatprep.subr.mxu0 0.0
  %2012 = vmatpush1.msra.mxu0 0.0
  %2013 = vmatprep.subr.mxu0 0.0
  %2014 = vmatpush1.msra.mxu0 0.0
  %2015 = vmatprep.subr.mxu0 0.0
  %2016 = vmatpush1.msra.mxu0 0.0
  %2017 = vmatprep.subr.mxu0 0.0
  %2018 = vmatpush1.msra.mxu0 0.0
  %2019 = vmatprep.subr.mxu0 0.0
  %2020 = vmatpush1.msra.mxu0 0.0
  %2021 = vmatprep.subr.mxu0 0.0
  %2022 = vmatpush1.msra.mxu0 0.0
  %2023 = vmatprep.subr.mxu0 0.0
  %2024 = vmatpush1.msra.mxu0 0.0
  %2025 = vmatprep.subr.mxu0 0.0
  %2026 = vmatpush1.msra.mxu0 0.0
  %2027 = vmatprep.subr.mxu0 0.0
  %2028 = vmatpush1.msra.mxu0 0.0
  %2029 = vmatprep.subr.mxu0 0.0
  %2030 = vmatpush1.msra.mxu0 0.0
  %2031 = vmatprep.subr.mxu0 0.0
  %2032 = vmatpush1.msra.mxu0 0.0
  %2033 = vmatprep.subr.mxu0 0.0
  %2034 = vmatpush1.msra.mxu0 0.0
  %2035 = vmatprep.mubr.f32.mxu0 0.0
  %2036 = vmatmul.mubr.f32.gmra.mrb[0].mxu0 %v1956
  %v2037 = vpop.f32.mrb[0].mxu0
  %v2038 = vadd.f32 0.0, %v2037
  %v2039 = vpop.f32.mrb[0].mxu0
  %2040 = vmatprep.mubr.f32.mxu0 0.0
  %2041 = vmatmul.mubr.f32.gmra.mrb[0].mxu0 %v1959
  %v2042 = vpop.f32.mrb[0].mxu0
  %v2043 = vadd.f32 0.0, %v2042
  %v2044 = vpop.f32.mrb[0].mxu0
  %2045 = vmatprep.mubr.f32.mxu0 0.0
  %2046 = vmatmul.mubr.f32.gmra.mrb[0].mxu0 %v1962
  %v2047 = vpop.f32.mrb[0].mxu0
  %v2048 = vadd.f32 0.0, %v2047
  %v2049 = vpop.f32.mrb[0].mxu0
  %2050 = vmatprep.mubr.f32.mxu0 0.0
  %2051 = vmatmul.mubr.f32.gmra.mrb[0].mxu0 %v1965
  %v2052 = vpop.f32.mrb[0].mxu0
  %v2053 = vadd.f32 0.0, %v2052
  %v2054 = vpop.f32.mrb[0].mxu0
  %2055 = vdwg.mxu0
  %2060 = vrot.lane.b32.xlu0 %v1947, 120
  %v2061 = vpop.permute.xlu0 %2060
  %2062 = vrot.lane.b32.xlu0 %v1948, 120
  %v2063 = vpop.permute.xlu0 %2062
  %2064 = vrot.lane.b32.xlu0 %v1949, 120
  %v2065 = vpop.permute.xlu0 %2064
  %2066 = vrot.lane.b32.xlu0 %v1950, 120
  %v2067 = vpop.permute.xlu0 %2066
  %v2068 = vsel %vm1954, %v2061, 0
  %v2070 = vsel %vm1954, %v2063, 0
  %v2072 = vsel %vm1954, %v2065, 0
  %v2074 = vsel %vm1954, %v2067, 0
  %2076 = vmatprep.subr.mxu0 0.0
  %2077 = vmatpush1.msra.mxu0 %v1951
  %2078 = vmatprep.subr.mxu0 0.0
  %2079 = vmatpush1.msra.mxu0 %v1952
  %2080 = vmatprep.subr.mxu0 0.0
  %2081 = vmatpush1.msra.mxu0 %v1969
  %2082 = vmatprep.subr.mxu0 0.0
  %2083 = vmatpush1.msra.mxu0 0.0
  %2084 = vmatprep.subr.mxu0 0.0
  %2085 = vmatpush1.msra.mxu0 0.0
  %2086 = vmatprep.subr.mxu0 0.0
  %2087 = vmatpush1.msra.mxu0 0.0
  %2088 = vmatprep.subr.mxu0 0.0
  %2089 = vmatpush1.msra.mxu0 0.0
  %2090 = vmatprep.subr.mxu0 0.0
  %2091 = vmatpush1.msra.mxu0 0.0
  %2092 = vmatprep.subr.mxu0 0.0
  %2093 = vmatpush1.msra.mxu0 0.0
  %2094 = vmatprep.subr.mxu0 0.0
  %2095 = vmatpush1.msra.mxu0 0.0
  %2096 = vmatprep.subr.mxu0 0.0
  %2097 = vmatpush1.msra.mxu0 0.0
  %2098 = vmatprep.subr.mxu0 0.0
  %2099 = vmatpush1.msra.mxu0 0.0
  %2100 = vmatprep.subr.mxu0 0.0
  %2101 = vmatpush1.msra.mxu0 0.0
  %2102 = vmatprep.subr.mxu0 0.0
  %2103 = vmatpush1.msra.mxu0 0.0
  %2104 = vmatprep.subr.mxu0 0.0
  %2105 = vmatpush1.msra.mxu0 0.0
  %2106 = vmatprep.subr.mxu0 0.0
  %2107 = vmatpush1.msra.mxu0 0.0
  %2108 = vmatprep.subr.mxu0 0.0
  %2109 = vmatpush1.msra.mxu0 0.0
  %2110 = vmatprep.subr.mxu0 0.0
  %2111 = vmatpush1.msra.mxu0 0.0
  %2112 = vmatprep.subr.mxu0 0.0
  %2113 = vmatpush1.msra.mxu0 0.0
  %2114 = vmatprep.subr.mxu0 0.0
  %2115 = vmatpush1.msra.mxu0 0.0
  %2116 = vmatprep.subr.mxu0 0.0
  %2117 = vmatpush1.msra.mxu0 0.0
  %2118 = vmatprep.subr.mxu0 0.0
  %2119 = vmatpush1.msra.mxu0 0.0
  %2120 = vmatprep.subr.mxu0 0.0
  %2121 = vmatpush1.msra.mxu0 0.0
  %2122 = vmatprep.subr.mxu0 0.0
  %2123 = vmatpush1.msra.mxu0 0.0
  %2124 = vmatprep.subr.mxu0 0.0
  %2125 = vmatpush1.msra.mxu0 0.0
  %2126 = vmatprep.subr.mxu0 0.0
  %2127 = vmatpush1.msra.mxu0 0.0
  %2128 = vmatprep.subr.mxu0 0.0
  %2129 = vmatpush1.msra.mxu0 0.0
  %2130 = vmatprep.subr.mxu0 0.0
  %2131 = vmatpush1.msra.mxu0 0.0
  %2132 = vmatprep.subr.mxu0 0.0
  %2133 = vmatpush1.msra.mxu0 0.0
  %2134 = vmatprep.subr.mxu0 0.0
  %2135 = vmatpush1.msra.mxu0 0.0
  %2136 = vmatprep.subr.mxu0 0.0
  %2137 = vmatpush1.msra.mxu0 0.0
  %2138 = vmatprep.subr.mxu0 0.0
  %2139 = vmatpush1.msra.mxu0 0.0
  %2140 = vmatprep.mubr.f32.mxu0 0.0
  %2141 = vmatmul.mubr.f32.gmra.mrb[0].mxu0 %v2068
  %v2142 = vpop.f32.mrb[0].mxu0
  %v2143 = vadd.f32 0.0, %v2142
  %v2144 = vpop.f32.mrb[0].mxu0
  %2145 = vmatprep.mubr.f32.mxu0 0.0
  %2146 = vmatmul.mubr.f32.gmra.mrb[0].mxu0 %v2070
  %v2147 = vpop.f32.mrb[0].mxu0
  %v2148 = vadd.f32 0.0, %v2147
  %v2149 = vpop.f32.mrb[0].mxu0
  %2150 = vmatprep.mubr.f32.mxu0 0.0
  %2151 = vmatmul.mubr.f32.gmra.mrb[0].mxu0 %v2072
  %v2152 = vpop.f32.mrb[0].mxu0
  %v2153 = vadd.f32 0.0, %v2152
  %v2154 = vpop.f32.mrb[0].mxu0
  %2155 = vmatprep.mubr.f32.mxu0 0.0
  %2156 = vmatmul.mubr.f32.gmra.mrb[0].mxu0 %v2074
  %v2157 = vpop.f32.mrb[0].mxu0
  %v2158 = vadd.f32 0.0, %v2157
  %v2159 = vpop.f32.mrb[0].mxu0
  %2160 = vdwg.mxu0
  %v2161 = vld [vmem:[%s17] sm:$0xff]
  %v2162 = vld [vmem:[%s17 + $0x8] sm:$0xff]
  %v2163 = vld [vmem:[%s17 + $0x10] sm:$0xff]
  %v2164 = vld [vmem:[%s17 + $0x18] sm:$0xff]
  %v2165 = vld [vmem:[%s17 + $0x20] sm:$0xff]
  %v2166 = vld [vmem:[%s17 + $0x28] sm:$0xff]
  %v2167 = vld [vmem:[%s17 + $0x30] sm:$0xff]
  %v2168 = vld [vmem:[%s17 + $0x38] sm:$0xff]
  %v2169 = vld [vmem:[%s18] sm:$0xff]
  %v2170 = vld [vmem:[%s18 + $0x8] sm:$0xff]
  %v2171 = vld [vmem:[%s18 + $0x10] sm:$0xff]
  %v2172 = vld [vmem:[%s18 + $0x18] sm:$0xff]
  %v2173 = vld [vmem:[%s18 + $0x20] sm:$0xff]
  %v2174 = vld [vmem:[%s18 + $0x28] sm:$0xff]
  %v2175 = vld [vmem:[%s18 + $0x30] sm:$0xff]
  %v2176 = vld [vmem:[%s18 + $0x38] sm:$0xff]
  %v2178 = vsel %vm636, %v2169, 0
  %v2181 = vsel %vm636, %v2170, 0
  %v2184 = vsel %vm636, %v2171, 0
  %v2187 = vsel %vm636, %v2172, 0
  %v2190 = vsel %vm636, %v2173, 0
  %v2193 = vsel %vm636, %v2174, 0
  %v2196 = vsel %vm636, %v2175, 0
  %v2199 = vsel %vm636, %v2176, 0
  %2201 = vmatprep.subr.mxu0 0.0
  %2202 = vmatpush1.msra.mxu0 %v2143
  %2203 = vmatprep.subr.mxu0 0.0
  %2204 = vmatpush1.msra.mxu0 %v2148
  %2205 = vmatprep.subr.mxu0 0.0
  %2206 = vmatpush1.msra.mxu0 %v2153
  %2207 = vmatprep.subr.mxu0 0.0
  %2208 = vmatpush1.msra.mxu0 %v2158
  %2209 = vmatprep.subr.mxu0 0.0
  %2210 = vmatpush1.msra.mxu0 0.0
  %2211 = vmatprep.subr.mxu0 0.0
  %2212 = vmatpush1.msra.mxu0 0.0
  %2213 = vmatprep.subr.mxu0 0.0
  %2214 = vmatpush1.msra.mxu0 0.0
  %2215 = vmatprep.subr.mxu0 0.0
  %2216 = vmatpush1.msra.mxu0 0.0
  %2217 = vmatprep.subr.mxu0 0.0
  %2218 = vmatpush1.msra.mxu0 0.0
  %2219 = vmatprep.subr.mxu0 0.0
  %2220 = vmatpush1.msra.mxu0 0.0
  %2221 = vmatprep.subr.mxu0 0.0
  %2222 = vmatpush1.msra.mxu0 0.0
  %2223 = vmatprep.subr.mxu0 0.0
  %2224 = vmatpush1.msra.mxu0 0.0
  %2225 = vmatprep.subr.mxu0 0.0
  %2226 = vmatpush1.msra.mxu0 0.0
  %2227 = vmatprep.subr.mxu0 0.0
  %2228 = vmatpush1.msra.mxu0 0.0
  %2229 = vmatprep.subr.mxu0 0.0
  %2230 = vmatpush1.msra.mxu0 0.0
  %2231 = vmatprep.subr.mxu0 0.0
  %2232 = vmatpush1.msra.mxu0 0.0
  %2233 = vmatprep.subr.mxu0 0.0
  %2234 = vmatpush1.msra.mxu0 0.0
  %2235 = vmatprep.subr.mxu0 0.0
  %2236 = vmatpush1.msra.mxu0 0.0
  %2237 = vmatprep.subr.mxu0 0.0
  %2238 = vmatpush1.msra.mxu0 0.0
  %2239 = vmatprep.subr.mxu0 0.0
  %2240 = vmatpush1.msra.mxu0 0.0
  %2241 = vmatprep.subr.mxu0 0.0
  %2242 = vmatpush1.msra.mxu0 0.0
  %2243 = vmatprep.subr.mxu0 0.0
  %2244 = vmatpush1.msra.mxu0 0.0
  %2245 = vmatprep.subr.mxu0 0.0
  %2246 = vmatpush1.msra.mxu0 0.0
  %2247 = vmatprep.subr.mxu0 0.0
  %2248 = vmatpush1.msra.mxu0 0.0
  %2249 = vmatprep.subr.mxu0 0.0
  %2250 = vmatpush1.msra.mxu0 0.0
  %2251 = vmatprep.subr.mxu0 0.0
  %2252 = vmatpush1.msra.mxu0 0.0
  %2253 = vmatprep.subr.mxu0 0.0
  %2254 = vmatpush1.msra.mxu0 0.0
  %2255 = vmatprep.subr.mxu0 0.0
  %2256 = vmatpush1.msra.mxu0 0.0
  %2257 = vmatprep.subr.mxu0 0.0
  %2258 = vmatpush1.msra.mxu0 0.0
  %2259 = vmatprep.subr.mxu0 0.0
  %2260 = vmatpush1.msra.mxu0 0.0
  %2261 = vmatprep.subr.mxu0 0.0
  %2262 = vmatpush1.msra.mxu0 0.0
  %2263 = vmatprep.subr.mxu0 0.0
  %2264 = vmatpush1.msra.mxu0 0.0
  %2265 = vmatprep.mubr.f32.mxu0 0.0
  %2266 = vmatmul.mubr.f32.gmra.mrb[0].mxu0 %v2178
  %v2267 = vpop.f32.mrb[0].mxu0
  %v2268 = vadd.f32 0.0, %v2267
  %v2269 = vpop.f32.mrb[0].mxu0
  %2270 = vmatprep.mubr.f32.mxu0 0.0
  %2271 = vmatmul.mubr.f32.gmra.mrb[0].mxu0 %v2181
  %v2272 = vpop.f32.mrb[0].mxu0
  %v2273 = vadd.f32 0.0, %v2272
  %v2274 = vpop.f32.mrb[0].mxu0
  %2275 = vmatprep.mubr.f32.mxu0 0.0
  %2276 = vmatmul.mubr.f32.gmra.mrb[0].mxu0 %v2184
  %v2277 = vpop.f32.mrb[0].mxu0
  %v2278 = vadd.f32 0.0, %v2277
  %v2279 = vpop.f32.mrb[0].mxu0
  %2280 = vmatprep.mubr.f32.mxu0 0.0
  %2281 = vmatmul.mubr.f32.gmra.mrb[0].mxu0 %v2187
  %v2282 = vpop.f32.mrb[0].mxu0
  %v2283 = vadd.f32 0.0, %v2282
  %v2284 = vpop.f32.mrb[0].mxu0
  %2285 = vmatprep.mubr.f32.mxu0 0.0
  %2286 = vmatmul.mubr.f32.gmra.mrb[0].mxu0 %v2190
  %v2287 = vpop.f32.mrb[0].mxu0
  %v2288 = vadd.f32 0.0, %v2287
  %v2289 = vpop.f32.mrb[0].mxu0
  %2290 = vmatprep.mubr.f32.mxu0 0.0
  %2291 = vmatmul.mubr.f32.gmra.mrb[0].mxu0 %v2193
  %v2292 = vpop.f32.mrb[0].mxu0
  %v2293 = vadd.f32 0.0, %v2292
  %v2294 = vpop.f32.mrb[0].mxu0
  %2295 = vmatprep.mubr.f32.mxu0 0.0
  %2296 = vmatmul.mubr.f32.gmra.mrb[0].mxu0 %v2196
  %v2297 = vpop.f32.mrb[0].mxu0
  %v2298 = vadd.f32 0.0, %v2297
  %v2299 = vpop.f32.mrb[0].mxu0
  %2300 = vmatprep.mubr.f32.mxu0 0.0
  %2301 = vmatmul.mubr.f32.gmra.mrb[0].mxu0 %v2199
  %v2302 = vpop.f32.mrb[0].mxu0
  %v2303 = vadd.f32 0.0, %v2302
  %v2304 = vpop.f32.mrb[0].mxu0
  %2305 = vdwg.mxu0
  %v2307 = vsel %vm636, %v2161, 0
  %v2310 = vsel %vm636, %v2162, 0
  %v2313 = vsel %vm636, %v2163, 0
  %v2316 = vsel %vm636, %v2164, 0
  %v2319 = vsel %vm636, %v2165, 0
  %v2322 = vsel %vm636, %v2166, 0
  %v2325 = vsel %vm636, %v2167, 0
  %v2328 = vsel %vm636, %v2168, 0
  %2330 = vmatprep.subr.mxu0 0.0
  %2331 = vmatpush1.msra.mxu0 %v2038
  %2332 = vmatprep.subr.mxu0 0.0
  %2333 = vmatpush1.msra.mxu0 %v2043
  %2334 = vmatprep.subr.mxu0 0.0
  %2335 = vmatpush1.msra.mxu0 %v2048
  %2336 = vmatprep.subr.mxu0 0.0
  %2337 = vmatpush1.msra.mxu0 %v2053
  %2338 = vmatprep.subr.mxu0 0.0
  %2339 = vmatpush1.msra.mxu0 0.0
  %2340 = vmatprep.subr.mxu0 0.0
  %2341 = vmatpush1.msra.mxu0 0.0
  %2342 = vmatprep.subr.mxu0 0.0
  %2343 = vmatpush1.msra.mxu0 0.0
  %2344 = vmatprep.subr.mxu0 0.0
  %2345 = vmatpush1.msra.mxu0 0.0
  %2346 = vmatprep.subr.mxu0 0.0
  %2347 = vmatpush1.msra.mxu0 0.0
  %2348 = vmatprep.subr.mxu0 0.0
  %2349 = vmatpush1.msra.mxu0 0.0
  %2350 = vmatprep.subr.mxu0 0.0
  %2351 = vmatpush1.msra.mxu0 0.0
  %2352 = vmatprep.subr.mxu0 0.0
  %2353 = vmatpush1.msra.mxu0 0.0
  %2354 = vmatprep.subr.mxu0 0.0
  %2355 = vmatpush1.msra.mxu0 0.0
  %2356 = vmatprep.subr.mxu0 0.0
  %2357 = vmatpush1.msra.mxu0 0.0
  %2358 = vmatprep.subr.mxu0 0.0
  %2359 = vmatpush1.msra.mxu0 0.0
  %2360 = vmatprep.subr.mxu0 0.0
  %2361 = vmatpush1.msra.mxu0 0.0
  %2362 = vmatprep.subr.mxu0 0.0
  %2363 = vmatpush1.msra.mxu0 0.0
  %2364 = vmatprep.subr.mxu0 0.0
  %2365 = vmatpush1.msra.mxu0 0.0
  %2366 = vmatprep.subr.mxu0 0.0
  %2367 = vmatpush1.msra.mxu0 0.0
  %2368 = vmatprep.subr.mxu0 0.0
  %2369 = vmatpush1.msra.mxu0 0.0
  %2370 = vmatprep.subr.mxu0 0.0
  %2371 = vmatpush1.msra.mxu0 0.0
  %2372 = vmatprep.subr.mxu0 0.0
  %2373 = vmatpush1.msra.mxu0 0.0
  %2374 = vmatprep.subr.mxu0 0.0
  %2375 = vmatpush1.msra.mxu0 0.0
  %2376 = vmatprep.subr.mxu0 0.0
  %2377 = vmatpush1.msra.mxu0 0.0
  %2378 = vmatprep.subr.mxu0 0.0
  %2379 = vmatpush1.msra.mxu0 0.0
  %2380 = vmatprep.subr.mxu0 0.0
  %2381 = vmatpush1.msra.mxu0 0.0
  %2382 = vmatprep.subr.mxu0 0.0
  %2383 = vmatpush1.msra.mxu0 0.0
  %2384 = vmatprep.subr.mxu0 0.0
  %2385 = vmatpush1.msra.mxu0 0.0
  %2386 = vmatprep.subr.mxu0 0.0
  %2387 = vmatpush1.msra.mxu0 0.0
  %2388 = vmatprep.subr.mxu0 0.0
  %2389 = vmatpush1.msra.mxu0 0.0
  %2390 = vmatprep.subr.mxu0 0.0
  %2391 = vmatpush1.msra.mxu0 0.0
  %2392 = vmatprep.subr.mxu0 0.0
  %2393 = vmatpush1.msra.mxu0 0.0
  %2394 = vmatprep.mubr.f32.mxu0 0.0
  %2395 = vmatmul.mubr.f32.gmra.mrb[0].mxu0 %v2307
  %v2396 = vpop.f32.mrb[0].mxu0
  %v2397 = vadd.f32 %v2268, %v2396
  %v2398 = vpop.f32.mrb[0].mxu0
  %2399 = vmatprep.mubr.f32.mxu0 0.0
  %2400 = vmatmul.mubr.f32.gmra.mrb[0].mxu0 %v2310
  %v2401 = vpop.f32.mrb[0].mxu0
  %v2402 = vadd.f32 %v2273, %v2401
  %v2403 = vpop.f32.mrb[0].mxu0
  %2404 = vmatprep.mubr.f32.mxu0 0.0
  %2405 = vmatmul.mubr.f32.gmra.mrb[0].mxu0 %v2313
  %v2406 = vpop.f32.mrb[0].mxu0
  %v2407 = vadd.f32 %v2278, %v2406
  %v2408 = vpop.f32.mrb[0].mxu0
  %2409 = vmatprep.mubr.f32.mxu0 0.0
  %2410 = vmatmul.mubr.f32.gmra.mrb[0].mxu0 %v2316
  %v2411 = vpop.f32.mrb[0].mxu0
  %v2412 = vadd.f32 %v2283, %v2411
  %v2413 = vpop.f32.mrb[0].mxu0
  %2414 = vmatprep.mubr.f32.mxu0 0.0
  %2415 = vmatmul.mubr.f32.gmra.mrb[0].mxu0 %v2319
  %v2416 = vpop.f32.mrb[0].mxu0
  %v2417 = vadd.f32 %v2288, %v2416
  %v2418 = vpop.f32.mrb[0].mxu0
  %2419 = vmatprep.mubr.f32.mxu0 0.0
  %2420 = vmatmul.mubr.f32.gmra.mrb[0].mxu0 %v2322
  %v2421 = vpop.f32.mrb[0].mxu0
  %v2422 = vadd.f32 %v2293, %v2421
  %v2423 = vpop.f32.mrb[0].mxu0
  %2424 = vmatprep.mubr.f32.mxu0 0.0
  %2425 = vmatmul.mubr.f32.gmra.mrb[0].mxu0 %v2325
  %v2426 = vpop.f32.mrb[0].mxu0
  %v2427 = vadd.f32 %v2298, %v2426
  %v2428 = vpop.f32.mrb[0].mxu0
  %2429 = vmatprep.mubr.f32.mxu0 0.0
  %2430 = vmatmul.mubr.f32.gmra.mrb[0].mxu0 %v2328
  %v2431 = vpop.f32.mrb[0].mxu0
  %v2432 = vadd.f32 %v2303, %v2431
  %v2433 = vpop.f32.mrb[0].mxu0
  %2434 = vdwg.mxu0
  %v2435 = vld [vmem:[%s19] sm:$0xff]
  %v2436 = vld [vmem:[%s19 + $0x8] sm:$0xff]
  %v2437 = vld [vmem:[%s19 + $0x10] sm:$0xff]
  %v2438 = vld [vmem:[%s19 + $0x18] sm:$0xff]
  %v2439 = vld [vmem:[%s19 + $0x20] sm:$0xff]
  %v2440 = vld [vmem:[%s19 + $0x28] sm:$0xff]
  %v2441 = vld [vmem:[%s19 + $0x30] sm:$0xff]
  %v2442 = vld [vmem:[%s19 + $0x38] sm:$0xff]
  %2444 = vset.pattern.permute.xlu0 0
  %2445 = vperm.xlu0 %2444, %v2435
  %v2446 = vpop.permute.xlu0 %2445
  %2449 = vset.pattern.permute.xlu0 0
  %2450 = vperm.xlu0 %2449, %v2436
  %v2451 = vpop.permute.xlu0 %2450
  %2454 = vset.pattern.permute.xlu0 0
  %2455 = vperm.xlu0 %2454, %v2437
  %v2456 = vpop.permute.xlu0 %2455
  %2459 = vset.pattern.permute.xlu0 0
  %2460 = vperm.xlu0 %2459, %v2438
  %v2461 = vpop.permute.xlu0 %2460
  %2464 = vset.pattern.permute.xlu0 0
  %2465 = vperm.xlu0 %2464, %v2439
  %v2466 = vpop.permute.xlu0 %2465
  %2469 = vset.pattern.permute.xlu0 0
  %2470 = vperm.xlu0 %2469, %v2440
  %v2471 = vpop.permute.xlu0 %2470
  %2474 = vset.pattern.permute.xlu0 0
  %2475 = vperm.xlu0 %2474, %v2441
  %v2476 = vpop.permute.xlu0 %2475
  %2479 = vset.pattern.permute.xlu0 0
  %2480 = vperm.xlu0 %2479, %v2442
  %v2481 = vpop.permute.xlu0 %2480
  %v2483 = vadd.f32 %v2397, %v2446
  %v2484 = vadd.f32 %v2402, %v2451
  %v2485 = vadd.f32 %v2407, %v2456
  %v2486 = vadd.f32 %v2412, %v2461
  %v2487 = vadd.f32 %v2417, %v2466
  %v2488 = vadd.f32 %v2422, %v2471
  %v2489 = vadd.f32 %v2427, %v2476
  %v2490 = vadd.f32 %v2432, %v2481
  %v2491 = vmax.f32 %v2483, 0.0
  %v2492 = vmax.f32 %v2484, 0.0
  %v2493 = vmax.f32 %v2485, 0.0
  %v2494 = vmax.f32 %v2486, 0.0
  %v2495 = vmax.f32 %v2487, 0.0
  %v2496 = vmax.f32 %v2488, 0.0
  %v2497 = vmax.f32 %v2489, 0.0
  %v2498 = vmax.f32 %v2490, 0.0
  %v2499 = vld [vmem:[%s20] sm:$0xff]
  %v2500 = vld [vmem:[%s20 + $0x8] sm:$0xff]
  %v2501 = vld [vmem:[%s20 + $0x10] sm:$0xff]
  %v2502 = vld [vmem:[%s20 + $0x18] sm:$0xff]
  %v2503 = vld [vmem:[%s20 + $0x20] sm:$0xff]
  %v2504 = vld [vmem:[%s20 + $0x28] sm:$0xff]
  %v2505 = vld [vmem:[%s20 + $0x30] sm:$0xff]
  %v2506 = vld [vmem:[%s20 + $0x38] sm:$0xff]
  %v2507 = vld [vmem:[%s21] sm:$0xff]
  %v2508 = vld [vmem:[%s21 + $0x8] sm:$0xff]
  %v2509 = vld [vmem:[%s21 + $0x10] sm:$0xff]
  %v2510 = vld [vmem:[%s21 + $0x18] sm:$0xff]
  %v2511 = vld [vmem:[%s21 + $0x20] sm:$0xff]
  %v2512 = vld [vmem:[%s21 + $0x28] sm:$0xff]
  %v2513 = vld [vmem:[%s21 + $0x30] sm:$0xff]
  %v2514 = vld [vmem:[%s21 + $0x38] sm:$0xff]
  %2516 = vset.pattern.permute.xlu0 0
  %2517 = vperm.xlu0 %2516, %v2507
  %v2518 = vpop.permute.xlu0 %2517
  %2521 = vset.pattern.permute.xlu0 0
  %2522 = vperm.xlu0 %2521, %v2508
  %v2523 = vpop.permute.xlu0 %2522
  %2526 = vset.pattern.permute.xlu0 0
  %2527 = vperm.xlu0 %2526, %v2509
  %v2528 = vpop.permute.xlu0 %2527
  %2531 = vset.pattern.permute.xlu0 0
  %2532 = vperm.xlu0 %2531, %v2510
  %v2533 = vpop.permute.xlu0 %2532
  %2536 = vset.pattern.permute.xlu0 0
  %2537 = vperm.xlu0 %2536, %v2511
  %v2538 = vpop.permute.xlu0 %2537
  %2541 = vset.pattern.permute.xlu0 0
  %2542 = vperm.xlu0 %2541, %v2512
  %v2543 = vpop.permute.xlu0 %2542
  %2546 = vset.pattern.permute.xlu0 0
  %2547 = vperm.xlu0 %2546, %v2513
  %v2548 = vpop.permute.xlu0 %2547
  %2551 = vset.pattern.permute.xlu0 0
  %2552 = vperm.xlu0 %2551, %v2514
  %v2553 = vpop.permute.xlu0 %2552
  %vm2555 = vcmask 523264
  %v2557 = vsel %vm2555, %v2499, 0
  %v2560 = vsel %vm2555, %v2500, 0
  %v2563 = vsel %vm2555, %v2501, 0
  %v2566 = vsel %vm2555, %v2502, 0
  %v2569 = vsel %vm2555, %v2503, 0
  %v2572 = vsel %vm2555, %v2504, 0
  %v2575 = vsel %vm2555, %v2505, 0
  %v2578 = vsel %vm2555, %v2506, 0
  %2580 = vmatprep.subr.mxu0 0.0
  %2581 = vmatpush1.msra.mxu0 %v2491
  %2582 = vmatprep.subr.mxu0 0.0
  %2583 = vmatpush1.msra.mxu0 %v2492
  %2584 = vmatprep.subr.mxu0 0.0
  %2585 = vmatpush1.msra.mxu0 %v2493
  %2586 = vmatprep.subr.mxu0 0.0
  %2587 = vmatpush1.msra.mxu0 %v2494
  %2588 = vmatprep.subr.mxu0 0.0
  %2589 = vmatpush1.msra.mxu0 %v2495
  %2590 = vmatprep.subr.mxu0 0.0
  %2591 = vmatpush1.msra.mxu0 %v2496
  %2592 = vmatprep.subr.mxu0 0.0
  %2593 = vmatpush1.msra.mxu0 %v2497
  %2594 = vmatprep.subr.mxu0 0.0
  %2595 = vmatpush1.msra.mxu0 %v2498
  %2596 = vmatprep.subr.mxu0 0.0
  %2597 = vmatpush1.msra.mxu0 0.0
  %2598 = vmatprep.subr.mxu0 0.0
  %2599 = vmatpush1.msra.mxu0 0.0
  %2600 = vmatprep.subr.mxu0 0.0
  %2601 = vmatpush1.msra.mxu0 0.0
  %2602 = vmatprep.subr.mxu0 0.0
  %2603 = vmatpush1.msra.mxu0 0.0
  %2604 = vmatprep.subr.mxu0 0.0
  %2605 = vmatpush1.msra.mxu0 0.0
  %2606 = vmatprep.subr.mxu0 0.0
  %2607 = vmatpush1.msra.mxu0 0.0
  %2608 = vmatprep.subr.mxu0 0.0
  %2609 = vmatpush1.msra.mxu0 0.0
  %2610 = vmatprep.subr.mxu0 0.0
  %2611 = vmatpush1.msra.mxu0 0.0
  %2612 = vmatprep.subr.mxu0 0.0
  %2613 = vmatpush1.msra.mxu0 0.0
  %2614 = vmatprep.subr.mxu0 0.0
  %2615 = vmatpush1.msra.mxu0 0.0
  %2616 = vmatprep.subr.mxu0 0.0
  %2617 = vmatpush1.msra.mxu0 0.0
  %2618 = vmatprep.subr.mxu0 0.0
  %2619 = vmatpush1.msra.mxu0 0.0
  %2620 = vmatprep.subr.mxu0 0.0
  %2621 = vmatpush1.msra.mxu0 0.0
  %2622 = vmatprep.subr.mxu0 0.0
  %2623 = vmatpush1.msra.mxu0 0.0
  %2624 = vmatprep.subr.mxu0 0.0
  %2625 = vmatpush1.msra.mxu0 0.0
  %2626 = vmatprep.subr.mxu0 0.0
  %2627 = vmatpush1.msra.mxu0 0.0
  %2628 = vmatprep.subr.mxu0 0.0
  %2629 = vmatpush1.msra.mxu0 0.0
  %2630 = vmatprep.subr.mxu0 0.0
  %2631 = vmatpush1.msra.mxu0 0.0
  %2632 = vmatprep.subr.mxu0 0.0
  %2633 = vmatpush1.msra.mxu0 0.0
  %2634 = vmatprep.subr.mxu0 0.0
  %2635 = vmatpush1.msra.mxu0 0.0
  %2636 = vmatprep.subr.mxu0 0.0
  %2637 = vmatpush1.msra.mxu0 0.0
  %2638 = vmatprep.subr.mxu0 0.0
  %2639 = vmatpush1.msra.mxu0 0.0
  %2640 = vmatprep.subr.mxu0 0.0
  %2641 = vmatpush1.msra.mxu0 0.0
  %2642 = vmatprep.subr.mxu0 0.0
  %2643 = vmatpush1.msra.mxu0 0.0
  %2644 = vmatprep.mubr.f32.mxu0 0.0
  %2645 = vmatmul.mubr.f32.gmra.mrb[0].mxu0 %v2557
  %v2646 = vpop.f32.mrb[0].mxu0
  %v2647 = vadd.f32 %v2518, %v2646
  %v2648 = vpop.f32.mrb[0].mxu0
  %2649 = vmatprep.mubr.f32.mxu0 0.0
  %2650 = vmatmul.mubr.f32.gmra.mrb[0].mxu0 %v2560
  %v2651 = vpop.f32.mrb[0].mxu0
  %v2652 = vadd.f32 %v2523, %v2651
  %v2653 = vpop.f32.mrb[0].mxu0
  %2654 = vmatprep.mubr.f32.mxu0 0.0
  %2655 = vmatmul.mubr.f32.gmra.mrb[0].mxu0 %v2563
  %v2656 = vpop.f32.mrb[0].mxu0
  %v2657 = vadd.f32 %v2528, %v2656
  %v2658 = vpop.f32.mrb[0].mxu0
  %2659 = vmatprep.mubr.f32.mxu0 0.0
  %2660 = vmatmul.mubr.f32.gmra.mrb[0].mxu0 %v2566
  %v2661 = vpop.f32.mrb[0].mxu0
  %v2662 = vadd.f32 %v2533, %v2661
  %v2663 = vpop.f32.mrb[0].mxu0
  %2664 = vmatprep.mubr.f32.mxu0 0.0
  %2665 = vmatmul.mubr.f32.gmra.mrb[0].mxu0 %v2569
  %v2666 = vpop.f32.mrb[0].mxu0
  %v2667 = vadd.f32 %v2538, %v2666
  %v2668 = vpop.f32.mrb[0].mxu0
  %2669 = vmatprep.mubr.f32.mxu0 0.0
  %2670 = vmatmul.mubr.f32.gmra.mrb[0].mxu0 %v2572
  %v2671 = vpop.f32.mrb[0].mxu0
  %v2672 = vadd.f32 %v2543, %v2671
  %v2673 = vpop.f32.mrb[0].mxu0
  %2674 = vmatprep.mubr.f32.mxu0 0.0
  %2675 = vmatmul.mubr.f32.gmra.mrb[0].mxu0 %v2575
  %v2676 = vpop.f32.mrb[0].mxu0
  %v2677 = vadd.f32 %v2548, %v2676
  %v2678 = vpop.f32.mrb[0].mxu0
  %2679 = vmatprep.mubr.f32.mxu0 0.0
  %2680 = vmatmul.mubr.f32.gmra.mrb[0].mxu0 %v2578
  %v2681 = vpop.f32.mrb[0].mxu0
  %v2682 = vadd.f32 %v2553, %v2681
  %v2683 = vpop.f32.mrb[0].mxu0
  %2684 = vdwg.mxu0
  %v2685 = vmax.f32 %v2647, 0.0
  %v2686 = vmax.f32 %v2652, 0.0
  %v2687 = vmax.f32 %v2657, 0.0
  %v2688 = vmax.f32 %v2662, 0.0
  %v2689 = vmax.f32 %v2667, 0.0
  %v2690 = vmax.f32 %v2672, 0.0
  %v2691 = vmax.f32 %v2677, 0.0
  %v2692 = vmax.f32 %v2682, 0.0
  %v2693 = vld [vmem:[%s22] sm:$0xff]
  %v2694 = vld [vmem:[%s22 + $0x8] sm:$0x3]
  %v2695 = vld [vmem:[%s23] sm:$0xff]
  %v2696 = vld [vmem:[%s23 + $0x8] sm:$0x3]
  %2698 = vset.pattern.permute.xlu0 0
  %2699 = vperm.xlu0 %2698, %v2695
  %v2700 = vpop.permute.xlu0 %2699
  %2703 = vset.pattern.permute.xlu0 0
  %2704 = vperm.xlu0 %2703, %v2696
  %v2705 = vpop.permute.xlu0 %2704
  %v2708 = vsel %vm2555, %v2693, 0
  %v2711 = vsel %vm2555, %v2694, 0
  %2713 = vmatprep.subr.mxu0 0.0
  %2714 = vmatpush1.msra.mxu0 %v2685
  %2715 = vmatprep.subr.mxu0 0.0
  %2716 = vmatpush1.msra.mxu0 %v2686
  %2717 = vmatprep.subr.mxu0 0.0
  %2718 = vmatpush1.msra.mxu0 %v2687
  %2719 = vmatprep.subr.mxu0 0.0
  %2720 = vmatpush1.msra.mxu0 %v2688
  %2721 = vmatprep.subr.mxu0 0.0
  %2722 = vmatpush1.msra.mxu0 %v2689
  %2723 = vmatprep.subr.mxu0 0.0
  %2724 = vmatpush1.msra.mxu0 %v2690
  %2725 = vmatprep.subr.mxu0 0.0
  %2726 = vmatpush1.msra.mxu0 %v2691
  %2727 = vmatprep.subr.mxu0 0.0
  %2728 = vmatpush1.msra.mxu0 %v2692
  %2729 = vmatprep.subr.mxu0 0.0
  %2730 = vmatpush1.msra.mxu0 0.0
  %2731 = vmatprep.subr.mxu0 0.0
  %2732 = vmatpush1.msra.mxu0 0.0
  %2733 = vmatprep.subr.mxu0 0.0
  %2734 = vmatpush1.msra.mxu0 0.0
  %2735 = vmatprep.subr.mxu0 0.0
  %2736 = vmatpush1.msra.mxu0 0.0
  %2737 = vmatprep.subr.mxu0 0.0
  %2738 = vmatpush1.msra.mxu0 0.0
  %2739 = vmatprep.subr.mxu0 0.0
  %2740 = vmatpush1.msra.mxu0 0.0
  %2741 = vmatprep.subr.mxu0 0.0
  %2742 = vmatpush1.msra.mxu0 0.0
  %2743 = vmatprep.subr.mxu0 0.0
  %2744 = vmatpush1.msra.mxu0 0.0
  %2745 = vmatprep.subr.mxu0 0.0
  %2746 = vmatpush1.msra.mxu0 0.0
  %2747 = vmatprep.subr.mxu0 0.0
  %2748 = vmatpush1.msra.mxu0 0.0
  %2749 = vmatprep.subr.mxu0 0.0
  %2750 = vmatpush1.msra.mxu0 0.0
  %2751 = vmatprep.subr.mxu0 0.0
  %2752 = vmatpush1.msra.mxu0 0.0
  %2753 = vmatprep.subr.mxu0 0.0
  %2754 = vmatpush1.msra.mxu0 0.0
  %2755 = vmatprep.subr.mxu0 0.0
  %2756 = vmatpush1.msra.mxu0 0.0
  %2757 = vmatprep.subr.mxu0 0.0
  %2758 = vmatpush1.msra.mxu0 0.0
  %2759 = vmatprep.subr.mxu0 0.0
  %2760 = vmatpush1.msra.mxu0 0.0
  %2761 = vmatprep.subr.mxu0 0.0
  %2762 = vmatpush1.msra.mxu0 0.0
  %2763 = vmatprep.subr.mxu0 0.0
  %2764 = vmatpush1.msra.mxu0 0.0
  %2765 = vmatprep.subr.mxu0 0.0
  %2766 = vmatpush1.msra.mxu0 0.0
  %2767 = vmatprep.subr.mxu0 0.0
  %2768 = vmatpush1.msra.mxu0 0.0
  %2769 = vmatprep.subr.mxu0 0.0
  %2770 = vmatpush1.msra.mxu0 0.0
  %2771 = vmatprep.subr.mxu0 0.0
  %2772 = vmatpush1.msra.mxu0 0.0
  %2773 = vmatprep.subr.mxu0 0.0
  %2774 = vmatpush1.msra.mxu0 0.0
  %2775 = vmatprep.subr.mxu0 0.0
  %2776 = vmatpush1.msra.mxu0 0.0
  %2777 = vmatprep.mubr.f32.mxu0 0.0
  %2778 = vmatmul.mubr.f32.gmra.mrb[0].mxu0 %v2708
  %v2779 = vpop.f32.mrb[0].mxu0
  %v2780 = vadd.f32 %v2700, %v2779
  %v2781 = vpop.f32.mrb[0].mxu0
  %2782 = vmatprep.mubr.f32.mxu0 0.0
  %2783 = vmatmul.mubr.f32.gmra.mrb[0].mxu0 %v2711
  %v2784 = vpop.f32.mrb[0].mxu0
  %v2785 = vadd.f32 %v2705, %v2784
  %v2786 = vpop.f32.mrb[0].mxu0
  %2787 = vdwg.mxu0
  %vm2788 = vcmask 15360
  %2789 = vst.msk [vmem:[%s24] sm:$0xff] %vm2788, %v2780
  %vm2790 = vcmask 9216
  %2791 = vst.msk [vmem:[%s24 + $0x8] sm:$0x3] %vm2790, %v2785
  // Predicated region
  $region98: #{rescnn_forward.7} parent=0 // pred_check
    _
  $region99: #{rescnn_forward.7} parent=0 // pred_check_branch
    %2793 = sbr.rel (0) target = $region101
  $region100: #{rescnn_forward.7} parent=0 // pred_region
    _
  $region101: #{rescnn_forward.7} parent=0 // pred_fallthru
    _
  // Predicated region
  $region102: #{rescnn_forward.7} parent=0 // pred_check
    _
  $region103: #{rescnn_forward.7} parent=0 // pred_check_branch
    %2795 = sbr.rel (0) target = $region105
  $region104: #{rescnn_forward.7} parent=0 // pred_region
    _
  $region105: #{rescnn_forward.7} parent=0 // pred_fallthru
    _

</llo_original>
